<compile_context>
chip_gen: v7x
topology: tpu7x:2x2x1
jax: 0.10.0
libtpu: 0.0.40
codegen_flags: <defaults>
</compile_context>

<pallas_src>
import jax
import jax.numpy as jnp
from jax.experimental import pallas as pl
from jax.experimental.pallas import tpu as pltpu


def _round_up(x, m):
    return (x + m - 1) // m * m


def _cdiv(a, b):
    return -(-a // b)


# --------------------------------------------------------------------------
# Pallas kernels
# --------------------------------------------------------------------------

def _conv_bn_relu_pool_kernel(x0_ref, x1_ref, x2_ref, x3_ref,
                              w_ref, scale_ref, shift_ref, o_ref):
    """Fused conv-as-matmul (4 pool taps) + BN affine + ReLU + 2x2 max-pool.

    x{0..3}: (tm, r*K) bf16 im2col patches for the 4 taps of each 2x2 pool window.
    w:       (r*K, 128) bf16 block-diagonal weight (kron(I_r, W)).
    scale/shift: (1, 128) f32 folded BatchNorm affine (tiled r times).
    o:       (tm, 128) bf16 pooled activations (lane-dense).
    """
    w = w_ref[...]
    scale = scale_ref[...]
    shift = shift_ref[...]

    def tap(x_ref):
        z = jnp.dot(x_ref[...], w, preferred_element_type=jnp.float32)
        return z * scale + shift

    y = jnp.maximum(jnp.maximum(tap(x0_ref), tap(x1_ref)),
                    jnp.maximum(tap(x2_ref), tap(x3_ref)))
    o_ref[...] = jnp.maximum(y, 0.0).astype(o_ref.dtype)


def _mlp_head_kernel(x_ref, w1_ref, b1_ref, w2_ref, b2_ref, o_ref):
    """Fused Linear(576,10) -> Dropout(identity, eval) -> Linear(10,2) -> ReLU."""
    h = jnp.dot(x_ref[...], w1_ref[...], preferred_element_type=jnp.float32) + b1_ref[...]
    # TODO(synk): nn.Dropout(0.5) is identity in eval mode; train-mode dropout not implemented.
    y = jnp.dot(h, w2_ref[...], preferred_element_type=jnp.float32) + b2_ref[...]
    o_ref[...] = jnp.maximum(y, 0.0).astype(o_ref.dtype)


# --------------------------------------------------------------------------
# Wrappers
# --------------------------------------------------------------------------

def _pool_tap_patches(x_nhwc, dr, dc):
    """im2col patches (k=3, s=2, VALID) for pool tap (dr, dc) of every 2x2 window.

    Returns (N*POH*POW, 9*Cin) with feature order (kh, kw, cin).  Plain-JAX glue.
    """
    Nb, H, W, C = x_nhwc.shape
    OH = (H - 3) // 2 + 1
    OW = (W - 3) // 2 + 1
    POH, POW = OH // 2, OW // 2
    cols = []
    for kh in range(3):
        for kw in range(3):
            r0 = 2 * dr + kh
            c0 = 2 * dc + kw
            cols.append(x_nhwc[:, r0:r0 + 4 * (POH - 1) + 1:4,
                               c0:c0 + 4 * (POW - 1) + 1:4, :])
    patches = jnp.stack(cols, axis=3)                # (N, POH, POW, 9, C)
    return patches.reshape(Nb * POH * POW, 9 * C), POH, POW


def fused_conv_block(x_nhwc, w, b, gamma, beta, mean, var, eps=1e-5):
    """Conv2d(k=3,s=2,p=0) + BatchNorm2d(eval) + ReLU + MaxPool2d(2), one Pallas kernel."""
    Nb, H, W, Cin = x_nhwc.shape
    Cout = w.shape[0]
    r = max(1, 128 // Cout)                          # pooled pixels packed per output row

    taps = []
    for dr in (0, 1):
        for dc in (0, 1):
            p, POH, POW = _pool_tap_patches(x_nhwc, dr, dc)
            taps.append(p)
    M, K = taps[0].shape                             # M = Nb*POH*POW, K = 9*Cin

    # Fold BatchNorm (eval) into per-channel scale/shift, tiled r times (lane-dense).
    s = gamma / jnp.sqrt(var + eps)
    scale = jnp.tile(s, r).reshape(1, r * Cout).astype(jnp.float32)
    shift = jnp.tile((b - mean) * s + beta, r).reshape(1, r * Cout).astype(jnp.float32)

    # PyTorch weight (Cout, Cin, KH, KW) -> (KH, KW, Cin, Cout) -> (K, Cout),
    # then block-diagonal kron(I_r, W) so N = r*Cout = 128.
    wmat = jnp.transpose(w, (2, 3, 1, 0)).reshape(K, Cout)
    wbd = jnp.kron(jnp.eye(r, dtype=wmat.dtype), wmat).astype(jnp.bfloat16)

    # Pack r consecutive patch rows into one lane-dense row: (M, K) -> (M2, r*K).
    Mpad = _round_up(M, r)
    def pack(p):
        if Mpad != M:
            p = jnp.pad(p, ((0, Mpad - M), (0, 0)))
        return p.reshape(Mpad // r, r * K).astype(jnp.bfloat16)
    taps = [pack(p) for p in taps]
    M2 = Mpad // r
    Kr = r * K
    Nlanes = r * Cout

    # Large M tiles, but keep >=2 grid blocks so both v7x TensorCores get work;
    # cap tm so double-buffered blocks stay far below the v7x 64 MiB VMEM budget.
    tm = min(1024, _round_up(_cdiv(M2, 2), 8))
    M2p = _round_up(M2, tm)
    if M2p != M2:
        taps = [jnp.pad(p, ((0, M2p - M2), (0, 0))) for p in taps]

    out = pl.pallas_call(
        _conv_bn_relu_pool_kernel,
        out_shape=jax.ShapeDtypeStruct((M2p, Nlanes), jnp.bfloat16),
        grid=(M2p // tm,),
        in_specs=[pl.BlockSpec((tm, Kr), lambda i: (i, 0))] * 4 + [
            pl.BlockSpec((Kr, Nlanes), lambda i: (0, 0)),
            pl.BlockSpec((1, Nlanes), lambda i: (0, 0)),
            pl.BlockSpec((1, Nlanes), lambda i: (0, 0)),
        ],
        out_specs=pl.BlockSpec((tm, Nlanes), lambda i: (i, 0)),
        compiler_params=pltpu.CompilerParams(
            dimension_semantics=("parallel",),
            vmem_limit_bytes=32 * 1024 * 1024),
    )(*taps, wbd, scale, shift)

    out = out[:M2].reshape(Mpad, Cout)[:M]
    return out.reshape(Nb, POH, POW, Cout)


def mlp_head(x, w1, b1, w2, b2):
    """Fused Linear(576,10) + Dropout(eval) + Linear(10,2) + ReLU in one kernel."""
    Nb, F = x.shape
    H1 = w1.shape[0]                                 # 10
    H2 = w2.shape[0]                                 # 2
    Np = _round_up(Nb, 8)
    HP = 128                                         # pad hidden/out to full lane width

    xp = jnp.pad(x.astype(jnp.float32), ((0, Np - Nb), (0, 0)))
    w1p = jnp.zeros((F, HP), jnp.float32).at[:, :H1].set(w1.T.astype(jnp.float32))
    b1p = jnp.zeros((1, HP), jnp.float32).at[0, :H1].set(b1.astype(jnp.float32))
    w2p = jnp.zeros((HP, HP), jnp.float32).at[:H1, :H2].set(w2.T.astype(jnp.float32))
    b2p = jnp.zeros((1, HP), jnp.float32).at[0, :H2].set(b2.astype(jnp.float32))

    out = pl.pallas_call(
        _mlp_head_kernel,
        out_shape=jax.ShapeDtypeStruct((Np, HP), jnp.float32),
        grid=(1,),
        in_specs=[pl.BlockSpec((Np, F), lambda i: (0, 0)),
                  pl.BlockSpec((F, HP), lambda i: (0, 0)),
                  pl.BlockSpec((1, HP), lambda i: (0, 0)),
                  pl.BlockSpec((HP, HP), lambda i: (0, 0)),
                  pl.BlockSpec((1, HP), lambda i: (0, 0))],
        out_specs=pl.BlockSpec((Np, HP), lambda i: (0, 0)),
        compiler_params=pltpu.CompilerParams(
            dimension_semantics=("arbitrary",),
            vmem_limit_bytes=32 * 1024 * 1024),
    )(xp, w1p, b1p, w2p, b2p)
    return out[:Nb, :H2]


def doggotrainer_forward(x_nchw, params):
    # Layout: convert PyTorch NCHW -> NHWC once at the boundary; bf16 activations.
    x = jnp.transpose(x_nchw, (0, 2, 3, 1)).astype(jnp.bfloat16)
    x = fused_conv_block(x, *params["cnn1"])
    x = fused_conv_block(x, *params["cnn2"])
    x = fused_conv_block(x, *params["cnn3"])
    # PyTorch flattens NCHW, i.e. feature order (c, h, w) -> transpose back first.
    Nb = x.shape[0]
    x = jnp.transpose(x, (0, 3, 1, 2)).reshape(Nb, -1)   # (N, 64*3*3) = (N, 576)
    w1, b1, w2, b2 = params["fc"]
    return mlp_head(x, w1, b1, w2, b2)


# --------------------------------------------------------------------------
# Deterministic parameter init (shapes from the PyTorch __init__)
# --------------------------------------------------------------------------

def init_params(key):
    def conv_block(k, cin, cout):
        k1, k2, k3, k4, k5, k6 = jax.random.split(k, 6)
        w = 0.05 * jax.random.normal(k1, (cout, cin, 3, 3), jnp.float32)
        b = 0.05 * jax.random.normal(k2, (cout,), jnp.float32)
        gamma = 1.0 + 0.1 * jax.random.normal(k3, (cout,), jnp.float32)
        beta = 0.1 * jax.random.normal(k4, (cout,), jnp.float32)
        mean = 0.1 * jax.random.normal(k5, (cout,), jnp.float32)
        var = 0.9 + 0.1 * jnp.abs(jax.random.normal(k6, (cout,), jnp.float32))
        return (w, b, gamma, beta, mean, var)

    kc1, kc2, kc3, kf1, kf2, kf3, kf4 = jax.random.split(key, 7)
    params = {
        "cnn1": conv_block(kc1, 3, 16),
        "cnn2": conv_block(kc2, 16, 32),
        "cnn3": conv_block(kc3, 32, 64),
        "fc": (
            0.05 * jax.random.normal(kf1, (10, 576), jnp.float32),   # Linear(576, 10)
            0.05 * jax.random.normal(kf2, (10,), jnp.float32),
            0.05 * jax.random.normal(kf3, (2, 10), jnp.float32),     # Linear(10, 2)
            0.05 * jax.random.normal(kf4, (2,), jnp.float32),
        ),
    }
    return params


if __name__ == "__main__":
    key = jax.random.PRNGKey(0)
    kp, kx = jax.random.split(key)
    params = init_params(kp)

    # Smallest canonical input producing the 3*3*64 feature map the FC head requires.
    x = jax.random.normal(kx, (2, 3, 224, 224), jnp.float32)

    fwd = jax.jit(lambda inp: doggotrainer_forward(inp, params))
    out = fwd(x)
    out = jax.block_until_ready(out)

    assert out.shape == (2, 2), out.shape
    assert bool(jnp.all(jnp.isfinite(out)))
    assert bool(jnp.all(out >= 0.0))  # final ReLU
    print("KERNEL_OK")
</pallas_src>

<mosaic_0001>
module attributes {stable_mosaic.version = 11 : i64} {
  func.func @_conv_bn_relu_pool_kernel(%arg0: i32, %arg1: memref<384x216xbf16, #tpu.memory_space<vmem>>, %arg2: memref<384x216xbf16, #tpu.memory_space<vmem>>, %arg3: memref<384x216xbf16, #tpu.memory_space<vmem>>, %arg4: memref<384x216xbf16, #tpu.memory_space<vmem>>, %arg5: memref<216x128xbf16, #tpu.memory_space<vmem>>, %arg6: memref<1x128xf32, #tpu.memory_space<vmem>>, %arg7: memref<1x128xf32, #tpu.memory_space<vmem>>, %arg8: memref<384x128xbf16, #tpu.memory_space<vmem>>) attributes {dimension_semantics = [#tpu.dimension_semantics<parallel>], iteration_bounds = array<i64: 2>, scalar_prefetch = 0 : i64, scratch_operands = 0 : i64, tpu.core_type = #tpu.core_type<tc>, window_params = [{transform_indices = @transform_0, window_bounds = array<i64: 384, 216>}, {transform_indices = @transform_1, window_bounds = array<i64: 384, 216>}, {transform_indices = @transform_2, window_bounds = array<i64: 384, 216>}, {transform_indices = @transform_3, window_bounds = array<i64: 384, 216>}, {pipeline_mode = #tpu.pipeline_mode<synchronous>, transform_indices = @transform_4, window_bounds = array<i64: 216, 128>}, {pipeline_mode = #tpu.pipeline_mode<synchronous>, transform_indices = @transform_5, window_bounds = array<i64: 1, 128>}, {pipeline_mode = #tpu.pipeline_mode<synchronous>, transform_indices = @transform_6, window_bounds = array<i64: 1, 128>}, {transform_indices = @transform_7, window_bounds = array<i64: 384, 128>}]} {
    %c0 = arith.constant 0 : index
    %c0_0 = arith.constant 0 : index
    %0 = vector.load %arg5[%c0, %c0_0] : memref<216x128xbf16, #tpu.memory_space<vmem>>, vector<216x128xbf16>
    %c0_1 = arith.constant 0 : index
    %c0_2 = arith.constant 0 : index
    %1 = vector.load %arg6[%c0_1, %c0_2] : memref<1x128xf32, #tpu.memory_space<vmem>>, vector<1x128xf32>
    %c0_3 = arith.constant 0 : index
    %c0_4 = arith.constant 0 : index
    %2 = vector.load %arg7[%c0_3, %c0_4] : memref<1x128xf32, #tpu.memory_space<vmem>>, vector<1x128xf32>
    %c0_5 = arith.constant 0 : index
    %c0_6 = arith.constant 0 : index
    %3 = vector.load %arg1[%c0_5, %c0_6] : memref<384x216xbf16, #tpu.memory_space<vmem>>, vector<384x216xbf16>
    %cst = arith.constant dense<0.000000e+00> : vector<384x128xf32>
    %4 = tpu.matmul %3, %0, %cst {dimension_numbers = #tpu.dot_dimension_numbers<[1], [0], [0], [1], [0, 0, 1, 1], [], []>} : vector<384x216xbf16>, vector<216x128xbf16>, vector<384x128xf32> -> vector<384x128xf32>
    %5 = vector.broadcast %1 : vector<1x128xf32> to vector<384x128xf32>
    %6 = arith.mulf %4, %5 : vector<384x128xf32>
    %7 = vector.broadcast %2 : vector<1x128xf32> to vector<384x128xf32>
    %8 = arith.addf %6, %7 : vector<384x128xf32>
    %c0_7 = arith.constant 0 : index
    %c0_8 = arith.constant 0 : index
    %9 = vector.load %arg2[%c0_7, %c0_8] : memref<384x216xbf16, #tpu.memory_space<vmem>>, vector<384x216xbf16>
    %cst_9 = arith.constant dense<0.000000e+00> : vector<384x128xf32>
    %10 = tpu.matmul %9, %0, %cst_9 {dimension_numbers = #tpu.dot_dimension_numbers<[1], [0], [0], [1], [0, 0, 1, 1], [], []>} : vector<384x216xbf16>, vector<216x128xbf16>, vector<384x128xf32> -> vector<384x128xf32>
    %11 = vector.broadcast %1 : vector<1x128xf32> to vector<384x128xf32>
    %12 = arith.mulf %10, %11 : vector<384x128xf32>
    %13 = vector.broadcast %2 : vector<1x128xf32> to vector<384x128xf32>
    %14 = arith.addf %12, %13 : vector<384x128xf32>
    %15 = arith.maximumf %8, %14 : vector<384x128xf32>
    %c0_10 = arith.constant 0 : index
    %c0_11 = arith.constant 0 : index
    %16 = vector.load %arg3[%c0_10, %c0_11] : memref<384x216xbf16, #tpu.memory_space<vmem>>, vector<384x216xbf16>
    %cst_12 = arith.constant dense<0.000000e+00> : vector<384x128xf32>
    %17 = tpu.matmul %16, %0, %cst_12 {dimension_numbers = #tpu.dot_dimension_numbers<[1], [0], [0], [1], [0, 0, 1, 1], [], []>} : vector<384x216xbf16>, vector<216x128xbf16>, vector<384x128xf32> -> vector<384x128xf32>
    %18 = vector.broadcast %1 : vector<1x128xf32> to vector<384x128xf32>
    %19 = arith.mulf %17, %18 : vector<384x128xf32>
    %20 = vector.broadcast %2 : vector<1x128xf32> to vector<384x128xf32>
    %21 = arith.addf %19, %20 : vector<384x128xf32>
    %c0_13 = arith.constant 0 : index
    %c0_14 = arith.constant 0 : index
    %22 = vector.load %arg4[%c0_13, %c0_14] : memref<384x216xbf16, #tpu.memory_space<vmem>>, vector<384x216xbf16>
    %cst_15 = arith.constant dense<0.000000e+00> : vector<384x128xf32>
    %23 = tpu.matmul %22, %0, %cst_15 {dimension_numbers = #tpu.dot_dimension_numbers<[1], [0], [0], [1], [0, 0, 1, 1], [], []>} : vector<384x216xbf16>, vector<216x128xbf16>, vector<384x128xf32> -> vector<384x128xf32>
    %24 = vector.broadcast %1 : vector<1x128xf32> to vector<384x128xf32>
    %25 = arith.mulf %23, %24 : vector<384x128xf32>
    %26 = vector.broadcast %2 : vector<1x128xf32> to vector<384x128xf32>
    %27 = arith.addf %25, %26 : vector<384x128xf32>
    %28 = arith.maximumf %21, %27 : vector<384x128xf32>
    %29 = arith.maximumf %15, %28 : vector<384x128xf32>
    %cst_16 = arith.constant 0.000000e+00 : f32
    %30 = vector.broadcast %cst_16 : f32 to vector<384x128xf32>
    %31 = arith.maximumf %29, %30 : vector<384x128xf32>
    %32 = arith.truncf %31 : vector<384x128xf32> to vector<384x128xbf16>
    %c0_17 = arith.constant 0 : index
    %c0_18 = arith.constant 0 : index
    %33 = vector.load %arg8[%c0_17, %c0_18] : memref<384x128xbf16, #tpu.memory_space<vmem>>, vector<384x128xbf16>
    tpu.vector_store %arg8[%c0_17, %c0_18], %32 {strides = array<i32>} : memref<384x128xbf16, #tpu.memory_space<vmem>>, vector<384x128xbf16>,
    return
  }
  func.func @transform_0(%arg0: i32) -> (i32, i32) {
    %c0_i32 = arith.constant 0 : i32
    %c0_i32_0 = arith.constant 0 : i32
    return %arg0, %c0_i32 : i32, i32
  }
  func.func @transform_1(%arg0: i32) -> (i32, i32) {
    %c0_i32 = arith.constant 0 : i32
    %c0_i32_0 = arith.constant 0 : i32
    return %arg0, %c0_i32 : i32, i32
  }
  func.func @transform_2(%arg0: i32) -> (i32, i32) {
    %c0_i32 = arith.constant 0 : i32
    %c0_i32_0 = arith.constant 0 : i32
    return %arg0, %c0_i32 : i32, i32
  }
  func.func @transform_3(%arg0: i32) -> (i32, i32) {
    %c0_i32 = arith.constant 0 : i32
    %c0_i32_0 = arith.constant 0 : i32
    return %arg0, %c0_i32 : i32, i32
  }
  func.func @transform_4(%arg0: i32) -> (i32, i32) {
    %c0_i32 = arith.constant 0 : i32
    %c0_i32_0 = arith.constant 0 : i32
    %c0_i32_1 = arith.constant 0 : i32
    return %c0_i32, %c0_i32_0 : i32, i32
  }
  func.func @transform_5(%arg0: i32) -> (i32, i32) {
    %c0_i32 = arith.constant 0 : i32
    %c0_i32_0 = arith.constant 0 : i32
    %c0_i32_1 = arith.constant 0 : i32
    return %c0_i32, %c0_i32_0 : i32, i32
  }
  func.func @transform_6(%arg0: i32) -> (i32, i32) {
    %c0_i32 = arith.constant 0 : i32
    %c0_i32_0 = arith.constant 0 : i32
    %c0_i32_1 = arith.constant 0 : i32
    return %c0_i32, %c0_i32_0 : i32, i32
  }
  func.func @transform_7(%arg0: i32) -> (i32, i32) {
    %c0_i32 = arith.constant 0 : i32
    %c0_i32_0 = arith.constant 0 : i32
    return %arg0, %c0_i32 : i32, i32
  }
}

module attributes {stable_mosaic.version = 11 : i64} {
  func.func @_conv_bn_relu_pool_kernel(%arg0: i32, %arg1: memref<48x576xbf16, #tpu.memory_space<vmem>>, %arg2: memref<48x576xbf16, #tpu.memory_space<vmem>>, %arg3: memref<48x576xbf16, #tpu.memory_space<vmem>>, %arg4: memref<48x576xbf16, #tpu.memory_space<vmem>>, %arg5: memref<576x128xbf16, #tpu.memory_space<vmem>>, %arg6: memref<1x128xf32, #tpu.memory_space<vmem>>, %arg7: memref<1x128xf32, #tpu.memory_space<vmem>>, %arg8: memref<48x128xbf16, #tpu.memory_space<vmem>>) attributes {dimension_semantics = [#tpu.dimension_semantics<parallel>], iteration_bounds = array<i64: 2>, scalar_prefetch = 0 : i64, scratch_operands = 0 : i64, tpu.core_type = #tpu.core_type<tc>, window_params = [{transform_indices = @transform_0, window_bounds = array<i64: 48, 576>}, {transform_indices = @transform_1, window_bounds = array<i64: 48, 576>}, {transform_indices = @transform_2, window_bounds = array<i64: 48, 576>}, {transform_indices = @transform_3, window_bounds = array<i64: 48, 576>}, {pipeline_mode = #tpu.pipeline_mode<synchronous>, transform_indices = @transform_4, window_bounds = array<i64: 576, 128>}, {pipeline_mode = #tpu.pipeline_mode<synchronous>, transform_indices = @transform_5, window_bounds = array<i64: 1, 128>}, {pipeline_mode = #tpu.pipeline_mode<synchronous>, transform_indices = @transform_6, window_bounds = array<i64: 1, 128>}, {transform_indices = @transform_7, window_bounds = array<i64: 48, 128>}]} {
    %c0 = arith.constant 0 : index
    %c0_0 = arith.constant 0 : index
    %0 = vector.load %arg5[%c0, %c0_0] : memref<576x128xbf16, #tpu.memory_space<vmem>>, vector<576x128xbf16>
    %c0_1 = arith.constant 0 : index
    %c0_2 = arith.constant 0 : index
    %1 = vector.load %arg6[%c0_1, %c0_2] : memref<1x128xf32, #tpu.memory_space<vmem>>, vector<1x128xf32>
    %c0_3 = arith.constant 0 : index
    %c0_4 = arith.constant 0 : index
    %2 = vector.load %arg7[%c0_3, %c0_4] : memref<1x128xf32, #tpu.memory_space<vmem>>, vector<1x128xf32>
    %c0_5 = arith.constant 0 : index
    %c0_6 = arith.constant 0 : index
    %3 = vector.load %arg1[%c0_5, %c0_6] : memref<48x576xbf16, #tpu.memory_space<vmem>>, vector<48x576xbf16>
    %cst = arith.constant dense<0.000000e+00> : vector<48x128xf32>
    %4 = tpu.matmul %3, %0, %cst {dimension_numbers = #tpu.dot_dimension_numbers<[1], [0], [0], [1], [0, 0, 1, 1], [], []>} : vector<48x576xbf16>, vector<576x128xbf16>, vector<48x128xf32> -> vector<48x128xf32>
    %5 = vector.broadcast %1 : vector<1x128xf32> to vector<48x128xf32>
    %6 = arith.mulf %4, %5 : vector<48x128xf32>
    %7 = vector.broadcast %2 : vector<1x128xf32> to vector<48x128xf32>
    %8 = arith.addf %6, %7 : vector<48x128xf32>
    %c0_7 = arith.constant 0 : index
    %c0_8 = arith.constant 0 : index
    %9 = vector.load %arg2[%c0_7, %c0_8] : memref<48x576xbf16, #tpu.memory_space<vmem>>, vector<48x576xbf16>
    %cst_9 = arith.constant dense<0.000000e+00> : vector<48x128xf32>
    %10 = tpu.matmul %9, %0, %cst_9 {dimension_numbers = #tpu.dot_dimension_numbers<[1], [0], [0], [1], [0, 0, 1, 1], [], []>} : vector<48x576xbf16>, vector<576x128xbf16>, vector<48x128xf32> -> vector<48x128xf32>
    %11 = vector.broadcast %1 : vector<1x128xf32> to vector<48x128xf32>
    %12 = arith.mulf %10, %11 : vector<48x128xf32>
    %13 = vector.broadcast %2 : vector<1x128xf32> to vector<48x128xf32>
    %14 = arith.addf %12, %13 : vector<48x128xf32>
    %15 = arith.maximumf %8, %14 : vector<48x128xf32>
    %c0_10 = arith.constant 0 : index
    %c0_11 = arith.constant 0 : index
    %16 = vector.load %arg3[%c0_10, %c0_11] : memref<48x576xbf16, #tpu.memory_space<vmem>>, vector<48x576xbf16>
    %cst_12 = arith.constant dense<0.000000e+00> : vector<48x128xf32>
    %17 = tpu.matmul %16, %0, %cst_12 {dimension_numbers = #tpu.dot_dimension_numbers<[1], [0], [0], [1], [0, 0, 1, 1], [], []>} : vector<48x576xbf16>, vector<576x128xbf16>, vector<48x128xf32> -> vector<48x128xf32>
    %18 = vector.broadcast %1 : vector<1x128xf32> to vector<48x128xf32>
    %19 = arith.mulf %17, %18 : vector<48x128xf32>
    %20 = vector.broadcast %2 : vector<1x128xf32> to vector<48x128xf32>
    %21 = arith.addf %19, %20 : vector<48x128xf32>
    %c0_13 = arith.constant 0 : index
    %c0_14 = arith.constant 0 : index
    %22 = vector.load %arg4[%c0_13, %c0_14] : memref<48x576xbf16, #tpu.memory_space<vmem>>, vector<48x576xbf16>
    %cst_15 = arith.constant dense<0.000000e+00> : vector<48x128xf32>
    %23 = tpu.matmul %22, %0, %cst_15 {dimension_numbers = #tpu.dot_dimension_numbers<[1], [0], [0], [1], [0, 0, 1, 1], [], []>} : vector<48x576xbf16>, vector<576x128xbf16>, vector<48x128xf32> -> vector<48x128xf32>
    %24 = vector.broadcast %1 : vector<1x128xf32> to vector<48x128xf32>
    %25 = arith.mulf %23, %24 : vector<48x128xf32>
    %26 = vector.broadcast %2 : vector<1x128xf32> to vector<48x128xf32>
    %27 = arith.addf %25, %26 : vector<48x128xf32>
    %28 = arith.maximumf %21, %27 : vector<48x128xf32>
    %29 = arith.maximumf %15, %28 : vector<48x128xf32>
    %cst_16 = arith.constant 0.000000e+00 : f32
    %30 = vector.broadcast %cst_16 : f32 to vector<48x128xf32>
    %31 = arith.maximumf %29, %30 : vector<48x128xf32>
    %32 = arith.truncf %31 : vector<48x128xf32> to vector<48x128xbf16>
    %c0_17 = arith.constant 0 : index
    %c0_18 = arith.constant 0 : index
    %33 = vector.load %arg8[%c0_17, %c0_18] : memref<48x128xbf16, #tpu.memory_space<vmem>>, vector<48x128xbf16>
    tpu.vector_store %arg8[%c0_17, %c0_18], %32 {strides = array<i32>} : memref<48x128xbf16, #tpu.memory_space<vmem>>, vector<48x128xbf16>,
    return
  }
  func.func @transform_0(%arg0: i32) -> (i32, i32) {
    %c0_i32 = arith.constant 0 : i32
    %c0_i32_0 = arith.constant 0 : i32
    return %arg0, %c0_i32 : i32, i32
  }
  func.func @transform_1(%arg0: i32) -> (i32, i32) {
    %c0_i32 = arith.constant 0 : i32
    %c0_i32_0 = arith.constant 0 : i32
    return %arg0, %c0_i32 : i32, i32
  }
  func.func @transform_2(%arg0: i32) -> (i32, i32) {
    %c0_i32 = arith.constant 0 : i32
    %c0_i32_0 = arith.constant 0 : i32
    return %arg0, %c0_i32 : i32, i32
  }
  func.func @transform_3(%arg0: i32) -> (i32, i32) {
    %c0_i32 = arith.constant 0 : i32
    %c0_i32_0 = arith.constant 0 : i32
    return %arg0, %c0_i32 : i32, i32
  }
  func.func @transform_4(%arg0: i32) -> (i32, i32) {
    %c0_i32 = arith.constant 0 : i32
    %c0_i32_0 = arith.constant 0 : i32
    %c0_i32_1 = arith.constant 0 : i32
    return %c0_i32, %c0_i32_0 : i32, i32
  }
  func.func @transform_5(%arg0: i32) -> (i32, i32) {
    %c0_i32 = arith.constant 0 : i32
    %c0_i32_0 = arith.constant 0 : i32
    %c0_i32_1 = arith.constant 0 : i32
    return %c0_i32, %c0_i32_0 : i32, i32
  }
  func.func @transform_6(%arg0: i32) -> (i32, i32) {
    %c0_i32 = arith.constant 0 : i32
    %c0_i32_0 = arith.constant 0 : i32
    %c0_i32_1 = arith.constant 0 : i32
    return %c0_i32, %c0_i32_0 : i32, i32
  }
  func.func @transform_7(%arg0: i32) -> (i32, i32) {
    %c0_i32 = arith.constant 0 : i32
    %c0_i32_0 = arith.constant 0 : i32
    return %arg0, %c0_i32 : i32, i32
  }
}

module attributes {stable_mosaic.version = 11 : i64} {
  func.func @_conv_bn_relu_pool_kernel(%arg0: i32, %arg1: memref<8x576xbf16, #tpu.memory_space<vmem>>, %arg2: memref<8x576xbf16, #tpu.memory_space<vmem>>, %arg3: memref<8x576xbf16, #tpu.memory_space<vmem>>, %arg4: memref<8x576xbf16, #tpu.memory_space<vmem>>, %arg5: memref<576x128xbf16, #tpu.memory_space<vmem>>, %arg6: memref<1x128xf32, #tpu.memory_space<vmem>>, %arg7: memref<1x128xf32, #tpu.memory_space<vmem>>, %arg8: memref<8x128xbf16, #tpu.memory_space<vmem>>) attributes {dimension_semantics = [#tpu.dimension_semantics<parallel>], iteration_bounds = array<i64: 2>, scalar_prefetch = 0 : i64, scratch_operands = 0 : i64, tpu.core_type = #tpu.core_type<tc>, window_params = [{transform_indices = @transform_0, window_bounds = array<i64: 8, 576>}, {transform_indices = @transform_1, window_bounds = array<i64: 8, 576>}, {transform_indices = @transform_2, window_bounds = array<i64: 8, 576>}, {transform_indices = @transform_3, window_bounds = array<i64: 8, 576>}, {pipeline_mode = #tpu.pipeline_mode<synchronous>, transform_indices = @transform_4, window_bounds = array<i64: 576, 128>}, {pipeline_mode = #tpu.pipeline_mode<synchronous>, transform_indices = @transform_5, window_bounds = array<i64: 1, 128>}, {pipeline_mode = #tpu.pipeline_mode<synchronous>, transform_indices = @transform_6, window_bounds = array<i64: 1, 128>}, {transform_indices = @transform_7, window_bounds = array<i64: 8, 128>}]} {
    %c0 = arith.constant 0 : index
    %c0_0 = arith.constant 0 : index
    %0 = vector.load %arg5[%c0, %c0_0] : memref<576x128xbf16, #tpu.memory_space<vmem>>, vector<576x128xbf16>
    %c0_1 = arith.constant 0 : index
    %c0_2 = arith.constant 0 : index
    %1 = vector.load %arg6[%c0_1, %c0_2] : memref<1x128xf32, #tpu.memory_space<vmem>>, vector<1x128xf32>
    %c0_3 = arith.constant 0 : index
    %c0_4 = arith.constant 0 : index
    %2 = vector.load %arg7[%c0_3, %c0_4] : memref<1x128xf32, #tpu.memory_space<vmem>>, vector<1x128xf32>
    %c0_5 = arith.constant 0 : index
    %c0_6 = arith.constant 0 : index
    %3 = vector.load %arg1[%c0_5, %c0_6] : memref<8x576xbf16, #tpu.memory_space<vmem>>, vector<8x576xbf16>
    %cst = arith.constant dense<0.000000e+00> : vector<8x128xf32>
    %4 = tpu.matmul %3, %0, %cst {dimension_numbers = #tpu.dot_dimension_numbers<[1], [0], [0], [1], [0, 0, 1, 1], [], []>} : vector<8x576xbf16>, vector<576x128xbf16>, vector<8x128xf32> -> vector<8x128xf32>
    %5 = vector.broadcast %1 : vector<1x128xf32> to vector<8x128xf32>
    %6 = arith.mulf %4, %5 : vector<8x128xf32>
    %7 = vector.broadcast %2 : vector<1x128xf32> to vector<8x128xf32>
    %8 = arith.addf %6, %7 : vector<8x128xf32>
    %c0_7 = arith.constant 0 : index
    %c0_8 = arith.constant 0 : index
    %9 = vector.load %arg2[%c0_7, %c0_8] : memref<8x576xbf16, #tpu.memory_space<vmem>>, vector<8x576xbf16>
    %cst_9 = arith.constant dense<0.000000e+00> : vector<8x128xf32>
    %10 = tpu.matmul %9, %0, %cst_9 {dimension_numbers = #tpu.dot_dimension_numbers<[1], [0], [0], [1], [0, 0, 1, 1], [], []>} : vector<8x576xbf16>, vector<576x128xbf16>, vector<8x128xf32> -> vector<8x128xf32>
    %11 = vector.broadcast %1 : vector<1x128xf32> to vector<8x128xf32>
    %12 = arith.mulf %10, %11 : vector<8x128xf32>
    %13 = vector.broadcast %2 : vector<1x128xf32> to vector<8x128xf32>
    %14 = arith.addf %12, %13 : vector<8x128xf32>
    %15 = arith.maximumf %8, %14 : vector<8x128xf32>
    %c0_10 = arith.constant 0 : index
    %c0_11 = arith.constant 0 : index
    %16 = vector.load %arg3[%c0_10, %c0_11] : memref<8x576xbf16, #tpu.memory_space<vmem>>, vector<8x576xbf16>
    %cst_12 = arith.constant dense<0.000000e+00> : vector<8x128xf32>
    %17 = tpu.matmul %16, %0, %cst_12 {dimension_numbers = #tpu.dot_dimension_numbers<[1], [0], [0], [1], [0, 0, 1, 1], [], []>} : vector<8x576xbf16>, vector<576x128xbf16>, vector<8x128xf32> -> vector<8x128xf32>
    %18 = vector.broadcast %1 : vector<1x128xf32> to vector<8x128xf32>
    %19 = arith.mulf %17, %18 : vector<8x128xf32>
    %20 = vector.broadcast %2 : vector<1x128xf32> to vector<8x128xf32>
    %21 = arith.addf %19, %20 : vector<8x128xf32>
    %c0_13 = arith.constant 0 : index
    %c0_14 = arith.constant 0 : index
    %22 = vector.load %arg4[%c0_13, %c0_14] : memref<8x576xbf16, #tpu.memory_space<vmem>>, vector<8x576xbf16>
    %cst_15 = arith.constant dense<0.000000e+00> : vector<8x128xf32>
    %23 = tpu.matmul %22, %0, %cst_15 {dimension_numbers = #tpu.dot_dimension_numbers<[1], [0], [0], [1], [0, 0, 1, 1], [], []>} : vector<8x576xbf16>, vector<576x128xbf16>, vector<8x128xf32> -> vector<8x128xf32>
    %24 = vector.broadcast %1 : vector<1x128xf32> to vector<8x128xf32>
    %25 = arith.mulf %23, %24 : vector<8x128xf32>
    %26 = vector.broadcast %2 : vector<1x128xf32> to vector<8x128xf32>
    %27 = arith.addf %25, %26 : vector<8x128xf32>
    %28 = arith.maximumf %21, %27 : vector<8x128xf32>
    %29 = arith.maximumf %15, %28 : vector<8x128xf32>
    %cst_16 = arith.constant 0.000000e+00 : f32
    %30 = vector.broadcast %cst_16 : f32 to vector<8x128xf32>
    %31 = arith.maximumf %29, %30 : vector<8x128xf32>
    %32 = arith.truncf %31 : vector<8x128xf32> to vector<8x128xbf16>
    %c0_17 = arith.constant 0 : index
    %c0_18 = arith.constant 0 : index
    %33 = vector.load %arg8[%c0_17, %c0_18] : memref<8x128xbf16, #tpu.memory_space<vmem>>, vector<8x128xbf16>
    tpu.vector_store %arg8[%c0_17, %c0_18], %32 {strides = array<i32>} : memref<8x128xbf16, #tpu.memory_space<vmem>>, vector<8x128xbf16>,
    return
  }
  func.func @transform_0(%arg0: i32) -> (i32, i32) {
    %c0_i32 = arith.constant 0 : i32
    %c0_i32_0 = arith.constant 0 : i32
    return %arg0, %c0_i32 : i32, i32
  }
  func.func @transform_1(%arg0: i32) -> (i32, i32) {
    %c0_i32 = arith.constant 0 : i32
    %c0_i32_0 = arith.constant 0 : i32
    return %arg0, %c0_i32 : i32, i32
  }
  func.func @transform_2(%arg0: i32) -> (i32, i32) {
    %c0_i32 = arith.constant 0 : i32
    %c0_i32_0 = arith.constant 0 : i32
    return %arg0, %c0_i32 : i32, i32
  }
  func.func @transform_3(%arg0: i32) -> (i32, i32) {
    %c0_i32 = arith.constant 0 : i32
    %c0_i32_0 = arith.constant 0 : i32
    return %arg0, %c0_i32 : i32, i32
  }
  func.func @transform_4(%arg0: i32) -> (i32, i32) {
    %c0_i32 = arith.constant 0 : i32
    %c0_i32_0 = arith.constant 0 : i32
    %c0_i32_1 = arith.constant 0 : i32
    return %c0_i32, %c0_i32_0 : i32, i32
  }
  func.func @transform_5(%arg0: i32) -> (i32, i32) {
    %c0_i32 = arith.constant 0 : i32
    %c0_i32_0 = arith.constant 0 : i32
    %c0_i32_1 = arith.constant 0 : i32
    return %c0_i32, %c0_i32_0 : i32, i32
  }
  func.func @transform_6(%arg0: i32) -> (i32, i32) {
    %c0_i32 = arith.constant 0 : i32
    %c0_i32_0 = arith.constant 0 : i32
    %c0_i32_1 = arith.constant 0 : i32
    return %c0_i32, %c0_i32_0 : i32, i32
  }
  func.func @transform_7(%arg0: i32) -> (i32, i32) {
    %c0_i32 = arith.constant 0 : i32
    %c0_i32_0 = arith.constant 0 : i32
    return %arg0, %c0_i32 : i32, i32
  }
}

module attributes {stable_mosaic.version = 11 : i64} {
  func.func @_mlp_head_kernel(%arg0: i32, %arg1: memref<8x576xf32, #tpu.memory_space<vmem>>, %arg2: memref<576x128xf32, #tpu.memory_space<vmem>>, %arg3: memref<1x128xf32, #tpu.memory_space<vmem>>, %arg4: memref<128x128xf32, #tpu.memory_space<vmem>>, %arg5: memref<1x128xf32, #tpu.memory_space<vmem>>, %arg6: memref<8x128xf32, #tpu.memory_space<vmem>>) attributes {dimension_semantics = [#tpu.dimension_semantics<arbitrary>], iteration_bounds = array<i64: 1>, scalar_prefetch = 0 : i64, scratch_operands = 0 : i64, tpu.core_type = #tpu.core_type<tc>, window_params = [{pipeline_mode = #tpu.pipeline_mode<synchronous>, transform_indices = @transform_0, window_bounds = array<i64: 8, 576>}, {pipeline_mode = #tpu.pipeline_mode<synchronous>, transform_indices = @transform_1, window_bounds = array<i64: 576, 128>}, {pipeline_mode = #tpu.pipeline_mode<synchronous>, transform_indices = @transform_2, window_bounds = array<i64: 1, 128>}, {pipeline_mode = #tpu.pipeline_mode<synchronous>, transform_indices = @transform_3, window_bounds = array<i64: 128, 128>}, {pipeline_mode = #tpu.pipeline_mode<synchronous>, transform_indices = @transform_4, window_bounds = array<i64: 1, 128>}, {pipeline_mode = #tpu.pipeline_mode<synchronous>, transform_indices = @transform_5, window_bounds = array<i64: 8, 128>}]} {
    %c0 = arith.constant 0 : index
    %c0_0 = arith.constant 0 : index
    %0 = vector.load %arg1[%c0, %c0_0] : memref<8x576xf32, #tpu.memory_space<vmem>>, vector<8x576xf32>
    %c0_1 = arith.constant 0 : index
    %c0_2 = arith.constant 0 : index
    %1 = vector.load %arg2[%c0_1, %c0_2] : memref<576x128xf32, #tpu.memory_space<vmem>>, vector<576x128xf32>
    %cst = arith.constant dense<0.000000e+00> : vector<8x128xf32>
    %2 = tpu.matmul %0, %1, %cst {dimension_numbers = #tpu.dot_dimension_numbers<[1], [0], [0], [1], [0, 0, 1, 1], [], []>} : vector<8x576xf32>, vector<576x128xf32>, vector<8x128xf32> -> vector<8x128xf32>
    %c0_3 = arith.constant 0 : index
    %c0_4 = arith.constant 0 : index
    %3 = vector.load %arg3[%c0_3, %c0_4] : memref<1x128xf32, #tpu.memory_space<vmem>>, vector<1x128xf32>
    %4 = vector.broadcast %3 : vector<1x128xf32> to vector<8x128xf32>
    %5 = arith.addf %2, %4 : vector<8x128xf32>
    %c0_5 = arith.constant 0 : index
    %c0_6 = arith.constant 0 : index
    %6 = vector.load %arg4[%c0_5, %c0_6] : memref<128x128xf32, #tpu.memory_space<vmem>>, vector<128x128xf32>
    %cst_7 = arith.constant dense<0.000000e+00> : vector<8x128xf32>
    %7 = tpu.matmul %5, %6, %cst_7 {dimension_numbers = #tpu.dot_dimension_numbers<[1], [0], [0], [1], [0, 0, 1, 1], [], []>} : vector<8x128xf32>, vector<128x128xf32>, vector<8x128xf32> -> vector<8x128xf32>
    %c0_8 = arith.constant 0 : index
    %c0_9 = arith.constant 0 : index
    %8 = vector.load %arg5[%c0_8, %c0_9] : memref<1x128xf32, #tpu.memory_space<vmem>>, vector<1x128xf32>
    %9 = vector.broadcast %8 : vector<1x128xf32> to vector<8x128xf32>
    %10 = arith.addf %7, %9 : vector<8x128xf32>
    %cst_10 = arith.constant 0.000000e+00 : f32
    %11 = vector.broadcast %cst_10 : f32 to vector<8x128xf32>
    %12 = arith.maximumf %10, %11 : vector<8x128xf32>
    %c0_11 = arith.constant 0 : index
    %c0_12 = arith.constant 0 : index
    %13 = vector.load %arg6[%c0_11, %c0_12] : memref<8x128xf32, #tpu.memory_space<vmem>>, vector<8x128xf32>
    tpu.vector_store %arg6[%c0_11, %c0_12], %12 {strides = array<i32>} : memref<8x128xf32, #tpu.memory_space<vmem>>, vector<8x128xf32>,
    return
  }
  func.func @transform_0(%arg0: i32) -> (i32, i32) {
    %c0_i32 = arith.constant 0 : i32
    %c0_i32_0 = arith.constant 0 : i32
    %c0_i32_1 = arith.constant 0 : i32
    return %c0_i32, %c0_i32_0 : i32, i32
  }
  func.func @transform_1(%arg0: i32) -> (i32, i32) {
    %c0_i32 = arith.constant 0 : i32
    %c0_i32_0 = arith.constant 0 : i32
    %c0_i32_1 = arith.constant 0 : i32
    return %c0_i32, %c0_i32_0 : i32, i32
  }
  func.func @transform_2(%arg0: i32) -> (i32, i32) {
    %c0_i32 = arith.constant 0 : i32
    %c0_i32_0 = arith.constant 0 : i32
    %c0_i32_1 = arith.constant 0 : i32
    return %c0_i32, %c0_i32_0 : i32, i32
  }
  func.func @transform_3(%arg0: i32) -> (i32, i32) {
    %c0_i32 = arith.constant 0 : i32
    %c0_i32_0 = arith.constant 0 : i32
    %c0_i32_1 = arith.constant 0 : i32
    return %c0_i32, %c0_i32_0 : i32, i32
  }
  func.func @transform_4(%arg0: i32) -> (i32, i32) {
    %c0_i32 = arith.constant 0 : i32
    %c0_i32_0 = arith.constant 0 : i32
    %c0_i32_1 = arith.constant 0 : i32
    return %c0_i32, %c0_i32_0 : i32, i32
  }
  func.func @transform_5(%arg0: i32) -> (i32, i32) {
    %c0_i32 = arith.constant 0 : i32
    %c0_i32_0 = arith.constant 0 : i32
    %c0_i32_1 = arith.constant 0 : i32
    return %c0_i32, %c0_i32_0 : i32, i32
  }
}

</mosaic_0001>

<llo_original>
// kernel: tile.26
$region0: #{tile.26}
  #allocation0 [shape = 's32[1]{0}', space=sflag, size = 0x4, scoped, tag = 'scoped memory for tile.26']
  %s0 = inlined_call_operand.vmem [shape: f32[16], index: 0, kind: input, shape index: {}]
  %s1 = inlined_call_operand.vmem [shape: f32[8,16], index: 1, kind: output, shape index: {}]
  // Predicated region
  $region2: #{tile.26} parent=0 // pred_check
    _
  $region3: #{tile.26} parent=0 // pred_check_branch
    %3 = sbr.rel (0) target = $region5
  $region4: #{tile.26} parent=0 // pred_region
    _
  $region5: #{tile.26} parent=0 // pred_fallthru
    _
  %v4 = vld [vmem:[%s0] ss:$0 sm:$0xff]
  %5 = vst [vmem:[%s1] sm:$0xff] %v4

// kernel: tile.27
$region0: #{tile.27}
  %s0 = inlined_call_operand.vmem [shape: f32[8,16], index: 0, kind: input, shape index: {}]
  %s1 = inlined_call_operand.vmem [shape: f32[1,128], index: 1, kind: output, shape index: {}]
  $region1: #{tile.27} parent=0
    #allocation0 [shape = 'u8[4096]{0}', space=vmem, size = 0x1000, scoped, tag = 'scoped mem for output reshape']
    %v2 = vld [vmem:[%s0] sm:$0x1]
    %vm3 = vcmask 130048
    %4 = vst.msk [vmem:[#allocation0] sm:$0x1] %vm3, %v2
    %s5 = scalar_lea.vmem %s0, 7
    %v6 = vld [vmem:[%s5] sm:$0x1]
    %7 = vrot.lane.b32.xlu0 %v6, 112
    %v8 = vpop.permute.xlu0 %7
    %vm9 = vcmask 1048448
    %10 = vst.msk [vmem:[#allocation0] sm:$0x1] %vm9, %v8
    %s11 = scalar_lea.vmem %s0, 6
    %v12 = vld [vmem:[%s11] sm:$0x1]
    %13 = vrot.lane.b32.xlu0 %v12, 96
    %v14 = vpop.permute.xlu0 %13
    %vm15 = vcmask 917248
    %16 = vst.msk [vmem:[#allocation0] sm:$0x1] %vm15, %v14
    %s17 = scalar_lea.vmem %s0, 5
    %v18 = vld [vmem:[%s17] sm:$0x1]
    %19 = vrot.lane.b32.xlu0 %v18, 80
    %v20 = vpop.permute.xlu0 %19
    %vm21 = vcmask 786048
    %22 = vst.msk [vmem:[#allocation0] sm:$0x1] %vm21, %v20
    %s23 = scalar_lea.vmem %s0, 4
    %v24 = vld [vmem:[%s23] sm:$0x1]
    %25 = vrot.lane.b32.xlu0 %v24, 64
    %v26 = vpop.permute.xlu0 %25
    %vm27 = vcmask 654848
    %28 = vst.msk [vmem:[#allocation0] sm:$0x1] %vm27, %v26
    %s29 = scalar_lea.vmem %s0, 3
    %v30 = vld [vmem:[%s29] sm:$0x1]
    %31 = vrot.lane.b32.xlu0 %v30, 48
    %v32 = vpop.permute.xlu0 %31
    %vm33 = vcmask 523648
    %34 = vst.msk [vmem:[#allocation0] sm:$0x1] %vm33, %v32
    %s35 = scalar_lea.vmem %s0, 2
    %v36 = vld [vmem:[%s35] sm:$0x1]
    %37 = vrot.lane.b32.xlu0 %v36, 32
    %v38 = vpop.permute.xlu0 %37
    %vm39 = vcmask 392448
    %40 = vst.msk [vmem:[#allocation0] sm:$0x1] %vm39, %v38
    %s41 = scalar_lea.vmem %s0, 1
    %v42 = vld [vmem:[%s41] sm:$0x1]
    %43 = vrot.lane.b32.xlu0 %v42, 16
    %v44 = vpop.permute.xlu0 %43
    %vm45 = vcmask 261248
    %46 = vst.msk [vmem:[#allocation0] sm:$0x1] %vm45, %v44
    %s48 = sshllo.u32 0, 1
    %v50 = vld [vmem:[#allocation0] sm:%s48]
    %s51 = sshllo.u32 0, 1
    %52 = vst [vmem:[%s1] sm:%s51] %v50

// kernel: _lambda_.4
$region0: #{_lambda_.4}
  #allocation0 [shape = 'u32[]', space=smem, size = 0x4, offset = 0x4, fixed_abs, tag = 'smem constant byte address 0x4 - core index']
  #allocation1 [shape = 'u32[144,128]{1,0:T(1,128)}', space=vmem, size = 0x12000, scoped, tag = 'internal scratch']
  %s0 = inlined_call_operand.vmem [shape: bf16[768,216], index: 0, kind: input, shape index: {}]
  %s1 = inlined_call_operand.vmem [shape: bf16[768,216], index: 1, kind: input, shape index: {}]
  %s2 = inlined_call_operand.vmem [shape: bf16[768,216], index: 2, kind: input, shape index: {}]
  %s3 = inlined_call_operand.vmem [shape: bf16[768,216], index: 3, kind: input, shape index: {}]
  %s4 = inlined_call_operand.vmem [shape: bf16[216,128], index: 4, kind: input, shape index: {}]
  %s5 = inlined_call_operand.vmem [shape: f32[1,128], index: 5, kind: input, shape index: {}]
  %s6 = inlined_call_operand.vmem [shape: f32[1,128], index: 6, kind: input, shape index: {}]
  %s7 = inlined_call_operand.vmem [shape: bf16[768,128], index: 7, kind: output, shape index: {}]
  %s8 = sld [smem:[#allocation0]]
  $region61: #{_lambda_.4} parent=0
    _
  %s10 = ssub.s32 1, %s8
  %s11 = scalar_select 0, %s10, %s8
  loop: start=0, step=1, limit=4
  $region2: #{_lambda_.4} parent=0 // loop_pre_header
    _
  $region3: #{_lambda_.4} parent=0 // loop_header
    %s13 = sphi 0, %s17
    %p14 = scmp.ge.s32.totalorder %s13, 4
    %s23 = sphi 0, %s25
    %s26 = sphi 0, %s23
    %s27 = sphi 0, %s26
    %s43 = sphi 0, %s27
    %s49 = sphi 0, %s51
    %s52 = sphi 0, %s49
    %s53 = sphi 0, %s52
    %s69 = sphi 0, %s53
    %s75 = sphi 0, %s77
    %s78 = sphi 0, %s75
    %s79 = sphi 0, %s78
    %s95 = sphi 0, %s79
    %s101 = sphi 0, %s103
    %s104 = sphi 0, %s101
    %s105 = sphi 0, %s104
    %s121 = sphi 0, %s105
    %s125 = sphi 0, %s125
    %s127 = sphi 0, %s125
    %s128 = sphi 0, %s127
    %s142 = sphi 0, %s128
    %s146 = sphi 0, %s146
    %s148 = sphi 0, %s146
    %s149 = sphi 0, %s148
    %s163 = sphi 0, %s149
    %s167 = sphi 0, %s167
    %s169 = sphi 0, %s167
    %s170 = sphi 0, %s169
    %s184 = sphi 0, %s170
    %s190 = sphi 0, %s192
    %s193 = sphi 0, %s190
    %s194 = sphi 0, %s193
    %s210 = sphi 0, %s194
  $region4: #{_lambda_.4} parent=0 // loop_header_branch
    %16 = sbr.rel (%p14) target = $region8
  $region5: #{_lambda_.4} parent=0 // loop_body
    %s18 = ssub.s32 %s13, 1
    %s19 = ssub.s32 %s13, 2
    %s20 = sadd.s32 %s13, 1
    %s21 = ssub.s32 %s13, %s20
    %p22 = scmp.eq.s32.totalorder %s21, 0
    %s24 = sadd.s32 %s23, 1
    %s25 = scalar_select %p22, %s23, %s24
    %p28 = pneg %p22
    %p29 = scmp.eq.s32.totalorder %s13, 1
    %p30 = por %p28, %p29
    %p31 = scmp.ne.s32.totalorder %s23, %s26
    %p32 = scmp.eq.s32.totalorder %s13, 0
    %p33 = por %p31, %p32
    %p34 = scmp.ne.s32.totalorder %s23, %s26
    %p35 = scmp.eq.s32.totalorder %s18, 1
    %p36 = por %p34, %p35
    %p37 = scmp.ne.s32.totalorder %s26, %s27
    %p38 = scmp.eq.s32.totalorder %s18, 0
    %p39 = por %p37, %p38
    %p40 = scmp.ne.s32.totalorder %s26, %s27
    %p41 = scmp.eq.s32.totalorder %s19, 1
    %p42 = por %p40, %p41
    %p44 = scmp.ne.s32.totalorder %s27, %s43
    %p45 = scmp.eq.s32.totalorder %s19, 0
    %p46 = por %p44, %p45
    %s47 = ssub.s32 %s13, %s20
    %p48 = scmp.eq.s32.totalorder %s47, 0
    %s50 = sadd.s32 %s49, 1
    %s51 = scalar_select %p48, %s49, %s50
    %p54 = pneg %p48
    %p55 = scmp.eq.s32.totalorder %s13, 1
    %p56 = por %p54, %p55
    %p57 = scmp.ne.s32.totalorder %s49, %s52
    %p58 = scmp.eq.s32.totalorder %s13, 0
    %p59 = por %p57, %p58
    %p60 = scmp.ne.s32.totalorder %s49, %s52
    %p61 = scmp.eq.s32.totalorder %s18, 1
    %p62 = por %p60, %p61
    %p63 = scmp.ne.s32.totalorder %s52, %s53
    %p64 = scmp.eq.s32.totalorder %s18, 0
    %p65 = por %p63, %p64
    %p66 = scmp.ne.s32.totalorder %s52, %s53
    %p67 = scmp.eq.s32.totalorder %s19, 1
    %p68 = por %p66, %p67
    %p70 = scmp.ne.s32.totalorder %s53, %s69
    %p71 = scmp.eq.s32.totalorder %s19, 0
    %p72 = por %p70, %p71
    %s73 = ssub.s32 %s13, %s20
    %p74 = scmp.eq.s32.totalorder %s73, 0
    %s76 = sadd.s32 %s75, 1
    %s77 = scalar_select %p74, %s75, %s76
    %p80 = pneg %p74
    %p81 = scmp.eq.s32.totalorder %s13, 1
    %p82 = por %p80, %p81
    %p83 = scmp.ne.s32.totalorder %s75, %s78
    %p84 = scmp.eq.s32.totalorder %s13, 0
    %p85 = por %p83, %p84
    %p86 = scmp.ne.s32.totalorder %s75, %s78
    %p87 = scmp.eq.s32.totalorder %s18, 1
    %p88 = por %p86, %p87
    %p89 = scmp.ne.s32.totalorder %s78, %s79
    %p90 = scmp.eq.s32.totalorder %s18, 0
    %p91 = por %p89, %p90
    %p92 = scmp.ne.s32.totalorder %s78, %s79
    %p93 = scmp.eq.s32.totalorder %s19, 1
    %p94 = por %p92, %p93
    %p96 = scmp.ne.s32.totalorder %s79, %s95
    %p97 = scmp.eq.s32.totalorder %s19, 0
    %p98 = por %p96, %p97
    %s99 = ssub.s32 %s13, %s20
    %p100 = scmp.eq.s32.totalorder %s99, 0
    %s102 = sadd.s32 %s101, 1
    %s103 = scalar_select %p100, %s101, %s102
    %p106 = pneg %p100
    %p107 = scmp.eq.s32.totalorder %s13, 1
    %p108 = por %p106, %p107
    %p109 = scmp.ne.s32.totalorder %s101, %s104
    %p110 = scmp.eq.s32.totalorder %s13, 0
    %p111 = por %p109, %p110
    %p112 = scmp.ne.s32.totalorder %s101, %s104
    %p113 = scmp.eq.s32.totalorder %s18, 1
    %p114 = por %p112, %p113
    %p115 = scmp.ne.s32.totalorder %s104, %s105
    %p116 = scmp.eq.s32.totalorder %s18, 0
    %p117 = por %p115, %p116
    %p118 = scmp.ne.s32.totalorder %s104, %s105
    %p119 = scmp.eq.s32.totalorder %s19, 1
    %p120 = por %p118, %p119
    %p122 = scmp.ne.s32.totalorder %s105, %s121
    %p123 = scmp.eq.s32.totalorder %s19, 0
    %p124 = por %p122, %p123
    %s126 = sadd.s32 %s125, 1
    %p129 = scmp.eq.s32.totalorder %s13, 1
    %p130 = scmp.ne.s32.totalorder %s125, %s127
    %p131 = scmp.eq.s32.totalorder %s13, 0
    %p132 = por %p130, %p131
    %p133 = scmp.ne.s32.totalorder %s125, %s127
    %p134 = scmp.eq.s32.totalorder %s18, 1
    %p135 = por %p133, %p134
    %p136 = scmp.ne.s32.totalorder %s127, %s128
    %p137 = scmp.eq.s32.totalorder %s18, 0
    %p138 = por %p136, %p137
    %p139 = scmp.ne.s32.totalorder %s127, %s128
    %p140 = scmp.eq.s32.totalorder %s19, 1
    %p141 = por %p139, %p140
    %p143 = scmp.ne.s32.totalorder %s128, %s142
    %p144 = scmp.eq.s32.totalorder %s19, 0
    %p145 = por %p143, %p144
    %s147 = sadd.s32 %s146, 1
    %p150 = scmp.eq.s32.totalorder %s13, 1
    %p151 = scmp.ne.s32.totalorder %s146, %s148
    %p152 = scmp.eq.s32.totalorder %s13, 0
    %p153 = por %p151, %p152
    %p154 = scmp.ne.s32.totalorder %s146, %s148
    %p155 = scmp.eq.s32.totalorder %s18, 1
    %p156 = por %p154, %p155
    %p157 = scmp.ne.s32.totalorder %s148, %s149
    %p158 = scmp.eq.s32.totalorder %s18, 0
    %p159 = por %p157, %p158
    %p160 = scmp.ne.s32.totalorder %s148, %s149
    %p161 = scmp.eq.s32.totalorder %s19, 1
    %p162 = por %p160, %p161
    %p164 = scmp.ne.s32.totalorder %s149, %s163
    %p165 = scmp.eq.s32.totalorder %s19, 0
    %p166 = por %p164, %p165
    %s168 = sadd.s32 %s167, 1
    %p171 = scmp.eq.s32.totalorder %s13, 1
    %p172 = scmp.ne.s32.totalorder %s167, %s169
    %p173 = scmp.eq.s32.totalorder %s13, 0
    %p174 = por %p172, %p173
    %p175 = scmp.ne.s32.totalorder %s167, %s169
    %p176 = scmp.eq.s32.totalorder %s18, 1
    %p177 = por %p175, %p176
    %p178 = scmp.ne.s32.totalorder %s169, %s170
    %p179 = scmp.eq.s32.totalorder %s18, 0
    %p180 = por %p178, %p179
    %p181 = scmp.ne.s32.totalorder %s169, %s170
    %p182 = scmp.eq.s32.totalorder %s19, 1
    %p183 = por %p181, %p182
    %p185 = scmp.ne.s32.totalorder %s170, %s184
    %p186 = scmp.eq.s32.totalorder %s19, 0
    %p187 = por %p185, %p186
    %s188 = ssub.s32 %s13, %s20
    %p189 = scmp.eq.s32.totalorder %s188, 0
    %s191 = sadd.s32 %s190, 1
    %s192 = scalar_select %p189, %s190, %s191
    %p195 = pneg %p189
    %p196 = scmp.eq.s32.totalorder %s13, 1
    %p197 = por %p195, %p196
    %p198 = scmp.ne.s32.totalorder %s190, %s193
    %p199 = scmp.eq.s32.totalorder %s13, 0
    %p200 = por %p198, %p199
    %p201 = scmp.ne.s32.totalorder %s190, %s193
    %p202 = scmp.eq.s32.totalorder %s18, 1
    %p203 = por %p201, %p202
    %p204 = scmp.ne.s32.totalorder %s193, %s194
    %p205 = scmp.eq.s32.totalorder %s18, 0
    %p206 = por %p204, %p205
    %p207 = scmp.ne.s32.totalorder %s193, %s194
    %p208 = scmp.eq.s32.totalorder %s19, 1
    %p209 = por %p207, %p208
    %p211 = scmp.ne.s32.totalorder %s194, %s210
    %p212 = scmp.eq.s32.totalorder %s19, 0
    %p213 = por %p211, %p212
    %p214 = scmp.le.s32.totalorder 1, %s13
    %p215 = scmp.lt.s32.totalorder %s13, 3
    %p216 = pnand %p214, %p215
    %p217 = pneg %p216
    // Predicated region
    $region9: #{_lambda_.4} parent=5 // pred_check
      _
    $region10: #{_lambda_.4} parent=5 // pred_check_branch
      %219 = sbr.rel (%p216) target = $region12
    $region11: #{_lambda_.4} parent=5 // pred_region
      %s220 = ssub.s32 %s13, 1
      // Predicated region
      $region13: #{_lambda_.4} parent=11 // pred_check
        %p221 = pneg %p138
      $region14: #{_lambda_.4} parent=11 // pred_check_branch
        %223 = sbr.rel (%p221) target = $region16
      $region15: #{_lambda_.4} parent=11 // pred_region
        _
      $region16: #{_lambda_.4} parent=11 // pred_fallthru
        _
      // Predicated region
      $region17: #{_lambda_.4} parent=11 // pred_check
        %p224 = pneg %p159
      $region18: #{_lambda_.4} parent=11 // pred_check_branch
        %226 = sbr.rel (%p224) target = $region20
      $region19: #{_lambda_.4} parent=11 // pred_region
        _
      $region20: #{_lambda_.4} parent=11 // pred_fallthru
        _
      // Predicated region
      $region21: #{_lambda_.4} parent=11 // pred_check
        %p227 = pneg %p180
      $region22: #{_lambda_.4} parent=11 // pred_check_branch
        %229 = sbr.rel (%p227) target = $region24
      $region23: #{_lambda_.4} parent=11 // pred_region
        _
      $region24: #{_lambda_.4} parent=11 // pred_fallthru
        _
    $region12: #{_lambda_.4} parent=5 // pred_fallthru
      _
    %p230 = scmp.lt.s32.totalorder %s13, 2
    // Predicated region
    $region25: #{_lambda_.4} parent=5 // pred_check
      %p231 = pneg %p230
    $region26: #{_lambda_.4} parent=5 // pred_check_branch
      %233 = sbr.rel (%p231) target = $region28
    $region27: #{_lambda_.4} parent=5 // pred_region
      // Predicated region
      $region29: #{_lambda_.4} parent=27 // pred_check
        %p234 = pneg %p33
      $region30: #{_lambda_.4} parent=27 // pred_check_branch
        %236 = sbr.rel (%p234) target = $region32
      $region31: #{_lambda_.4} parent=27 // pred_region
        %s237 = smul.u32 48, %s13
        %p238 = scmp.lt.s32.totalorder %s237, 95
        %s239 = scalar_select %p238, %s237, 95
        %s240 = smul.addr %s239, 2
        %s241 = smul.addr %s240, 4
        %s242 = scalar_lea.vmem %s0, %s241
        %s243 = smul.u32 48, %s13
      $region32: #{_lambda_.4} parent=27 // pred_fallthru
        _
      // Predicated region
      $region33: #{_lambda_.4} parent=27 // pred_check
        %p244 = pneg %p59
      $region34: #{_lambda_.4} parent=27 // pred_check_branch
        %246 = sbr.rel (%p244) target = $region36
      $region35: #{_lambda_.4} parent=27 // pred_region
        %s247 = smul.u32 48, %s13
        %p248 = scmp.lt.s32.totalorder %s247, 95
        %s249 = scalar_select %p248, %s247, 95
        %s250 = smul.addr %s249, 2
        %s251 = smul.addr %s250, 4
        %s252 = scalar_lea.vmem %s1, %s251
        %s253 = smul.u32 48, %s13
      $region36: #{_lambda_.4} parent=27 // pred_fallthru
        _
      // Predicated region
      $region37: #{_lambda_.4} parent=27 // pred_check
        %p254 = pneg %p85
      $region38: #{_lambda_.4} parent=27 // pred_check_branch
        %256 = sbr.rel (%p254) target = $region40
      $region39: #{_lambda_.4} parent=27 // pred_region
        %s257 = smul.u32 48, %s13
        %p258 = scmp.lt.s32.totalorder %s257, 95
        %s259 = scalar_select %p258, %s257, 95
        %s260 = smul.addr %s259, 2
        %s261 = smul.addr %s260, 4
        %s262 = scalar_lea.vmem %s2, %s261
        %s263 = smul.u32 48, %s13
      $region40: #{_lambda_.4} parent=27 // pred_fallthru
        _
      // Predicated region
      $region41: #{_lambda_.4} parent=27 // pred_check
        %p264 = pneg %p111
      $region42: #{_lambda_.4} parent=27 // pred_check_branch
        %266 = sbr.rel (%p264) target = $region44
      $region43: #{_lambda_.4} parent=27 // pred_region
        %s267 = smul.u32 48, %s13
        %p268 = scmp.lt.s32.totalorder %s267, 95
        %s269 = scalar_select %p268, %s267, 95
        %s270 = smul.addr %s269, 2
        %s271 = smul.addr %s270, 4
        %s272 = scalar_lea.vmem %s3, %s271
        %s273 = smul.u32 48, %s13
      $region44: #{_lambda_.4} parent=27 // pred_fallthru
        _
    $region28: #{_lambda_.4} parent=5 // pred_fallthru
      _
    %p274 = scmp.le.s32.totalorder 1, %s13
    %p275 = scmp.lt.s32.totalorder %s13, 3
    %p276 = pnand %p274, %p275
    %p277 = pneg %p276
    // Predicated region
    $region45: #{_lambda_.4} parent=5 // pred_check
      _
    $region46: #{_lambda_.4} parent=5 // pred_check_branch
      %279 = sbr.rel (%p276) target = $region48
    $region47: #{_lambda_.4} parent=5 // pred_region
      %s280 = ssub.s32 %s13, 1
      %s281 = smul.u32 48, %s18
      %p282 = scmp.lt.s32.totalorder %s281, 95
      %s283 = scalar_select %p282, %s281, 95
      %s284 = smul.addr %s283, 2
      %s285 = smul.addr %s284, 4
      %s286 = scalar_lea.vmem %s0, %s285
      %p287 = pneg %p39
      %p288 = pneg %p36
      %s289 = smul.u32 48, %s18
      %p290 = scmp.lt.s32.totalorder %s289, 95
      %s291 = scalar_select %p290, %s289, 95
      %s292 = smul.addr %s291, 2
      %s293 = smul.addr %s292, 4
      %s294 = scalar_lea.vmem %s1, %s293
      %p295 = pneg %p65
      %p296 = pneg %p62
      %s297 = smul.u32 48, %s18
      %p298 = scmp.lt.s32.totalorder %s297, 95
      %s299 = scalar_select %p298, %s297, 95
      %s300 = smul.addr %s299, 2
      %s301 = smul.addr %s300, 4
      %s302 = scalar_lea.vmem %s2, %s301
      %p303 = pneg %p91
      %p304 = pneg %p88
      %s305 = smul.u32 48, %s18
      %p306 = scmp.lt.s32.totalorder %s305, 95
      %s307 = scalar_select %p306, %s305, 95
      %s308 = smul.addr %s307, 2
      %s309 = smul.addr %s308, 4
      %s310 = scalar_lea.vmem %s3, %s309
      %p311 = pneg %p117
      %p312 = pneg %p114
      %p313 = pneg %p138
      %p314 = pneg %p135
      %p315 = pneg %p159
      %p316 = pneg %p156
      %p317 = pneg %p180
      %p318 = pneg %p177
      %p319 = pneg %p206
      %p320 = pneg %p203
      %s321 = smul.u32 48, %s18
      %p322 = scmp.lt.s32.totalorder %s321, 95
      %s323 = scalar_select %p322, %s321, 95
      %s324 = smul.addr %s323, 4
      %s325 = scalar_lea.vmem %s7, %s324
      %s326 = smul.u32 48, %s18
      %p327 = scmp.lt.s32.totalorder %s326, 95
      %s328 = scalar_select %p327, %s326, 95
      %s329 = smul.addr %s328, 2
      %s330 = smul.addr %s329, 4
      %s331 = scalar_lea.vmem %s0, %s330
      %s332 = smul.u32 48, %s18
      %s333 = smul.u32 48, %s18
      %p334 = scmp.lt.s32.totalorder %s333, 95
      %s335 = scalar_select %p334, %s333, 95
      %s336 = smul.addr %s335, 2
      %s337 = smul.addr %s336, 4
      %s338 = scalar_lea.vmem %s1, %s337
      %s339 = smul.u32 48, %s18
      %s340 = smul.u32 48, %s18
      %p341 = scmp.lt.s32.totalorder %s340, 95
      %s342 = scalar_select %p341, %s340, 95
      %s343 = smul.addr %s342, 2
      %s344 = smul.addr %s343, 4
      %s345 = scalar_lea.vmem %s2, %s344
      %s346 = smul.u32 48, %s18
      %s347 = smul.u32 48, %s18
      %p348 = scmp.lt.s32.totalorder %s347, 95
      %s349 = scalar_select %p348, %s347, 95
      %s350 = smul.addr %s349, 2
      %s351 = smul.addr %s350, 4
      %s352 = scalar_lea.vmem %s3, %s351
      %s353 = smul.u32 48, %s18
      %s354 = smul.u32 48, %s18
      %p355 = scmp.lt.s32.totalorder %s354, 95
      %s356 = scalar_select %p355, %s354, 95
      %s357 = smul.addr %s356, 4
      %s358 = scalar_lea.vmem %s7, %s357
      %s359 = smul.u32 48, %s18
      %v361 = vld [vmem:[%s4] sm:$0xf]
      %v362 = vld [vmem:[%s4 + $0x4] sm:$0xf]
      %v363 = vld [vmem:[%s4 + $0x8] sm:$0xf]
      %v364 = vld [vmem:[%s4 + $0xc] sm:$0xf]
      %v365 = vld [vmem:[%s4 + $0x10] sm:$0xf]
      %v366 = vld [vmem:[%s4 + $0x14] sm:$0xf]
      %v367 = vld [vmem:[%s4 + $0x18] sm:$0xf]
      %v368 = vld [vmem:[%s4 + $0x1c] sm:$0xf]
      %v369 = vld [vmem:[%s4 + $0x20] sm:$0xf]
      %v370 = vld [vmem:[%s4 + $0x24] sm:$0xf]
      %v371 = vld [vmem:[%s4 + $0x28] sm:$0xf]
      %v372 = vld [vmem:[%s4 + $0x2c] sm:$0xf]
      %v373 = vld [vmem:[%s4 + $0x30] sm:$0xf]
      %v374 = vld [vmem:[%s4 + $0x34] sm:$0xf]
      %v375 = vld [vmem:[%s4 + $0x38] sm:$0xf]
      %v376 = vld [vmem:[%s4 + $0x3c] sm:$0xf]
      %v377 = vld [vmem:[%s4 + $0x40] sm:$0xf]
      %v378 = vld [vmem:[%s4 + $0x44] sm:$0xf]
      %v379 = vld [vmem:[%s4 + $0x48] sm:$0xf]
      %v380 = vld [vmem:[%s4 + $0x4c] sm:$0xf]
      %v381 = vld [vmem:[%s4 + $0x50] sm:$0xf]
      %v382 = vld [vmem:[%s4 + $0x54] sm:$0xf]
      %v383 = vld [vmem:[%s4 + $0x58] sm:$0xf]
      %v384 = vld [vmem:[%s4 + $0x5c] sm:$0xf]
      %v385 = vld [vmem:[%s4 + $0x60] sm:$0xf]
      %v386 = vld [vmem:[%s4 + $0x64] sm:$0xf]
      %v387 = vld [vmem:[%s4 + $0x68] sm:$0xf]
      %v388 = vld [vmem:[%s5] sm:$0x1]
      %v389 = vld [vmem:[%s6] sm:$0x1]
      %v390 = vld [vmem:[%s331] sm:$0xff]
      %v391 = vld [vmem:[%s331 + $0x8] sm:$0xff]
      %v392 = vld [vmem:[%s331 + $0x10] sm:$0xff]
      %v393 = vld [vmem:[%s331 + $0x18] sm:$0xff]
      %v394 = vld [vmem:[%s331 + $0x20] sm:$0xff]
      %v395 = vld [vmem:[%s331 + $0x28] sm:$0xff]
      %v396 = vld [vmem:[%s331 + $0x30] sm:$0xff]
      %v397 = vld [vmem:[%s331 + $0x38] sm:$0xff]
      %v398 = vld [vmem:[%s331 + $0x40] sm:$0xff]
      %v399 = vld [vmem:[%s331 + $0x48] sm:$0xff]
      %v400 = vld [vmem:[%s331 + $0x50] sm:$0xff]
      %v401 = vld [vmem:[%s331 + $0x58] sm:$0xff]
      %v402 = vld [vmem:[%s331 + $0x60] sm:$0xff]
      %v403 = vld [vmem:[%s331 + $0x68] sm:$0xff]
      %v404 = vld [vmem:[%s331 + $0x70] sm:$0xff]
      %v405 = vld [vmem:[%s331 + $0x78] sm:$0xff]
      %v406 = vld [vmem:[%s331 + $0x80] sm:$0xff]
      %v407 = vld [vmem:[%s331 + $0x88] sm:$0xff]
      %v408 = vld [vmem:[%s331 + $0x90] sm:$0xff]
      %v409 = vld [vmem:[%s331 + $0x98] sm:$0xff]
      %v410 = vld [vmem:[%s331 + $0xa0] sm:$0xff]
      %v411 = vld [vmem:[%s331 + $0xa8] sm:$0xff]
      %v412 = vld [vmem:[%s331 + $0xb0] sm:$0xff]
      %v413 = vld [vmem:[%s331 + $0xb8] sm:$0xff]
      %v414 = vld [vmem:[%s331 + $0xc0] sm:$0xff]
      %v415 = vld [vmem:[%s331 + $0xc8] sm:$0xff]
      %v416 = vld [vmem:[%s331 + $0xd0] sm:$0xff]
      %v417 = vld [vmem:[%s331 + $0xd8] sm:$0xff]
      %v418 = vld [vmem:[%s331 + $0xe0] sm:$0xff]
      %v419 = vld [vmem:[%s331 + $0xe8] sm:$0xff]
      %v420 = vld [vmem:[%s331 + $0xf0] sm:$0xff]
      %v421 = vld [vmem:[%s331 + $0xf8] sm:$0xff]
      %v422 = vld [vmem:[%s331 + $0x100] sm:$0xff]
      %v423 = vld [vmem:[%s331 + $0x108] sm:$0xff]
      %v424 = vld [vmem:[%s331 + $0x110] sm:$0xff]
      %v425 = vld [vmem:[%s331 + $0x118] sm:$0xff]
      %v426 = vld [vmem:[%s331 + $0x120] sm:$0xff]
      %v427 = vld [vmem:[%s331 + $0x128] sm:$0xff]
      %v428 = vld [vmem:[%s331 + $0x130] sm:$0xff]
      %v429 = vld [vmem:[%s331 + $0x138] sm:$0xff]
      %v430 = vld [vmem:[%s331 + $0x140] sm:$0xff]
      %v431 = vld [vmem:[%s331 + $0x148] sm:$0xff]
      %v432 = vld [vmem:[%s331 + $0x150] sm:$0xff]
      %v433 = vld [vmem:[%s331 + $0x158] sm:$0xff]
      %v434 = vld [vmem:[%s331 + $0x160] sm:$0xff]
      %v435 = vld [vmem:[%s331 + $0x168] sm:$0xff]
      %v436 = vld [vmem:[%s331 + $0x170] sm:$0xff]
      %v437 = vld [vmem:[%s331 + $0x178] sm:$0xff]
      %v486 = vunpack.c.l.b16 %v390
      %v487 = vunpack.c.h.b16 %v390
      %v488 = vunpack.c.l.b16 %v391
      %v489 = vunpack.c.h.b16 %v391
      %v490 = vunpack.c.l.b16 %v392
      %v491 = vunpack.c.h.b16 %v392
      %v492 = vunpack.c.l.b16 %v393
      %v493 = vunpack.c.h.b16 %v393
      %v494 = vunpack.c.l.b16 %v394
      %v495 = vunpack.c.h.b16 %v394
      %v496 = vunpack.c.l.b16 %v395
      %v497 = vunpack.c.h.b16 %v395
      %v498 = vunpack.c.l.b16 %v396
      %v499 = vunpack.c.h.b16 %v396
      %v500 = vunpack.c.l.b16 %v397
      %v501 = vunpack.c.h.b16 %v397
      %v502 = vunpack.c.l.b16 %v398
      %v503 = vunpack.c.h.b16 %v398
      %v504 = vunpack.c.l.b16 %v399
      %v505 = vunpack.c.h.b16 %v399
      %v506 = vunpack.c.l.b16 %v400
      %v507 = vunpack.c.h.b16 %v400
      %v508 = vunpack.c.l.b16 %v401
      %v509 = vunpack.c.h.b16 %v401
      %v510 = vunpack.c.l.b16 %v402
      %v511 = vunpack.c.h.b16 %v402
      %v512 = vunpack.c.l.b16 %v403
      %v513 = vunpack.c.h.b16 %v403
      %v514 = vunpack.c.l.b16 %v404
      %v515 = vunpack.c.h.b16 %v404
      %v516 = vunpack.c.l.b16 %v405
      %v517 = vunpack.c.h.b16 %v405
      %v518 = vunpack.c.l.b16 %v406
      %v519 = vunpack.c.h.b16 %v406
      %v520 = vunpack.c.l.b16 %v407
      %v521 = vunpack.c.h.b16 %v407
      %v522 = vunpack.c.l.b16 %v408
      %v523 = vunpack.c.h.b16 %v408
      %v524 = vunpack.c.l.b16 %v409
      %v525 = vunpack.c.h.b16 %v409
      %v526 = vunpack.c.l.b16 %v410
      %v527 = vunpack.c.h.b16 %v410
      %v528 = vunpack.c.l.b16 %v411
      %v529 = vunpack.c.h.b16 %v411
      %v530 = vunpack.c.l.b16 %v412
      %v531 = vunpack.c.h.b16 %v412
      %v532 = vunpack.c.l.b16 %v413
      %v533 = vunpack.c.h.b16 %v413
      %v534 = vunpack.c.l.b16 %v414
      %v535 = vunpack.c.h.b16 %v414
      %v536 = vunpack.c.l.b16 %v415
      %v537 = vunpack.c.h.b16 %v415
      %v538 = vunpack.c.l.b16 %v416
      %v539 = vunpack.c.h.b16 %v416
      %v540 = vunpack.c.l.b16 %v417
      %v541 = vunpack.c.h.b16 %v417
      %v542 = vunpack.c.l.b16 %v418
      %v543 = vunpack.c.h.b16 %v418
      %v544 = vunpack.c.l.b16 %v419
      %v545 = vunpack.c.h.b16 %v419
      %v546 = vunpack.c.l.b16 %v420
      %v547 = vunpack.c.h.b16 %v420
      %v548 = vunpack.c.l.b16 %v421
      %v549 = vunpack.c.h.b16 %v421
      %v550 = vunpack.c.l.b16 %v422
      %v551 = vunpack.c.h.b16 %v422
      %v552 = vunpack.c.l.b16 %v423
      %v553 = vunpack.c.h.b16 %v423
      %v554 = vunpack.c.l.b16 %v424
      %v555 = vunpack.c.h.b16 %v424
      %v556 = vunpack.c.l.b16 %v425
      %v557 = vunpack.c.h.b16 %v425
      %v558 = vunpack.c.l.b16 %v426
      %v559 = vunpack.c.h.b16 %v426
      %v560 = vunpack.c.l.b16 %v427
      %v561 = vunpack.c.h.b16 %v427
      %v562 = vunpack.c.l.b16 %v428
      %v563 = vunpack.c.h.b16 %v428
      %v564 = vunpack.c.l.b16 %v429
      %v565 = vunpack.c.h.b16 %v429
      %v566 = vunpack.c.l.b16 %v430
      %v567 = vunpack.c.h.b16 %v430
      %v568 = vunpack.c.l.b16 %v431
      %v569 = vunpack.c.h.b16 %v431
      %v570 = vunpack.c.l.b16 %v432
      %v571 = vunpack.c.h.b16 %v432
      %v572 = vunpack.c.l.b16 %v433
      %v573 = vunpack.c.h.b16 %v433
      %v574 = vunpack.c.l.b16 %v434
      %v575 = vunpack.c.h.b16 %v434
      %v576 = vunpack.c.l.b16 %v435
      %v577 = vunpack.c.h.b16 %v435
      %v578 = vunpack.c.l.b16 %v436
      %v579 = vunpack.c.h.b16 %v436
      %v580 = vunpack.c.l.b16 %v437
      %v581 = vunpack.c.h.b16 %v437
      %v582 = vpack.c.b16 %v488, %v486
      %v583 = vpack.c.b16 %v489, %v487
      %v584 = vpack.c.b16 %v492, %v490
      %v585 = vpack.c.b16 %v493, %v491
      %v586 = vpack.c.b16 %v496, %v494
      %v587 = vpack.c.b16 %v497, %v495
      %v588 = vpack.c.b16 %v500, %v498
      %v589 = vpack.c.b16 %v501, %v499
      %v590 = vpack.c.b16 %v504, %v502
      %v591 = vpack.c.b16 %v505, %v503
      %v592 = vpack.c.b16 %v508, %v506
      %v593 = vpack.c.b16 %v509, %v507
      %v594 = vpack.c.b16 %v512, %v510
      %v595 = vpack.c.b16 %v513, %v511
      %v596 = vpack.c.b16 %v516, %v514
      %v597 = vpack.c.b16 %v517, %v515
      %v598 = vpack.c.b16 %v520, %v518
      %v599 = vpack.c.b16 %v521, %v519
      %v600 = vpack.c.b16 %v524, %v522
      %v601 = vpack.c.b16 %v525, %v523
      %v602 = vpack.c.b16 %v528, %v526
      %v603 = vpack.c.b16 %v529, %v527
      %v604 = vpack.c.b16 %v532, %v530
      %v605 = vpack.c.b16 %v533, %v531
      %v606 = vpack.c.b16 %v536, %v534
      %v607 = vpack.c.b16 %v537, %v535
      %v608 = vpack.c.b16 %v540, %v538
      %v609 = vpack.c.b16 %v541, %v539
      %v610 = vpack.c.b16 %v544, %v542
      %v611 = vpack.c.b16 %v545, %v543
      %v612 = vpack.c.b16 %v548, %v546
      %v613 = vpack.c.b16 %v549, %v547
      %v614 = vpack.c.b16 %v552, %v550
      %v615 = vpack.c.b16 %v553, %v551
      %v616 = vpack.c.b16 %v556, %v554
      %v617 = vpack.c.b16 %v557, %v555
      %v618 = vpack.c.b16 %v560, %v558
      %v619 = vpack.c.b16 %v561, %v559
      %v620 = vpack.c.b16 %v564, %v562
      %v621 = vpack.c.b16 %v565, %v563
      %v622 = vpack.c.b16 %v568, %v566
      %v623 = vpack.c.b16 %v569, %v567
      %v624 = vpack.c.b16 %v572, %v570
      %v625 = vpack.c.b16 %v573, %v571
      %v626 = vpack.c.b16 %v576, %v574
      %v627 = vpack.c.b16 %v577, %v575
      %v628 = vpack.c.b16 %v580, %v578
      %v629 = vpack.c.b16 %v581, %v579
      %v681 = vunpack.c.l.b16 %v361
      %v682 = vunpack.c.l.b16 %v362
      %v683 = vunpack.c.l.b16 %v363
      %v684 = vunpack.c.l.b16 %v364
      %v685 = vunpack.c.l.b16 %v365
      %v686 = vunpack.c.l.b16 %v366
      %v687 = vunpack.c.l.b16 %v367
      %v688 = vunpack.c.l.b16 %v368
      %v689 = vunpack.c.l.b16 %v369
      %v690 = vunpack.c.l.b16 %v370
      %v691 = vunpack.c.l.b16 %v371
      %v692 = vunpack.c.l.b16 %v372
      %v693 = vunpack.c.l.b16 %v373
      %v694 = vunpack.c.l.b16 %v374
      %v695 = vunpack.c.l.b16 %v375
      %v696 = vunpack.c.l.b16 %v376
      %v697 = vunpack.c.l.b16 %v377
      %v698 = vunpack.c.l.b16 %v378
      %v699 = vunpack.c.l.b16 %v379
      %v700 = vunpack.c.l.b16 %v380
      %v701 = vunpack.c.l.b16 %v381
      %v702 = vunpack.c.l.b16 %v382
      %v703 = vunpack.c.l.b16 %v383
      %v704 = vunpack.c.l.b16 %v384
      %v705 = vunpack.c.l.b16 %v385
      %v706 = vunpack.c.l.b16 %v386
      %v707 = vunpack.c.l.b16 %v387
      %v708 = vpack.c.b16 %v682, %v681
      %v709 = vpack.c.b16 %v684, %v683
      %v710 = vpack.c.b16 %v686, %v685
      %v711 = vpack.c.b16 %v688, %v687
      %v712 = vpack.c.b16 %v690, %v689
      %v713 = vpack.c.b16 %v692, %v691
      %v714 = vpack.c.b16 %v694, %v693
      %v715 = vpack.c.b16 %v696, %v695
      %v716 = vpack.c.b16 %v698, %v697
      %v717 = vpack.c.b16 %v700, %v699
      %v718 = vpack.c.b16 %v702, %v701
      %v719 = vpack.c.b16 %v704, %v703
      %v720 = vpack.c.b16 %v706, %v705
      %v721 = vpack.c.b16 %v707, %v707
      %vm735 = vcmask 719872
      %v737 = vsel %vm735, %v583, 0
      %v740 = vsel %vm735, %v585, 0
      %v743 = vsel %vm735, %v587, 0
      %v746 = vsel %vm735, %v589, 0
      %v749 = vsel %vm735, %v591, 0
      %v752 = vsel %vm735, %v593, 0
      %v755 = vsel %vm735, %v595, 0
      %v758 = vsel %vm735, %v597, 0
      %v761 = vsel %vm735, %v599, 0
      %v764 = vsel %vm735, %v601, 0
      %v767 = vsel %vm735, %v603, 0
      %v770 = vsel %vm735, %v605, 0
      %v773 = vsel %vm735, %v607, 0
      %v776 = vsel %vm735, %v609, 0
      %v779 = vsel %vm735, %v611, 0
      %v782 = vsel %vm735, %v613, 0
      %v785 = vsel %vm735, %v615, 0
      %v788 = vsel %vm735, %v617, 0
      %v791 = vsel %vm735, %v619, 0
      %v794 = vsel %vm735, %v621, 0
      %v797 = vsel %vm735, %v623, 0
      %v800 = vsel %vm735, %v625, 0
      %v803 = vsel %vm735, %v627, 0
      %v806 = vsel %vm735, %v629, 0
      %vm808 = vcmask 1043456
      %v810 = vsel %vm808, %v721, 0
      %812 = vmatprep.subr.bf16.mxu0 0
      %813 = vmatpush1.bf16.msra.mxu0 %v708
      %814 = vmatprep.subr.bf16.mxu0 0
      %815 = vmatpush1.bf16.msra.mxu0 %v709
      %816 = vmatprep.subr.bf16.mxu0 0
      %817 = vmatpush1.bf16.msra.mxu0 %v710
      %818 = vmatprep.subr.bf16.mxu0 0
      %819 = vmatpush1.bf16.msra.mxu0 %v711
      %820 = vmatprep.subr.bf16.mxu0 0
      %821 = vmatpush1.bf16.msra.mxu0 %v712
      %822 = vmatprep.subr.bf16.mxu0 0
      %823 = vmatpush1.bf16.msra.mxu0 %v713
      %824 = vmatprep.subr.bf16.mxu0 0
      %825 = vmatpush1.bf16.msra.mxu0 %v714
      %826 = vmatprep.subr.bf16.mxu0 0
      %827 = vmatpush1.bf16.msra.mxu0 %v715
      %828 = vmatprep.subr.bf16.mxu0 0
      %829 = vmatpush1.bf16.msra.mxu0 %v716
      %830 = vmatprep.subr.bf16.mxu0 0
      %831 = vmatpush1.bf16.msra.mxu0 %v717
      %832 = vmatprep.subr.bf16.mxu0 0
      %833 = vmatpush1.bf16.msra.mxu0 %v718
      %834 = vmatprep.subr.bf16.mxu0 0
      %835 = vmatpush1.bf16.msra.mxu0 %v719
      %836 = vmatprep.subr.bf16.mxu0 0
      %837 = vmatpush1.bf16.msra.mxu0 %v720
      %838 = vmatprep.subr.bf16.mxu0 0
      %839 = vmatpush1.bf16.msra.mxu0 %v810
      %840 = vmatprep.subr.bf16.mxu0 0
      %841 = vmatpush1.bf16.msra.mxu0 0
      %842 = vmatprep.subr.bf16.mxu0 0
      %843 = vmatpush1.bf16.msra.mxu0 0
      %844 = vmatprep.mubr.bf16.mxu0 %v737
      %845 = vmatmul.mubr.bf16.gmra.mrb[0].mxu0 %v582
      %v846 = vpop.f32.mrb[0].mxu0
      %v847 = vadd.f32 0.0, %v846
      %v848 = vpop.f32.mrb[0].mxu0
      %v849 = vpop.f32.mrb[0].mxu0
      %v850 = vadd.f32 0.0, %v849
      %v851 = vpop.f32.mrb[0].mxu0
      %852 = vmatprep.mubr.bf16.mxu0 %v740
      %853 = vmatmul.mubr.bf16.gmra.mrb[0].mxu0 %v584
      %v854 = vpop.f32.mrb[0].mxu0
      %v855 = vadd.f32 0.0, %v854
      %v856 = vpop.f32.mrb[0].mxu0
      %v857 = vpop.f32.mrb[0].mxu0
      %v858 = vadd.f32 0.0, %v857
      %v859 = vpop.f32.mrb[0].mxu0
      %860 = vmatprep.mubr.bf16.mxu0 %v743
      %861 = vmatmul.mubr.bf16.gmra.mrb[0].mxu0 %v586
      %v862 = vpop.f32.mrb[0].mxu0
      %v863 = vadd.f32 0.0, %v862
      %v864 = vpop.f32.mrb[0].mxu0
      %v865 = vpop.f32.mrb[0].mxu0
      %v866 = vadd.f32 0.0, %v865
      %v867 = vpop.f32.mrb[0].mxu0
      %868 = vmatprep.mubr.bf16.mxu0 %v746
      %869 = vmatmul.mubr.bf16.gmra.mrb[0].mxu0 %v588
      %v870 = vpop.f32.mrb[0].mxu0
      %v871 = vadd.f32 0.0, %v870
      %v872 = vpop.f32.mrb[0].mxu0
      %v873 = vpop.f32.mrb[0].mxu0
      %v874 = vadd.f32 0.0, %v873
      %v875 = vpop.f32.mrb[0].mxu0
      %876 = vmatprep.mubr.bf16.mxu0 %v749
      %877 = vmatmul.mubr.bf16.gmra.mrb[0].mxu0 %v590
      %v878 = vpop.f32.mrb[0].mxu0
      %v879 = vadd.f32 0.0, %v878
      %v880 = vpop.f32.mrb[0].mxu0
      %v881 = vpop.f32.mrb[0].mxu0
      %v882 = vadd.f32 0.0, %v881
      %v883 = vpop.f32.mrb[0].mxu0
      %884 = vmatprep.mubr.bf16.mxu0 %v752
      %885 = vmatmul.mubr.bf16.gmra.mrb[0].mxu0 %v592
      %v886 = vpop.f32.mrb[0].mxu0
      %v887 = vadd.f32 0.0, %v886
      %v888 = vpop.f32.mrb[0].mxu0
      %v889 = vpop.f32.mrb[0].mxu0
      %v890 = vadd.f32 0.0, %v889
      %v891 = vpop.f32.mrb[0].mxu0
      %892 = vmatprep.mubr.bf16.mxu0 %v755
      %893 = vmatmul.mubr.bf16.gmra.mrb[0].mxu0 %v594
      %v894 = vpop.f32.mrb[0].mxu0
      %v895 = vadd.f32 0.0, %v894
      %v896 = vpop.f32.mrb[0].mxu0
      %v897 = vpop.f32.mrb[0].mxu0
      %v898 = vadd.f32 0.0, %v897
      %v899 = vpop.f32.mrb[0].mxu0
      %900 = vmatprep.mubr.bf16.mxu0 %v758
      %901 = vmatmul.mubr.bf16.gmra.mrb[0].mxu0 %v596
      %v902 = vpop.f32.mrb[0].mxu0
      %v903 = vadd.f32 0.0, %v902
      %v904 = vpop.f32.mrb[0].mxu0
      %v905 = vpop.f32.mrb[0].mxu0
      %v906 = vadd.f32 0.0, %v905
      %v907 = vpop.f32.mrb[0].mxu0
      %908 = vmatprep.mubr.bf16.mxu0 %v761
      %909 = vmatmul.mubr.bf16.gmra.mrb[0].mxu0 %v598
      %v910 = vpop.f32.mrb[0].mxu0
      %v911 = vadd.f32 0.0, %v910
      %v912 = vpop.f32.mrb[0].mxu0
      %v913 = vpop.f32.mrb[0].mxu0
      %v914 = vadd.f32 0.0, %v913
      %v915 = vpop.f32.mrb[0].mxu0
      %916 = vmatprep.mubr.bf16.mxu0 %v764
      %917 = vmatmul.mubr.bf16.gmra.mrb[0].mxu0 %v600
      %v918 = vpop.f32.mrb[0].mxu0
      %v919 = vadd.f32 0.0, %v918
      %v920 = vpop.f32.mrb[0].mxu0
      %v921 = vpop.f32.mrb[0].mxu0
      %v922 = vadd.f32 0.0, %v921
      %v923 = vpop.f32.mrb[0].mxu0
      %924 = vmatprep.mubr.bf16.mxu0 %v767
      %925 = vmatmul.mubr.bf16.gmra.mrb[0].mxu0 %v602
      %v926 = vpop.f32.mrb[0].mxu0
      %v927 = vadd.f32 0.0, %v926
      %v928 = vpop.f32.mrb[0].mxu0
      %v929 = vpop.f32.mrb[0].mxu0
      %v930 = vadd.f32 0.0, %v929
      %v931 = vpop.f32.mrb[0].mxu0
      %932 = vmatprep.mubr.bf16.mxu0 %v770
      %933 = vmatmul.mubr.bf16.gmra.mrb[0].mxu0 %v604
      %v934 = vpop.f32.mrb[0].mxu0
      %v935 = vadd.f32 0.0, %v934
      %v936 = vpop.f32.mrb[0].mxu0
      %v937 = vpop.f32.mrb[0].mxu0
      %v938 = vadd.f32 0.0, %v937
      %v939 = vpop.f32.mrb[0].mxu0
      %940 = vmatprep.mubr.bf16.mxu0 %v773
      %941 = vmatmul.mubr.bf16.gmra.mrb[0].mxu0 %v606
      %v942 = vpop.f32.mrb[0].mxu0
      %v943 = vadd.f32 0.0, %v942
      %v944 = vpop.f32.mrb[0].mxu0
      %v945 = vpop.f32.mrb[0].mxu0
      %v946 = vadd.f32 0.0, %v945
      %v947 = vpop.f32.mrb[0].mxu0
      %948 = vmatprep.mubr.bf16.mxu0 %v776
      %949 = vmatmul.mubr.bf16.gmra.mrb[0].mxu0 %v608
      %v950 = vpop.f32.mrb[0].mxu0
      %v951 = vadd.f32 0.0, %v950
      %v952 = vpop.f32.mrb[0].mxu0
      %v953 = vpop.f32.mrb[0].mxu0
      %v954 = vadd.f32 0.0, %v953
      %v955 = vpop.f32.mrb[0].mxu0
      %956 = vmatprep.mubr.bf16.mxu0 %v779
      %957 = vmatmul.mubr.bf16.gmra.mrb[0].mxu0 %v610
      %v958 = vpop.f32.mrb[0].mxu0
      %v959 = vadd.f32 0.0, %v958
      %v960 = vpop.f32.mrb[0].mxu0
      %v961 = vpop.f32.mrb[0].mxu0
      %v962 = vadd.f32 0.0, %v961
      %v963 = vpop.f32.mrb[0].mxu0
      %964 = vmatprep.mubr.bf16.mxu0 %v782
      %965 = vmatmul.mubr.bf16.gmra.mrb[0].mxu0 %v612
      %v966 = vpop.f32.mrb[0].mxu0
      %v967 = vadd.f32 0.0, %v966
      %v968 = vpop.f32.mrb[0].mxu0
      %v969 = vpop.f32.mrb[0].mxu0
      %v970 = vadd.f32 0.0, %v969
      %v971 = vpop.f32.mrb[0].mxu0
      %972 = vmatprep.mubr.bf16.mxu0 %v785
      %973 = vmatmul.mubr.bf16.gmra.mrb[0].mxu0 %v614
      %v974 = vpop.f32.mrb[0].mxu0
      %v975 = vadd.f32 0.0, %v974
      %v976 = vpop.f32.mrb[0].mxu0
      %v977 = vpop.f32.mrb[0].mxu0
      %v978 = vadd.f32 0.0, %v977
      %v979 = vpop.f32.mrb[0].mxu0
      %980 = vmatprep.mubr.bf16.mxu0 %v788
      %981 = vmatmul.mubr.bf16.gmra.mrb[0].mxu0 %v616
      %v982 = vpop.f32.mrb[0].mxu0
      %v983 = vadd.f32 0.0, %v982
      %v984 = vpop.f32.mrb[0].mxu0
      %v985 = vpop.f32.mrb[0].mxu0
      %v986 = vadd.f32 0.0, %v985
      %v987 = vpop.f32.mrb[0].mxu0
      %988 = vmatprep.mubr.bf16.mxu0 %v791
      %989 = vmatmul.mubr.bf16.gmra.mrb[0].mxu0 %v618
      %v990 = vpop.f32.mrb[0].mxu0
      %v991 = vadd.f32 0.0, %v990
      %v992 = vpop.f32.mrb[0].mxu0
      %v993 = vpop.f32.mrb[0].mxu0
      %v994 = vadd.f32 0.0, %v993
      %v995 = vpop.f32.mrb[0].mxu0
      %996 = vmatprep.mubr.bf16.mxu0 %v794
      %997 = vmatmul.mubr.bf16.gmra.mrb[0].mxu0 %v620
      %v998 = vpop.f32.mrb[0].mxu0
      %v999 = vadd.f32 0.0, %v998
      %v1000 = vpop.f32.mrb[0].mxu0
      %v1001 = vpop.f32.mrb[0].mxu0
      %v1002 = vadd.f32 0.0, %v1001
      %v1003 = vpop.f32.mrb[0].mxu0
      %1004 = vmatprep.mubr.bf16.mxu0 %v797
      %1005 = vmatmul.mubr.bf16.gmra.mrb[0].mxu0 %v622
      %v1006 = vpop.f32.mrb[0].mxu0
      %v1007 = vadd.f32 0.0, %v1006
      %v1008 = vpop.f32.mrb[0].mxu0
      %v1009 = vpop.f32.mrb[0].mxu0
      %v1010 = vadd.f32 0.0, %v1009
      %v1011 = vpop.f32.mrb[0].mxu0
      %1012 = vmatprep.mubr.bf16.mxu0 %v800
      %1013 = vmatmul.mubr.bf16.gmra.mrb[0].mxu0 %v624
      %v1014 = vpop.f32.mrb[0].mxu0
      %v1015 = vadd.f32 0.0, %v1014
      %v1016 = vpop.f32.mrb[0].mxu0
      %v1017 = vpop.f32.mrb[0].mxu0
      %v1018 = vadd.f32 0.0, %v1017
      %v1019 = vpop.f32.mrb[0].mxu0
      %1020 = vmatprep.mubr.bf16.mxu0 %v803
      %1021 = vmatmul.mubr.bf16.gmra.mrb[0].mxu0 %v626
      %v1022 = vpop.f32.mrb[0].mxu0
      %v1023 = vadd.f32 0.0, %v1022
      %v1024 = vpop.f32.mrb[0].mxu0
      %v1025 = vpop.f32.mrb[0].mxu0
      %v1026 = vadd.f32 0.0, %v1025
      %v1027 = vpop.f32.mrb[0].mxu0
      %1028 = vmatprep.mubr.bf16.mxu0 %v806
      %1029 = vmatmul.mubr.bf16.gmra.mrb[0].mxu0 %v628
      %v1030 = vpop.f32.mrb[0].mxu0
      %v1031 = vadd.f32 0.0, %v1030
      %v1032 = vpop.f32.mrb[0].mxu0
      %v1033 = vpop.f32.mrb[0].mxu0
      %v1034 = vadd.f32 0.0, %v1033
      %v1035 = vpop.f32.mrb[0].mxu0
      %1036 = vdwg.mxu0
      %v1038 = vlaneseq
      %v1039 = vshrl.u32 %v1038, 7
      %v1040 = vsub.s32 0, %v1039
      %v1041 = vrot.slane %v388, %v1040
      %v1043 = vmul.f32 %v847, %v1041
      %v1044 = vmul.f32 %v850, %v1041
      %v1045 = vmul.f32 %v855, %v1041
      %v1046 = vmul.f32 %v858, %v1041
      %v1047 = vmul.f32 %v863, %v1041
      %v1048 = vmul.f32 %v866, %v1041
      %v1049 = vmul.f32 %v871, %v1041
      %v1050 = vmul.f32 %v874, %v1041
      %v1051 = vmul.f32 %v879, %v1041
      %v1052 = vmul.f32 %v882, %v1041
      %v1053 = vmul.f32 %v887, %v1041
      %v1054 = vmul.f32 %v890, %v1041
      %v1055 = vmul.f32 %v895, %v1041
      %v1056 = vmul.f32 %v898, %v1041
      %v1057 = vmul.f32 %v903, %v1041
      %v1058 = vmul.f32 %v906, %v1041
      %v1059 = vmul.f32 %v911, %v1041
      %v1060 = vmul.f32 %v914, %v1041
      %v1061 = vmul.f32 %v919, %v1041
      %v1062 = vmul.f32 %v922, %v1041
      %v1063 = vmul.f32 %v927, %v1041
      %v1064 = vmul.f32 %v930, %v1041
      %v1065 = vmul.f32 %v935, %v1041
      %v1066 = vmul.f32 %v938, %v1041
      %v1067 = vmul.f32 %v943, %v1041
      %v1068 = vmul.f32 %v946, %v1041
      %v1069 = vmul.f32 %v951, %v1041
      %v1070 = vmul.f32 %v954, %v1041
      %v1071 = vmul.f32 %v959, %v1041
      %v1072 = vmul.f32 %v962, %v1041
      %v1073 = vmul.f32 %v967, %v1041
      %v1074 = vmul.f32 %v970, %v1041
      %v1075 = vmul.f32 %v975, %v1041
      %v1076 = vmul.f32 %v978, %v1041
      %v1077 = vmul.f32 %v983, %v1041
      %v1078 = vmul.f32 %v986, %v1041
      %v1079 = vmul.f32 %v991, %v1041
      %v1080 = vmul.f32 %v994, %v1041
      %v1081 = vmul.f32 %v999, %v1041
      %v1082 = vmul.f32 %v1002, %v1041
      %v1083 = vmul.f32 %v1007, %v1041
      %v1084 = vmul.f32 %v1010, %v1041
      %v1085 = vmul.f32 %v1015, %v1041
      %v1086 = vmul.f32 %v1018, %v1041
      %v1087 = vmul.f32 %v1023, %v1041
      %v1088 = vmul.f32 %v1026, %v1041
      %v1089 = vmul.f32 %v1031, %v1041
      %v1090 = vmul.f32 %v1034, %v1041
      %v1092 = vlaneseq
      %v1093 = vshrl.u32 %v1092, 7
      %v1094 = vsub.s32 0, %v1093
      %v1095 = vrot.slane %v389, %v1094
      %v1097 = vadd.f32 %v1043, %v1095
      %v1098 = vadd.f32 %v1044, %v1095
      %v1099 = vadd.f32 %v1045, %v1095
      %v1100 = vadd.f32 %v1046, %v1095
      %v1101 = vadd.f32 %v1047, %v1095
      %v1102 = vadd.f32 %v1048, %v1095
      %v1103 = vadd.f32 %v1049, %v1095
      %v1104 = vadd.f32 %v1050, %v1095
      %v1105 = vadd.f32 %v1051, %v1095
      %v1106 = vadd.f32 %v1052, %v1095
      %v1107 = vadd.f32 %v1053, %v1095
      %v1108 = vadd.f32 %v1054, %v1095
      %v1109 = vadd.f32 %v1055, %v1095
      %v1110 = vadd.f32 %v1056, %v1095
      %v1111 = vadd.f32 %v1057, %v1095
      %v1112 = vadd.f32 %v1058, %v1095
      %v1113 = vadd.f32 %v1059, %v1095
      %v1114 = vadd.f32 %v1060, %v1095
      %v1115 = vadd.f32 %v1061, %v1095
      %v1116 = vadd.f32 %v1062, %v1095
      %v1117 = vadd.f32 %v1063, %v1095
      %v1118 = vadd.f32 %v1064, %v1095
      %v1119 = vadd.f32 %v1065, %v1095
      %v1120 = vadd.f32 %v1066, %v1095
      %v1121 = vadd.f32 %v1067, %v1095
      %v1122 = vadd.f32 %v1068, %v1095
      %v1123 = vadd.f32 %v1069, %v1095
      %v1124 = vadd.f32 %v1070, %v1095
      %v1125 = vadd.f32 %v1071, %v1095
      %v1126 = vadd.f32 %v1072, %v1095
      %v1127 = vadd.f32 %v1073, %v1095
      %v1128 = vadd.f32 %v1074, %v1095
      %v1129 = vadd.f32 %v1075, %v1095
      %v1130 = vadd.f32 %v1076, %v1095
      %v1131 = vadd.f32 %v1077, %v1095
      %v1132 = vadd.f32 %v1078, %v1095
      %v1133 = vadd.f32 %v1079, %v1095
      %v1134 = vadd.f32 %v1080, %v1095
      %v1135 = vadd.f32 %v1081, %v1095
      %v1136 = vadd.f32 %v1082, %v1095
      %v1137 = vadd.f32 %v1083, %v1095
      %v1138 = vadd.f32 %v1084, %v1095
      %v1139 = vadd.f32 %v1085, %v1095
      %v1140 = vadd.f32 %v1086, %v1095
      %v1141 = vadd.f32 %v1087, %v1095
      %v1142 = vadd.f32 %v1088, %v1095
      %v1143 = vadd.f32 %v1089, %v1095
      %v1144 = vadd.f32 %v1090, %v1095
      %v1145 = vld [vmem:[%s338] sm:$0xff]
      %v1146 = vld [vmem:[%s338 + $0x8] sm:$0xff]
      %v1147 = vld [vmem:[%s338 + $0x10] sm:$0xff]
      %v1148 = vld [vmem:[%s338 + $0x18] sm:$0xff]
      %v1149 = vld [vmem:[%s338 + $0x20] sm:$0xff]
      %v1150 = vld [vmem:[%s338 + $0x28] sm:$0xff]
      %v1151 = vld [vmem:[%s338 + $0x30] sm:$0xff]
      %v1152 = vld [vmem:[%s338 + $0x38] sm:$0xff]
      %v1153 = vld [vmem:[%s338 + $0x40] sm:$0xff]
      %v1154 = vld [vmem:[%s338 + $0x48] sm:$0xff]
      %v1155 = vld [vmem:[%s338 + $0x50] sm:$0xff]
      %v1156 = vld [vmem:[%s338 + $0x58] sm:$0xff]
      %v1157 = vld [vmem:[%s338 + $0x60] sm:$0xff]
      %v1158 = vld [vmem:[%s338 + $0x68] sm:$0xff]
      %v1159 = vld [vmem:[%s338 + $0x70] sm:$0xff]
      %v1160 = vld [vmem:[%s338 + $0x78] sm:$0xff]
      %v1161 = vld [vmem:[%s338 + $0x80] sm:$0xff]
      %v1162 = vld [vmem:[%s338 + $0x88] sm:$0xff]
      %v1163 = vld [vmem:[%s338 + $0x90] sm:$0xff]
      %v1164 = vld [vmem:[%s338 + $0x98] sm:$0xff]
      %v1165 = vld [vmem:[%s338 + $0xa0] sm:$0xff]
      %v1166 = vld [vmem:[%s338 + $0xa8] sm:$0xff]
      %v1167 = vld [vmem:[%s338 + $0xb0] sm:$0xff]
      %v1168 = vld [vmem:[%s338 + $0xb8] sm:$0xff]
      %v1169 = vld [vmem:[%s338 + $0xc0] sm:$0xff]
      %v1170 = vld [vmem:[%s338 + $0xc8] sm:$0xff]
      %v1171 = vld [vmem:[%s338 + $0xd0] sm:$0xff]
      %v1172 = vld [vmem:[%s338 + $0xd8] sm:$0xff]
      %v1173 = vld [vmem:[%s338 + $0xe0] sm:$0xff]
      %v1174 = vld [vmem:[%s338 + $0xe8] sm:$0xff]
      %v1175 = vld [vmem:[%s338 + $0xf0] sm:$0xff]
      %v1176 = vld [vmem:[%s338 + $0xf8] sm:$0xff]
      %v1177 = vld [vmem:[%s338 + $0x100] sm:$0xff]
      %v1178 = vld [vmem:[%s338 + $0x108] sm:$0xff]
      %v1179 = vld [vmem:[%s338 + $0x110] sm:$0xff]
      %v1180 = vld [vmem:[%s338 + $0x118] sm:$0xff]
      %v1181 = vld [vmem:[%s338 + $0x120] sm:$0xff]
      %v1182 = vld [vmem:[%s338 + $0x128] sm:$0xff]
      %v1183 = vld [vmem:[%s338 + $0x130] sm:$0xff]
      %v1184 = vld [vmem:[%s338 + $0x138] sm:$0xff]
      %v1185 = vld [vmem:[%s338 + $0x140] sm:$0xff]
      %v1186 = vld [vmem:[%s338 + $0x148] sm:$0xff]
      %v1187 = vld [vmem:[%s338 + $0x150] sm:$0xff]
      %v1188 = vld [vmem:[%s338 + $0x158] sm:$0xff]
      %v1189 = vld [vmem:[%s338 + $0x160] sm:$0xff]
      %v1190 = vld [vmem:[%s338 + $0x168] sm:$0xff]
      %v1191 = vld [vmem:[%s338 + $0x170] sm:$0xff]
      %v1192 = vld [vmem:[%s338 + $0x178] sm:$0xff]
      %v1241 = vunpack.c.l.b16 %v1145
      %v1242 = vunpack.c.h.b16 %v1145
      %v1243 = vunpack.c.l.b16 %v1146
      %v1244 = vunpack.c.h.b16 %v1146
      %v1245 = vunpack.c.l.b16 %v1147
      %v1246 = vunpack.c.h.b16 %v1147
      %v1247 = vunpack.c.l.b16 %v1148
      %v1248 = vunpack.c.h.b16 %v1148
      %v1249 = vunpack.c.l.b16 %v1149
      %v1250 = vunpack.c.h.b16 %v1149
      %v1251 = vunpack.c.l.b16 %v1150
      %v1252 = vunpack.c.h.b16 %v1150
      %v1253 = vunpack.c.l.b16 %v1151
      %v1254 = vunpack.c.h.b16 %v1151
      %v1255 = vunpack.c.l.b16 %v1152
      %v1256 = vunpack.c.h.b16 %v1152
      %v1257 = vunpack.c.l.b16 %v1153
      %v1258 = vunpack.c.h.b16 %v1153
      %v1259 = vunpack.c.l.b16 %v1154
      %v1260 = vunpack.c.h.b16 %v1154
      %v1261 = vunpack.c.l.b16 %v1155
      %v1262 = vunpack.c.h.b16 %v1155
      %v1263 = vunpack.c.l.b16 %v1156
      %v1264 = vunpack.c.h.b16 %v1156
      %v1265 = vunpack.c.l.b16 %v1157
      %v1266 = vunpack.c.h.b16 %v1157
      %v1267 = vunpack.c.l.b16 %v1158
      %v1268 = vunpack.c.h.b16 %v1158
      %v1269 = vunpack.c.l.b16 %v1159
      %v1270 = vunpack.c.h.b16 %v1159
      %v1271 = vunpack.c.l.b16 %v1160
      %v1272 = vunpack.c.h.b16 %v1160
      %v1273 = vunpack.c.l.b16 %v1161
      %v1274 = vunpack.c.h.b16 %v1161
      %v1275 = vunpack.c.l.b16 %v1162
      %v1276 = vunpack.c.h.b16 %v1162
      %v1277 = vunpack.c.l.b16 %v1163
      %v1278 = vunpack.c.h.b16 %v1163
      %v1279 = vunpack.c.l.b16 %v1164
      %v1280 = vunpack.c.h.b16 %v1164
      %v1281 = vunpack.c.l.b16 %v1165
      %v1282 = vunpack.c.h.b16 %v1165
      %v1283 = vunpack.c.l.b16 %v1166
      %v1284 = vunpack.c.h.b16 %v1166
      %v1285 = vunpack.c.l.b16 %v1167
      %v1286 = vunpack.c.h.b16 %v1167
      %v1287 = vunpack.c.l.b16 %v1168
      %v1288 = vunpack.c.h.b16 %v1168
      %v1289 = vunpack.c.l.b16 %v1169
      %v1290 = vunpack.c.h.b16 %v1169
      %v1291 = vunpack.c.l.b16 %v1170
      %v1292 = vunpack.c.h.b16 %v1170
      %v1293 = vunpack.c.l.b16 %v1171
      %v1294 = vunpack.c.h.b16 %v1171
      %v1295 = vunpack.c.l.b16 %v1172
      %v1296 = vunpack.c.h.b16 %v1172
      %v1297 = vunpack.c.l.b16 %v1173
      %v1298 = vunpack.c.h.b16 %v1173
      %v1299 = vunpack.c.l.b16 %v1174
      %v1300 = vunpack.c.h.b16 %v1174
      %v1301 = vunpack.c.l.b16 %v1175
      %v1302 = vunpack.c.h.b16 %v1175
      %v1303 = vunpack.c.l.b16 %v1176
      %v1304 = vunpack.c.h.b16 %v1176
      %v1305 = vunpack.c.l.b16 %v1177
      %v1306 = vunpack.c.h.b16 %v1177
      %v1307 = vunpack.c.l.b16 %v1178
      %v1308 = vunpack.c.h.b16 %v1178
      %v1309 = vunpack.c.l.b16 %v1179
      %v1310 = vunpack.c.h.b16 %v1179
      %v1311 = vunpack.c.l.b16 %v1180
      %v1312 = vunpack.c.h.b16 %v1180
      %v1313 = vunpack.c.l.b16 %v1181
      %v1314 = vunpack.c.h.b16 %v1181
      %v1315 = vunpack.c.l.b16 %v1182
      %v1316 = vunpack.c.h.b16 %v1182
      %v1317 = vunpack.c.l.b16 %v1183
      %v1318 = vunpack.c.h.b16 %v1183
      %v1319 = vunpack.c.l.b16 %v1184
      %v1320 = vunpack.c.h.b16 %v1184
      %v1321 = vunpack.c.l.b16 %v1185
      %v1322 = vunpack.c.h.b16 %v1185
      %v1323 = vunpack.c.l.b16 %v1186
      %v1324 = vunpack.c.h.b16 %v1186
      %v1325 = vunpack.c.l.b16 %v1187
      %v1326 = vunpack.c.h.b16 %v1187
      %v1327 = vunpack.c.l.b16 %v1188
      %v1328 = vunpack.c.h.b16 %v1188
      %v1329 = vunpack.c.l.b16 %v1189
      %v1330 = vunpack.c.h.b16 %v1189
      %v1331 = vunpack.c.l.b16 %v1190
      %v1332 = vunpack.c.h.b16 %v1190
      %v1333 = vunpack.c.l.b16 %v1191
      %v1334 = vunpack.c.h.b16 %v1191
      %v1335 = vunpack.c.l.b16 %v1192
      %v1336 = vunpack.c.h.b16 %v1192
      %v1337 = vpack.c.b16 %v1243, %v1241
      %v1338 = vpack.c.b16 %v1244, %v1242
      %v1339 = vpack.c.b16 %v1247, %v1245
      %v1340 = vpack.c.b16 %v1248, %v1246
      %v1341 = vpack.c.b16 %v1251, %v1249
      %v1342 = vpack.c.b16 %v1252, %v1250
      %v1343 = vpack.c.b16 %v1255, %v1253
      %v1344 = vpack.c.b16 %v1256, %v1254
      %v1345 = vpack.c.b16 %v1259, %v1257
      %v1346 = vpack.c.b16 %v1260, %v1258
      %v1347 = vpack.c.b16 %v1263, %v1261
      %v1348 = vpack.c.b16 %v1264, %v1262
      %v1349 = vpack.c.b16 %v1267, %v1265
      %v1350 = vpack.c.b16 %v1268, %v1266
      %v1351 = vpack.c.b16 %v1271, %v1269
      %v1352 = vpack.c.b16 %v1272, %v1270
      %v1353 = vpack.c.b16 %v1275, %v1273
      %v1354 = vpack.c.b16 %v1276, %v1274
      %v1355 = vpack.c.b16 %v1279, %v1277
      %v1356 = vpack.c.b16 %v1280, %v1278
      %v1357 = vpack.c.b16 %v1283, %v1281
      %v1358 = vpack.c.b16 %v1284, %v1282
      %v1359 = vpack.c.b16 %v1287, %v1285
      %v1360 = vpack.c.b16 %v1288, %v1286
      %v1361 = vpack.c.b16 %v1291, %v1289
      %v1362 = vpack.c.b16 %v1292, %v1290
      %v1363 = vpack.c.b16 %v1295, %v1293
      %v1364 = vpack.c.b16 %v1296, %v1294
      %v1365 = vpack.c.b16 %v1299, %v1297
      %v1366 = vpack.c.b16 %v1300, %v1298
      %v1367 = vpack.c.b16 %v1303, %v1301
      %v1368 = vpack.c.b16 %v1304, %v1302
      %v1369 = vpack.c.b16 %v1307, %v1305
      %v1370 = vpack.c.b16 %v1308, %v1306
      %v1371 = vpack.c.b16 %v1311, %v1309
      %v1372 = vpack.c.b16 %v1312, %v1310
      %v1373 = vpack.c.b16 %v1315, %v1313
      %v1374 = vpack.c.b16 %v1316, %v1314
      %v1375 = vpack.c.b16 %v1319, %v1317
      %v1376 = vpack.c.b16 %v1320, %v1318
      %v1377 = vpack.c.b16 %v1323, %v1321
      %v1378 = vpack.c.b16 %v1324, %v1322
      %v1379 = vpack.c.b16 %v1327, %v1325
      %v1380 = vpack.c.b16 %v1328, %v1326
      %v1381 = vpack.c.b16 %v1331, %v1329
      %v1382 = vpack.c.b16 %v1332, %v1330
      %v1383 = vpack.c.b16 %v1335, %v1333
      %v1384 = vpack.c.b16 %v1336, %v1334
      %v1410 = vsel %vm735, %v1338, 0
      %v1413 = vsel %vm735, %v1340, 0
      %v1416 = vsel %vm735, %v1342, 0
      %v1419 = vsel %vm735, %v1344, 0
      %v1422 = vsel %vm735, %v1346, 0
      %v1425 = vsel %vm735, %v1348, 0
      %v1428 = vsel %vm735, %v1350, 0
      %v1431 = vsel %vm735, %v1352, 0
      %v1434 = vsel %vm735, %v1354, 0
      %v1437 = vsel %vm735, %v1356, 0
      %v1440 = vsel %vm735, %v1358, 0
      %v1443 = vsel %vm735, %v1360, 0
      %v1446 = vsel %vm735, %v1362, 0
      %v1449 = vsel %vm735, %v1364, 0
      %v1452 = vsel %vm735, %v1366, 0
      %v1455 = vsel %vm735, %v1368, 0
      %v1458 = vsel %vm735, %v1370, 0
      %v1461 = vsel %vm735, %v1372, 0
      %v1464 = vsel %vm735, %v1374, 0
      %v1467 = vsel %vm735, %v1376, 0
      %v1470 = vsel %vm735, %v1378, 0
      %v1473 = vsel %vm735, %v1380, 0
      %v1476 = vsel %vm735, %v1382, 0
      %v1479 = vsel %vm735, %v1384, 0
      %1481 = vmatprep.subr.bf16.mxu0 0
      %1482 = vmatpush1.bf16.msra.mxu0 %v708
      %1483 = vmatprep.subr.bf16.mxu0 0
      %1484 = vmatpush1.bf16.msra.mxu0 %v709
      %1485 = vmatprep.subr.bf16.mxu0 0
      %1486 = vmatpush1.bf16.msra.mxu0 %v710
      %1487 = vmatprep.subr.bf16.mxu0 0
      %1488 = vmatpush1.bf16.msra.mxu0 %v711
      %1489 = vmatprep.subr.bf16.mxu0 0
      %1490 = vmatpush1.bf16.msra.mxu0 %v712
      %1491 = vmatprep.subr.bf16.mxu0 0
      %1492 = vmatpush1.bf16.msra.mxu0 %v713
      %1493 = vmatprep.subr.bf16.mxu0 0
      %1494 = vmatpush1.bf16.msra.mxu0 %v714
      %1495 = vmatprep.subr.bf16.mxu0 0
      %1496 = vmatpush1.bf16.msra.mxu0 %v715
      %1497 = vmatprep.subr.bf16.mxu0 0
      %1498 = vmatpush1.bf16.msra.mxu0 %v716
      %1499 = vmatprep.subr.bf16.mxu0 0
      %1500 = vmatpush1.bf16.msra.mxu0 %v717
      %1501 = vmatprep.subr.bf16.mxu0 0
      %1502 = vmatpush1.bf16.msra.mxu0 %v718
      %1503 = vmatprep.subr.bf16.mxu0 0
      %1504 = vmatpush1.bf16.msra.mxu0 %v719
      %1505 = vmatprep.subr.bf16.mxu0 0
      %1506 = vmatpush1.bf16.msra.mxu0 %v720
      %1507 = vmatprep.subr.bf16.mxu0 0
      %1508 = vmatpush1.bf16.msra.mxu0 %v810
      %1509 = vmatprep.subr.bf16.mxu0 0
      %1510 = vmatpush1.bf16.msra.mxu0 0
      %1511 = vmatprep.subr.bf16.mxu0 0
      %1512 = vmatpush1.bf16.msra.mxu0 0
      %1513 = vmatprep.mubr.bf16.mxu0 %v1410
      %1514 = vmatmul.mubr.bf16.gmra.mrb[0].mxu0 %v1337
      %v1515 = vpop.f32.mrb[0].mxu0
      %v1516 = vadd.f32 0.0, %v1515
      %v1517 = vpop.f32.mrb[0].mxu0
      %v1518 = vpop.f32.mrb[0].mxu0
      %v1519 = vadd.f32 0.0, %v1518
      %v1520 = vpop.f32.mrb[0].mxu0
      %1521 = vmatprep.mubr.bf16.mxu0 %v1413
      %1522 = vmatmul.mubr.bf16.gmra.mrb[0].mxu0 %v1339
      %v1523 = vpop.f32.mrb[0].mxu0
      %v1524 = vadd.f32 0.0, %v1523
      %v1525 = vpop.f32.mrb[0].mxu0
      %v1526 = vpop.f32.mrb[0].mxu0
      %v1527 = vadd.f32 0.0, %v1526
      %v1528 = vpop.f32.mrb[0].mxu0
      %1529 = vmatprep.mubr.bf16.mxu0 %v1416
      %1530 = vmatmul.mubr.bf16.gmra.mrb[0].mxu0 %v1341
      %v1531 = vpop.f32.mrb[0].mxu0
      %v1532 = vadd.f32 0.0, %v1531
      %v1533 = vpop.f32.mrb[0].mxu0
      %v1534 = vpop.f32.mrb[0].mxu0
      %v1535 = vadd.f32 0.0, %v1534
      %v1536 = vpop.f32.mrb[0].mxu0
      %1537 = vmatprep.mubr.bf16.mxu0 %v1419
      %1538 = vmatmul.mubr.bf16.gmra.mrb[0].mxu0 %v1343
      %v1539 = vpop.f32.mrb[0].mxu0
      %v1540 = vadd.f32 0.0, %v1539
      %v1541 = vpop.f32.mrb[0].mxu0
      %v1542 = vpop.f32.mrb[0].mxu0
      %v1543 = vadd.f32 0.0, %v1542
      %v1544 = vpop.f32.mrb[0].mxu0
      %1545 = vmatprep.mubr.bf16.mxu0 %v1422
      %1546 = vmatmul.mubr.bf16.gmra.mrb[0].mxu0 %v1345
      %v1547 = vpop.f32.mrb[0].mxu0
      %v1548 = vadd.f32 0.0, %v1547
      %v1549 = vpop.f32.mrb[0].mxu0
      %v1550 = vpop.f32.mrb[0].mxu0
      %v1551 = vadd.f32 0.0, %v1550
      %v1552 = vpop.f32.mrb[0].mxu0
      %1553 = vmatprep.mubr.bf16.mxu0 %v1425
      %1554 = vmatmul.mubr.bf16.gmra.mrb[0].mxu0 %v1347
      %v1555 = vpop.f32.mrb[0].mxu0
      %v1556 = vadd.f32 0.0, %v1555
      %v1557 = vpop.f32.mrb[0].mxu0
      %v1558 = vpop.f32.mrb[0].mxu0
      %v1559 = vadd.f32 0.0, %v1558
      %v1560 = vpop.f32.mrb[0].mxu0
      %1561 = vmatprep.mubr.bf16.mxu0 %v1428
      %1562 = vmatmul.mubr.bf16.gmra.mrb[0].mxu0 %v1349
      %v1563 = vpop.f32.mrb[0].mxu0
      %v1564 = vadd.f32 0.0, %v1563
      %v1565 = vpop.f32.mrb[0].mxu0
      %v1566 = vpop.f32.mrb[0].mxu0
      %v1567 = vadd.f32 0.0, %v1566
      %v1568 = vpop.f32.mrb[0].mxu0
      %1569 = vmatprep.mubr.bf16.mxu0 %v1431
      %1570 = vmatmul.mubr.bf16.gmra.mrb[0].mxu0 %v1351
      %v1571 = vpop.f32.mrb[0].mxu0
      %v1572 = vadd.f32 0.0, %v1571
      %v1573 = vpop.f32.mrb[0].mxu0
      %v1574 = vpop.f32.mrb[0].mxu0
      %v1575 = vadd.f32 0.0, %v1574
      %v1576 = vpop.f32.mrb[0].mxu0
      %1577 = vmatprep.mubr.bf16.mxu0 %v1434
      %1578 = vmatmul.mubr.bf16.gmra.mrb[0].mxu0 %v1353
      %v1579 = vpop.f32.mrb[0].mxu0
      %v1580 = vadd.f32 0.0, %v1579
      %v1581 = vpop.f32.mrb[0].mxu0
      %v1582 = vpop.f32.mrb[0].mxu0
      %v1583 = vadd.f32 0.0, %v1582
      %v1584 = vpop.f32.mrb[0].mxu0
      %1585 = vmatprep.mubr.bf16.mxu0 %v1437
      %1586 = vmatmul.mubr.bf16.gmra.mrb[0].mxu0 %v1355
      %v1587 = vpop.f32.mrb[0].mxu0
      %v1588 = vadd.f32 0.0, %v1587
      %v1589 = vpop.f32.mrb[0].mxu0
      %v1590 = vpop.f32.mrb[0].mxu0
      %v1591 = vadd.f32 0.0, %v1590
      %v1592 = vpop.f32.mrb[0].mxu0
      %1593 = vmatprep.mubr.bf16.mxu0 %v1440
      %1594 = vmatmul.mubr.bf16.gmra.mrb[0].mxu0 %v1357
      %v1595 = vpop.f32.mrb[0].mxu0
      %v1596 = vadd.f32 0.0, %v1595
      %v1597 = vpop.f32.mrb[0].mxu0
      %v1598 = vpop.f32.mrb[0].mxu0
      %v1599 = vadd.f32 0.0, %v1598
      %v1600 = vpop.f32.mrb[0].mxu0
      %1601 = vmatprep.mubr.bf16.mxu0 %v1443
      %1602 = vmatmul.mubr.bf16.gmra.mrb[0].mxu0 %v1359
      %v1603 = vpop.f32.mrb[0].mxu0
      %v1604 = vadd.f32 0.0, %v1603
      %v1605 = vpop.f32.mrb[0].mxu0
      %v1606 = vpop.f32.mrb[0].mxu0
      %v1607 = vadd.f32 0.0, %v1606
      %v1608 = vpop.f32.mrb[0].mxu0
      %1609 = vmatprep.mubr.bf16.mxu0 %v1446
      %1610 = vmatmul.mubr.bf16.gmra.mrb[0].mxu0 %v1361
      %v1611 = vpop.f32.mrb[0].mxu0
      %v1612 = vadd.f32 0.0, %v1611
      %v1613 = vpop.f32.mrb[0].mxu0
      %v1614 = vpop.f32.mrb[0].mxu0
      %v1615 = vadd.f32 0.0, %v1614
      %v1616 = vpop.f32.mrb[0].mxu0
      %1617 = vmatprep.mubr.bf16.mxu0 %v1449
      %1618 = vmatmul.mubr.bf16.gmra.mrb[0].mxu0 %v1363
      %v1619 = vpop.f32.mrb[0].mxu0
      %v1620 = vadd.f32 0.0, %v1619
      %v1621 = vpop.f32.mrb[0].mxu0
      %v1622 = vpop.f32.mrb[0].mxu0
      %v1623 = vadd.f32 0.0, %v1622
      %v1624 = vpop.f32.mrb[0].mxu0
      %1625 = vmatprep.mubr.bf16.mxu0 %v1452
      %1626 = vmatmul.mubr.bf16.gmra.mrb[0].mxu0 %v1365
      %v1627 = vpop.f32.mrb[0].mxu0
      %v1628 = vadd.f32 0.0, %v1627
      %v1629 = vpop.f32.mrb[0].mxu0
      %v1630 = vpop.f32.mrb[0].mxu0
      %v1631 = vadd.f32 0.0, %v1630
      %v1632 = vpop.f32.mrb[0].mxu0
      %1633 = vmatprep.mubr.bf16.mxu0 %v1455
      %1634 = vmatmul.mubr.bf16.gmra.mrb[0].mxu0 %v1367
      %v1635 = vpop.f32.mrb[0].mxu0
      %v1636 = vadd.f32 0.0, %v1635
      %v1637 = vpop.f32.mrb[0].mxu0
      %v1638 = vpop.f32.mrb[0].mxu0
      %v1639 = vadd.f32 0.0, %v1638
      %v1640 = vpop.f32.mrb[0].mxu0
      %1641 = vmatprep.mubr.bf16.mxu0 %v1458
      %1642 = vmatmul.mubr.bf16.gmra.mrb[0].mxu0 %v1369
      %v1643 = vpop.f32.mrb[0].mxu0
      %v1644 = vadd.f32 0.0, %v1643
      %v1645 = vpop.f32.mrb[0].mxu0
      %v1646 = vpop.f32.mrb[0].mxu0
      %v1647 = vadd.f32 0.0, %v1646
      %v1648 = vpop.f32.mrb[0].mxu0
      %1649 = vmatprep.mubr.bf16.mxu0 %v1461
      %1650 = vmatmul.mubr.bf16.gmra.mrb[0].mxu0 %v1371
      %v1651 = vpop.f32.mrb[0].mxu0
      %v1652 = vadd.f32 0.0, %v1651
      %v1653 = vpop.f32.mrb[0].mxu0
      %v1654 = vpop.f32.mrb[0].mxu0
      %v1655 = vadd.f32 0.0, %v1654
      %v1656 = vpop.f32.mrb[0].mxu0
      %1657 = vmatprep.mubr.bf16.mxu0 %v1464
      %1658 = vmatmul.mubr.bf16.gmra.mrb[0].mxu0 %v1373
      %v1659 = vpop.f32.mrb[0].mxu0
      %v1660 = vadd.f32 0.0, %v1659
      %v1661 = vpop.f32.mrb[0].mxu0
      %v1662 = vpop.f32.mrb[0].mxu0
      %v1663 = vadd.f32 0.0, %v1662
      %v1664 = vpop.f32.mrb[0].mxu0
      %1665 = vmatprep.mubr.bf16.mxu0 %v1467
      %1666 = vmatmul.mubr.bf16.gmra.mrb[0].mxu0 %v1375
      %v1667 = vpop.f32.mrb[0].mxu0
      %v1668 = vadd.f32 0.0, %v1667
      %v1669 = vpop.f32.mrb[0].mxu0
      %v1670 = vpop.f32.mrb[0].mxu0
      %v1671 = vadd.f32 0.0, %v1670
      %v1672 = vpop.f32.mrb[0].mxu0
      %1673 = vmatprep.mubr.bf16.mxu0 %v1470
      %1674 = vmatmul.mubr.bf16.gmra.mrb[0].mxu0 %v1377
      %v1675 = vpop.f32.mrb[0].mxu0
      %v1676 = vadd.f32 0.0, %v1675
      %v1677 = vpop.f32.mrb[0].mxu0
      %v1678 = vpop.f32.mrb[0].mxu0
      %v1679 = vadd.f32 0.0, %v1678
      %v1680 = vpop.f32.mrb[0].mxu0
      %1681 = vmatprep.mubr.bf16.mxu0 %v1473
      %1682 = vmatmul.mubr.bf16.gmra.mrb[0].mxu0 %v1379
      %v1683 = vpop.f32.mrb[0].mxu0
      %v1684 = vadd.f32 0.0, %v1683
      %v1685 = vpop.f32.mrb[0].mxu0
      %v1686 = vpop.f32.mrb[0].mxu0
      %v1687 = vadd.f32 0.0, %v1686
      %v1688 = vpop.f32.mrb[0].mxu0
      %1689 = vmatprep.mubr.bf16.mxu0 %v1476
      %1690 = vmatmul.mubr.bf16.gmra.mrb[0].mxu0 %v1381
      %v1691 = vpop.f32.mrb[0].mxu0
      %v1692 = vadd.f32 0.0, %v1691
      %v1693 = vpop.f32.mrb[0].mxu0
      %v1694 = vpop.f32.mrb[0].mxu0
      %v1695 = vadd.f32 0.0, %v1694
      %v1696 = vpop.f32.mrb[0].mxu0
      %1697 = vmatprep.mubr.bf16.mxu0 %v1479
      %1698 = vmatmul.mubr.bf16.gmra.mrb[0].mxu0 %v1383
      %v1699 = vpop.f32.mrb[0].mxu0
      %v1700 = vadd.f32 0.0, %v1699
      %v1701 = vpop.f32.mrb[0].mxu0
      %v1702 = vpop.f32.mrb[0].mxu0
      %v1703 = vadd.f32 0.0, %v1702
      %v1704 = vpop.f32.mrb[0].mxu0
      %1705 = vdwg.mxu0
      %v1706 = vmul.f32 %v1516, %v1041
      %v1707 = vmul.f32 %v1519, %v1041
      %v1708 = vmul.f32 %v1524, %v1041
      %v1709 = vmul.f32 %v1527, %v1041
      %v1710 = vmul.f32 %v1532, %v1041
      %v1711 = vmul.f32 %v1535, %v1041
      %v1712 = vmul.f32 %v1540, %v1041
      %v1713 = vmul.f32 %v1543, %v1041
      %v1714 = vmul.f32 %v1548, %v1041
      %v1715 = vmul.f32 %v1551, %v1041
      %v1716 = vmul.f32 %v1556, %v1041
      %v1717 = vmul.f32 %v1559, %v1041
      %v1718 = vmul.f32 %v1564, %v1041
      %v1719 = vmul.f32 %v1567, %v1041
      %v1720 = vmul.f32 %v1572, %v1041
      %v1721 = vmul.f32 %v1575, %v1041
      %v1722 = vmul.f32 %v1580, %v1041
      %v1723 = vmul.f32 %v1583, %v1041
      %v1724 = vmul.f32 %v1588, %v1041
      %v1725 = vmul.f32 %v1591, %v1041
      %v1726 = vmul.f32 %v1596, %v1041
      %v1727 = vmul.f32 %v1599, %v1041
      %v1728 = vmul.f32 %v1604, %v1041
      %v1729 = vmul.f32 %v1607, %v1041
      %v1730 = vmul.f32 %v1612, %v1041
      %v1731 = vmul.f32 %v1615, %v1041
      %v1732 = vmul.f32 %v1620, %v1041
      %v1733 = vmul.f32 %v1623, %v1041
      %v1734 = vmul.f32 %v1628, %v1041
      %v1735 = vmul.f32 %v1631, %v1041
      %v1736 = vmul.f32 %v1636, %v1041
      %v1737 = vmul.f32 %v1639, %v1041
      %v1738 = vmul.f32 %v1644, %v1041
      %v1739 = vmul.f32 %v1647, %v1041
      %v1740 = vmul.f32 %v1652, %v1041
      %v1741 = vmul.f32 %v1655, %v1041
      %v1742 = vmul.f32 %v1660, %v1041
      %v1743 = vmul.f32 %v1663, %v1041
      %v1744 = vmul.f32 %v1668, %v1041
      %v1745 = vmul.f32 %v1671, %v1041
      %v1746 = vmul.f32 %v1676, %v1041
      %v1747 = vmul.f32 %v1679, %v1041
      %v1748 = vmul.f32 %v1684, %v1041
      %v1749 = vmul.f32 %v1687, %v1041
      %v1750 = vmul.f32 %v1692, %v1041
      %v1751 = vmul.f32 %v1695, %v1041
      %v1752 = vmul.f32 %v1700, %v1041
      %v1753 = vmul.f32 %v1703, %v1041
      %v1754 = vadd.f32 %v1706, %v1095
      %v1755 = vadd.f32 %v1707, %v1095
      %v1756 = vadd.f32 %v1708, %v1095
      %v1757 = vadd.f32 %v1709, %v1095
      %v1758 = vadd.f32 %v1710, %v1095
      %v1759 = vadd.f32 %v1711, %v1095
      %v1760 = vadd.f32 %v1712, %v1095
      %v1761 = vadd.f32 %v1713, %v1095
      %v1762 = vadd.f32 %v1714, %v1095
      %v1763 = vadd.f32 %v1715, %v1095
      %v1764 = vadd.f32 %v1716, %v1095
      %v1765 = vadd.f32 %v1717, %v1095
      %v1766 = vadd.f32 %v1718, %v1095
      %v1767 = vadd.f32 %v1719, %v1095
      %v1768 = vadd.f32 %v1720, %v1095
      %v1769 = vadd.f32 %v1721, %v1095
      %v1770 = vadd.f32 %v1722, %v1095
      %v1771 = vadd.f32 %v1723, %v1095
      %v1772 = vadd.f32 %v1724, %v1095
      %v1773 = vadd.f32 %v1725, %v1095
      %v1774 = vadd.f32 %v1726, %v1095
      %v1775 = vadd.f32 %v1727, %v1095
      %v1776 = vadd.f32 %v1728, %v1095
      %v1777 = vadd.f32 %v1729, %v1095
      %v1778 = vadd.f32 %v1730, %v1095
      %v1779 = vadd.f32 %v1731, %v1095
      %v1780 = vadd.f32 %v1732, %v1095
      %v1781 = vadd.f32 %v1733, %v1095
      %v1782 = vadd.f32 %v1734, %v1095
      %v1783 = vadd.f32 %v1735, %v1095
      %v1784 = vadd.f32 %v1736, %v1095
      %v1785 = vadd.f32 %v1737, %v1095
      %v1786 = vadd.f32 %v1738, %v1095
      %v1787 = vadd.f32 %v1739, %v1095
      %v1788 = vadd.f32 %v1740, %v1095
      %v1789 = vadd.f32 %v1741, %v1095
      %v1790 = vadd.f32 %v1742, %v1095
      %v1791 = vadd.f32 %v1743, %v1095
      %v1792 = vadd.f32 %v1744, %v1095
      %v1793 = vadd.f32 %v1745, %v1095
      %v1794 = vadd.f32 %v1746, %v1095
      %v1795 = vadd.f32 %v1747, %v1095
      %v1796 = vadd.f32 %v1748, %v1095
      %v1797 = vadd.f32 %v1749, %v1095
      %v1798 = vadd.f32 %v1750, %v1095
      %v1799 = vadd.f32 %v1751, %v1095
      %v1800 = vadd.f32 %v1752, %v1095
      %v1801 = vadd.f32 %v1753, %v1095
      %v1802 = vmax.f32 %v1097, %v1754
      %v1803 = vmax.f32 %v1098, %v1755
      %v1804 = vmax.f32 %v1099, %v1756
      %v1805 = vmax.f32 %v1100, %v1757
      %v1806 = vmax.f32 %v1101, %v1758
      %v1807 = vmax.f32 %v1102, %v1759
      %v1808 = vmax.f32 %v1103, %v1760
      %v1809 = vmax.f32 %v1104, %v1761
      %v1810 = vmax.f32 %v1105, %v1762
      %v1811 = vmax.f32 %v1106, %v1763
      %v1812 = vmax.f32 %v1107, %v1764
      %v1813 = vmax.f32 %v1108, %v1765
      %v1814 = vmax.f32 %v1109, %v1766
      %v1815 = vmax.f32 %v1110, %v1767
      %v1816 = vmax.f32 %v1111, %v1768
      %v1817 = vmax.f32 %v1112, %v1769
      %v1818 = vmax.f32 %v1113, %v1770
      %v1819 = vmax.f32 %v1114, %v1771
      %v1820 = vmax.f32 %v1115, %v1772
      %v1821 = vmax.f32 %v1116, %v1773
      %v1822 = vmax.f32 %v1117, %v1774
      %v1823 = vmax.f32 %v1118, %v1775
      %v1824 = vmax.f32 %v1119, %v1776
      %v1825 = vmax.f32 %v1120, %v1777
      %v1826 = vmax.f32 %v1121, %v1778
      %v1827 = vmax.f32 %v1122, %v1779
      %v1828 = vmax.f32 %v1123, %v1780
      %v1829 = vmax.f32 %v1124, %v1781
      %v1830 = vmax.f32 %v1125, %v1782
      %v1831 = vmax.f32 %v1126, %v1783
      %v1832 = vmax.f32 %v1127, %v1784
      %v1833 = vmax.f32 %v1128, %v1785
      %v1834 = vmax.f32 %v1129, %v1786
      %v1835 = vmax.f32 %v1130, %v1787
      %v1836 = vmax.f32 %v1131, %v1788
      %v1837 = vmax.f32 %v1132, %v1789
      %v1838 = vmax.f32 %v1133, %v1790
      %v1839 = vmax.f32 %v1134, %v1791
      %v1840 = vmax.f32 %v1135, %v1792
      %v1841 = vmax.f32 %v1136, %v1793
      %v1842 = vmax.f32 %v1137, %v1794
      %v1843 = vmax.f32 %v1138, %v1795
      %v1844 = vmax.f32 %v1139, %v1796
      %v1845 = vmax.f32 %v1140, %v1797
      %v1846 = vmax.f32 %v1141, %v1798
      %v1847 = vmax.f32 %v1142, %v1799
      %v1848 = vmax.f32 %v1143, %v1800
      %v1849 = vmax.f32 %v1144, %v1801
      %v1850 = vld [vmem:[%s345] sm:$0xff]
      %v1851 = vld [vmem:[%s345 + $0x8] sm:$0xff]
      %v1852 = vld [vmem:[%s345 + $0x10] sm:$0xff]
      %v1853 = vld [vmem:[%s345 + $0x18] sm:$0xff]
      %v1854 = vld [vmem:[%s345 + $0x20] sm:$0xff]
      %v1855 = vld [vmem:[%s345 + $0x28] sm:$0xff]
      %v1856 = vld [vmem:[%s345 + $0x30] sm:$0xff]
      %v1857 = vld [vmem:[%s345 + $0x38] sm:$0xff]
      %v1858 = vld [vmem:[%s345 + $0x40] sm:$0xff]
      %v1859 = vld [vmem:[%s345 + $0x48] sm:$0xff]
      %v1860 = vld [vmem:[%s345 + $0x50] sm:$0xff]
      %v1861 = vld [vmem:[%s345 + $0x58] sm:$0xff]
      %v1862 = vld [vmem:[%s345 + $0x60] sm:$0xff]
      %v1863 = vld [vmem:[%s345 + $0x68] sm:$0xff]
      %v1864 = vld [vmem:[%s345 + $0x70] sm:$0xff]
      %v1865 = vld [vmem:[%s345 + $0x78] sm:$0xff]
      %v1866 = vld [vmem:[%s345 + $0x80] sm:$0xff]
      %v1867 = vld [vmem:[%s345 + $0x88] sm:$0xff]
      %v1868 = vld [vmem:[%s345 + $0x90] sm:$0xff]
      %v1869 = vld [vmem:[%s345 + $0x98] sm:$0xff]
      %v1870 = vld [vmem:[%s345 + $0xa0] sm:$0xff]
      %v1871 = vld [vmem:[%s345 + $0xa8] sm:$0xff]
      %v1872 = vld [vmem:[%s345 + $0xb0] sm:$0xff]
      %v1873 = vld [vmem:[%s345 + $0xb8] sm:$0xff]
      %v1874 = vld [vmem:[%s345 + $0xc0] sm:$0xff]
      %v1875 = vld [vmem:[%s345 + $0xc8] sm:$0xff]
      %v1876 = vld [vmem:[%s345 + $0xd0] sm:$0xff]
      %v1877 = vld [vmem:[%s345 + $0xd8] sm:$0xff]
      %v1878 = vld [vmem:[%s345 + $0xe0] sm:$0xff]
      %v1879 = vld [vmem:[%s345 + $0xe8] sm:$0xff]
      %v1880 = vld [vmem:[%s345 + $0xf0] sm:$0xff]
      %v1881 = vld [vmem:[%s345 + $0xf8] sm:$0xff]
      %v1882 = vld [vmem:[%s345 + $0x100] sm:$0xff]
      %v1883 = vld [vmem:[%s345 + $0x108] sm:$0xff]
      %v1884 = vld [vmem:[%s345 + $0x110] sm:$0xff]
      %v1885 = vld [vmem:[%s345 + $0x118] sm:$0xff]
      %v1886 = vld [vmem:[%s345 + $0x120] sm:$0xff]
      %v1887 = vld [vmem:[%s345 + $0x128] sm:$0xff]
      %v1888 = vld [vmem:[%s345 + $0x130] sm:$0xff]
      %v1889 = vld [vmem:[%s345 + $0x138] sm:$0xff]
      %v1890 = vld [vmem:[%s345 + $0x140] sm:$0xff]
      %v1891 = vld [vmem:[%s345 + $0x148] sm:$0xff]
      %v1892 = vld [vmem:[%s345 + $0x150] sm:$0xff]
      %v1893 = vld [vmem:[%s345 + $0x158] sm:$0xff]
      %v1894 = vld [vmem:[%s345 + $0x160] sm:$0xff]
      %v1895 = vld [vmem:[%s345 + $0x168] sm:$0xff]
      %v1896 = vld [vmem:[%s345 + $0x170] sm:$0xff]
      %v1897 = vld [vmem:[%s345 + $0x178] sm:$0xff]
      %v1946 = vunpack.c.l.b16 %v1850
      %v1947 = vunpack.c.h.b16 %v1850
      %v1948 = vunpack.c.l.b16 %v1851
      %v1949 = vunpack.c.h.b16 %v1851
      %v1950 = vunpack.c.l.b16 %v1852
      %v1951 = vunpack.c.h.b16 %v1852
      %v1952 = vunpack.c.l.b16 %v1853
      %v1953 = vunpack.c.h.b16 %v1853
      %v1954 = vunpack.c.l.b16 %v1854
      %v1955 = vunpack.c.h.b16 %v1854
      %v1956 = vunpack.c.l.b16 %v1855
      %v1957 = vunpack.c.h.b16 %v1855
      %v1958 = vunpack.c.l.b16 %v1856
      %v1959 = vunpack.c.h.b16 %v1856
      %v1960 = vunpack.c.l.b16 %v1857
      %v1961 = vunpack.c.h.b16 %v1857
      %v1962 = vunpack.c.l.b16 %v1858
      %v1963 = vunpack.c.h.b16 %v1858
      %v1964 = vunpack.c.l.b16 %v1859
      %v1965 = vunpack.c.h.b16 %v1859
      %v1966 = vunpack.c.l.b16 %v1860
      %v1967 = vunpack.c.h.b16 %v1860
      %v1968 = vunpack.c.l.b16 %v1861
      %v1969 = vunpack.c.h.b16 %v1861
      %v1970 = vunpack.c.l.b16 %v1862
      %v1971 = vunpack.c.h.b16 %v1862
      %v1972 = vunpack.c.l.b16 %v1863
      %v1973 = vunpack.c.h.b16 %v1863
      %v1974 = vunpack.c.l.b16 %v1864
      %v1975 = vunpack.c.h.b16 %v1864
      %v1976 = vunpack.c.l.b16 %v1865
      %v1977 = vunpack.c.h.b16 %v1865
      %v1978 = vunpack.c.l.b16 %v1866
      %v1979 = vunpack.c.h.b16 %v1866
      %v1980 = vunpack.c.l.b16 %v1867
      %v1981 = vunpack.c.h.b16 %v1867
      %v1982 = vunpack.c.l.b16 %v1868
      %v1983 = vunpack.c.h.b16 %v1868
      %v1984 = vunpack.c.l.b16 %v1869
      %v1985 = vunpack.c.h.b16 %v1869
      %v1986 = vunpack.c.l.b16 %v1870
      %v1987 = vunpack.c.h.b16 %v1870
      %v1988 = vunpack.c.l.b16 %v1871
      %v1989 = vunpack.c.h.b16 %v1871
      %v1990 = vunpack.c.l.b16 %v1872
      %v1991 = vunpack.c.h.b16 %v1872
      %v1992 = vunpack.c.l.b16 %v1873
      %v1993 = vunpack.c.h.b16 %v1873
      %v1994 = vunpack.c.l.b16 %v1874
      %v1995 = vunpack.c.h.b16 %v1874
      %v1996 = vunpack.c.l.b16 %v1875
      %v1997 = vunpack.c.h.b16 %v1875
      %v1998 = vunpack.c.l.b16 %v1876
      %v1999 = vunpack.c.h.b16 %v1876
      %v2000 = vunpack.c.l.b16 %v1877
      %v2001 = vunpack.c.h.b16 %v1877
      %v2002 = vunpack.c.l.b16 %v1878
      %v2003 = vunpack.c.h.b16 %v1878
      %v2004 = vunpack.c.l.b16 %v1879
      %v2005 = vunpack.c.h.b16 %v1879
      %v2006 = vunpack.c.l.b16 %v1880
      %v2007 = vunpack.c.h.b16 %v1880
      %v2008 = vunpack.c.l.b16 %v1881
      %v2009 = vunpack.c.h.b16 %v1881
      %v2010 = vunpack.c.l.b16 %v1882
      %v2011 = vunpack.c.h.b16 %v1882
      %v2012 = vunpack.c.l.b16 %v1883
      %v2013 = vunpack.c.h.b16 %v1883
      %v2014 = vunpack.c.l.b16 %v1884
      %v2015 = vunpack.c.h.b16 %v1884
      %v2016 = vunpack.c.l.b16 %v1885
      %v2017 = vunpack.c.h.b16 %v1885
      %v2018 = vunpack.c.l.b16 %v1886
      %v2019 = vunpack.c.h.b16 %v1886
      %v2020 = vunpack.c.l.b16 %v1887
      %v2021 = vunpack.c.h.b16 %v1887
      %v2022 = vunpack.c.l.b16 %v1888
      %v2023 = vunpack.c.h.b16 %v1888
      %v2024 = vunpack.c.l.b16 %v1889
      %v2025 = vunpack.c.h.b16 %v1889
      %v2026 = vunpack.c.l.b16 %v1890
      %v2027 = vunpack.c.h.b16 %v1890
      %v2028 = vunpack.c.l.b16 %v1891
      %v2029 = vunpack.c.h.b16 %v1891
      %v2030 = vunpack.c.l.b16 %v1892
      %v2031 = vunpack.c.h.b16 %v1892
      %v2032 = vunpack.c.l.b16 %v1893
      %v2033 = vunpack.c.h.b16 %v1893
      %v2034 = vunpack.c.l.b16 %v1894
      %v2035 = vunpack.c.h.b16 %v1894
      %v2036 = vunpack.c.l.b16 %v1895
      %v2037 = vunpack.c.h.b16 %v1895
      %v2038 = vunpack.c.l.b16 %v1896
      %v2039 = vunpack.c.h.b16 %v1896
      %v2040 = vunpack.c.l.b16 %v1897
      %v2041 = vunpack.c.h.b16 %v1897
      %v2042 = vpack.c.b16 %v1948, %v1946
      %v2043 = vpack.c.b16 %v1949, %v1947
      %v2044 = vpack.c.b16 %v1952, %v1950
      %v2045 = vpack.c.b16 %v1953, %v1951
      %v2046 = vpack.c.b16 %v1956, %v1954
      %v2047 = vpack.c.b16 %v1957, %v1955
      %v2048 = vpack.c.b16 %v1960, %v1958
      %v2049 = vpack.c.b16 %v1961, %v1959
      %v2050 = vpack.c.b16 %v1964, %v1962
      %v2051 = vpack.c.b16 %v1965, %v1963
      %v2052 = vpack.c.b16 %v1968, %v1966
      %v2053 = vpack.c.b16 %v1969, %v1967
      %v2054 = vpack.c.b16 %v1972, %v1970
      %v2055 = vpack.c.b16 %v1973, %v1971
      %v2056 = vpack.c.b16 %v1976, %v1974
      %v2057 = vpack.c.b16 %v1977, %v1975
      %v2058 = vpack.c.b16 %v1980, %v1978
      %v2059 = vpack.c.b16 %v1981, %v1979
      %v2060 = vpack.c.b16 %v1984, %v1982
      %v2061 = vpack.c.b16 %v1985, %v1983
      %v2062 = vpack.c.b16 %v1988, %v1986
      %v2063 = vpack.c.b16 %v1989, %v1987
      %v2064 = vpack.c.b16 %v1992, %v1990
      %v2065 = vpack.c.b16 %v1993, %v1991
      %v2066 = vpack.c.b16 %v1996, %v1994
      %v2067 = vpack.c.b16 %v1997, %v1995
      %v2068 = vpack.c.b16 %v2000, %v1998
      %v2069 = vpack.c.b16 %v2001, %v1999
      %v2070 = vpack.c.b16 %v2004, %v2002
      %v2071 = vpack.c.b16 %v2005, %v2003
      %v2072 = vpack.c.b16 %v2008, %v2006
      %v2073 = vpack.c.b16 %v2009, %v2007
      %v2074 = vpack.c.b16 %v2012, %v2010
      %v2075 = vpack.c.b16 %v2013, %v2011
      %v2076 = vpack.c.b16 %v2016, %v2014
      %v2077 = vpack.c.b16 %v2017, %v2015
      %v2078 = vpack.c.b16 %v2020, %v2018
      %v2079 = vpack.c.b16 %v2021, %v2019
      %v2080 = vpack.c.b16 %v2024, %v2022
      %v2081 = vpack.c.b16 %v2025, %v2023
      %v2082 = vpack.c.b16 %v2028, %v2026
      %v2083 = vpack.c.b16 %v2029, %v2027
      %v2084 = vpack.c.b16 %v2032, %v2030
      %v2085 = vpack.c.b16 %v2033, %v2031
      %v2086 = vpack.c.b16 %v2036, %v2034
      %v2087 = vpack.c.b16 %v2037, %v2035
      %v2088 = vpack.c.b16 %v2040, %v2038
      %v2089 = vpack.c.b16 %v2041, %v2039
      %v2115 = vsel %vm735, %v2043, 0
      %v2118 = vsel %vm735, %v2045, 0
      %v2121 = vsel %vm735, %v2047, 0
      %v2124 = vsel %vm735, %v2049, 0
      %v2127 = vsel %vm735, %v2051, 0
      %v2130 = vsel %vm735, %v2053, 0
      %v2133 = vsel %vm735, %v2055, 0
      %v2136 = vsel %vm735, %v2057, 0
      %v2139 = vsel %vm735, %v2059, 0
      %v2142 = vsel %vm735, %v2061, 0
      %v2145 = vsel %vm735, %v2063, 0
      %v2148 = vsel %vm735, %v2065, 0
      %v2151 = vsel %vm735, %v2067, 0
      %v2154 = vsel %vm735, %v2069, 0
      %v2157 = vsel %vm735, %v2071, 0
      %v2160 = vsel %vm735, %v2073, 0
      %v2163 = vsel %vm735, %v2075, 0
      %v2166 = vsel %vm735, %v2077, 0
      %v2169 = vsel %vm735, %v2079, 0
      %v2172 = vsel %vm735, %v2081, 0
      %v2175 = vsel %vm735, %v2083, 0
      %v2178 = vsel %vm735, %v2085, 0
      %v2181 = vsel %vm735, %v2087, 0
      %v2184 = vsel %vm735, %v2089, 0
      %2186 = vmatprep.subr.bf16.mxu0 0
      %2187 = vmatpush1.bf16.msra.mxu0 %v708
      %2188 = vmatprep.subr.bf16.mxu0 0
      %2189 = vmatpush1.bf16.msra.mxu0 %v709
      %2190 = vmatprep.subr.bf16.mxu0 0
      %2191 = vmatpush1.bf16.msra.mxu0 %v710
      %2192 = vmatprep.subr.bf16.mxu0 0
      %2193 = vmatpush1.bf16.msra.mxu0 %v711
      %2194 = vmatprep.subr.bf16.mxu0 0
      %2195 = vmatpush1.bf16.msra.mxu0 %v712
      %2196 = vmatprep.subr.bf16.mxu0 0
      %2197 = vmatpush1.bf16.msra.mxu0 %v713
      %2198 = vmatprep.subr.bf16.mxu0 0
      %2199 = vmatpush1.bf16.msra.mxu0 %v714
      %2200 = vmatprep.subr.bf16.mxu0 0
      %2201 = vmatpush1.bf16.msra.mxu0 %v715
      %2202 = vmatprep.subr.bf16.mxu0 0
      %2203 = vmatpush1.bf16.msra.mxu0 %v716
      %2204 = vmatprep.subr.bf16.mxu0 0
      %2205 = vmatpush1.bf16.msra.mxu0 %v717
      %2206 = vmatprep.subr.bf16.mxu0 0
      %2207 = vmatpush1.bf16.msra.mxu0 %v718
      %2208 = vmatprep.subr.bf16.mxu0 0
      %2209 = vmatpush1.bf16.msra.mxu0 %v719
      %2210 = vmatprep.subr.bf16.mxu0 0
      %2211 = vmatpush1.bf16.msra.mxu0 %v720
      %2212 = vmatprep.subr.bf16.mxu0 0
      %2213 = vmatpush1.bf16.msra.mxu0 %v810
      %2214 = vmatprep.subr.bf16.mxu0 0
      %2215 = vmatpush1.bf16.msra.mxu0 0
      %2216 = vmatprep.subr.bf16.mxu0 0
      %2217 = vmatpush1.bf16.msra.mxu0 0
      %2218 = vmatprep.mubr.bf16.mxu0 %v2115
      %2219 = vmatmul.mubr.bf16.gmra.mrb[0].mxu0 %v2042
      %v2220 = vpop.f32.mrb[0].mxu0
      %v2221 = vadd.f32 0.0, %v2220
      %v2222 = vpop.f32.mrb[0].mxu0
      %v2223 = vpop.f32.mrb[0].mxu0
      %v2224 = vadd.f32 0.0, %v2223
      %v2225 = vpop.f32.mrb[0].mxu0
      %2226 = vmatprep.mubr.bf16.mxu0 %v2118
      %2227 = vmatmul.mubr.bf16.gmra.mrb[0].mxu0 %v2044
      %v2228 = vpop.f32.mrb[0].mxu0
      %v2229 = vadd.f32 0.0, %v2228
      %v2230 = vpop.f32.mrb[0].mxu0
      %v2231 = vpop.f32.mrb[0].mxu0
      %v2232 = vadd.f32 0.0, %v2231
      %v2233 = vpop.f32.mrb[0].mxu0
      %2234 = vmatprep.mubr.bf16.mxu0 %v2121
      %2235 = vmatmul.mubr.bf16.gmra.mrb[0].mxu0 %v2046
      %v2236 = vpop.f32.mrb[0].mxu0
      %v2237 = vadd.f32 0.0, %v2236
      %v2238 = vpop.f32.mrb[0].mxu0
      %v2239 = vpop.f32.mrb[0].mxu0
      %v2240 = vadd.f32 0.0, %v2239
      %v2241 = vpop.f32.mrb[0].mxu0
      %2242 = vmatprep.mubr.bf16.mxu0 %v2124
      %2243 = vmatmul.mubr.bf16.gmra.mrb[0].mxu0 %v2048
      %v2244 = vpop.f32.mrb[0].mxu0
      %v2245 = vadd.f32 0.0, %v2244
      %v2246 = vpop.f32.mrb[0].mxu0
      %v2247 = vpop.f32.mrb[0].mxu0
      %v2248 = vadd.f32 0.0, %v2247
      %v2249 = vpop.f32.mrb[0].mxu0
      %2250 = vmatprep.mubr.bf16.mxu0 %v2127
      %2251 = vmatmul.mubr.bf16.gmra.mrb[0].mxu0 %v2050
      %v2252 = vpop.f32.mrb[0].mxu0
      %v2253 = vadd.f32 0.0, %v2252
      %v2254 = vpop.f32.mrb[0].mxu0
      %v2255 = vpop.f32.mrb[0].mxu0
      %v2256 = vadd.f32 0.0, %v2255
      %v2257 = vpop.f32.mrb[0].mxu0
      %2258 = vmatprep.mubr.bf16.mxu0 %v2130
      %2259 = vmatmul.mubr.bf16.gmra.mrb[0].mxu0 %v2052
      %v2260 = vpop.f32.mrb[0].mxu0
      %v2261 = vadd.f32 0.0, %v2260
      %v2262 = vpop.f32.mrb[0].mxu0
      %v2263 = vpop.f32.mrb[0].mxu0
      %v2264 = vadd.f32 0.0, %v2263
      %v2265 = vpop.f32.mrb[0].mxu0
      %2266 = vmatprep.mubr.bf16.mxu0 %v2133
      %2267 = vmatmul.mubr.bf16.gmra.mrb[0].mxu0 %v2054
      %v2268 = vpop.f32.mrb[0].mxu0
      %v2269 = vadd.f32 0.0, %v2268
      %v2270 = vpop.f32.mrb[0].mxu0
      %v2271 = vpop.f32.mrb[0].mxu0
      %v2272 = vadd.f32 0.0, %v2271
      %v2273 = vpop.f32.mrb[0].mxu0
      %2274 = vmatprep.mubr.bf16.mxu0 %v2136
      %2275 = vmatmul.mubr.bf16.gmra.mrb[0].mxu0 %v2056
      %v2276 = vpop.f32.mrb[0].mxu0
      %v2277 = vadd.f32 0.0, %v2276
      %v2278 = vpop.f32.mrb[0].mxu0
      %v2279 = vpop.f32.mrb[0].mxu0
      %v2280 = vadd.f32 0.0, %v2279
      %v2281 = vpop.f32.mrb[0].mxu0
      %2282 = vmatprep.mubr.bf16.mxu0 %v2139
      %2283 = vmatmul.mubr.bf16.gmra.mrb[0].mxu0 %v2058
      %v2284 = vpop.f32.mrb[0].mxu0
      %v2285 = vadd.f32 0.0, %v2284
      %v2286 = vpop.f32.mrb[0].mxu0
      %v2287 = vpop.f32.mrb[0].mxu0
      %v2288 = vadd.f32 0.0, %v2287
      %v2289 = vpop.f32.mrb[0].mxu0
      %2290 = vmatprep.mubr.bf16.mxu0 %v2142
      %2291 = vmatmul.mubr.bf16.gmra.mrb[0].mxu0 %v2060
      %v2292 = vpop.f32.mrb[0].mxu0
      %v2293 = vadd.f32 0.0, %v2292
      %v2294 = vpop.f32.mrb[0].mxu0
      %v2295 = vpop.f32.mrb[0].mxu0
      %v2296 = vadd.f32 0.0, %v2295
      %v2297 = vpop.f32.mrb[0].mxu0
      %2298 = vmatprep.mubr.bf16.mxu0 %v2145
      %2299 = vmatmul.mubr.bf16.gmra.mrb[0].mxu0 %v2062
      %v2300 = vpop.f32.mrb[0].mxu0
      %v2301 = vadd.f32 0.0, %v2300
      %v2302 = vpop.f32.mrb[0].mxu0
      %v2303 = vpop.f32.mrb[0].mxu0
      %v2304 = vadd.f32 0.0, %v2303
      %v2305 = vpop.f32.mrb[0].mxu0
      %2306 = vmatprep.mubr.bf16.mxu0 %v2148
      %2307 = vmatmul.mubr.bf16.gmra.mrb[0].mxu0 %v2064
      %v2308 = vpop.f32.mrb[0].mxu0
      %v2309 = vadd.f32 0.0, %v2308
      %v2310 = vpop.f32.mrb[0].mxu0
      %v2311 = vpop.f32.mrb[0].mxu0
      %v2312 = vadd.f32 0.0, %v2311
      %v2313 = vpop.f32.mrb[0].mxu0
      %2314 = vmatprep.mubr.bf16.mxu0 %v2151
      %2315 = vmatmul.mubr.bf16.gmra.mrb[0].mxu0 %v2066
      %v2316 = vpop.f32.mrb[0].mxu0
      %v2317 = vadd.f32 0.0, %v2316
      %v2318 = vpop.f32.mrb[0].mxu0
      %v2319 = vpop.f32.mrb[0].mxu0
      %v2320 = vadd.f32 0.0, %v2319
      %v2321 = vpop.f32.mrb[0].mxu0
      %2322 = vmatprep.mubr.bf16.mxu0 %v2154
      %2323 = vmatmul.mubr.bf16.gmra.mrb[0].mxu0 %v2068
      %v2324 = vpop.f32.mrb[0].mxu0
      %v2325 = vadd.f32 0.0, %v2324
      %v2326 = vpop.f32.mrb[0].mxu0
      %v2327 = vpop.f32.mrb[0].mxu0
      %v2328 = vadd.f32 0.0, %v2327
      %v2329 = vpop.f32.mrb[0].mxu0
      %2330 = vmatprep.mubr.bf16.mxu0 %v2157
      %2331 = vmatmul.mubr.bf16.gmra.mrb[0].mxu0 %v2070
      %v2332 = vpop.f32.mrb[0].mxu0
      %v2333 = vadd.f32 0.0, %v2332
      %v2334 = vpop.f32.mrb[0].mxu0
      %v2335 = vpop.f32.mrb[0].mxu0
      %v2336 = vadd.f32 0.0, %v2335
      %v2337 = vpop.f32.mrb[0].mxu0
      %2338 = vmatprep.mubr.bf16.mxu0 %v2160
      %2339 = vmatmul.mubr.bf16.gmra.mrb[0].mxu0 %v2072
      %v2340 = vpop.f32.mrb[0].mxu0
      %v2341 = vadd.f32 0.0, %v2340
      %v2342 = vpop.f32.mrb[0].mxu0
      %v2343 = vpop.f32.mrb[0].mxu0
      %v2344 = vadd.f32 0.0, %v2343
      %v2345 = vpop.f32.mrb[0].mxu0
      %2346 = vmatprep.mubr.bf16.mxu0 %v2163
      %2347 = vmatmul.mubr.bf16.gmra.mrb[0].mxu0 %v2074
      %v2348 = vpop.f32.mrb[0].mxu0
      %v2349 = vadd.f32 0.0, %v2348
      %v2350 = vpop.f32.mrb[0].mxu0
      %v2351 = vpop.f32.mrb[0].mxu0
      %v2352 = vadd.f32 0.0, %v2351
      %v2353 = vpop.f32.mrb[0].mxu0
      %2354 = vmatprep.mubr.bf16.mxu0 %v2166
      %2355 = vmatmul.mubr.bf16.gmra.mrb[0].mxu0 %v2076
      %v2356 = vpop.f32.mrb[0].mxu0
      %v2357 = vadd.f32 0.0, %v2356
      %v2358 = vpop.f32.mrb[0].mxu0
      %v2359 = vpop.f32.mrb[0].mxu0
      %v2360 = vadd.f32 0.0, %v2359
      %v2361 = vpop.f32.mrb[0].mxu0
      %2362 = vmatprep.mubr.bf16.mxu0 %v2169
      %2363 = vmatmul.mubr.bf16.gmra.mrb[0].mxu0 %v2078
      %v2364 = vpop.f32.mrb[0].mxu0
      %v2365 = vadd.f32 0.0, %v2364
      %v2366 = vpop.f32.mrb[0].mxu0
      %v2367 = vpop.f32.mrb[0].mxu0
      %v2368 = vadd.f32 0.0, %v2367
      %v2369 = vpop.f32.mrb[0].mxu0
      %2370 = vmatprep.mubr.bf16.mxu0 %v2172
      %2371 = vmatmul.mubr.bf16.gmra.mrb[0].mxu0 %v2080
      %v2372 = vpop.f32.mrb[0].mxu0
      %v2373 = vadd.f32 0.0, %v2372
      %v2374 = vpop.f32.mrb[0].mxu0
      %v2375 = vpop.f32.mrb[0].mxu0
      %v2376 = vadd.f32 0.0, %v2375
      %v2377 = vpop.f32.mrb[0].mxu0
      %2378 = vmatprep.mubr.bf16.mxu0 %v2175
      %2379 = vmatmul.mubr.bf16.gmra.mrb[0].mxu0 %v2082
      %v2380 = vpop.f32.mrb[0].mxu0
      %v2381 = vadd.f32 0.0, %v2380
      %v2382 = vpop.f32.mrb[0].mxu0
      %v2383 = vpop.f32.mrb[0].mxu0
      %v2384 = vadd.f32 0.0, %v2383
      %v2385 = vpop.f32.mrb[0].mxu0
      %2386 = vmatprep.mubr.bf16.mxu0 %v2178
      %2387 = vmatmul.mubr.bf16.gmra.mrb[0].mxu0 %v2084
      %v2388 = vpop.f32.mrb[0].mxu0
      %v2389 = vadd.f32 0.0, %v2388
      %v2390 = vpop.f32.mrb[0].mxu0
      %v2391 = vpop.f32.mrb[0].mxu0
      %v2392 = vadd.f32 0.0, %v2391
      %v2393 = vpop.f32.mrb[0].mxu0
      %2394 = vmatprep.mubr.bf16.mxu0 %v2181
      %2395 = vmatmul.mubr.bf16.gmra.mrb[0].mxu0 %v2086
      %v2396 = vpop.f32.mrb[0].mxu0
      %v2397 = vadd.f32 0.0, %v2396
      %v2398 = vpop.f32.mrb[0].mxu0
      %v2399 = vpop.f32.mrb[0].mxu0
      %v2400 = vadd.f32 0.0, %v2399
      %v2401 = vpop.f32.mrb[0].mxu0
      %2402 = vmatprep.mubr.bf16.mxu0 %v2184
      %2403 = vmatmul.mubr.bf16.gmra.mrb[0].mxu0 %v2088
      %v2404 = vpop.f32.mrb[0].mxu0
      %v2405 = vadd.f32 0.0, %v2404
      %v2406 = vpop.f32.mrb[0].mxu0
      %v2407 = vpop.f32.mrb[0].mxu0
      %v2408 = vadd.f32 0.0, %v2407
      %v2409 = vpop.f32.mrb[0].mxu0
      %2410 = vdwg.mxu0
      %v2411 = vmul.f32 %v2221, %v1041
      %v2412 = vmul.f32 %v2224, %v1041
      %v2413 = vmul.f32 %v2229, %v1041
      %v2414 = vmul.f32 %v2232, %v1041
      %v2415 = vmul.f32 %v2237, %v1041
      %v2416 = vmul.f32 %v2240, %v1041
      %v2417 = vmul.f32 %v2245, %v1041
      %v2418 = vmul.f32 %v2248, %v1041
      %v2419 = vmul.f32 %v2253, %v1041
      %v2420 = vmul.f32 %v2256, %v1041
      %v2421 = vmul.f32 %v2261, %v1041
      %v2422 = vmul.f32 %v2264, %v1041
      %v2423 = vmul.f32 %v2269, %v1041
      %v2424 = vmul.f32 %v2272, %v1041
      %v2425 = vmul.f32 %v2277, %v1041
      %v2426 = vmul.f32 %v2280, %v1041
      %v2427 = vmul.f32 %v2285, %v1041
      %v2428 = vmul.f32 %v2288, %v1041
      %v2429 = vmul.f32 %v2293, %v1041
      %v2430 = vmul.f32 %v2296, %v1041
      %v2431 = vmul.f32 %v2301, %v1041
      %v2432 = vmul.f32 %v2304, %v1041
      %v2433 = vmul.f32 %v2309, %v1041
      %v2434 = vmul.f32 %v2312, %v1041
      %v2435 = vmul.f32 %v2317, %v1041
      %v2436 = vmul.f32 %v2320, %v1041
      %v2437 = vmul.f32 %v2325, %v1041
      %v2438 = vmul.f32 %v2328, %v1041
      %v2439 = vmul.f32 %v2333, %v1041
      %v2440 = vmul.f32 %v2336, %v1041
      %v2441 = vmul.f32 %v2341, %v1041
      %v2442 = vmul.f32 %v2344, %v1041
      %v2443 = vmul.f32 %v2349, %v1041
      %v2444 = vmul.f32 %v2352, %v1041
      %v2445 = vmul.f32 %v2357, %v1041
      %v2446 = vmul.f32 %v2360, %v1041
      %v2447 = vmul.f32 %v2365, %v1041
      %v2448 = vmul.f32 %v2368, %v1041
      %v2449 = vmul.f32 %v2373, %v1041
      %v2450 = vmul.f32 %v2376, %v1041
      %v2451 = vmul.f32 %v2381, %v1041
      %v2452 = vmul.f32 %v2384, %v1041
      %v2453 = vmul.f32 %v2389, %v1041
      %v2454 = vmul.f32 %v2392, %v1041
      %v2455 = vmul.f32 %v2397, %v1041
      %v2456 = vmul.f32 %v2400, %v1041
      %v2457 = vmul.f32 %v2405, %v1041
      %v2458 = vmul.f32 %v2408, %v1041
      %v2459 = vadd.f32 %v2411, %v1095
      %v2460 = vadd.f32 %v2412, %v1095
      %v2461 = vadd.f32 %v2413, %v1095
      %v2462 = vadd.f32 %v2414, %v1095
      %v2463 = vadd.f32 %v2415, %v1095
      %v2464 = vadd.f32 %v2416, %v1095
      %v2465 = vadd.f32 %v2417, %v1095
      %v2466 = vadd.f32 %v2418, %v1095
      %v2467 = vadd.f32 %v2419, %v1095
      %v2468 = vadd.f32 %v2420, %v1095
      %v2469 = vadd.f32 %v2421, %v1095
      %v2470 = vadd.f32 %v2422, %v1095
      %v2471 = vadd.f32 %v2423, %v1095
      %v2472 = vadd.f32 %v2424, %v1095
      %v2473 = vadd.f32 %v2425, %v1095
      %v2474 = vadd.f32 %v2426, %v1095
      %v2475 = vadd.f32 %v2427, %v1095
      %v2476 = vadd.f32 %v2428, %v1095
      %v2477 = vadd.f32 %v2429, %v1095
      %v2478 = vadd.f32 %v2430, %v1095
      %v2479 = vadd.f32 %v2431, %v1095
      %v2480 = vadd.f32 %v2432, %v1095
      %v2481 = vadd.f32 %v2433, %v1095
      %v2482 = vadd.f32 %v2434, %v1095
      %v2483 = vadd.f32 %v2435, %v1095
      %v2484 = vadd.f32 %v2436, %v1095
      %v2485 = vadd.f32 %v2437, %v1095
      %v2486 = vadd.f32 %v2438, %v1095
      %v2487 = vadd.f32 %v2439, %v1095
      %v2488 = vadd.f32 %v2440, %v1095
      %v2489 = vadd.f32 %v2441, %v1095
      %v2490 = vadd.f32 %v2442, %v1095
      %v2491 = vadd.f32 %v2443, %v1095
      %v2492 = vadd.f32 %v2444, %v1095
      %v2493 = vadd.f32 %v2445, %v1095
      %v2494 = vadd.f32 %v2446, %v1095
      %v2495 = vadd.f32 %v2447, %v1095
      %v2496 = vadd.f32 %v2448, %v1095
      %v2497 = vadd.f32 %v2449, %v1095
      %v2498 = vadd.f32 %v2450, %v1095
      %v2499 = vadd.f32 %v2451, %v1095
      %v2500 = vadd.f32 %v2452, %v1095
      %v2501 = vadd.f32 %v2453, %v1095
      %v2502 = vadd.f32 %v2454, %v1095
      %v2503 = vadd.f32 %v2455, %v1095
      %v2504 = vadd.f32 %v2456, %v1095
      %v2505 = vadd.f32 %v2457, %v1095
      %v2506 = vadd.f32 %v2458, %v1095
      %v2507 = vld [vmem:[%s352] sm:$0xff]
      %v2508 = vld [vmem:[%s352 + $0x8] sm:$0xff]
      %v2509 = vld [vmem:[%s352 + $0x10] sm:$0xff]
      %v2510 = vld [vmem:[%s352 + $0x18] sm:$0xff]
      %v2511 = vld [vmem:[%s352 + $0x20] sm:$0xff]
      %v2512 = vld [vmem:[%s352 + $0x28] sm:$0xff]
      %v2513 = vld [vmem:[%s352 + $0x30] sm:$0xff]
      %v2514 = vld [vmem:[%s352 + $0x38] sm:$0xff]
      %v2515 = vld [vmem:[%s352 + $0x40] sm:$0xff]
      %v2516 = vld [vmem:[%s352 + $0x48] sm:$0xff]
      %v2517 = vld [vmem:[%s352 + $0x50] sm:$0xff]
      %v2518 = vld [vmem:[%s352 + $0x58] sm:$0xff]
      %v2519 = vld [vmem:[%s352 + $0x60] sm:$0xff]
      %v2520 = vld [vmem:[%s352 + $0x68] sm:$0xff]
      %v2521 = vld [vmem:[%s352 + $0x70] sm:$0xff]
      %v2522 = vld [vmem:[%s352 + $0x78] sm:$0xff]
      %v2523 = vld [vmem:[%s352 + $0x80] sm:$0xff]
      %v2524 = vld [vmem:[%s352 + $0x88] sm:$0xff]
      %v2525 = vld [vmem:[%s352 + $0x90] sm:$0xff]
      %v2526 = vld [vmem:[%s352 + $0x98] sm:$0xff]
      %v2527 = vld [vmem:[%s352 + $0xa0] sm:$0xff]
      %v2528 = vld [vmem:[%s352 + $0xa8] sm:$0xff]
      %v2529 = vld [vmem:[%s352 + $0xb0] sm:$0xff]
      %v2530 = vld [vmem:[%s352 + $0xb8] sm:$0xff]
      %v2531 = vld [vmem:[%s352 + $0xc0] sm:$0xff]
      %v2532 = vld [vmem:[%s352 + $0xc8] sm:$0xff]
      %v2533 = vld [vmem:[%s352 + $0xd0] sm:$0xff]
      %v2534 = vld [vmem:[%s352 + $0xd8] sm:$0xff]
      %v2535 = vld [vmem:[%s352 + $0xe0] sm:$0xff]
      %v2536 = vld [vmem:[%s352 + $0xe8] sm:$0xff]
      %v2537 = vld [vmem:[%s352 + $0xf0] sm:$0xff]
      %v2538 = vld [vmem:[%s352 + $0xf8] sm:$0xff]
      %v2539 = vld [vmem:[%s352 + $0x100] sm:$0xff]
      %v2540 = vld [vmem:[%s352 + $0x108] sm:$0xff]
      %v2541 = vld [vmem:[%s352 + $0x110] sm:$0xff]
      %v2542 = vld [vmem:[%s352 + $0x118] sm:$0xff]
      %v2543 = vld [vmem:[%s352 + $0x120] sm:$0xff]
      %v2544 = vld [vmem:[%s352 + $0x128] sm:$0xff]
      %v2545 = vld [vmem:[%s352 + $0x130] sm:$0xff]
      %v2546 = vld [vmem:[%s352 + $0x138] sm:$0xff]
      %v2547 = vld [vmem:[%s352 + $0x140] sm:$0xff]
      %v2548 = vld [vmem:[%s352 + $0x148] sm:$0xff]
      %v2549 = vld [vmem:[%s352 + $0x150] sm:$0xff]
      %v2550 = vld [vmem:[%s352 + $0x158] sm:$0xff]
      %v2551 = vld [vmem:[%s352 + $0x160] sm:$0xff]
      %v2552 = vld [vmem:[%s352 + $0x168] sm:$0xff]
      %v2553 = vld [vmem:[%s352 + $0x170] sm:$0xff]
      %v2554 = vld [vmem:[%s352 + $0x178] sm:$0xff]
      %v2603 = vunpack.c.l.b16 %v2507
      %v2604 = vunpack.c.h.b16 %v2507
      %v2605 = vunpack.c.l.b16 %v2508
      %v2606 = vunpack.c.h.b16 %v2508
      %v2607 = vunpack.c.l.b16 %v2509
      %v2608 = vunpack.c.h.b16 %v2509
      %v2609 = vunpack.c.l.b16 %v2510
      %v2610 = vunpack.c.h.b16 %v2510
      %v2611 = vunpack.c.l.b16 %v2511
      %v2612 = vunpack.c.h.b16 %v2511
      %v2613 = vunpack.c.l.b16 %v2512
      %v2614 = vunpack.c.h.b16 %v2512
      %v2615 = vunpack.c.l.b16 %v2513
      %v2616 = vunpack.c.h.b16 %v2513
      %v2617 = vunpack.c.l.b16 %v2514
      %v2618 = vunpack.c.h.b16 %v2514
      %v2619 = vunpack.c.l.b16 %v2515
      %v2620 = vunpack.c.h.b16 %v2515
      %v2621 = vunpack.c.l.b16 %v2516
      %v2622 = vunpack.c.h.b16 %v2516
      %v2623 = vunpack.c.l.b16 %v2517
      %v2624 = vunpack.c.h.b16 %v2517
      %v2625 = vunpack.c.l.b16 %v2518
      %v2626 = vunpack.c.h.b16 %v2518
      %v2627 = vunpack.c.l.b16 %v2519
      %v2628 = vunpack.c.h.b16 %v2519
      %v2629 = vunpack.c.l.b16 %v2520
      %v2630 = vunpack.c.h.b16 %v2520
      %v2631 = vunpack.c.l.b16 %v2521
      %v2632 = vunpack.c.h.b16 %v2521
      %v2633 = vunpack.c.l.b16 %v2522
      %v2634 = vunpack.c.h.b16 %v2522
      %v2635 = vunpack.c.l.b16 %v2523
      %v2636 = vunpack.c.h.b16 %v2523
      %v2637 = vunpack.c.l.b16 %v2524
      %v2638 = vunpack.c.h.b16 %v2524
      %v2639 = vunpack.c.l.b16 %v2525
      %v2640 = vunpack.c.h.b16 %v2525
      %v2641 = vunpack.c.l.b16 %v2526
      %v2642 = vunpack.c.h.b16 %v2526
      %v2643 = vunpack.c.l.b16 %v2527
      %v2644 = vunpack.c.h.b16 %v2527
      %v2645 = vunpack.c.l.b16 %v2528
      %v2646 = vunpack.c.h.b16 %v2528
      %v2647 = vunpack.c.l.b16 %v2529
      %v2648 = vunpack.c.h.b16 %v2529
      %v2649 = vunpack.c.l.b16 %v2530
      %v2650 = vunpack.c.h.b16 %v2530
      %v2651 = vunpack.c.l.b16 %v2531
      %v2652 = vunpack.c.h.b16 %v2531
      %v2653 = vunpack.c.l.b16 %v2532
      %v2654 = vunpack.c.h.b16 %v2532
      %v2655 = vunpack.c.l.b16 %v2533
      %v2656 = vunpack.c.h.b16 %v2533
      %v2657 = vunpack.c.l.b16 %v2534
      %v2658 = vunpack.c.h.b16 %v2534
      %v2659 = vunpack.c.l.b16 %v2535
      %v2660 = vunpack.c.h.b16 %v2535
      %v2661 = vunpack.c.l.b16 %v2536
      %v2662 = vunpack.c.h.b16 %v2536
      %v2663 = vunpack.c.l.b16 %v2537
      %v2664 = vunpack.c.h.b16 %v2537
      %v2665 = vunpack.c.l.b16 %v2538
      %v2666 = vunpack.c.h.b16 %v2538
      %v2667 = vunpack.c.l.b16 %v2539
      %v2668 = vunpack.c.h.b16 %v2539
      %v2669 = vunpack.c.l.b16 %v2540
      %v2670 = vunpack.c.h.b16 %v2540
      %v2671 = vunpack.c.l.b16 %v2541
      %v2672 = vunpack.c.h.b16 %v2541
      %v2673 = vunpack.c.l.b16 %v2542
      %v2674 = vunpack.c.h.b16 %v2542
      %v2675 = vunpack.c.l.b16 %v2543
      %v2676 = vunpack.c.h.b16 %v2543
      %v2677 = vunpack.c.l.b16 %v2544
      %v2678 = vunpack.c.h.b16 %v2544
      %v2679 = vunpack.c.l.b16 %v2545
      %v2680 = vunpack.c.h.b16 %v2545
      %v2681 = vunpack.c.l.b16 %v2546
      %v2682 = vunpack.c.h.b16 %v2546
      %v2683 = vunpack.c.l.b16 %v2547
      %v2684 = vunpack.c.h.b16 %v2547
      %v2685 = vunpack.c.l.b16 %v2548
      %v2686 = vunpack.c.h.b16 %v2548
      %v2687 = vunpack.c.l.b16 %v2549
      %v2688 = vunpack.c.h.b16 %v2549
      %v2689 = vunpack.c.l.b16 %v2550
      %v2690 = vunpack.c.h.b16 %v2550
      %v2691 = vunpack.c.l.b16 %v2551
      %v2692 = vunpack.c.h.b16 %v2551
      %v2693 = vunpack.c.l.b16 %v2552
      %v2694 = vunpack.c.h.b16 %v2552
      %v2695 = vunpack.c.l.b16 %v2553
      %v2696 = vunpack.c.h.b16 %v2553
      %v2697 = vunpack.c.l.b16 %v2554
      %v2698 = vunpack.c.h.b16 %v2554
      %v2699 = vpack.c.b16 %v2605, %v2603
      %v2700 = vpack.c.b16 %v2606, %v2604
      %v2701 = vpack.c.b16 %v2609, %v2607
      %v2702 = vpack.c.b16 %v2610, %v2608
      %v2703 = vpack.c.b16 %v2613, %v2611
      %v2704 = vpack.c.b16 %v2614, %v2612
      %v2705 = vpack.c.b16 %v2617, %v2615
      %v2706 = vpack.c.b16 %v2618, %v2616
      %v2707 = vpack.c.b16 %v2621, %v2619
      %v2708 = vpack.c.b16 %v2622, %v2620
      %v2709 = vpack.c.b16 %v2625, %v2623
      %v2710 = vpack.c.b16 %v2626, %v2624
      %v2711 = vpack.c.b16 %v2629, %v2627
      %v2712 = vpack.c.b16 %v2630, %v2628
      %v2713 = vpack.c.b16 %v2633, %v2631
      %v2714 = vpack.c.b16 %v2634, %v2632
      %v2715 = vpack.c.b16 %v2637, %v2635
      %v2716 = vpack.c.b16 %v2638, %v2636
      %v2717 = vpack.c.b16 %v2641, %v2639
      %v2718 = vpack.c.b16 %v2642, %v2640
      %v2719 = vpack.c.b16 %v2645, %v2643
      %v2720 = vpack.c.b16 %v2646, %v2644
      %v2721 = vpack.c.b16 %v2649, %v2647
      %v2722 = vpack.c.b16 %v2650, %v2648
      %v2723 = vpack.c.b16 %v2653, %v2651
      %v2724 = vpack.c.b16 %v2654, %v2652
      %v2725 = vpack.c.b16 %v2657, %v2655
      %v2726 = vpack.c.b16 %v2658, %v2656
      %v2727 = vpack.c.b16 %v2661, %v2659
      %v2728 = vpack.c.b16 %v2662, %v2660
      %v2729 = vpack.c.b16 %v2665, %v2663
      %v2730 = vpack.c.b16 %v2666, %v2664
      %v2731 = vpack.c.b16 %v2669, %v2667
      %v2732 = vpack.c.b16 %v2670, %v2668
      %v2733 = vpack.c.b16 %v2673, %v2671
      %v2734 = vpack.c.b16 %v2674, %v2672
      %v2735 = vpack.c.b16 %v2677, %v2675
      %v2736 = vpack.c.b16 %v2678, %v2676
      %v2737 = vpack.c.b16 %v2681, %v2679
      %v2738 = vpack.c.b16 %v2682, %v2680
      %v2739 = vpack.c.b16 %v2685, %v2683
      %v2740 = vpack.c.b16 %v2686, %v2684
      %v2741 = vpack.c.b16 %v2689, %v2687
      %v2742 = vpack.c.b16 %v2690, %v2688
      %v2743 = vpack.c.b16 %v2693, %v2691
      %v2744 = vpack.c.b16 %v2694, %v2692
      %v2745 = vpack.c.b16 %v2697, %v2695
      %v2746 = vpack.c.b16 %v2698, %v2696
      %v2772 = vsel %vm735, %v2700, 0
      %v2775 = vsel %vm735, %v2702, 0
      %v2778 = vsel %vm735, %v2704, 0
      %v2781 = vsel %vm735, %v2706, 0
      %v2784 = vsel %vm735, %v2708, 0
      %v2787 = vsel %vm735, %v2710, 0
      %v2790 = vsel %vm735, %v2712, 0
      %v2793 = vsel %vm735, %v2714, 0
      %v2796 = vsel %vm735, %v2716, 0
      %v2799 = vsel %vm735, %v2718, 0
      %v2802 = vsel %vm735, %v2720, 0
      %v2805 = vsel %vm735, %v2722, 0
      %v2808 = vsel %vm735, %v2724, 0
      %v2811 = vsel %vm735, %v2726, 0
      %v2814 = vsel %vm735, %v2728, 0
      %v2817 = vsel %vm735, %v2730, 0
      %v2820 = vsel %vm735, %v2732, 0
      %v2823 = vsel %vm735, %v2734, 0
      %v2826 = vsel %vm735, %v2736, 0
      %v2829 = vsel %vm735, %v2738, 0
      %v2832 = vsel %vm735, %v2740, 0
      %v2835 = vsel %vm735, %v2742, 0
      %v2838 = vsel %vm735, %v2744, 0
      %v2841 = vsel %vm735, %v2746, 0
      %2843 = vmatprep.subr.bf16.mxu0 0
      %2844 = vmatpush1.bf16.msra.mxu0 %v708
      %2845 = vmatprep.subr.bf16.mxu0 0
      %2846 = vmatpush1.bf16.msra.mxu0 %v709
      %2847 = vmatprep.subr.bf16.mxu0 0
      %2848 = vmatpush1.bf16.msra.mxu0 %v710
      %2849 = vmatprep.subr.bf16.mxu0 0
      %2850 = vmatpush1.bf16.msra.mxu0 %v711
      %2851 = vmatprep.subr.bf16.mxu0 0
      %2852 = vmatpush1.bf16.msra.mxu0 %v712
      %2853 = vmatprep.subr.bf16.mxu0 0
      %2854 = vmatpush1.bf16.msra.mxu0 %v713
      %2855 = vmatprep.subr.bf16.mxu0 0
      %2856 = vmatpush1.bf16.msra.mxu0 %v714
      %2857 = vmatprep.subr.bf16.mxu0 0
      %2858 = vmatpush1.bf16.msra.mxu0 %v715
      %2859 = vmatprep.subr.bf16.mxu0 0
      %2860 = vmatpush1.bf16.msra.mxu0 %v716
      %2861 = vmatprep.subr.bf16.mxu0 0
      %2862 = vmatpush1.bf16.msra.mxu0 %v717
      %2863 = vmatprep.subr.bf16.mxu0 0
      %2864 = vmatpush1.bf16.msra.mxu0 %v718
      %2865 = vmatprep.subr.bf16.mxu0 0
      %2866 = vmatpush1.bf16.msra.mxu0 %v719
      %2867 = vmatprep.subr.bf16.mxu0 0
      %2868 = vmatpush1.bf16.msra.mxu0 %v720
      %2869 = vmatprep.subr.bf16.mxu0 0
      %2870 = vmatpush1.bf16.msra.mxu0 %v810
      %2871 = vmatprep.subr.bf16.mxu0 0
      %2872 = vmatpush1.bf16.msra.mxu0 0
      %2873 = vmatprep.subr.bf16.mxu0 0
      %2874 = vmatpush1.bf16.msra.mxu0 0
      %2875 = vmatprep.mubr.bf16.mxu0 %v2772
      %2876 = vmatmul.mubr.bf16.gmra.mrb[0].mxu0 %v2699
      %v2877 = vpop.f32.mrb[0].mxu0
      %v2878 = vadd.f32 0.0, %v2877
      %v2879 = vpop.f32.mrb[0].mxu0
      %v2880 = vpop.f32.mrb[0].mxu0
      %v2881 = vadd.f32 0.0, %v2880
      %v2882 = vpop.f32.mrb[0].mxu0
      %2883 = vmatprep.mubr.bf16.mxu0 %v2775
      %2884 = vmatmul.mubr.bf16.gmra.mrb[0].mxu0 %v2701
      %v2885 = vpop.f32.mrb[0].mxu0
      %v2886 = vadd.f32 0.0, %v2885
      %v2887 = vpop.f32.mrb[0].mxu0
      %v2888 = vpop.f32.mrb[0].mxu0
      %v2889 = vadd.f32 0.0, %v2888
      %v2890 = vpop.f32.mrb[0].mxu0
      %2891 = vmatprep.mubr.bf16.mxu0 %v2778
      %2892 = vmatmul.mubr.bf16.gmra.mrb[0].mxu0 %v2703
      %v2893 = vpop.f32.mrb[0].mxu0
      %v2894 = vadd.f32 0.0, %v2893
      %v2895 = vpop.f32.mrb[0].mxu0
      %v2896 = vpop.f32.mrb[0].mxu0
      %v2897 = vadd.f32 0.0, %v2896
      %v2898 = vpop.f32.mrb[0].mxu0
      %2899 = vmatprep.mubr.bf16.mxu0 %v2781
      %2900 = vmatmul.mubr.bf16.gmra.mrb[0].mxu0 %v2705
      %v2901 = vpop.f32.mrb[0].mxu0
      %v2902 = vadd.f32 0.0, %v2901
      %v2903 = vpop.f32.mrb[0].mxu0
      %v2904 = vpop.f32.mrb[0].mxu0
      %v2905 = vadd.f32 0.0, %v2904
      %v2906 = vpop.f32.mrb[0].mxu0
      %2907 = vmatprep.mubr.bf16.mxu0 %v2784
      %2908 = vmatmul.mubr.bf16.gmra.mrb[0].mxu0 %v2707
      %v2909 = vpop.f32.mrb[0].mxu0
      %v2910 = vadd.f32 0.0, %v2909
      %v2911 = vpop.f32.mrb[0].mxu0
      %v2912 = vpop.f32.mrb[0].mxu0
      %v2913 = vadd.f32 0.0, %v2912
      %v2914 = vpop.f32.mrb[0].mxu0
      %2915 = vmatprep.mubr.bf16.mxu0 %v2787
      %2916 = vmatmul.mubr.bf16.gmra.mrb[0].mxu0 %v2709
      %v2917 = vpop.f32.mrb[0].mxu0
      %v2918 = vadd.f32 0.0, %v2917
      %v2919 = vpop.f32.mrb[0].mxu0
      %v2920 = vpop.f32.mrb[0].mxu0
      %v2921 = vadd.f32 0.0, %v2920
      %v2922 = vpop.f32.mrb[0].mxu0
      %2923 = vmatprep.mubr.bf16.mxu0 %v2790
      %2924 = vmatmul.mubr.bf16.gmra.mrb[0].mxu0 %v2711
      %v2925 = vpop.f32.mrb[0].mxu0
      %v2926 = vadd.f32 0.0, %v2925
      %v2927 = vpop.f32.mrb[0].mxu0
      %v2928 = vpop.f32.mrb[0].mxu0
      %v2929 = vadd.f32 0.0, %v2928
      %v2930 = vpop.f32.mrb[0].mxu0
      %2931 = vmatprep.mubr.bf16.mxu0 %v2793
      %2932 = vmatmul.mubr.bf16.gmra.mrb[0].mxu0 %v2713
      %v2933 = vpop.f32.mrb[0].mxu0
      %v2934 = vadd.f32 0.0, %v2933
      %v2935 = vpop.f32.mrb[0].mxu0
      %v2936 = vpop.f32.mrb[0].mxu0
      %v2937 = vadd.f32 0.0, %v2936
      %v2938 = vpop.f32.mrb[0].mxu0
      %2939 = vmatprep.mubr.bf16.mxu0 %v2796
      %2940 = vmatmul.mubr.bf16.gmra.mrb[0].mxu0 %v2715
      %v2941 = vpop.f32.mrb[0].mxu0
      %v2942 = vadd.f32 0.0, %v2941
      %v2943 = vpop.f32.mrb[0].mxu0
      %v2944 = vpop.f32.mrb[0].mxu0
      %v2945 = vadd.f32 0.0, %v2944
      %v2946 = vpop.f32.mrb[0].mxu0
      %2947 = vmatprep.mubr.bf16.mxu0 %v2799
      %2948 = vmatmul.mubr.bf16.gmra.mrb[0].mxu0 %v2717
      %v2949 = vpop.f32.mrb[0].mxu0
      %v2950 = vadd.f32 0.0, %v2949
      %v2951 = vpop.f32.mrb[0].mxu0
      %v2952 = vpop.f32.mrb[0].mxu0
      %v2953 = vadd.f32 0.0, %v2952
      %v2954 = vpop.f32.mrb[0].mxu0
      %2955 = vmatprep.mubr.bf16.mxu0 %v2802
      %2956 = vmatmul.mubr.bf16.gmra.mrb[0].mxu0 %v2719
      %v2957 = vpop.f32.mrb[0].mxu0
      %v2958 = vadd.f32 0.0, %v2957
      %v2959 = vpop.f32.mrb[0].mxu0
      %v2960 = vpop.f32.mrb[0].mxu0
      %v2961 = vadd.f32 0.0, %v2960
      %v2962 = vpop.f32.mrb[0].mxu0
      %2963 = vmatprep.mubr.bf16.mxu0 %v2805
      %2964 = vmatmul.mubr.bf16.gmra.mrb[0].mxu0 %v2721
      %v2965 = vpop.f32.mrb[0].mxu0
      %v2966 = vadd.f32 0.0, %v2965
      %v2967 = vpop.f32.mrb[0].mxu0
      %v2968 = vpop.f32.mrb[0].mxu0
      %v2969 = vadd.f32 0.0, %v2968
      %v2970 = vpop.f32.mrb[0].mxu0
      %2971 = vmatprep.mubr.bf16.mxu0 %v2808
      %2972 = vmatmul.mubr.bf16.gmra.mrb[0].mxu0 %v2723
      %v2973 = vpop.f32.mrb[0].mxu0
      %v2974 = vadd.f32 0.0, %v2973
      %v2975 = vpop.f32.mrb[0].mxu0
      %v2976 = vpop.f32.mrb[0].mxu0
      %v2977 = vadd.f32 0.0, %v2976
      %v2978 = vpop.f32.mrb[0].mxu0
      %2979 = vmatprep.mubr.bf16.mxu0 %v2811
      %2980 = vmatmul.mubr.bf16.gmra.mrb[0].mxu0 %v2725
      %v2981 = vpop.f32.mrb[0].mxu0
      %v2982 = vadd.f32 0.0, %v2981
      %v2983 = vpop.f32.mrb[0].mxu0
      %v2984 = vpop.f32.mrb[0].mxu0
      %v2985 = vadd.f32 0.0, %v2984
      %v2986 = vpop.f32.mrb[0].mxu0
      %2987 = vmatprep.mubr.bf16.mxu0 %v2814
      %2988 = vmatmul.mubr.bf16.gmra.mrb[0].mxu0 %v2727
      %v2989 = vpop.f32.mrb[0].mxu0
      %v2990 = vadd.f32 0.0, %v2989
      %v2991 = vpop.f32.mrb[0].mxu0
      %v2992 = vpop.f32.mrb[0].mxu0
      %v2993 = vadd.f32 0.0, %v2992
      %v2994 = vpop.f32.mrb[0].mxu0
      %2995 = vmatprep.mubr.bf16.mxu0 %v2817
      %2996 = vmatmul.mubr.bf16.gmra.mrb[0].mxu0 %v2729
      %v2997 = vpop.f32.mrb[0].mxu0
      %v2998 = vadd.f32 0.0, %v2997
      %v2999 = vpop.f32.mrb[0].mxu0
      %v3000 = vpop.f32.mrb[0].mxu0
      %v3001 = vadd.f32 0.0, %v3000
      %v3002 = vpop.f32.mrb[0].mxu0
      %3003 = vmatprep.mubr.bf16.mxu0 %v2820
      %3004 = vmatmul.mubr.bf16.gmra.mrb[0].mxu0 %v2731
      %v3005 = vpop.f32.mrb[0].mxu0
      %v3006 = vadd.f32 0.0, %v3005
      %v3007 = vpop.f32.mrb[0].mxu0
      %v3008 = vpop.f32.mrb[0].mxu0
      %v3009 = vadd.f32 0.0, %v3008
      %v3010 = vpop.f32.mrb[0].mxu0
      %3011 = vmatprep.mubr.bf16.mxu0 %v2823
      %3012 = vmatmul.mubr.bf16.gmra.mrb[0].mxu0 %v2733
      %v3013 = vpop.f32.mrb[0].mxu0
      %v3014 = vadd.f32 0.0, %v3013
      %v3015 = vpop.f32.mrb[0].mxu0
      %v3016 = vpop.f32.mrb[0].mxu0
      %v3017 = vadd.f32 0.0, %v3016
      %v3018 = vpop.f32.mrb[0].mxu0
      %3019 = vmatprep.mubr.bf16.mxu0 %v2826
      %3020 = vmatmul.mubr.bf16.gmra.mrb[0].mxu0 %v2735
      %v3021 = vpop.f32.mrb[0].mxu0
      %v3022 = vadd.f32 0.0, %v3021
      %v3023 = vpop.f32.mrb[0].mxu0
      %v3024 = vpop.f32.mrb[0].mxu0
      %v3025 = vadd.f32 0.0, %v3024
      %v3026 = vpop.f32.mrb[0].mxu0
      %3027 = vmatprep.mubr.bf16.mxu0 %v2829
      %3028 = vmatmul.mubr.bf16.gmra.mrb[0].mxu0 %v2737
      %v3029 = vpop.f32.mrb[0].mxu0
      %v3030 = vadd.f32 0.0, %v3029
      %v3031 = vpop.f32.mrb[0].mxu0
      %v3032 = vpop.f32.mrb[0].mxu0
      %v3033 = vadd.f32 0.0, %v3032
      %v3034 = vpop.f32.mrb[0].mxu0
      %3035 = vmatprep.mubr.bf16.mxu0 %v2832
      %3036 = vmatmul.mubr.bf16.gmra.mrb[0].mxu0 %v2739
      %v3037 = vpop.f32.mrb[0].mxu0
      %v3038 = vadd.f32 0.0, %v3037
      %v3039 = vpop.f32.mrb[0].mxu0
      %v3040 = vpop.f32.mrb[0].mxu0
      %v3041 = vadd.f32 0.0, %v3040
      %v3042 = vpop.f32.mrb[0].mxu0
      %3043 = vmatprep.mubr.bf16.mxu0 %v2835
      %3044 = vmatmul.mubr.bf16.gmra.mrb[0].mxu0 %v2741
      %v3045 = vpop.f32.mrb[0].mxu0
      %v3046 = vadd.f32 0.0, %v3045
      %v3047 = vpop.f32.mrb[0].mxu0
      %v3048 = vpop.f32.mrb[0].mxu0
      %v3049 = vadd.f32 0.0, %v3048
      %v3050 = vpop.f32.mrb[0].mxu0
      %3051 = vmatprep.mubr.bf16.mxu0 %v2838
      %3052 = vmatmul.mubr.bf16.gmra.mrb[0].mxu0 %v2743
      %v3053 = vpop.f32.mrb[0].mxu0
      %v3054 = vadd.f32 0.0, %v3053
      %v3055 = vpop.f32.mrb[0].mxu0
      %v3056 = vpop.f32.mrb[0].mxu0
      %v3057 = vadd.f32 0.0, %v3056
      %v3058 = vpop.f32.mrb[0].mxu0
      %3059 = vmatprep.mubr.bf16.mxu0 %v2841
      %3060 = vmatmul.mubr.bf16.gmra.mrb[0].mxu0 %v2745
      %v3061 = vpop.f32.mrb[0].mxu0
      %v3062 = vadd.f32 0.0, %v3061
      %v3063 = vpop.f32.mrb[0].mxu0
      %v3064 = vpop.f32.mrb[0].mxu0
      %v3065 = vadd.f32 0.0, %v3064
      %v3066 = vpop.f32.mrb[0].mxu0
      %3067 = vdwg.mxu0
      %v3068 = vmul.f32 %v2878, %v1041
      %v3069 = vmul.f32 %v2881, %v1041
      %v3070 = vmul.f32 %v2886, %v1041
      %v3071 = vmul.f32 %v2889, %v1041
      %v3072 = vmul.f32 %v2894, %v1041
      %v3073 = vmul.f32 %v2897, %v1041
      %v3074 = vmul.f32 %v2902, %v1041
      %v3075 = vmul.f32 %v2905, %v1041
      %v3076 = vmul.f32 %v2910, %v1041
      %v3077 = vmul.f32 %v2913, %v1041
      %v3078 = vmul.f32 %v2918, %v1041
      %v3079 = vmul.f32 %v2921, %v1041
      %v3080 = vmul.f32 %v2926, %v1041
      %v3081 = vmul.f32 %v2929, %v1041
      %v3082 = vmul.f32 %v2934, %v1041
      %v3083 = vmul.f32 %v2937, %v1041
      %v3084 = vmul.f32 %v2942, %v1041
      %v3085 = vmul.f32 %v2945, %v1041
      %v3086 = vmul.f32 %v2950, %v1041
      %v3087 = vmul.f32 %v2953, %v1041
      %v3088 = vmul.f32 %v2958, %v1041
      %v3089 = vmul.f32 %v2961, %v1041
      %v3090 = vmul.f32 %v2966, %v1041
      %v3091 = vmul.f32 %v2969, %v1041
      %v3092 = vmul.f32 %v2974, %v1041
      %v3093 = vmul.f32 %v2977, %v1041
      %v3094 = vmul.f32 %v2982, %v1041
      %v3095 = vmul.f32 %v2985, %v1041
      %v3096 = vmul.f32 %v2990, %v1041
      %v3097 = vmul.f32 %v2993, %v1041
      %v3098 = vmul.f32 %v2998, %v1041
      %v3099 = vmul.f32 %v3001, %v1041
      %v3100 = vmul.f32 %v3006, %v1041
      %v3101 = vmul.f32 %v3009, %v1041
      %v3102 = vmul.f32 %v3014, %v1041
      %v3103 = vmul.f32 %v3017, %v1041
      %v3104 = vmul.f32 %v3022, %v1041
      %v3105 = vmul.f32 %v3025, %v1041
      %v3106 = vmul.f32 %v3030, %v1041
      %v3107 = vmul.f32 %v3033, %v1041
      %v3108 = vmul.f32 %v3038, %v1041
      %v3109 = vmul.f32 %v3041, %v1041
      %v3110 = vmul.f32 %v3046, %v1041
      %v3111 = vmul.f32 %v3049, %v1041
      %v3112 = vmul.f32 %v3054, %v1041
      %v3113 = vmul.f32 %v3057, %v1041
      %v3114 = vmul.f32 %v3062, %v1041
      %v3115 = vmul.f32 %v3065, %v1041
      %v3116 = vadd.f32 %v3068, %v1095
      %v3117 = vadd.f32 %v3069, %v1095
      %v3118 = vadd.f32 %v3070, %v1095
      %v3119 = vadd.f32 %v3071, %v1095
      %v3120 = vadd.f32 %v3072, %v1095
      %v3121 = vadd.f32 %v3073, %v1095
      %v3122 = vadd.f32 %v3074, %v1095
      %v3123 = vadd.f32 %v3075, %v1095
      %v3124 = vadd.f32 %v3076, %v1095
      %v3125 = vadd.f32 %v3077, %v1095
      %v3126 = vadd.f32 %v3078, %v1095
      %v3127 = vadd.f32 %v3079, %v1095
      %v3128 = vadd.f32 %v3080, %v1095
      %v3129 = vadd.f32 %v3081, %v1095
      %v3130 = vadd.f32 %v3082, %v1095
      %v3131 = vadd.f32 %v3083, %v1095
      %v3132 = vadd.f32 %v3084, %v1095
      %v3133 = vadd.f32 %v3085, %v1095
      %v3134 = vadd.f32 %v3086, %v1095
      %v3135 = vadd.f32 %v3087, %v1095
      %v3136 = vadd.f32 %v3088, %v1095
      %v3137 = vadd.f32 %v3089, %v1095
      %v3138 = vadd.f32 %v3090, %v1095
      %v3139 = vadd.f32 %v3091, %v1095
      %v3140 = vadd.f32 %v3092, %v1095
      %v3141 = vadd.f32 %v3093, %v1095
      %v3142 = vadd.f32 %v3094, %v1095
      %v3143 = vadd.f32 %v3095, %v1095
      %v3144 = vadd.f32 %v3096, %v1095
      %v3145 = vadd.f32 %v3097, %v1095
      %v3146 = vadd.f32 %v3098, %v1095
      %v3147 = vadd.f32 %v3099, %v1095
      %v3148 = vadd.f32 %v3100, %v1095
      %v3149 = vadd.f32 %v3101, %v1095
      %v3150 = vadd.f32 %v3102, %v1095
      %v3151 = vadd.f32 %v3103, %v1095
      %v3152 = vadd.f32 %v3104, %v1095
      %v3153 = vadd.f32 %v3105, %v1095
      %v3154 = vadd.f32 %v3106, %v1095
      %v3155 = vadd.f32 %v3107, %v1095
      %v3156 = vadd.f32 %v3108, %v1095
      %v3157 = vadd.f32 %v3109, %v1095
      %v3158 = vadd.f32 %v3110, %v1095
      %v3159 = vadd.f32 %v3111, %v1095
      %v3160 = vadd.f32 %v3112, %v1095
      %v3161 = vadd.f32 %v3113, %v1095
      %v3162 = vadd.f32 %v3114, %v1095
      %v3163 = vadd.f32 %v3115, %v1095
      %v3164 = vmax.f32 %v2459, %v3116
      %v3165 = vmax.f32 %v2460, %v3117
      %v3166 = vmax.f32 %v2461, %v3118
      %v3167 = vmax.f32 %v2462, %v3119
      %v3168 = vmax.f32 %v2463, %v3120
      %v3169 = vmax.f32 %v2464, %v3121
      %v3170 = vmax.f32 %v2465, %v3122
      %v3171 = vmax.f32 %v2466, %v3123
      %v3172 = vmax.f32 %v2467, %v3124
      %v3173 = vmax.f32 %v2468, %v3125
      %v3174 = vmax.f32 %v2469, %v3126
      %v3175 = vmax.f32 %v2470, %v3127
      %v3176 = vmax.f32 %v2471, %v3128
      %v3177 = vmax.f32 %v2472, %v3129
      %v3178 = vmax.f32 %v2473, %v3130
      %v3179 = vmax.f32 %v2474, %v3131
      %v3180 = vmax.f32 %v2475, %v3132
      %v3181 = vmax.f32 %v2476, %v3133
      %v3182 = vmax.f32 %v2477, %v3134
      %v3183 = vmax.f32 %v2478, %v3135
      %v3184 = vmax.f32 %v2479, %v3136
      %v3185 = vmax.f32 %v2480, %v3137
      %v3186 = vmax.f32 %v2481, %v3138
      %v3187 = vmax.f32 %v2482, %v3139
      %v3188 = vmax.f32 %v2483, %v3140
      %v3189 = vmax.f32 %v2484, %v3141
      %v3190 = vmax.f32 %v2485, %v3142
      %v3191 = vmax.f32 %v2486, %v3143
      %v3192 = vmax.f32 %v2487, %v3144
      %v3193 = vmax.f32 %v2488, %v3145
      %v3194 = vmax.f32 %v2489, %v3146
      %v3195 = vmax.f32 %v2490, %v3147
      %v3196 = vmax.f32 %v2491, %v3148
      %v3197 = vmax.f32 %v2492, %v3149
      %v3198 = vmax.f32 %v2493, %v3150
      %v3199 = vmax.f32 %v2494, %v3151
      %v3200 = vmax.f32 %v2495, %v3152
      %v3201 = vmax.f32 %v2496, %v3153
      %v3202 = vmax.f32 %v2497, %v3154
      %v3203 = vmax.f32 %v2498, %v3155
      %v3204 = vmax.f32 %v2499, %v3156
      %v3205 = vmax.f32 %v2500, %v3157
      %v3206 = vmax.f32 %v2501, %v3158
      %v3207 = vmax.f32 %v2502, %v3159
      %v3208 = vmax.f32 %v2503, %v3160
      %v3209 = vmax.f32 %v2504, %v3161
      %v3210 = vmax.f32 %v2505, %v3162
      %v3211 = vmax.f32 %v2506, %v3163
      %v3212 = vmax.f32 %v1802, %v3164
      %v3213 = vmax.f32 %v1803, %v3165
      %v3214 = vmax.f32 %v1804, %v3166
      %v3215 = vmax.f32 %v1805, %v3167
      %v3216 = vmax.f32 %v1806, %v3168
      %v3217 = vmax.f32 %v1807, %v3169
      %v3218 = vmax.f32 %v1808, %v3170
      %v3219 = vmax.f32 %v1809, %v3171
      %v3220 = vmax.f32 %v1810, %v3172
      %v3221 = vmax.f32 %v1811, %v3173
      %v3222 = vmax.f32 %v1812, %v3174
      %v3223 = vmax.f32 %v1813, %v3175
      %v3224 = vmax.f32 %v1814, %v3176
      %v3225 = vmax.f32 %v1815, %v3177
      %v3226 = vmax.f32 %v1816, %v3178
      %v3227 = vmax.f32 %v1817, %v3179
      %v3228 = vmax.f32 %v1818, %v3180
      %v3229 = vmax.f32 %v1819, %v3181
      %v3230 = vmax.f32 %v1820, %v3182
      %v3231 = vmax.f32 %v1821, %v3183
      %v3232 = vmax.f32 %v1822, %v3184
      %v3233 = vmax.f32 %v1823, %v3185
      %v3234 = vmax.f32 %v1824, %v3186
      %v3235 = vmax.f32 %v1825, %v3187
      %v3236 = vmax.f32 %v1826, %v3188
      %v3237 = vmax.f32 %v1827, %v3189
      %v3238 = vmax.f32 %v1828, %v3190
      %v3239 = vmax.f32 %v1829, %v3191
      %v3240 = vmax.f32 %v1830, %v3192
      %v3241 = vmax.f32 %v1831, %v3193
      %v3242 = vmax.f32 %v1832, %v3194
      %v3243 = vmax.f32 %v1833, %v3195
      %v3244 = vmax.f32 %v1834, %v3196
      %v3245 = vmax.f32 %v1835, %v3197
      %v3246 = vmax.f32 %v1836, %v3198
      %v3247 = vmax.f32 %v1837, %v3199
      %v3248 = vmax.f32 %v1838, %v3200
      %v3249 = vmax.f32 %v1839, %v3201
      %v3250 = vmax.f32 %v1840, %v3202
      %v3251 = vmax.f32 %v1841, %v3203
      %v3252 = vmax.f32 %v1842, %v3204
      %v3253 = vmax.f32 %v1843, %v3205
      %v3254 = vmax.f32 %v1844, %v3206
      %v3255 = vmax.f32 %v1845, %v3207
      %v3256 = vmax.f32 %v1846, %v3208
      %v3257 = vmax.f32 %v1847, %v3209
      %v3258 = vmax.f32 %v1848, %v3210
      %v3259 = vmax.f32 %v1849, %v3211
      %v3260 = vmax.f32 %v3212, 0.0
      %v3261 = vmax.f32 %v3213, 0.0
      %v3262 = vmax.f32 %v3214, 0.0
      %v3263 = vmax.f32 %v3215, 0.0
      %v3264 = vmax.f32 %v3216, 0.0
      %v3265 = vmax.f32 %v3217, 0.0
      %v3266 = vmax.f32 %v3218, 0.0
      %v3267 = vmax.f32 %v3219, 0.0
      %v3268 = vmax.f32 %v3220, 0.0
      %v3269 = vmax.f32 %v3221, 0.0
      %v3270 = vmax.f32 %v3222, 0.0
      %v3271 = vmax.f32 %v3223, 0.0
      %v3272 = vmax.f32 %v3224, 0.0
      %v3273 = vmax.f32 %v3225, 0.0
      %v3274 = vmax.f32 %v3226, 0.0
      %v3275 = vmax.f32 %v3227, 0.0
      %v3276 = vmax.f32 %v3228, 0.0
      %v3277 = vmax.f32 %v3229, 0.0
      %v3278 = vmax.f32 %v3230, 0.0
      %v3279 = vmax.f32 %v3231, 0.0
      %v3280 = vmax.f32 %v3232, 0.0
      %v3281 = vmax.f32 %v3233, 0.0
      %v3282 = vmax.f32 %v3234, 0.0
      %v3283 = vmax.f32 %v3235, 0.0
      %v3284 = vmax.f32 %v3236, 0.0
      %v3285 = vmax.f32 %v3237, 0.0
      %v3286 = vmax.f32 %v3238, 0.0
      %v3287 = vmax.f32 %v3239, 0.0
      %v3288 = vmax.f32 %v3240, 0.0
      %v3289 = vmax.f32 %v3241, 0.0
      %v3290 = vmax.f32 %v3242, 0.0
      %v3291 = vmax.f32 %v3243, 0.0
      %v3292 = vmax.f32 %v3244, 0.0
      %v3293 = vmax.f32 %v3245, 0.0
      %v3294 = vmax.f32 %v3246, 0.0
      %v3295 = vmax.f32 %v3247, 0.0
      %v3296 = vmax.f32 %v3248, 0.0
      %v3297 = vmax.f32 %v3249, 0.0
      %v3298 = vmax.f32 %v3250, 0.0
      %v3299 = vmax.f32 %v3251, 0.0
      %v3300 = vmax.f32 %v3252, 0.0
      %v3301 = vmax.f32 %v3253, 0.0
      %v3302 = vmax.f32 %v3254, 0.0
      %v3303 = vmax.f32 %v3255, 0.0
      %v3304 = vmax.f32 %v3256, 0.0
      %v3305 = vmax.f32 %v3257, 0.0
      %v3306 = vmax.f32 %v3258, 0.0
      %v3307 = vmax.f32 %v3259, 0.0
      %v3308 = vpack.c.bf16 %v3261, %v3260
      %v3309 = vpack.c.bf16 %v3263, %v3262
      %v3310 = vpack.c.bf16 %v3265, %v3264
      %v3311 = vpack.c.bf16 %v3267, %v3266
      %v3312 = vpack.c.bf16 %v3269, %v3268
      %v3313 = vpack.c.bf16 %v3271, %v3270
      %v3314 = vpack.c.bf16 %v3273, %v3272
      %v3315 = vpack.c.bf16 %v3275, %v3274
      %v3316 = vpack.c.bf16 %v3277, %v3276
      %v3317 = vpack.c.bf16 %v3279, %v3278
      %v3318 = vpack.c.bf16 %v3281, %v3280
      %v3319 = vpack.c.bf16 %v3283, %v3282
      %v3320 = vpack.c.bf16 %v3285, %v3284
      %v3321 = vpack.c.bf16 %v3287, %v3286
      %v3322 = vpack.c.bf16 %v3289, %v3288
      %v3323 = vpack.c.bf16 %v3291, %v3290
      %v3324 = vpack.c.bf16 %v3293, %v3292
      %v3325 = vpack.c.bf16 %v3295, %v3294
      %v3326 = vpack.c.bf16 %v3297, %v3296
      %v3327 = vpack.c.bf16 %v3299, %v3298
      %v3328 = vpack.c.bf16 %v3301, %v3300
      %v3329 = vpack.c.bf16 %v3303, %v3302
      %v3330 = vpack.c.bf16 %v3305, %v3304
      %v3331 = vpack.c.bf16 %v3307, %v3306
      %v3356 = vunpack.c.l.b16 %v3308
      %v3357 = vunpack.c.h.b16 %v3308
      %v3358 = vunpack.c.l.b16 %v3309
      %v3359 = vunpack.c.h.b16 %v3309
      %v3360 = vunpack.c.l.b16 %v3310
      %v3361 = vunpack.c.h.b16 %v3310
      %v3362 = vunpack.c.l.b16 %v3311
      %v3363 = vunpack.c.h.b16 %v3311
      %v3364 = vunpack.c.l.b16 %v3312
      %v3365 = vunpack.c.h.b16 %v3312
      %v3366 = vunpack.c.l.b16 %v3313
      %v3367 = vunpack.c.h.b16 %v3313
      %v3368 = vunpack.c.l.b16 %v3314
      %v3369 = vunpack.c.h.b16 %v3314
      %v3370 = vunpack.c.l.b16 %v3315
      %v3371 = vunpack.c.h.b16 %v3315
      %v3372 = vunpack.c.l.b16 %v3316
      %v3373 = vunpack.c.h.b16 %v3316
      %v3374 = vunpack.c.l.b16 %v3317
      %v3375 = vunpack.c.h.b16 %v3317
      %v3376 = vunpack.c.l.b16 %v3318
      %v3377 = vunpack.c.h.b16 %v3318
      %v3378 = vunpack.c.l.b16 %v3319
      %v3379 = vunpack.c.h.b16 %v3319
      %v3380 = vunpack.c.l.b16 %v3320
      %v3381 = vunpack.c.h.b16 %v3320
      %v3382 = vunpack.c.l.b16 %v3321
      %v3383 = vunpack.c.h.b16 %v3321
      %v3384 = vunpack.c.l.b16 %v3322
      %v3385 = vunpack.c.h.b16 %v3322
      %v3386 = vunpack.c.l.b16 %v3323
      %v3387 = vunpack.c.h.b16 %v3323
      %v3388 = vunpack.c.l.b16 %v3324
      %v3389 = vunpack.c.h.b16 %v3324
      %v3390 = vunpack.c.l.b16 %v3325
      %v3391 = vunpack.c.h.b16 %v3325
      %v3392 = vunpack.c.l.b16 %v3326
      %v3393 = vunpack.c.h.b16 %v3326
      %v3394 = vunpack.c.l.b16 %v3327
      %v3395 = vunpack.c.h.b16 %v3327
      %v3396 = vunpack.c.l.b16 %v3328
      %v3397 = vunpack.c.h.b16 %v3328
      %v3398 = vunpack.c.l.b16 %v3329
      %v3399 = vunpack.c.h.b16 %v3329
      %v3400 = vunpack.c.l.b16 %v3330
      %v3401 = vunpack.c.h.b16 %v3330
      %v3402 = vunpack.c.l.b16 %v3331
      %v3403 = vunpack.c.h.b16 %v3331
      %v3404 = vpack.c.b16 %v3356, %v3356
      %v3405 = vpack.c.b16 %v3357, %v3357
      %v3406 = vpack.c.b16 %v3358, %v3358
      %v3407 = vpack.c.b16 %v3359, %v3359
      %v3408 = vpack.c.b16 %v3360, %v3360
      %v3409 = vpack.c.b16 %v3361, %v3361
      %v3410 = vpack.c.b16 %v3362, %v3362
      %v3411 = vpack.c.b16 %v3363, %v3363
      %v3412 = vpack.c.b16 %v3364, %v3364
      %v3413 = vpack.c.b16 %v3365, %v3365
      %v3414 = vpack.c.b16 %v3366, %v3366
      %v3415 = vpack.c.b16 %v3367, %v3367
      %v3416 = vpack.c.b16 %v3368, %v3368
      %v3417 = vpack.c.b16 %v3369, %v3369
      %v3418 = vpack.c.b16 %v3370, %v3370
      %v3419 = vpack.c.b16 %v3371, %v3371
      %v3420 = vpack.c.b16 %v3372, %v3372
      %v3421 = vpack.c.b16 %v3373, %v3373
      %v3422 = vpack.c.b16 %v3374, %v3374
      %v3423 = vpack.c.b16 %v3375, %v3375
      %v3424 = vpack.c.b16 %v3376, %v3376
      %v3425 = vpack.c.b16 %v3377, %v3377
      %v3426 = vpack.c.b16 %v3378, %v3378
      %v3427 = vpack.c.b16 %v3379, %v3379
      %v3428 = vpack.c.b16 %v3380, %v3380
      %v3429 = vpack.c.b16 %v3381, %v3381
      %v3430 = vpack.c.b16 %v3382, %v3382
      %v3431 = vpack.c.b16 %v3383, %v3383
      %v3432 = vpack.c.b16 %v3384, %v3384
      %v3433 = vpack.c.b16 %v3385, %v3385
      %v3434 = vpack.c.b16 %v3386, %v3386
      %v3435 = vpack.c.b16 %v3387, %v3387
      %v3436 = vpack.c.b16 %v3388, %v3388
      %v3437 = vpack.c.b16 %v3389, %v3389
      %v3438 = vpack.c.b16 %v3390, %v3390
      %v3439 = vpack.c.b16 %v3391, %v3391
      %v3440 = vpack.c.b16 %v3392, %v3392
      %v3441 = vpack.c.b16 %v3393, %v3393
      %v3442 = vpack.c.b16 %v3394, %v3394
      %v3443 = vpack.c.b16 %v3395, %v3395
      %v3444 = vpack.c.b16 %v3396, %v3396
      %v3445 = vpack.c.b16 %v3397, %v3397
      %v3446 = vpack.c.b16 %v3398, %v3398
      %v3447 = vpack.c.b16 %v3399, %v3399
      %v3448 = vpack.c.b16 %v3400, %v3400
      %v3449 = vpack.c.b16 %v3401, %v3401
      %v3450 = vpack.c.b16 %v3402, %v3402
      %v3451 = vpack.c.b16 %v3403, %v3403
      %3500 = vst [vmem:[%s358] sm:$0xf] %v3404
      %3501 = vst [vmem:[%s358 + $0x4] sm:$0xf] %v3405
      %3502 = vst [vmem:[%s358 + $0x8] sm:$0xf] %v3406
      %3503 = vst [vmem:[%s358 + $0xc] sm:$0xf] %v3407
      %3504 = vst [vmem:[%s358 + $0x10] sm:$0xf] %v3408
      %3505 = vst [vmem:[%s358 + $0x14] sm:$0xf] %v3409
      %3506 = vst [vmem:[%s358 + $0x18] sm:$0xf] %v3410
      %3507 = vst [vmem:[%s358 + $0x1c] sm:$0xf] %v3411
      %3508 = vst [vmem:[%s358 + $0x20] sm:$0xf] %v3412
      %3509 = vst [vmem:[%s358 + $0x24] sm:$0xf] %v3413
      %3510 = vst [vmem:[%s358 + $0x28] sm:$0xf] %v3414
      %3511 = vst [vmem:[%s358 + $0x2c] sm:$0xf] %v3415
      %3512 = vst [vmem:[%s358 + $0x30] sm:$0xf] %v3416
      %3513 = vst [vmem:[%s358 + $0x34] sm:$0xf] %v3417
      %3514 = vst [vmem:[%s358 + $0x38] sm:$0xf] %v3418
      %3515 = vst [vmem:[%s358 + $0x3c] sm:$0xf] %v3419
      %3516 = vst [vmem:[%s358 + $0x40] sm:$0xf] %v3420
      %3517 = vst [vmem:[%s358 + $0x44] sm:$0xf] %v3421
      %3518 = vst [vmem:[%s358 + $0x48] sm:$0xf] %v3422
      %3519 = vst [vmem:[%s358 + $0x4c] sm:$0xf] %v3423
      %3520 = vst [vmem:[%s358 + $0x50] sm:$0xf] %v3424
      %3521 = vst [vmem:[%s358 + $0x54] sm:$0xf] %v3425
      %3522 = vst [vmem:[%s358 + $0x58] sm:$0xf] %v3426
      %3523 = vst [vmem:[%s358 + $0x5c] sm:$0xf] %v3427
      %3524 = vst [vmem:[%s358 + $0x60] sm:$0xf] %v3428
      %3525 = vst [vmem:[%s358 + $0x64] sm:$0xf] %v3429
      %3526 = vst [vmem:[%s358 + $0x68] sm:$0xf] %v3430
      %3527 = vst [vmem:[%s358 + $0x6c] sm:$0xf] %v3431
      %3528 = vst [vmem:[%s358 + $0x70] sm:$0xf] %v3432
      %3529 = vst [vmem:[%s358 + $0x74] sm:$0xf] %v3433
      %3530 = vst [vmem:[%s358 + $0x78] sm:$0xf] %v3434
      %3531 = vst [vmem:[%s358 + $0x7c] sm:$0xf] %v3435
      %3532 = vst [vmem:[%s358 + $0x80] sm:$0xf] %v3436
      %3533 = vst [vmem:[%s358 + $0x84] sm:$0xf] %v3437
      %3534 = vst [vmem:[%s358 + $0x88] sm:$0xf] %v3438
      %3535 = vst [vmem:[%s358 + $0x8c] sm:$0xf] %v3439
      %3536 = vst [vmem:[%s358 + $0x90] sm:$0xf] %v3440
      %3537 = vst [vmem:[%s358 + $0x94] sm:$0xf] %v3441
      %3538 = vst [vmem:[%s358 + $0x98] sm:$0xf] %v3442
      %3539 = vst [vmem:[%s358 + $0x9c] sm:$0xf] %v3443
      %3540 = vst [vmem:[%s358 + $0xa0] sm:$0xf] %v3444
      %3541 = vst [vmem:[%s358 + $0xa4] sm:$0xf] %v3445
      %3542 = vst [vmem:[%s358 + $0xa8] sm:$0xf] %v3446
      %3543 = vst [vmem:[%s358 + $0xac] sm:$0xf] %v3447
      %3544 = vst [vmem:[%s358 + $0xb0] sm:$0xf] %v3448
      %3545 = vst [vmem:[%s358 + $0xb4] sm:$0xf] %v3449
      %3546 = vst [vmem:[%s358 + $0xb8] sm:$0xf] %v3450
      %3547 = vst [vmem:[%s358 + $0xbc] sm:$0xf] %v3451
      %s3548 = smul.u32 48, %s18
      %p3549 = scmp.lt.s32.totalorder %s3548, 95
      %s3550 = scalar_select %p3549, %s3548, 95
      %s3551 = smul.addr %s3550, 4
      %s3552 = scalar_lea.vmem %s7, %s3551
      // Predicated region
      $region49: #{_lambda_.4} parent=47 // pred_check
        %p3553 = pneg %p203
      $region50: #{_lambda_.4} parent=47 // pred_check_branch
        %3555 = sbr.rel (%p3553) target = $region52
      $region51: #{_lambda_.4} parent=47 // pred_region
        %s3556 = smul.u32 48, %s18
      $region52: #{_lambda_.4} parent=47 // pred_fallthru
        _
    $region48: #{_lambda_.4} parent=5 // pred_fallthru
      _
    %p3557 = scmp.le.s32.totalorder 2, %s13
    // Predicated region
    $region53: #{_lambda_.4} parent=5 // pred_check
      %p3558 = pneg %p3557
    $region54: #{_lambda_.4} parent=5 // pred_check_branch
      %3560 = sbr.rel (%p3558) target = $region56
    $region55: #{_lambda_.4} parent=5 // pred_region
      %s3561 = ssub.s32 %s13, 2
      // Predicated region
      $region57: #{_lambda_.4} parent=55 // pred_check
        %p3562 = pneg %p209
      $region58: #{_lambda_.4} parent=55 // pred_check_branch
        %3564 = sbr.rel (%p3562) target = $region60
      $region59: #{_lambda_.4} parent=55 // pred_region
        %s3565 = smul.u32 48, %s19
        %p3566 = scmp.lt.s32.totalorder %s3565, 95
        %s3567 = scalar_select %p3566, %s3565, 95
        %s3568 = smul.addr %s3567, 4
        %s3569 = scalar_lea.vmem %s7, %s3568
      $region60: #{_lambda_.4} parent=55 // pred_fallthru
        _
    $region56: #{_lambda_.4} parent=5 // pred_fallthru
      _
  $region6: #{_lambda_.4} parent=0 // loop_footer
    %s17 = sadd.s32 1, %s13
  $region7: #{_lambda_.4} parent=0 // loop_footer_branch
    %12 = sbr.rel target = $region3
  $region8: #{_lambda_.4} parent=0 // loop_exit
    _

// kernel: tile.34
$region0: #{tile.34}
  #allocation0 [shape = 's32[1]{0}', space=sflag, size = 0x4, scoped, tag = 'scoped memory for tile.34']
  %s0 = inlined_call_operand.vmem [shape: f32[32], index: 0, kind: input, shape index: {}]
  %s1 = inlined_call_operand.vmem [shape: f32[4,32], index: 1, kind: output, shape index: {}]
  // Predicated region
  $region2: #{tile.34} parent=0 // pred_check
    _
  $region3: #{tile.34} parent=0 // pred_check_branch
    %3 = sbr.rel (0) target = $region5
  $region4: #{tile.34} parent=0 // pred_region
    _
  $region5: #{tile.34} parent=0 // pred_fallthru
    _
  %v4 = vld [vmem:[%s0] ss:$0 sm:$0xff]
  %5 = vst [vmem:[%s1] sm:$0xf] %v4

// kernel: tile.35
$region0: #{tile.35}
  %s0 = inlined_call_operand.vmem [shape: f32[4,32], index: 0, kind: input, shape index: {}]
  %s1 = inlined_call_operand.vmem [shape: f32[1,128], index: 1, kind: output, shape index: {}]
  $region1: #{tile.35} parent=0
    #allocation0 [shape = 'u8[4096]{0}', space=vmem, size = 0x1000, scoped, tag = 'scoped mem for output reshape']
    #allocation1 [shape = 'u8[4096]{0}', space=vmem, size = 0x1000, scoped, tag = 'scoped mem for input reshape']
    %s3 = sshllo.u32 0, 4
    %v4 = vld [vmem:[%s0] sm:%s3]
    %5 = vst [vmem:[#allocation1] sm:%s3] %v4
    %v6 = vld [vmem:[#allocation1] sm:$0x1]
    %vm7 = vcmask 261120
    %8 = vst.msk [vmem:[#allocation0] sm:$0x1] %vm7, %v6
    %s9 = scalar_lea.vmem [#allocation1], 3
    %v10 = vld [vmem:[%s9] sm:$0x1]
    %11 = vrot.lane.b32.xlu0 %v10, 96
    %v12 = vpop.permute.xlu0 %11
    %vm13 = vcmask 1048320
    %14 = vst.msk [vmem:[#allocation0] sm:$0x1] %vm13, %v12
    %s15 = scalar_lea.vmem [#allocation1], 2
    %v16 = vld [vmem:[%s15] sm:$0x1]
    %17 = vrot.lane.b32.xlu0 %v16, 64
    %v18 = vpop.permute.xlu0 %17
    %vm19 = vcmask 785920
    %20 = vst.msk [vmem:[#allocation0] sm:$0x1] %vm19, %v18
    %s21 = scalar_lea.vmem [#allocation1], 1
    %v22 = vld [vmem:[%s21] sm:$0x1]
    %23 = vrot.lane.b32.xlu0 %v22, 32
    %v24 = vpop.permute.xlu0 %23
    %vm25 = vcmask 523520
    %26 = vst.msk [vmem:[#allocation0] sm:$0x1] %vm25, %v24
    %s28 = sshllo.u32 0, 1
    %v30 = vld [vmem:[#allocation0] sm:%s28]
    %s31 = sshllo.u32 0, 1
    %32 = vst [vmem:[%s1] sm:%s31] %v30

// kernel: _lambda_.5
$region0: #{_lambda_.5}
  #allocation0 [shape = 'u32[]', space=smem, size = 0x4, offset = 0x4, fixed_abs, tag = 'smem constant byte address 0x4 - core index']
  #allocation1 [shape = 'u32[144,128]{1,0:T(1,128)}', space=vmem, size = 0x12000, scoped, tag = 'internal scratch']
  %s0 = inlined_call_operand.vmem [shape: bf16[96,576], index: 0, kind: input, shape index: {}]
  %s1 = inlined_call_operand.vmem [shape: bf16[96,576], index: 1, kind: input, shape index: {}]
  %s2 = inlined_call_operand.vmem [shape: bf16[96,576], index: 2, kind: input, shape index: {}]
  %s3 = inlined_call_operand.vmem [shape: bf16[96,576], index: 3, kind: input, shape index: {}]
  %s4 = inlined_call_operand.vmem [shape: bf16[576,128], index: 4, kind: input, shape index: {}]
  %s5 = inlined_call_operand.vmem [shape: f32[1,128], index: 5, kind: input, shape index: {}]
  %s6 = inlined_call_operand.vmem [shape: f32[1,128], index: 6, kind: input, shape index: {}]
  %s7 = inlined_call_operand.vmem [shape: bf16[96,128], index: 7, kind: output, shape index: {}]
  %s8 = sld [smem:[#allocation0]]
  $region61: #{_lambda_.5} parent=0
    _
  %s10 = ssub.s32 1, %s8
  %s11 = scalar_select 0, %s10, %s8
  loop: start=0, step=1, limit=4
  $region2: #{_lambda_.5} parent=0 // loop_pre_header
    _
  $region3: #{_lambda_.5} parent=0 // loop_header
    %s13 = sphi 0, %s17
    %p14 = scmp.ge.s32.totalorder %s13, 4
    %s23 = sphi 0, %s25
    %s26 = sphi 0, %s23
    %s27 = sphi 0, %s26
    %s43 = sphi 0, %s27
    %s49 = sphi 0, %s51
    %s52 = sphi 0, %s49
    %s53 = sphi 0, %s52
    %s69 = sphi 0, %s53
    %s75 = sphi 0, %s77
    %s78 = sphi 0, %s75
    %s79 = sphi 0, %s78
    %s95 = sphi 0, %s79
    %s101 = sphi 0, %s103
    %s104 = sphi 0, %s101
    %s105 = sphi 0, %s104
    %s121 = sphi 0, %s105
    %s125 = sphi 0, %s125
    %s127 = sphi 0, %s125
    %s128 = sphi 0, %s127
    %s142 = sphi 0, %s128
    %s146 = sphi 0, %s146
    %s148 = sphi 0, %s146
    %s149 = sphi 0, %s148
    %s163 = sphi 0, %s149
    %s167 = sphi 0, %s167
    %s169 = sphi 0, %s167
    %s170 = sphi 0, %s169
    %s184 = sphi 0, %s170
    %s190 = sphi 0, %s192
    %s193 = sphi 0, %s190
    %s194 = sphi 0, %s193
    %s210 = sphi 0, %s194
  $region4: #{_lambda_.5} parent=0 // loop_header_branch
    %16 = sbr.rel (%p14) target = $region8
  $region5: #{_lambda_.5} parent=0 // loop_body
    %s18 = ssub.s32 %s13, 1
    %s19 = ssub.s32 %s13, 2
    %s20 = sadd.s32 %s13, 1
    %s21 = ssub.s32 %s13, %s20
    %p22 = scmp.eq.s32.totalorder %s21, 0
    %s24 = sadd.s32 %s23, 1
    %s25 = scalar_select %p22, %s23, %s24
    %p28 = pneg %p22
    %p29 = scmp.eq.s32.totalorder %s13, 1
    %p30 = por %p28, %p29
    %p31 = scmp.ne.s32.totalorder %s23, %s26
    %p32 = scmp.eq.s32.totalorder %s13, 0
    %p33 = por %p31, %p32
    %p34 = scmp.ne.s32.totalorder %s23, %s26
    %p35 = scmp.eq.s32.totalorder %s18, 1
    %p36 = por %p34, %p35
    %p37 = scmp.ne.s32.totalorder %s26, %s27
    %p38 = scmp.eq.s32.totalorder %s18, 0
    %p39 = por %p37, %p38
    %p40 = scmp.ne.s32.totalorder %s26, %s27
    %p41 = scmp.eq.s32.totalorder %s19, 1
    %p42 = por %p40, %p41
    %p44 = scmp.ne.s32.totalorder %s27, %s43
    %p45 = scmp.eq.s32.totalorder %s19, 0
    %p46 = por %p44, %p45
    %s47 = ssub.s32 %s13, %s20
    %p48 = scmp.eq.s32.totalorder %s47, 0
    %s50 = sadd.s32 %s49, 1
    %s51 = scalar_select %p48, %s49, %s50
    %p54 = pneg %p48
    %p55 = scmp.eq.s32.totalorder %s13, 1
    %p56 = por %p54, %p55
    %p57 = scmp.ne.s32.totalorder %s49, %s52
    %p58 = scmp.eq.s32.totalorder %s13, 0
    %p59 = por %p57, %p58
    %p60 = scmp.ne.s32.totalorder %s49, %s52
    %p61 = scmp.eq.s32.totalorder %s18, 1
    %p62 = por %p60, %p61
    %p63 = scmp.ne.s32.totalorder %s52, %s53
    %p64 = scmp.eq.s32.totalorder %s18, 0
    %p65 = por %p63, %p64
    %p66 = scmp.ne.s32.totalorder %s52, %s53
    %p67 = scmp.eq.s32.totalorder %s19, 1
    %p68 = por %p66, %p67
    %p70 = scmp.ne.s32.totalorder %s53, %s69
    %p71 = scmp.eq.s32.totalorder %s19, 0
    %p72 = por %p70, %p71
    %s73 = ssub.s32 %s13, %s20
    %p74 = scmp.eq.s32.totalorder %s73, 0
    %s76 = sadd.s32 %s75, 1
    %s77 = scalar_select %p74, %s75, %s76
    %p80 = pneg %p74
    %p81 = scmp.eq.s32.totalorder %s13, 1
    %p82 = por %p80, %p81
    %p83 = scmp.ne.s32.totalorder %s75, %s78
    %p84 = scmp.eq.s32.totalorder %s13, 0
    %p85 = por %p83, %p84
    %p86 = scmp.ne.s32.totalorder %s75, %s78
    %p87 = scmp.eq.s32.totalorder %s18, 1
    %p88 = por %p86, %p87
    %p89 = scmp.ne.s32.totalorder %s78, %s79
    %p90 = scmp.eq.s32.totalorder %s18, 0
    %p91 = por %p89, %p90
    %p92 = scmp.ne.s32.totalorder %s78, %s79
    %p93 = scmp.eq.s32.totalorder %s19, 1
    %p94 = por %p92, %p93
    %p96 = scmp.ne.s32.totalorder %s79, %s95
    %p97 = scmp.eq.s32.totalorder %s19, 0
    %p98 = por %p96, %p97
    %s99 = ssub.s32 %s13, %s20
    %p100 = scmp.eq.s32.totalorder %s99, 0
    %s102 = sadd.s32 %s101, 1
    %s103 = scalar_select %p100, %s101, %s102
    %p106 = pneg %p100
    %p107 = scmp.eq.s32.totalorder %s13, 1
    %p108 = por %p106, %p107
    %p109 = scmp.ne.s32.totalorder %s101, %s104
    %p110 = scmp.eq.s32.totalorder %s13, 0
    %p111 = por %p109, %p110
    %p112 = scmp.ne.s32.totalorder %s101, %s104
    %p113 = scmp.eq.s32.totalorder %s18, 1
    %p114 = por %p112, %p113
    %p115 = scmp.ne.s32.totalorder %s104, %s105
    %p116 = scmp.eq.s32.totalorder %s18, 0
    %p117 = por %p115, %p116
    %p118 = scmp.ne.s32.totalorder %s104, %s105
    %p119 = scmp.eq.s32.totalorder %s19, 1
    %p120 = por %p118, %p119
    %p122 = scmp.ne.s32.totalorder %s105, %s121
    %p123 = scmp.eq.s32.totalorder %s19, 0
    %p124 = por %p122, %p123
    %s126 = sadd.s32 %s125, 1
    %p129 = scmp.eq.s32.totalorder %s13, 1
    %p130 = scmp.ne.s32.totalorder %s125, %s127
    %p131 = scmp.eq.s32.totalorder %s13, 0
    %p132 = por %p130, %p131
    %p133 = scmp.ne.s32.totalorder %s125, %s127
    %p134 = scmp.eq.s32.totalorder %s18, 1
    %p135 = por %p133, %p134
    %p136 = scmp.ne.s32.totalorder %s127, %s128
    %p137 = scmp.eq.s32.totalorder %s18, 0
    %p138 = por %p136, %p137
    %p139 = scmp.ne.s32.totalorder %s127, %s128
    %p140 = scmp.eq.s32.totalorder %s19, 1
    %p141 = por %p139, %p140
    %p143 = scmp.ne.s32.totalorder %s128, %s142
    %p144 = scmp.eq.s32.totalorder %s19, 0
    %p145 = por %p143, %p144
    %s147 = sadd.s32 %s146, 1
    %p150 = scmp.eq.s32.totalorder %s13, 1
    %p151 = scmp.ne.s32.totalorder %s146, %s148
    %p152 = scmp.eq.s32.totalorder %s13, 0
    %p153 = por %p151, %p152
    %p154 = scmp.ne.s32.totalorder %s146, %s148
    %p155 = scmp.eq.s32.totalorder %s18, 1
    %p156 = por %p154, %p155
    %p157 = scmp.ne.s32.totalorder %s148, %s149
    %p158 = scmp.eq.s32.totalorder %s18, 0
    %p159 = por %p157, %p158
    %p160 = scmp.ne.s32.totalorder %s148, %s149
    %p161 = scmp.eq.s32.totalorder %s19, 1
    %p162 = por %p160, %p161
    %p164 = scmp.ne.s32.totalorder %s149, %s163
    %p165 = scmp.eq.s32.totalorder %s19, 0
    %p166 = por %p164, %p165
    %s168 = sadd.s32 %s167, 1
    %p171 = scmp.eq.s32.totalorder %s13, 1
    %p172 = scmp.ne.s32.totalorder %s167, %s169
    %p173 = scmp.eq.s32.totalorder %s13, 0
    %p174 = por %p172, %p173
    %p175 = scmp.ne.s32.totalorder %s167, %s169
    %p176 = scmp.eq.s32.totalorder %s18, 1
    %p177 = por %p175, %p176
    %p178 = scmp.ne.s32.totalorder %s169, %s170
    %p179 = scmp.eq.s32.totalorder %s18, 0
    %p180 = por %p178, %p179
    %p181 = scmp.ne.s32.totalorder %s169, %s170
    %p182 = scmp.eq.s32.totalorder %s19, 1
    %p183 = por %p181, %p182
    %p185 = scmp.ne.s32.totalorder %s170, %s184
    %p186 = scmp.eq.s32.totalorder %s19, 0
    %p187 = por %p185, %p186
    %s188 = ssub.s32 %s13, %s20
    %p189 = scmp.eq.s32.totalorder %s188, 0
    %s191 = sadd.s32 %s190, 1
    %s192 = scalar_select %p189, %s190, %s191
    %p195 = pneg %p189
    %p196 = scmp.eq.s32.totalorder %s13, 1
    %p197 = por %p195, %p196
    %p198 = scmp.ne.s32.totalorder %s190, %s193
    %p199 = scmp.eq.s32.totalorder %s13, 0
    %p200 = por %p198, %p199
    %p201 = scmp.ne.s32.totalorder %s190, %s193
    %p202 = scmp.eq.s32.totalorder %s18, 1
    %p203 = por %p201, %p202
    %p204 = scmp.ne.s32.totalorder %s193, %s194
    %p205 = scmp.eq.s32.totalorder %s18, 0
    %p206 = por %p204, %p205
    %p207 = scmp.ne.s32.totalorder %s193, %s194
    %p208 = scmp.eq.s32.totalorder %s19, 1
    %p209 = por %p207, %p208
    %p211 = scmp.ne.s32.totalorder %s194, %s210
    %p212 = scmp.eq.s32.totalorder %s19, 0
    %p213 = por %p211, %p212
    %p214 = scmp.le.s32.totalorder 1, %s13
    %p215 = scmp.lt.s32.totalorder %s13, 3
    %p216 = pnand %p214, %p215
    %p217 = pneg %p216
    // Predicated region
    $region9: #{_lambda_.5} parent=5 // pred_check
      _
    $region10: #{_lambda_.5} parent=5 // pred_check_branch
      %219 = sbr.rel (%p216) target = $region12
    $region11: #{_lambda_.5} parent=5 // pred_region
      %s220 = ssub.s32 %s13, 1
      // Predicated region
      $region13: #{_lambda_.5} parent=11 // pred_check
        %p221 = pneg %p138
      $region14: #{_lambda_.5} parent=11 // pred_check_branch
        %223 = sbr.rel (%p221) target = $region16
      $region15: #{_lambda_.5} parent=11 // pred_region
        _
      $region16: #{_lambda_.5} parent=11 // pred_fallthru
        _
      // Predicated region
      $region17: #{_lambda_.5} parent=11 // pred_check
        %p224 = pneg %p159
      $region18: #{_lambda_.5} parent=11 // pred_check_branch
        %226 = sbr.rel (%p224) target = $region20
      $region19: #{_lambda_.5} parent=11 // pred_region
        _
      $region20: #{_lambda_.5} parent=11 // pred_fallthru
        _
      // Predicated region
      $region21: #{_lambda_.5} parent=11 // pred_check
        %p227 = pneg %p180
      $region22: #{_lambda_.5} parent=11 // pred_check_branch
        %229 = sbr.rel (%p227) target = $region24
      $region23: #{_lambda_.5} parent=11 // pred_region
        _
      $region24: #{_lambda_.5} parent=11 // pred_fallthru
        _
    $region12: #{_lambda_.5} parent=5 // pred_fallthru
      _
    %p230 = scmp.lt.s32.totalorder %s13, 2
    // Predicated region
    $region25: #{_lambda_.5} parent=5 // pred_check
      %p231 = pneg %p230
    $region26: #{_lambda_.5} parent=5 // pred_check_branch
      %233 = sbr.rel (%p231) target = $region28
    $region27: #{_lambda_.5} parent=5 // pred_region
      // Predicated region
      $region29: #{_lambda_.5} parent=27 // pred_check
        %p234 = pneg %p33
      $region30: #{_lambda_.5} parent=27 // pred_check_branch
        %236 = sbr.rel (%p234) target = $region32
      $region31: #{_lambda_.5} parent=27 // pred_region
        %s237 = smul.u32 6, %s13
        %p238 = scmp.lt.s32.totalorder %s237, 11
        %s239 = scalar_select %p238, %s237, 11
        %s240 = smul.addr %s239, 5
        %s241 = smul.addr %s240, 4
        %s242 = scalar_lea.vmem %s0, %s241
        %s243 = smul.u32 6, %s13
      $region32: #{_lambda_.5} parent=27 // pred_fallthru
        _
      // Predicated region
      $region33: #{_lambda_.5} parent=27 // pred_check
        %p244 = pneg %p59
      $region34: #{_lambda_.5} parent=27 // pred_check_branch
        %246 = sbr.rel (%p244) target = $region36
      $region35: #{_lambda_.5} parent=27 // pred_region
        %s247 = smul.u32 6, %s13
        %p248 = scmp.lt.s32.totalorder %s247, 11
        %s249 = scalar_select %p248, %s247, 11
        %s250 = smul.addr %s249, 5
        %s251 = smul.addr %s250, 4
        %s252 = scalar_lea.vmem %s1, %s251
        %s253 = smul.u32 6, %s13
      $region36: #{_lambda_.5} parent=27 // pred_fallthru
        _
      // Predicated region
      $region37: #{_lambda_.5} parent=27 // pred_check
        %p254 = pneg %p85
      $region38: #{_lambda_.5} parent=27 // pred_check_branch
        %256 = sbr.rel (%p254) target = $region40
      $region39: #{_lambda_.5} parent=27 // pred_region
        %s257 = smul.u32 6, %s13
        %p258 = scmp.lt.s32.totalorder %s257, 11
        %s259 = scalar_select %p258, %s257, 11
        %s260 = smul.addr %s259, 5
        %s261 = smul.addr %s260, 4
        %s262 = scalar_lea.vmem %s2, %s261
        %s263 = smul.u32 6, %s13
      $region40: #{_lambda_.5} parent=27 // pred_fallthru
        _
      // Predicated region
      $region41: #{_lambda_.5} parent=27 // pred_check
        %p264 = pneg %p111
      $region42: #{_lambda_.5} parent=27 // pred_check_branch
        %266 = sbr.rel (%p264) target = $region44
      $region43: #{_lambda_.5} parent=27 // pred_region
        %s267 = smul.u32 6, %s13
        %p268 = scmp.lt.s32.totalorder %s267, 11
        %s269 = scalar_select %p268, %s267, 11
        %s270 = smul.addr %s269, 5
        %s271 = smul.addr %s270, 4
        %s272 = scalar_lea.vmem %s3, %s271
        %s273 = smul.u32 6, %s13
      $region44: #{_lambda_.5} parent=27 // pred_fallthru
        _
    $region28: #{_lambda_.5} parent=5 // pred_fallthru
      _
    %p274 = scmp.le.s32.totalorder 1, %s13
    %p275 = scmp.lt.s32.totalorder %s13, 3
    %p276 = pnand %p274, %p275
    %p277 = pneg %p276
    // Predicated region
    $region45: #{_lambda_.5} parent=5 // pred_check
      _
    $region46: #{_lambda_.5} parent=5 // pred_check_branch
      %279 = sbr.rel (%p276) target = $region48
    $region47: #{_lambda_.5} parent=5 // pred_region
      %s280 = ssub.s32 %s13, 1
      %s281 = smul.u32 6, %s18
      %p282 = scmp.lt.s32.totalorder %s281, 11
      %s283 = scalar_select %p282, %s281, 11
      %s284 = smul.addr %s283, 5
      %s285 = smul.addr %s284, 4
      %s286 = scalar_lea.vmem %s0, %s285
      %p287 = pneg %p39
      %p288 = pneg %p36
      %s289 = smul.u32 6, %s18
      %p290 = scmp.lt.s32.totalorder %s289, 11
      %s291 = scalar_select %p290, %s289, 11
      %s292 = smul.addr %s291, 5
      %s293 = smul.addr %s292, 4
      %s294 = scalar_lea.vmem %s1, %s293
      %p295 = pneg %p65
      %p296 = pneg %p62
      %s297 = smul.u32 6, %s18
      %p298 = scmp.lt.s32.totalorder %s297, 11
      %s299 = scalar_select %p298, %s297, 11
      %s300 = smul.addr %s299, 5
      %s301 = smul.addr %s300, 4
      %s302 = scalar_lea.vmem %s2, %s301
      %p303 = pneg %p91
      %p304 = pneg %p88
      %s305 = smul.u32 6, %s18
      %p306 = scmp.lt.s32.totalorder %s305, 11
      %s307 = scalar_select %p306, %s305, 11
      %s308 = smul.addr %s307, 5
      %s309 = smul.addr %s308, 4
      %s310 = scalar_lea.vmem %s3, %s309
      %p311 = pneg %p117
      %p312 = pneg %p114
      %p313 = pneg %p138
      %p314 = pneg %p135
      %p315 = pneg %p159
      %p316 = pneg %p156
      %p317 = pneg %p180
      %p318 = pneg %p177
      %p319 = pneg %p206
      %p320 = pneg %p203
      %s321 = smul.u32 6, %s18
      %p322 = scmp.lt.s32.totalorder %s321, 11
      %s323 = scalar_select %p322, %s321, 11
      %s324 = smul.addr %s323, 4
      %s325 = scalar_lea.vmem %s7, %s324
      %s326 = smul.u32 6, %s18
      %p327 = scmp.lt.s32.totalorder %s326, 11
      %s328 = scalar_select %p327, %s326, 11
      %s329 = smul.addr %s328, 5
      %s330 = smul.addr %s329, 4
      %s331 = scalar_lea.vmem %s0, %s330
      %s332 = smul.u32 6, %s18
      %s333 = smul.u32 6, %s18
      %p334 = scmp.lt.s32.totalorder %s333, 11
      %s335 = scalar_select %p334, %s333, 11
      %s336 = smul.addr %s335, 5
      %s337 = smul.addr %s336, 4
      %s338 = scalar_lea.vmem %s1, %s337
      %s339 = smul.u32 6, %s18
      %s340 = smul.u32 6, %s18
      %p341 = scmp.lt.s32.totalorder %s340, 11
      %s342 = scalar_select %p341, %s340, 11
      %s343 = smul.addr %s342, 5
      %s344 = smul.addr %s343, 4
      %s345 = scalar_lea.vmem %s2, %s344
      %s346 = smul.u32 6, %s18
      %s347 = smul.u32 6, %s18
      %p348 = scmp.lt.s32.totalorder %s347, 11
      %s349 = scalar_select %p348, %s347, 11
      %s350 = smul.addr %s349, 5
      %s351 = smul.addr %s350, 4
      %s352 = scalar_lea.vmem %s3, %s351
      %s353 = smul.u32 6, %s18
      %s354 = smul.u32 6, %s18
      %p355 = scmp.lt.s32.totalorder %s354, 11
      %s356 = scalar_select %p355, %s354, 11
      %s357 = smul.addr %s356, 4
      %s358 = scalar_lea.vmem %s7, %s357
      %s359 = smul.u32 6, %s18
      %v361 = vld [vmem:[%s4] sm:$0xf]
      %v362 = vld [vmem:[%s4 + $0x4] sm:$0xf]
      %v363 = vld [vmem:[%s4 + $0x8] sm:$0xf]
      %v364 = vld [vmem:[%s4 + $0xc] sm:$0xf]
      %v365 = vld [vmem:[%s4 + $0x10] sm:$0xf]
      %v366 = vld [vmem:[%s4 + $0x14] sm:$0xf]
      %v367 = vld [vmem:[%s4 + $0x18] sm:$0xf]
      %v368 = vld [vmem:[%s4 + $0x1c] sm:$0xf]
      %v369 = vld [vmem:[%s4 + $0x20] sm:$0xf]
      %v370 = vld [vmem:[%s4 + $0x24] sm:$0xf]
      %v371 = vld [vmem:[%s4 + $0x28] sm:$0xf]
      %v372 = vld [vmem:[%s4 + $0x2c] sm:$0xf]
      %v373 = vld [vmem:[%s4 + $0x30] sm:$0xf]
      %v374 = vld [vmem:[%s4 + $0x34] sm:$0xf]
      %v375 = vld [vmem:[%s4 + $0x38] sm:$0xf]
      %v376 = vld [vmem:[%s4 + $0x3c] sm:$0xf]
      %v377 = vld [vmem:[%s4 + $0x40] sm:$0xf]
      %v378 = vld [vmem:[%s4 + $0x44] sm:$0xf]
      %v379 = vld [vmem:[%s4 + $0x48] sm:$0xf]
      %v380 = vld [vmem:[%s4 + $0x4c] sm:$0xf]
      %v381 = vld [vmem:[%s4 + $0x50] sm:$0xf]
      %v382 = vld [vmem:[%s4 + $0x54] sm:$0xf]
      %v383 = vld [vmem:[%s4 + $0x58] sm:$0xf]
      %v384 = vld [vmem:[%s4 + $0x5c] sm:$0xf]
      %v385 = vld [vmem:[%s4 + $0x60] sm:$0xf]
      %v386 = vld [vmem:[%s4 + $0x64] sm:$0xf]
      %v387 = vld [vmem:[%s4 + $0x68] sm:$0xf]
      %v388 = vld [vmem:[%s4 + $0x6c] sm:$0xf]
      %v389 = vld [vmem:[%s4 + $0x70] sm:$0xf]
      %v390 = vld [vmem:[%s4 + $0x74] sm:$0xf]
      %v391 = vld [vmem:[%s4 + $0x78] sm:$0xf]
      %v392 = vld [vmem:[%s4 + $0x7c] sm:$0xf]
      %v393 = vld [vmem:[%s4 + $0x80] sm:$0xf]
      %v394 = vld [vmem:[%s4 + $0x84] sm:$0xf]
      %v395 = vld [vmem:[%s4 + $0x88] sm:$0xf]
      %v396 = vld [vmem:[%s4 + $0x8c] sm:$0xf]
      %v397 = vld [vmem:[%s4 + $0x90] sm:$0xf]
      %v398 = vld [vmem:[%s4 + $0x94] sm:$0xf]
      %v399 = vld [vmem:[%s4 + $0x98] sm:$0xf]
      %v400 = vld [vmem:[%s4 + $0x9c] sm:$0xf]
      %v401 = vld [vmem:[%s4 + $0xa0] sm:$0xf]
      %v402 = vld [vmem:[%s4 + $0xa4] sm:$0xf]
      %v403 = vld [vmem:[%s4 + $0xa8] sm:$0xf]
      %v404 = vld [vmem:[%s4 + $0xac] sm:$0xf]
      %v405 = vld [vmem:[%s4 + $0xb0] sm:$0xf]
      %v406 = vld [vmem:[%s4 + $0xb4] sm:$0xf]
      %v407 = vld [vmem:[%s4 + $0xb8] sm:$0xf]
      %v408 = vld [vmem:[%s4 + $0xbc] sm:$0xf]
      %v409 = vld [vmem:[%s4 + $0xc0] sm:$0xf]
      %v410 = vld [vmem:[%s4 + $0xc4] sm:$0xf]
      %v411 = vld [vmem:[%s4 + $0xc8] sm:$0xf]
      %v412 = vld [vmem:[%s4 + $0xcc] sm:$0xf]
      %v413 = vld [vmem:[%s4 + $0xd0] sm:$0xf]
      %v414 = vld [vmem:[%s4 + $0xd4] sm:$0xf]
      %v415 = vld [vmem:[%s4 + $0xd8] sm:$0xf]
      %v416 = vld [vmem:[%s4 + $0xdc] sm:$0xf]
      %v417 = vld [vmem:[%s4 + $0xe0] sm:$0xf]
      %v418 = vld [vmem:[%s4 + $0xe4] sm:$0xf]
      %v419 = vld [vmem:[%s4 + $0xe8] sm:$0xf]
      %v420 = vld [vmem:[%s4 + $0xec] sm:$0xf]
      %v421 = vld [vmem:[%s4 + $0xf0] sm:$0xf]
      %v422 = vld [vmem:[%s4 + $0xf4] sm:$0xf]
      %v423 = vld [vmem:[%s4 + $0xf8] sm:$0xf]
      %v424 = vld [vmem:[%s4 + $0xfc] sm:$0xf]
      %v425 = vld [vmem:[%s4 + $0x100] sm:$0xf]
      %v426 = vld [vmem:[%s4 + $0x104] sm:$0xf]
      %v427 = vld [vmem:[%s4 + $0x108] sm:$0xf]
      %v428 = vld [vmem:[%s4 + $0x10c] sm:$0xf]
      %v429 = vld [vmem:[%s4 + $0x110] sm:$0xf]
      %v430 = vld [vmem:[%s4 + $0x114] sm:$0xf]
      %v431 = vld [vmem:[%s4 + $0x118] sm:$0xf]
      %v432 = vld [vmem:[%s4 + $0x11c] sm:$0xf]
      %v433 = vld [vmem:[%s5] sm:$0x1]
      %v434 = vld [vmem:[%s6] sm:$0x1]
      %v435 = vld [vmem:[%s331] sm:$0xff]
      %v436 = vld [vmem:[%s331 + $0x8] sm:$0xff]
      %v437 = vld [vmem:[%s331 + $0x10] sm:$0xf]
      %v438 = vld [vmem:[%s331 + $0x14] sm:$0xff]
      %v439 = vld [vmem:[%s331 + $0x1c] sm:$0xff]
      %v440 = vld [vmem:[%s331 + $0x24] sm:$0xf]
      %v441 = vld [vmem:[%s331 + $0x28] sm:$0xff]
      %v442 = vld [vmem:[%s331 + $0x30] sm:$0xff]
      %v443 = vld [vmem:[%s331 + $0x38] sm:$0xf]
      %v444 = vld [vmem:[%s331 + $0x3c] sm:$0xff]
      %v445 = vld [vmem:[%s331 + $0x44] sm:$0xff]
      %v446 = vld [vmem:[%s331 + $0x4c] sm:$0xf]
      %v447 = vld [vmem:[%s331 + $0x50] sm:$0xff]
      %v448 = vld [vmem:[%s331 + $0x58] sm:$0xff]
      %v449 = vld [vmem:[%s331 + $0x60] sm:$0xf]
      %v450 = vld [vmem:[%s331 + $0x64] sm:$0xff]
      %v451 = vld [vmem:[%s331 + $0x6c] sm:$0xff]
      %v452 = vld [vmem:[%s331 + $0x74] sm:$0xf]
      %v471 = vunpack.c.l.b16 %v435
      %v472 = vunpack.c.h.b16 %v435
      %v473 = vunpack.c.l.b16 %v436
      %v474 = vunpack.c.h.b16 %v436
      %v475 = vunpack.c.l.b16 %v437
      %v476 = vunpack.c.l.b16 %v438
      %v477 = vunpack.c.h.b16 %v438
      %v478 = vunpack.c.l.b16 %v439
      %v479 = vunpack.c.h.b16 %v439
      %v480 = vunpack.c.l.b16 %v440
      %v481 = vunpack.c.l.b16 %v441
      %v482 = vunpack.c.h.b16 %v441
      %v483 = vunpack.c.l.b16 %v442
      %v484 = vunpack.c.h.b16 %v442
      %v485 = vunpack.c.l.b16 %v443
      %v486 = vunpack.c.l.b16 %v444
      %v487 = vunpack.c.h.b16 %v444
      %v488 = vunpack.c.l.b16 %v445
      %v489 = vunpack.c.h.b16 %v445
      %v490 = vunpack.c.l.b16 %v446
      %v491 = vunpack.c.l.b16 %v447
      %v492 = vunpack.c.h.b16 %v447
      %v493 = vunpack.c.l.b16 %v448
      %v494 = vunpack.c.h.b16 %v448
      %v495 = vunpack.c.l.b16 %v449
      %v496 = vunpack.c.l.b16 %v450
      %v497 = vunpack.c.h.b16 %v450
      %v498 = vunpack.c.l.b16 %v451
      %v499 = vunpack.c.h.b16 %v451
      %v500 = vunpack.c.l.b16 %v452
      %v501 = vpack.c.b16 %v476, %v471
      %v502 = vpack.c.b16 %v477, %v472
      %v503 = vpack.c.b16 %v478, %v473
      %v504 = vpack.c.b16 %v479, %v474
      %v505 = vpack.c.b16 %v480, %v475
      %v506 = vpack.c.b16 %v486, %v481
      %v507 = vpack.c.b16 %v487, %v482
      %v508 = vpack.c.b16 %v488, %v483
      %v509 = vpack.c.b16 %v489, %v484
      %v510 = vpack.c.b16 %v490, %v485
      %v511 = vpack.c.b16 %v496, %v491
      %v512 = vpack.c.b16 %v497, %v492
      %v513 = vpack.c.b16 %v498, %v493
      %v514 = vpack.c.b16 %v499, %v494
      %v515 = vpack.c.b16 %v500, %v495
      %v600 = vunpack.c.l.b16 %v361
      %v601 = vunpack.c.l.b16 %v362
      %v602 = vunpack.c.l.b16 %v363
      %v603 = vunpack.c.l.b16 %v364
      %v604 = vunpack.c.l.b16 %v365
      %v605 = vunpack.c.l.b16 %v366
      %v606 = vunpack.c.l.b16 %v367
      %v607 = vunpack.c.l.b16 %v368
      %v608 = vunpack.c.l.b16 %v369
      %v609 = vunpack.c.l.b16 %v370
      %v610 = vunpack.c.l.b16 %v371
      %v611 = vunpack.c.l.b16 %v372
      %v612 = vunpack.c.l.b16 %v373
      %v613 = vunpack.c.l.b16 %v374
      %v614 = vunpack.c.l.b16 %v375
      %v615 = vunpack.c.l.b16 %v376
      %v616 = vunpack.c.l.b16 %v377
      %v617 = vunpack.c.l.b16 %v378
      %v618 = vunpack.c.l.b16 %v379
      %v619 = vunpack.c.l.b16 %v380
      %v620 = vunpack.c.l.b16 %v381
      %v621 = vunpack.c.l.b16 %v382
      %v622 = vunpack.c.l.b16 %v383
      %v623 = vunpack.c.l.b16 %v384
      %v624 = vunpack.c.l.b16 %v385
      %v625 = vunpack.c.l.b16 %v386
      %v626 = vunpack.c.l.b16 %v387
      %v627 = vunpack.c.l.b16 %v388
      %v628 = vunpack.c.l.b16 %v389
      %v629 = vunpack.c.l.b16 %v390
      %v630 = vunpack.c.l.b16 %v391
      %v631 = vunpack.c.l.b16 %v392
      %v632 = vunpack.c.l.b16 %v393
      %v633 = vunpack.c.l.b16 %v394
      %v634 = vunpack.c.l.b16 %v395
      %v635 = vunpack.c.l.b16 %v396
      %v636 = vunpack.c.l.b16 %v397
      %v637 = vunpack.c.l.b16 %v398
      %v638 = vunpack.c.l.b16 %v399
      %v639 = vunpack.c.l.b16 %v400
      %v640 = vunpack.c.l.b16 %v401
      %v641 = vunpack.c.l.b16 %v402
      %v642 = vunpack.c.l.b16 %v403
      %v643 = vunpack.c.l.b16 %v404
      %v644 = vunpack.c.l.b16 %v405
      %v645 = vunpack.c.l.b16 %v406
      %v646 = vunpack.c.l.b16 %v407
      %v647 = vunpack.c.l.b16 %v408
      %v648 = vunpack.c.l.b16 %v409
      %v649 = vunpack.c.l.b16 %v410
      %v650 = vunpack.c.l.b16 %v411
      %v651 = vunpack.c.l.b16 %v412
      %v652 = vunpack.c.l.b16 %v413
      %v653 = vunpack.c.l.b16 %v414
      %v654 = vunpack.c.l.b16 %v415
      %v655 = vunpack.c.l.b16 %v416
      %v656 = vunpack.c.l.b16 %v417
      %v657 = vunpack.c.l.b16 %v418
      %v658 = vunpack.c.l.b16 %v419
      %v659 = vunpack.c.l.b16 %v420
      %v660 = vunpack.c.l.b16 %v421
      %v661 = vunpack.c.l.b16 %v422
      %v662 = vunpack.c.l.b16 %v423
      %v663 = vunpack.c.l.b16 %v424
      %v664 = vunpack.c.l.b16 %v425
      %v665 = vunpack.c.l.b16 %v426
      %v666 = vunpack.c.l.b16 %v427
      %v667 = vunpack.c.l.b16 %v428
      %v668 = vunpack.c.l.b16 %v429
      %v669 = vunpack.c.l.b16 %v430
      %v670 = vunpack.c.l.b16 %v431
      %v671 = vunpack.c.l.b16 %v432
      %v672 = vpack.c.b16 %v601, %v600
      %v673 = vpack.c.b16 %v603, %v602
      %v674 = vpack.c.b16 %v605, %v604
      %v675 = vpack.c.b16 %v607, %v606
      %v676 = vpack.c.b16 %v609, %v608
      %v677 = vpack.c.b16 %v611, %v610
      %v678 = vpack.c.b16 %v613, %v612
      %v679 = vpack.c.b16 %v615, %v614
      %v680 = vpack.c.b16 %v617, %v616
      %v681 = vpack.c.b16 %v619, %v618
      %v682 = vpack.c.b16 %v621, %v620
      %v683 = vpack.c.b16 %v623, %v622
      %v684 = vpack.c.b16 %v625, %v624
      %v685 = vpack.c.b16 %v627, %v626
      %v686 = vpack.c.b16 %v629, %v628
      %v687 = vpack.c.b16 %v631, %v630
      %v688 = vpack.c.b16 %v633, %v632
      %v689 = vpack.c.b16 %v635, %v634
      %v690 = vpack.c.b16 %v637, %v636
      %v691 = vpack.c.b16 %v639, %v638
      %v692 = vpack.c.b16 %v641, %v640
      %v693 = vpack.c.b16 %v643, %v642
      %v694 = vpack.c.b16 %v645, %v644
      %v695 = vpack.c.b16 %v647, %v646
      %v696 = vpack.c.b16 %v649, %v648
      %v697 = vpack.c.b16 %v651, %v650
      %v698 = vpack.c.b16 %v653, %v652
      %v699 = vpack.c.b16 %v655, %v654
      %v700 = vpack.c.b16 %v657, %v656
      %v701 = vpack.c.b16 %v659, %v658
      %v702 = vpack.c.b16 %v661, %v660
      %v703 = vpack.c.b16 %v663, %v662
      %v704 = vpack.c.b16 %v665, %v664
      %v705 = vpack.c.b16 %v667, %v666
      %v706 = vpack.c.b16 %v669, %v668
      %v707 = vpack.c.b16 %v671, %v670
      %vm744 = vcmask 523264
      %v746 = vsel %vm744, %v505, 0
      %v749 = vsel %vm744, %v510, 0
      %v752 = vsel %vm744, %v515, 0
      %754 = vmatprep.subr.bf16.mxu0 0
      %755 = vmatpush1.bf16.msra.mxu0 %v672
      %756 = vmatprep.subr.bf16.mxu0 0
      %757 = vmatpush1.bf16.msra.mxu0 %v673
      %758 = vmatprep.subr.bf16.mxu0 0
      %759 = vmatpush1.bf16.msra.mxu0 %v674
      %760 = vmatprep.subr.bf16.mxu0 0
      %761 = vmatpush1.bf16.msra.mxu0 %v675
      %762 = vmatprep.subr.bf16.mxu0 0
      %763 = vmatpush1.bf16.msra.mxu0 %v676
      %764 = vmatprep.subr.bf16.mxu0 0
      %765 = vmatpush1.bf16.msra.mxu0 %v677
      %766 = vmatprep.subr.bf16.mxu0 0
      %767 = vmatpush1.bf16.msra.mxu0 %v678
      %768 = vmatprep.subr.bf16.mxu0 0
      %769 = vmatpush1.bf16.msra.mxu0 %v679
      %770 = vmatprep.subr.bf16.mxu0 0
      %771 = vmatpush1.bf16.msra.mxu0 %v680
      %772 = vmatprep.subr.bf16.mxu0 0
      %773 = vmatpush1.bf16.msra.mxu0 %v681
      %774 = vmatprep.subr.bf16.mxu0 0
      %775 = vmatpush1.bf16.msra.mxu0 %v682
      %776 = vmatprep.subr.bf16.mxu0 0
      %777 = vmatpush1.bf16.msra.mxu0 %v683
      %778 = vmatprep.subr.bf16.mxu0 0
      %779 = vmatpush1.bf16.msra.mxu0 %v684
      %780 = vmatprep.subr.bf16.mxu0 0
      %781 = vmatpush1.bf16.msra.mxu0 %v685
      %782 = vmatprep.subr.bf16.mxu0 0
      %783 = vmatpush1.bf16.msra.mxu0 %v686
      %784 = vmatprep.subr.bf16.mxu0 0
      %785 = vmatpush1.bf16.msra.mxu0 %v687
      %786 = vmatprep.mubr.bf16.mxu0 %v502
      %787 = vmatmul.mubr.bf16.gmra.mrb[0].mxu0 %v501
      %v788 = vpop.f32.mrb[0].mxu0
      %v789 = vadd.f32 0.0, %v788
      %v790 = vpop.f32.mrb[0].mxu0
      %v791 = vpop.f32.mrb[0].mxu0
      %v792 = vadd.f32 0.0, %v791
      %v793 = vpop.f32.mrb[0].mxu0
      %794 = vmatprep.mubr.bf16.mxu0 %v507
      %795 = vmatmul.mubr.bf16.gmra.mrb[0].mxu0 %v506
      %v796 = vpop.f32.mrb[0].mxu0
      %v797 = vadd.f32 0.0, %v796
      %v798 = vpop.f32.mrb[0].mxu0
      %v799 = vpop.f32.mrb[0].mxu0
      %v800 = vadd.f32 0.0, %v799
      %v801 = vpop.f32.mrb[0].mxu0
      %802 = vmatprep.mubr.bf16.mxu0 %v512
      %803 = vmatmul.mubr.bf16.gmra.mrb[0].mxu0 %v511
      %v804 = vpop.f32.mrb[0].mxu0
      %v805 = vadd.f32 0.0, %v804
      %v806 = vpop.f32.mrb[0].mxu0
      %v807 = vpop.f32.mrb[0].mxu0
      %v808 = vadd.f32 0.0, %v807
      %v809 = vpop.f32.mrb[0].mxu0
      %810 = vdwg.mxu0
      %811 = vmatprep.subr.bf16.mxu0 0
      %812 = vmatpush1.bf16.msra.mxu0 %v688
      %813 = vmatprep.subr.bf16.mxu0 0
      %814 = vmatpush1.bf16.msra.mxu0 %v689
      %815 = vmatprep.subr.bf16.mxu0 0
      %816 = vmatpush1.bf16.msra.mxu0 %v690
      %817 = vmatprep.subr.bf16.mxu0 0
      %818 = vmatpush1.bf16.msra.mxu0 %v691
      %819 = vmatprep.subr.bf16.mxu0 0
      %820 = vmatpush1.bf16.msra.mxu0 %v692
      %821 = vmatprep.subr.bf16.mxu0 0
      %822 = vmatpush1.bf16.msra.mxu0 %v693
      %823 = vmatprep.subr.bf16.mxu0 0
      %824 = vmatpush1.bf16.msra.mxu0 %v694
      %825 = vmatprep.subr.bf16.mxu0 0
      %826 = vmatpush1.bf16.msra.mxu0 %v695
      %827 = vmatprep.subr.bf16.mxu0 0
      %828 = vmatpush1.bf16.msra.mxu0 %v696
      %829 = vmatprep.subr.bf16.mxu0 0
      %830 = vmatpush1.bf16.msra.mxu0 %v697
      %831 = vmatprep.subr.bf16.mxu0 0
      %832 = vmatpush1.bf16.msra.mxu0 %v698
      %833 = vmatprep.subr.bf16.mxu0 0
      %834 = vmatpush1.bf16.msra.mxu0 %v699
      %835 = vmatprep.subr.bf16.mxu0 0
      %836 = vmatpush1.bf16.msra.mxu0 %v700
      %837 = vmatprep.subr.bf16.mxu0 0
      %838 = vmatpush1.bf16.msra.mxu0 %v701
      %839 = vmatprep.subr.bf16.mxu0 0
      %840 = vmatpush1.bf16.msra.mxu0 %v702
      %841 = vmatprep.subr.bf16.mxu0 0
      %842 = vmatpush1.bf16.msra.mxu0 %v703
      %843 = vmatprep.mubr.bf16.mxu0 %v504
      %844 = vmatmul.mubr.bf16.gmra.mrb[0].mxu0 %v503
      %v845 = vpop.f32.mrb[0].mxu0
      %v846 = vadd.f32 %v789, %v845
      %v847 = vpop.f32.mrb[0].mxu0
      %v848 = vpop.f32.mrb[0].mxu0
      %v849 = vadd.f32 %v792, %v848
      %v850 = vpop.f32.mrb[0].mxu0
      %851 = vmatprep.mubr.bf16.mxu0 %v509
      %852 = vmatmul.mubr.bf16.gmra.mrb[0].mxu0 %v508
      %v853 = vpop.f32.mrb[0].mxu0
      %v854 = vadd.f32 %v797, %v853
      %v855 = vpop.f32.mrb[0].mxu0
      %v856 = vpop.f32.mrb[0].mxu0
      %v857 = vadd.f32 %v800, %v856
      %v858 = vpop.f32.mrb[0].mxu0
      %859 = vmatprep.mubr.bf16.mxu0 %v514
      %860 = vmatmul.mubr.bf16.gmra.mrb[0].mxu0 %v513
      %v861 = vpop.f32.mrb[0].mxu0
      %v862 = vadd.f32 %v805, %v861
      %v863 = vpop.f32.mrb[0].mxu0
      %v864 = vpop.f32.mrb[0].mxu0
      %v865 = vadd.f32 %v808, %v864
      %v866 = vpop.f32.mrb[0].mxu0
      %867 = vdwg.mxu0
      %868 = vmatprep.subr.bf16.mxu0 0
      %869 = vmatpush1.bf16.msra.mxu0 %v704
      %870 = vmatprep.subr.bf16.mxu0 0
      %871 = vmatpush1.bf16.msra.mxu0 %v705
      %872 = vmatprep.subr.bf16.mxu0 0
      %873 = vmatpush1.bf16.msra.mxu0 %v706
      %874 = vmatprep.subr.bf16.mxu0 0
      %875 = vmatpush1.bf16.msra.mxu0 %v707
      %876 = vmatprep.subr.bf16.mxu0 0
      %877 = vmatpush1.bf16.msra.mxu0 0
      %878 = vmatprep.subr.bf16.mxu0 0
      %879 = vmatpush1.bf16.msra.mxu0 0
      %880 = vmatprep.subr.bf16.mxu0 0
      %881 = vmatpush1.bf16.msra.mxu0 0
      %882 = vmatprep.subr.bf16.mxu0 0
      %883 = vmatpush1.bf16.msra.mxu0 0
      %884 = vmatprep.subr.bf16.mxu0 0
      %885 = vmatpush1.bf16.msra.mxu0 0
      %886 = vmatprep.subr.bf16.mxu0 0
      %887 = vmatpush1.bf16.msra.mxu0 0
      %888 = vmatprep.subr.bf16.mxu0 0
      %889 = vmatpush1.bf16.msra.mxu0 0
      %890 = vmatprep.subr.bf16.mxu0 0
      %891 = vmatpush1.bf16.msra.mxu0 0
      %892 = vmatprep.subr.bf16.mxu0 0
      %893 = vmatpush1.bf16.msra.mxu0 0
      %894 = vmatprep.subr.bf16.mxu0 0
      %895 = vmatpush1.bf16.msra.mxu0 0
      %896 = vmatprep.subr.bf16.mxu0 0
      %897 = vmatpush1.bf16.msra.mxu0 0
      %898 = vmatprep.subr.bf16.mxu0 0
      %899 = vmatpush1.bf16.msra.mxu0 0
      %900 = vmatprep.mubr.bf16.mxu0 0
      %901 = vmatmul.mubr.bf16.gmra.mrb[0].mxu0 %v746
      %v902 = vpop.f32.mrb[0].mxu0
      %v903 = vadd.f32 %v846, %v902
      %v904 = vpop.f32.mrb[0].mxu0
      %v905 = vpop.f32.mrb[0].mxu0
      %v906 = vadd.f32 %v849, %v905
      %v907 = vpop.f32.mrb[0].mxu0
      %908 = vmatprep.mubr.bf16.mxu0 0
      %909 = vmatmul.mubr.bf16.gmra.mrb[0].mxu0 %v749
      %v910 = vpop.f32.mrb[0].mxu0
      %v911 = vadd.f32 %v854, %v910
      %v912 = vpop.f32.mrb[0].mxu0
      %v913 = vpop.f32.mrb[0].mxu0
      %v914 = vadd.f32 %v857, %v913
      %v915 = vpop.f32.mrb[0].mxu0
      %916 = vmatprep.mubr.bf16.mxu0 0
      %917 = vmatmul.mubr.bf16.gmra.mrb[0].mxu0 %v752
      %v918 = vpop.f32.mrb[0].mxu0
      %v919 = vadd.f32 %v862, %v918
      %v920 = vpop.f32.mrb[0].mxu0
      %v921 = vpop.f32.mrb[0].mxu0
      %v922 = vadd.f32 %v865, %v921
      %v923 = vpop.f32.mrb[0].mxu0
      %924 = vdwg.mxu0
      %v926 = vlaneseq
      %v927 = vshrl.u32 %v926, 7
      %v928 = vsub.s32 0, %v927
      %v929 = vrot.slane %v433, %v928
      %v931 = vmul.f32 %v903, %v929
      %v932 = vmul.f32 %v906, %v929
      %v933 = vmul.f32 %v911, %v929
      %v934 = vmul.f32 %v914, %v929
      %v935 = vmul.f32 %v919, %v929
      %v936 = vmul.f32 %v922, %v929
      %v938 = vlaneseq
      %v939 = vshrl.u32 %v938, 7
      %v940 = vsub.s32 0, %v939
      %v941 = vrot.slane %v434, %v940
      %v943 = vadd.f32 %v931, %v941
      %v944 = vadd.f32 %v932, %v941
      %v945 = vadd.f32 %v933, %v941
      %v946 = vadd.f32 %v934, %v941
      %v947 = vadd.f32 %v935, %v941
      %v948 = vadd.f32 %v936, %v941
      %v949 = vld [vmem:[%s338] sm:$0xff]
      %v950 = vld [vmem:[%s338 + $0x8] sm:$0xff]
      %v951 = vld [vmem:[%s338 + $0x10] sm:$0xf]
      %v952 = vld [vmem:[%s338 + $0x14] sm:$0xff]
      %v953 = vld [vmem:[%s338 + $0x1c] sm:$0xff]
      %v954 = vld [vmem:[%s338 + $0x24] sm:$0xf]
      %v955 = vld [vmem:[%s338 + $0x28] sm:$0xff]
      %v956 = vld [vmem:[%s338 + $0x30] sm:$0xff]
      %v957 = vld [vmem:[%s338 + $0x38] sm:$0xf]
      %v958 = vld [vmem:[%s338 + $0x3c] sm:$0xff]
      %v959 = vld [vmem:[%s338 + $0x44] sm:$0xff]
      %v960 = vld [vmem:[%s338 + $0x4c] sm:$0xf]
      %v961 = vld [vmem:[%s338 + $0x50] sm:$0xff]
      %v962 = vld [vmem:[%s338 + $0x58] sm:$0xff]
      %v963 = vld [vmem:[%s338 + $0x60] sm:$0xf]
      %v964 = vld [vmem:[%s338 + $0x64] sm:$0xff]
      %v965 = vld [vmem:[%s338 + $0x6c] sm:$0xff]
      %v966 = vld [vmem:[%s338 + $0x74] sm:$0xf]
      %v985 = vunpack.c.l.b16 %v949
      %v986 = vunpack.c.h.b16 %v949
      %v987 = vunpack.c.l.b16 %v950
      %v988 = vunpack.c.h.b16 %v950
      %v989 = vunpack.c.l.b16 %v951
      %v990 = vunpack.c.l.b16 %v952
      %v991 = vunpack.c.h.b16 %v952
      %v992 = vunpack.c.l.b16 %v953
      %v993 = vunpack.c.h.b16 %v953
      %v994 = vunpack.c.l.b16 %v954
      %v995 = vunpack.c.l.b16 %v955
      %v996 = vunpack.c.h.b16 %v955
      %v997 = vunpack.c.l.b16 %v956
      %v998 = vunpack.c.h.b16 %v956
      %v999 = vunpack.c.l.b16 %v957
      %v1000 = vunpack.c.l.b16 %v958
      %v1001 = vunpack.c.h.b16 %v958
      %v1002 = vunpack.c.l.b16 %v959
      %v1003 = vunpack.c.h.b16 %v959
      %v1004 = vunpack.c.l.b16 %v960
      %v1005 = vunpack.c.l.b16 %v961
      %v1006 = vunpack.c.h.b16 %v961
      %v1007 = vunpack.c.l.b16 %v962
      %v1008 = vunpack.c.h.b16 %v962
      %v1009 = vunpack.c.l.b16 %v963
      %v1010 = vunpack.c.l.b16 %v964
      %v1011 = vunpack.c.h.b16 %v964
      %v1012 = vunpack.c.l.b16 %v965
      %v1013 = vunpack.c.h.b16 %v965
      %v1014 = vunpack.c.l.b16 %v966
      %v1015 = vpack.c.b16 %v990, %v985
      %v1016 = vpack.c.b16 %v991, %v986
      %v1017 = vpack.c.b16 %v992, %v987
      %v1018 = vpack.c.b16 %v993, %v988
      %v1019 = vpack.c.b16 %v994, %v989
      %v1020 = vpack.c.b16 %v1000, %v995
      %v1021 = vpack.c.b16 %v1001, %v996
      %v1022 = vpack.c.b16 %v1002, %v997
      %v1023 = vpack.c.b16 %v1003, %v998
      %v1024 = vpack.c.b16 %v1004, %v999
      %v1025 = vpack.c.b16 %v1010, %v1005
      %v1026 = vpack.c.b16 %v1011, %v1006
      %v1027 = vpack.c.b16 %v1012, %v1007
      %v1028 = vpack.c.b16 %v1013, %v1008
      %v1029 = vpack.c.b16 %v1014, %v1009
      %v1043 = vsel %vm744, %v1019, 0
      %v1046 = vsel %vm744, %v1024, 0
      %v1049 = vsel %vm744, %v1029, 0
      %1051 = vmatprep.subr.bf16.mxu0 0
      %1052 = vmatpush1.bf16.msra.mxu0 %v672
      %1053 = vmatprep.subr.bf16.mxu0 0
      %1054 = vmatpush1.bf16.msra.mxu0 %v673
      %1055 = vmatprep.subr.bf16.mxu0 0
      %1056 = vmatpush1.bf16.msra.mxu0 %v674
      %1057 = vmatprep.subr.bf16.mxu0 0
      %1058 = vmatpush1.bf16.msra.mxu0 %v675
      %1059 = vmatprep.subr.bf16.mxu0 0
      %1060 = vmatpush1.bf16.msra.mxu0 %v676
      %1061 = vmatprep.subr.bf16.mxu0 0
      %1062 = vmatpush1.bf16.msra.mxu0 %v677
      %1063 = vmatprep.subr.bf16.mxu0 0
      %1064 = vmatpush1.bf16.msra.mxu0 %v678
      %1065 = vmatprep.subr.bf16.mxu0 0
      %1066 = vmatpush1.bf16.msra.mxu0 %v679
      %1067 = vmatprep.subr.bf16.mxu0 0
      %1068 = vmatpush1.bf16.msra.mxu0 %v680
      %1069 = vmatprep.subr.bf16.mxu0 0
      %1070 = vmatpush1.bf16.msra.mxu0 %v681
      %1071 = vmatprep.subr.bf16.mxu0 0
      %1072 = vmatpush1.bf16.msra.mxu0 %v682
      %1073 = vmatprep.subr.bf16.mxu0 0
      %1074 = vmatpush1.bf16.msra.mxu0 %v683
      %1075 = vmatprep.subr.bf16.mxu0 0
      %1076 = vmatpush1.bf16.msra.mxu0 %v684
      %1077 = vmatprep.subr.bf16.mxu0 0
      %1078 = vmatpush1.bf16.msra.mxu0 %v685
      %1079 = vmatprep.subr.bf16.mxu0 0
      %1080 = vmatpush1.bf16.msra.mxu0 %v686
      %1081 = vmatprep.subr.bf16.mxu0 0
      %1082 = vmatpush1.bf16.msra.mxu0 %v687
      %1083 = vmatprep.mubr.bf16.mxu0 %v1016
      %1084 = vmatmul.mubr.bf16.gmra.mrb[0].mxu0 %v1015
      %v1085 = vpop.f32.mrb[0].mxu0
      %v1086 = vadd.f32 0.0, %v1085
      %v1087 = vpop.f32.mrb[0].mxu0
      %v1088 = vpop.f32.mrb[0].mxu0
      %v1089 = vadd.f32 0.0, %v1088
      %v1090 = vpop.f32.mrb[0].mxu0
      %1091 = vmatprep.mubr.bf16.mxu0 %v1021
      %1092 = vmatmul.mubr.bf16.gmra.mrb[0].mxu0 %v1020
      %v1093 = vpop.f32.mrb[0].mxu0
      %v1094 = vadd.f32 0.0, %v1093
      %v1095 = vpop.f32.mrb[0].mxu0
      %v1096 = vpop.f32.mrb[0].mxu0
      %v1097 = vadd.f32 0.0, %v1096
      %v1098 = vpop.f32.mrb[0].mxu0
      %1099 = vmatprep.mubr.bf16.mxu0 %v1026
      %1100 = vmatmul.mubr.bf16.gmra.mrb[0].mxu0 %v1025
      %v1101 = vpop.f32.mrb[0].mxu0
      %v1102 = vadd.f32 0.0, %v1101
      %v1103 = vpop.f32.mrb[0].mxu0
      %v1104 = vpop.f32.mrb[0].mxu0
      %v1105 = vadd.f32 0.0, %v1104
      %v1106 = vpop.f32.mrb[0].mxu0
      %1107 = vdwg.mxu0
      %1108 = vmatprep.subr.bf16.mxu0 0
      %1109 = vmatpush1.bf16.msra.mxu0 %v688
      %1110 = vmatprep.subr.bf16.mxu0 0
      %1111 = vmatpush1.bf16.msra.mxu0 %v689
      %1112 = vmatprep.subr.bf16.mxu0 0
      %1113 = vmatpush1.bf16.msra.mxu0 %v690
      %1114 = vmatprep.subr.bf16.mxu0 0
      %1115 = vmatpush1.bf16.msra.mxu0 %v691
      %1116 = vmatprep.subr.bf16.mxu0 0
      %1117 = vmatpush1.bf16.msra.mxu0 %v692
      %1118 = vmatprep.subr.bf16.mxu0 0
      %1119 = vmatpush1.bf16.msra.mxu0 %v693
      %1120 = vmatprep.subr.bf16.mxu0 0
      %1121 = vmatpush1.bf16.msra.mxu0 %v694
      %1122 = vmatprep.subr.bf16.mxu0 0
      %1123 = vmatpush1.bf16.msra.mxu0 %v695
      %1124 = vmatprep.subr.bf16.mxu0 0
      %1125 = vmatpush1.bf16.msra.mxu0 %v696
      %1126 = vmatprep.subr.bf16.mxu0 0
      %1127 = vmatpush1.bf16.msra.mxu0 %v697
      %1128 = vmatprep.subr.bf16.mxu0 0
      %1129 = vmatpush1.bf16.msra.mxu0 %v698
      %1130 = vmatprep.subr.bf16.mxu0 0
      %1131 = vmatpush1.bf16.msra.mxu0 %v699
      %1132 = vmatprep.subr.bf16.mxu0 0
      %1133 = vmatpush1.bf16.msra.mxu0 %v700
      %1134 = vmatprep.subr.bf16.mxu0 0
      %1135 = vmatpush1.bf16.msra.mxu0 %v701
      %1136 = vmatprep.subr.bf16.mxu0 0
      %1137 = vmatpush1.bf16.msra.mxu0 %v702
      %1138 = vmatprep.subr.bf16.mxu0 0
      %1139 = vmatpush1.bf16.msra.mxu0 %v703
      %1140 = vmatprep.mubr.bf16.mxu0 %v1018
      %1141 = vmatmul.mubr.bf16.gmra.mrb[0].mxu0 %v1017
      %v1142 = vpop.f32.mrb[0].mxu0
      %v1143 = vadd.f32 %v1086, %v1142
      %v1144 = vpop.f32.mrb[0].mxu0
      %v1145 = vpop.f32.mrb[0].mxu0
      %v1146 = vadd.f32 %v1089, %v1145
      %v1147 = vpop.f32.mrb[0].mxu0
      %1148 = vmatprep.mubr.bf16.mxu0 %v1023
      %1149 = vmatmul.mubr.bf16.gmra.mrb[0].mxu0 %v1022
      %v1150 = vpop.f32.mrb[0].mxu0
      %v1151 = vadd.f32 %v1094, %v1150
      %v1152 = vpop.f32.mrb[0].mxu0
      %v1153 = vpop.f32.mrb[0].mxu0
      %v1154 = vadd.f32 %v1097, %v1153
      %v1155 = vpop.f32.mrb[0].mxu0
      %1156 = vmatprep.mubr.bf16.mxu0 %v1028
      %1157 = vmatmul.mubr.bf16.gmra.mrb[0].mxu0 %v1027
      %v1158 = vpop.f32.mrb[0].mxu0
      %v1159 = vadd.f32 %v1102, %v1158
      %v1160 = vpop.f32.mrb[0].mxu0
      %v1161 = vpop.f32.mrb[0].mxu0
      %v1162 = vadd.f32 %v1105, %v1161
      %v1163 = vpop.f32.mrb[0].mxu0
      %1164 = vdwg.mxu0
      %1165 = vmatprep.subr.bf16.mxu0 0
      %1166 = vmatpush1.bf16.msra.mxu0 %v704
      %1167 = vmatprep.subr.bf16.mxu0 0
      %1168 = vmatpush1.bf16.msra.mxu0 %v705
      %1169 = vmatprep.subr.bf16.mxu0 0
      %1170 = vmatpush1.bf16.msra.mxu0 %v706
      %1171 = vmatprep.subr.bf16.mxu0 0
      %1172 = vmatpush1.bf16.msra.mxu0 %v707
      %1173 = vmatprep.subr.bf16.mxu0 0
      %1174 = vmatpush1.bf16.msra.mxu0 0
      %1175 = vmatprep.subr.bf16.mxu0 0
      %1176 = vmatpush1.bf16.msra.mxu0 0
      %1177 = vmatprep.subr.bf16.mxu0 0
      %1178 = vmatpush1.bf16.msra.mxu0 0
      %1179 = vmatprep.subr.bf16.mxu0 0
      %1180 = vmatpush1.bf16.msra.mxu0 0
      %1181 = vmatprep.subr.bf16.mxu0 0
      %1182 = vmatpush1.bf16.msra.mxu0 0
      %1183 = vmatprep.subr.bf16.mxu0 0
      %1184 = vmatpush1.bf16.msra.mxu0 0
      %1185 = vmatprep.subr.bf16.mxu0 0
      %1186 = vmatpush1.bf16.msra.mxu0 0
      %1187 = vmatprep.subr.bf16.mxu0 0
      %1188 = vmatpush1.bf16.msra.mxu0 0
      %1189 = vmatprep.subr.bf16.mxu0 0
      %1190 = vmatpush1.bf16.msra.mxu0 0
      %1191 = vmatprep.subr.bf16.mxu0 0
      %1192 = vmatpush1.bf16.msra.mxu0 0
      %1193 = vmatprep.subr.bf16.mxu0 0
      %1194 = vmatpush1.bf16.msra.mxu0 0
      %1195 = vmatprep.subr.bf16.mxu0 0
      %1196 = vmatpush1.bf16.msra.mxu0 0
      %1197 = vmatprep.mubr.bf16.mxu0 0
      %1198 = vmatmul.mubr.bf16.gmra.mrb[0].mxu0 %v1043
      %v1199 = vpop.f32.mrb[0].mxu0
      %v1200 = vadd.f32 %v1143, %v1199
      %v1201 = vpop.f32.mrb[0].mxu0
      %v1202 = vpop.f32.mrb[0].mxu0
      %v1203 = vadd.f32 %v1146, %v1202
      %v1204 = vpop.f32.mrb[0].mxu0
      %1205 = vmatprep.mubr.bf16.mxu0 0
      %1206 = vmatmul.mubr.bf16.gmra.mrb[0].mxu0 %v1046
      %v1207 = vpop.f32.mrb[0].mxu0
      %v1208 = vadd.f32 %v1151, %v1207
      %v1209 = vpop.f32.mrb[0].mxu0
      %v1210 = vpop.f32.mrb[0].mxu0
      %v1211 = vadd.f32 %v1154, %v1210
      %v1212 = vpop.f32.mrb[0].mxu0
      %1213 = vmatprep.mubr.bf16.mxu0 0
      %1214 = vmatmul.mubr.bf16.gmra.mrb[0].mxu0 %v1049
      %v1215 = vpop.f32.mrb[0].mxu0
      %v1216 = vadd.f32 %v1159, %v1215
      %v1217 = vpop.f32.mrb[0].mxu0
      %v1218 = vpop.f32.mrb[0].mxu0
      %v1219 = vadd.f32 %v1162, %v1218
      %v1220 = vpop.f32.mrb[0].mxu0
      %1221 = vdwg.mxu0
      %v1222 = vmul.f32 %v1200, %v929
      %v1223 = vmul.f32 %v1203, %v929
      %v1224 = vmul.f32 %v1208, %v929
      %v1225 = vmul.f32 %v1211, %v929
      %v1226 = vmul.f32 %v1216, %v929
      %v1227 = vmul.f32 %v1219, %v929
      %v1228 = vadd.f32 %v1222, %v941
      %v1229 = vadd.f32 %v1223, %v941
      %v1230 = vadd.f32 %v1224, %v941
      %v1231 = vadd.f32 %v1225, %v941
      %v1232 = vadd.f32 %v1226, %v941
      %v1233 = vadd.f32 %v1227, %v941
      %v1234 = vmax.f32 %v943, %v1228
      %v1235 = vmax.f32 %v944, %v1229
      %v1236 = vmax.f32 %v945, %v1230
      %v1237 = vmax.f32 %v946, %v1231
      %v1238 = vmax.f32 %v947, %v1232
      %v1239 = vmax.f32 %v948, %v1233
      %v1240 = vld [vmem:[%s345] sm:$0xff]
      %v1241 = vld [vmem:[%s345 + $0x8] sm:$0xff]
      %v1242 = vld [vmem:[%s345 + $0x10] sm:$0xf]
      %v1243 = vld [vmem:[%s345 + $0x14] sm:$0xff]
      %v1244 = vld [vmem:[%s345 + $0x1c] sm:$0xff]
      %v1245 = vld [vmem:[%s345 + $0x24] sm:$0xf]
      %v1246 = vld [vmem:[%s345 + $0x28] sm:$0xff]
      %v1247 = vld [vmem:[%s345 + $0x30] sm:$0xff]
      %v1248 = vld [vmem:[%s345 + $0x38] sm:$0xf]
      %v1249 = vld [vmem:[%s345 + $0x3c] sm:$0xff]
      %v1250 = vld [vmem:[%s345 + $0x44] sm:$0xff]
      %v1251 = vld [vmem:[%s345 + $0x4c] sm:$0xf]
      %v1252 = vld [vmem:[%s345 + $0x50] sm:$0xff]
      %v1253 = vld [vmem:[%s345 + $0x58] sm:$0xff]
      %v1254 = vld [vmem:[%s345 + $0x60] sm:$0xf]
      %v1255 = vld [vmem:[%s345 + $0x64] sm:$0xff]
      %v1256 = vld [vmem:[%s345 + $0x6c] sm:$0xff]
      %v1257 = vld [vmem:[%s345 + $0x74] sm:$0xf]
      %v1276 = vunpack.c.l.b16 %v1240
      %v1277 = vunpack.c.h.b16 %v1240
      %v1278 = vunpack.c.l.b16 %v1241
      %v1279 = vunpack.c.h.b16 %v1241
      %v1280 = vunpack.c.l.b16 %v1242
      %v1281 = vunpack.c.l.b16 %v1243
      %v1282 = vunpack.c.h.b16 %v1243
      %v1283 = vunpack.c.l.b16 %v1244
      %v1284 = vunpack.c.h.b16 %v1244
      %v1285 = vunpack.c.l.b16 %v1245
      %v1286 = vunpack.c.l.b16 %v1246
      %v1287 = vunpack.c.h.b16 %v1246
      %v1288 = vunpack.c.l.b16 %v1247
      %v1289 = vunpack.c.h.b16 %v1247
      %v1290 = vunpack.c.l.b16 %v1248
      %v1291 = vunpack.c.l.b16 %v1249
      %v1292 = vunpack.c.h.b16 %v1249
      %v1293 = vunpack.c.l.b16 %v1250
      %v1294 = vunpack.c.h.b16 %v1250
      %v1295 = vunpack.c.l.b16 %v1251
      %v1296 = vunpack.c.l.b16 %v1252
      %v1297 = vunpack.c.h.b16 %v1252
      %v1298 = vunpack.c.l.b16 %v1253
      %v1299 = vunpack.c.h.b16 %v1253
      %v1300 = vunpack.c.l.b16 %v1254
      %v1301 = vunpack.c.l.b16 %v1255
      %v1302 = vunpack.c.h.b16 %v1255
      %v1303 = vunpack.c.l.b16 %v1256
      %v1304 = vunpack.c.h.b16 %v1256
      %v1305 = vunpack.c.l.b16 %v1257
      %v1306 = vpack.c.b16 %v1281, %v1276
      %v1307 = vpack.c.b16 %v1282, %v1277
      %v1308 = vpack.c.b16 %v1283, %v1278
      %v1309 = vpack.c.b16 %v1284, %v1279
      %v1310 = vpack.c.b16 %v1285, %v1280
      %v1311 = vpack.c.b16 %v1291, %v1286
      %v1312 = vpack.c.b16 %v1292, %v1287
      %v1313 = vpack.c.b16 %v1293, %v1288
      %v1314 = vpack.c.b16 %v1294, %v1289
      %v1315 = vpack.c.b16 %v1295, %v1290
      %v1316 = vpack.c.b16 %v1301, %v1296
      %v1317 = vpack.c.b16 %v1302, %v1297
      %v1318 = vpack.c.b16 %v1303, %v1298
      %v1319 = vpack.c.b16 %v1304, %v1299
      %v1320 = vpack.c.b16 %v1305, %v1300
      %v1334 = vsel %vm744, %v1310, 0
      %v1337 = vsel %vm744, %v1315, 0
      %v1340 = vsel %vm744, %v1320, 0
      %1342 = vmatprep.subr.bf16.mxu0 0
      %1343 = vmatpush1.bf16.msra.mxu0 %v672
      %1344 = vmatprep.subr.bf16.mxu0 0
      %1345 = vmatpush1.bf16.msra.mxu0 %v673
      %1346 = vmatprep.subr.bf16.mxu0 0
      %1347 = vmatpush1.bf16.msra.mxu0 %v674
      %1348 = vmatprep.subr.bf16.mxu0 0
      %1349 = vmatpush1.bf16.msra.mxu0 %v675
      %1350 = vmatprep.subr.bf16.mxu0 0
      %1351 = vmatpush1.bf16.msra.mxu0 %v676
      %1352 = vmatprep.subr.bf16.mxu0 0
      %1353 = vmatpush1.bf16.msra.mxu0 %v677
      %1354 = vmatprep.subr.bf16.mxu0 0
      %1355 = vmatpush1.bf16.msra.mxu0 %v678
      %1356 = vmatprep.subr.bf16.mxu0 0
      %1357 = vmatpush1.bf16.msra.mxu0 %v679
      %1358 = vmatprep.subr.bf16.mxu0 0
      %1359 = vmatpush1.bf16.msra.mxu0 %v680
      %1360 = vmatprep.subr.bf16.mxu0 0
      %1361 = vmatpush1.bf16.msra.mxu0 %v681
      %1362 = vmatprep.subr.bf16.mxu0 0
      %1363 = vmatpush1.bf16.msra.mxu0 %v682
      %1364 = vmatprep.subr.bf16.mxu0 0
      %1365 = vmatpush1.bf16.msra.mxu0 %v683
      %1366 = vmatprep.subr.bf16.mxu0 0
      %1367 = vmatpush1.bf16.msra.mxu0 %v684
      %1368 = vmatprep.subr.bf16.mxu0 0
      %1369 = vmatpush1.bf16.msra.mxu0 %v685
      %1370 = vmatprep.subr.bf16.mxu0 0
      %1371 = vmatpush1.bf16.msra.mxu0 %v686
      %1372 = vmatprep.subr.bf16.mxu0 0
      %1373 = vmatpush1.bf16.msra.mxu0 %v687
      %1374 = vmatprep.mubr.bf16.mxu0 %v1307
      %1375 = vmatmul.mubr.bf16.gmra.mrb[0].mxu0 %v1306
      %v1376 = vpop.f32.mrb[0].mxu0
      %v1377 = vadd.f32 0.0, %v1376
      %v1378 = vpop.f32.mrb[0].mxu0
      %v1379 = vpop.f32.mrb[0].mxu0
      %v1380 = vadd.f32 0.0, %v1379
      %v1381 = vpop.f32.mrb[0].mxu0
      %1382 = vmatprep.mubr.bf16.mxu0 %v1312
      %1383 = vmatmul.mubr.bf16.gmra.mrb[0].mxu0 %v1311
      %v1384 = vpop.f32.mrb[0].mxu0
      %v1385 = vadd.f32 0.0, %v1384
      %v1386 = vpop.f32.mrb[0].mxu0
      %v1387 = vpop.f32.mrb[0].mxu0
      %v1388 = vadd.f32 0.0, %v1387
      %v1389 = vpop.f32.mrb[0].mxu0
      %1390 = vmatprep.mubr.bf16.mxu0 %v1317
      %1391 = vmatmul.mubr.bf16.gmra.mrb[0].mxu0 %v1316
      %v1392 = vpop.f32.mrb[0].mxu0
      %v1393 = vadd.f32 0.0, %v1392
      %v1394 = vpop.f32.mrb[0].mxu0
      %v1395 = vpop.f32.mrb[0].mxu0
      %v1396 = vadd.f32 0.0, %v1395
      %v1397 = vpop.f32.mrb[0].mxu0
      %1398 = vdwg.mxu0
      %1399 = vmatprep.subr.bf16.mxu0 0
      %1400 = vmatpush1.bf16.msra.mxu0 %v688
      %1401 = vmatprep.subr.bf16.mxu0 0
      %1402 = vmatpush1.bf16.msra.mxu0 %v689
      %1403 = vmatprep.subr.bf16.mxu0 0
      %1404 = vmatpush1.bf16.msra.mxu0 %v690
      %1405 = vmatprep.subr.bf16.mxu0 0
      %1406 = vmatpush1.bf16.msra.mxu0 %v691
      %1407 = vmatprep.subr.bf16.mxu0 0
      %1408 = vmatpush1.bf16.msra.mxu0 %v692
      %1409 = vmatprep.subr.bf16.mxu0 0
      %1410 = vmatpush1.bf16.msra.mxu0 %v693
      %1411 = vmatprep.subr.bf16.mxu0 0
      %1412 = vmatpush1.bf16.msra.mxu0 %v694
      %1413 = vmatprep.subr.bf16.mxu0 0
      %1414 = vmatpush1.bf16.msra.mxu0 %v695
      %1415 = vmatprep.subr.bf16.mxu0 0
      %1416 = vmatpush1.bf16.msra.mxu0 %v696
      %1417 = vmatprep.subr.bf16.mxu0 0
      %1418 = vmatpush1.bf16.msra.mxu0 %v697
      %1419 = vmatprep.subr.bf16.mxu0 0
      %1420 = vmatpush1.bf16.msra.mxu0 %v698
      %1421 = vmatprep.subr.bf16.mxu0 0
      %1422 = vmatpush1.bf16.msra.mxu0 %v699
      %1423 = vmatprep.subr.bf16.mxu0 0
      %1424 = vmatpush1.bf16.msra.mxu0 %v700
      %1425 = vmatprep.subr.bf16.mxu0 0
      %1426 = vmatpush1.bf16.msra.mxu0 %v701
      %1427 = vmatprep.subr.bf16.mxu0 0
      %1428 = vmatpush1.bf16.msra.mxu0 %v702
      %1429 = vmatprep.subr.bf16.mxu0 0
      %1430 = vmatpush1.bf16.msra.mxu0 %v703
      %1431 = vmatprep.mubr.bf16.mxu0 %v1309
      %1432 = vmatmul.mubr.bf16.gmra.mrb[0].mxu0 %v1308
      %v1433 = vpop.f32.mrb[0].mxu0
      %v1434 = vadd.f32 %v1377, %v1433
      %v1435 = vpop.f32.mrb[0].mxu0
      %v1436 = vpop.f32.mrb[0].mxu0
      %v1437 = vadd.f32 %v1380, %v1436
      %v1438 = vpop.f32.mrb[0].mxu0
      %1439 = vmatprep.mubr.bf16.mxu0 %v1314
      %1440 = vmatmul.mubr.bf16.gmra.mrb[0].mxu0 %v1313
      %v1441 = vpop.f32.mrb[0].mxu0
      %v1442 = vadd.f32 %v1385, %v1441
      %v1443 = vpop.f32.mrb[0].mxu0
      %v1444 = vpop.f32.mrb[0].mxu0
      %v1445 = vadd.f32 %v1388, %v1444
      %v1446 = vpop.f32.mrb[0].mxu0
      %1447 = vmatprep.mubr.bf16.mxu0 %v1319
      %1448 = vmatmul.mubr.bf16.gmra.mrb[0].mxu0 %v1318
      %v1449 = vpop.f32.mrb[0].mxu0
      %v1450 = vadd.f32 %v1393, %v1449
      %v1451 = vpop.f32.mrb[0].mxu0
      %v1452 = vpop.f32.mrb[0].mxu0
      %v1453 = vadd.f32 %v1396, %v1452
      %v1454 = vpop.f32.mrb[0].mxu0
      %1455 = vdwg.mxu0
      %1456 = vmatprep.subr.bf16.mxu0 0
      %1457 = vmatpush1.bf16.msra.mxu0 %v704
      %1458 = vmatprep.subr.bf16.mxu0 0
      %1459 = vmatpush1.bf16.msra.mxu0 %v705
      %1460 = vmatprep.subr.bf16.mxu0 0
      %1461 = vmatpush1.bf16.msra.mxu0 %v706
      %1462 = vmatprep.subr.bf16.mxu0 0
      %1463 = vmatpush1.bf16.msra.mxu0 %v707
      %1464 = vmatprep.subr.bf16.mxu0 0
      %1465 = vmatpush1.bf16.msra.mxu0 0
      %1466 = vmatprep.subr.bf16.mxu0 0
      %1467 = vmatpush1.bf16.msra.mxu0 0
      %1468 = vmatprep.subr.bf16.mxu0 0
      %1469 = vmatpush1.bf16.msra.mxu0 0
      %1470 = vmatprep.subr.bf16.mxu0 0
      %1471 = vmatpush1.bf16.msra.mxu0 0
      %1472 = vmatprep.subr.bf16.mxu0 0
      %1473 = vmatpush1.bf16.msra.mxu0 0
      %1474 = vmatprep.subr.bf16.mxu0 0
      %1475 = vmatpush1.bf16.msra.mxu0 0
      %1476 = vmatprep.subr.bf16.mxu0 0
      %1477 = vmatpush1.bf16.msra.mxu0 0
      %1478 = vmatprep.subr.bf16.mxu0 0
      %1479 = vmatpush1.bf16.msra.mxu0 0
      %1480 = vmatprep.subr.bf16.mxu0 0
      %1481 = vmatpush1.bf16.msra.mxu0 0
      %1482 = vmatprep.subr.bf16.mxu0 0
      %1483 = vmatpush1.bf16.msra.mxu0 0
      %1484 = vmatprep.subr.bf16.mxu0 0
      %1485 = vmatpush1.bf16.msra.mxu0 0
      %1486 = vmatprep.subr.bf16.mxu0 0
      %1487 = vmatpush1.bf16.msra.mxu0 0
      %1488 = vmatprep.mubr.bf16.mxu0 0
      %1489 = vmatmul.mubr.bf16.gmra.mrb[0].mxu0 %v1334
      %v1490 = vpop.f32.mrb[0].mxu0
      %v1491 = vadd.f32 %v1434, %v1490
      %v1492 = vpop.f32.mrb[0].mxu0
      %v1493 = vpop.f32.mrb[0].mxu0
      %v1494 = vadd.f32 %v1437, %v1493
      %v1495 = vpop.f32.mrb[0].mxu0
      %1496 = vmatprep.mubr.bf16.mxu0 0
      %1497 = vmatmul.mubr.bf16.gmra.mrb[0].mxu0 %v1337
      %v1498 = vpop.f32.mrb[0].mxu0
      %v1499 = vadd.f32 %v1442, %v1498
      %v1500 = vpop.f32.mrb[0].mxu0
      %v1501 = vpop.f32.mrb[0].mxu0
      %v1502 = vadd.f32 %v1445, %v1501
      %v1503 = vpop.f32.mrb[0].mxu0
      %1504 = vmatprep.mubr.bf16.mxu0 0
      %1505 = vmatmul.mubr.bf16.gmra.mrb[0].mxu0 %v1340
      %v1506 = vpop.f32.mrb[0].mxu0
      %v1507 = vadd.f32 %v1450, %v1506
      %v1508 = vpop.f32.mrb[0].mxu0
      %v1509 = vpop.f32.mrb[0].mxu0
      %v1510 = vadd.f32 %v1453, %v1509
      %v1511 = vpop.f32.mrb[0].mxu0
      %1512 = vdwg.mxu0
      %v1513 = vmul.f32 %v1491, %v929
      %v1514 = vmul.f32 %v1494, %v929
      %v1515 = vmul.f32 %v1499, %v929
      %v1516 = vmul.f32 %v1502, %v929
      %v1517 = vmul.f32 %v1507, %v929
      %v1518 = vmul.f32 %v1510, %v929
      %v1519 = vadd.f32 %v1513, %v941
      %v1520 = vadd.f32 %v1514, %v941
      %v1521 = vadd.f32 %v1515, %v941
      %v1522 = vadd.f32 %v1516, %v941
      %v1523 = vadd.f32 %v1517, %v941
      %v1524 = vadd.f32 %v1518, %v941
      %v1525 = vld [vmem:[%s352] sm:$0xff]
      %v1526 = vld [vmem:[%s352 + $0x8] sm:$0xff]
      %v1527 = vld [vmem:[%s352 + $0x10] sm:$0xf]
      %v1528 = vld [vmem:[%s352 + $0x14] sm:$0xff]
      %v1529 = vld [vmem:[%s352 + $0x1c] sm:$0xff]
      %v1530 = vld [vmem:[%s352 + $0x24] sm:$0xf]
      %v1531 = vld [vmem:[%s352 + $0x28] sm:$0xff]
      %v1532 = vld [vmem:[%s352 + $0x30] sm:$0xff]
      %v1533 = vld [vmem:[%s352 + $0x38] sm:$0xf]
      %v1534 = vld [vmem:[%s352 + $0x3c] sm:$0xff]
      %v1535 = vld [vmem:[%s352 + $0x44] sm:$0xff]
      %v1536 = vld [vmem:[%s352 + $0x4c] sm:$0xf]
      %v1537 = vld [vmem:[%s352 + $0x50] sm:$0xff]
      %v1538 = vld [vmem:[%s352 + $0x58] sm:$0xff]
      %v1539 = vld [vmem:[%s352 + $0x60] sm:$0xf]
      %v1540 = vld [vmem:[%s352 + $0x64] sm:$0xff]
      %v1541 = vld [vmem:[%s352 + $0x6c] sm:$0xff]
      %v1542 = vld [vmem:[%s352 + $0x74] sm:$0xf]
      %v1561 = vunpack.c.l.b16 %v1525
      %v1562 = vunpack.c.h.b16 %v1525
      %v1563 = vunpack.c.l.b16 %v1526
      %v1564 = vunpack.c.h.b16 %v1526
      %v1565 = vunpack.c.l.b16 %v1527
      %v1566 = vunpack.c.l.b16 %v1528
      %v1567 = vunpack.c.h.b16 %v1528
      %v1568 = vunpack.c.l.b16 %v1529
      %v1569 = vunpack.c.h.b16 %v1529
      %v1570 = vunpack.c.l.b16 %v1530
      %v1571 = vunpack.c.l.b16 %v1531
      %v1572 = vunpack.c.h.b16 %v1531
      %v1573 = vunpack.c.l.b16 %v1532
      %v1574 = vunpack.c.h.b16 %v1532
      %v1575 = vunpack.c.l.b16 %v1533
      %v1576 = vunpack.c.l.b16 %v1534
      %v1577 = vunpack.c.h.b16 %v1534
      %v1578 = vunpack.c.l.b16 %v1535
      %v1579 = vunpack.c.h.b16 %v1535
      %v1580 = vunpack.c.l.b16 %v1536
      %v1581 = vunpack.c.l.b16 %v1537
      %v1582 = vunpack.c.h.b16 %v1537
      %v1583 = vunpack.c.l.b16 %v1538
      %v1584 = vunpack.c.h.b16 %v1538
      %v1585 = vunpack.c.l.b16 %v1539
      %v1586 = vunpack.c.l.b16 %v1540
      %v1587 = vunpack.c.h.b16 %v1540
      %v1588 = vunpack.c.l.b16 %v1541
      %v1589 = vunpack.c.h.b16 %v1541
      %v1590 = vunpack.c.l.b16 %v1542
      %v1591 = vpack.c.b16 %v1566, %v1561
      %v1592 = vpack.c.b16 %v1567, %v1562
      %v1593 = vpack.c.b16 %v1568, %v1563
      %v1594 = vpack.c.b16 %v1569, %v1564
      %v1595 = vpack.c.b16 %v1570, %v1565
      %v1596 = vpack.c.b16 %v1576, %v1571
      %v1597 = vpack.c.b16 %v1577, %v1572
      %v1598 = vpack.c.b16 %v1578, %v1573
      %v1599 = vpack.c.b16 %v1579, %v1574
      %v1600 = vpack.c.b16 %v1580, %v1575
      %v1601 = vpack.c.b16 %v1586, %v1581
      %v1602 = vpack.c.b16 %v1587, %v1582
      %v1603 = vpack.c.b16 %v1588, %v1583
      %v1604 = vpack.c.b16 %v1589, %v1584
      %v1605 = vpack.c.b16 %v1590, %v1585
      %v1619 = vsel %vm744, %v1595, 0
      %v1622 = vsel %vm744, %v1600, 0
      %v1625 = vsel %vm744, %v1605, 0
      %1627 = vmatprep.subr.bf16.mxu0 0
      %1628 = vmatpush1.bf16.msra.mxu0 %v672
      %1629 = vmatprep.subr.bf16.mxu0 0
      %1630 = vmatpush1.bf16.msra.mxu0 %v673
      %1631 = vmatprep.subr.bf16.mxu0 0
      %1632 = vmatpush1.bf16.msra.mxu0 %v674
      %1633 = vmatprep.subr.bf16.mxu0 0
      %1634 = vmatpush1.bf16.msra.mxu0 %v675
      %1635 = vmatprep.subr.bf16.mxu0 0
      %1636 = vmatpush1.bf16.msra.mxu0 %v676
      %1637 = vmatprep.subr.bf16.mxu0 0
      %1638 = vmatpush1.bf16.msra.mxu0 %v677
      %1639 = vmatprep.subr.bf16.mxu0 0
      %1640 = vmatpush1.bf16.msra.mxu0 %v678
      %1641 = vmatprep.subr.bf16.mxu0 0
      %1642 = vmatpush1.bf16.msra.mxu0 %v679
      %1643 = vmatprep.subr.bf16.mxu0 0
      %1644 = vmatpush1.bf16.msra.mxu0 %v680
      %1645 = vmatprep.subr.bf16.mxu0 0
      %1646 = vmatpush1.bf16.msra.mxu0 %v681
      %1647 = vmatprep.subr.bf16.mxu0 0
      %1648 = vmatpush1.bf16.msra.mxu0 %v682
      %1649 = vmatprep.subr.bf16.mxu0 0
      %1650 = vmatpush1.bf16.msra.mxu0 %v683
      %1651 = vmatprep.subr.bf16.mxu0 0
      %1652 = vmatpush1.bf16.msra.mxu0 %v684
      %1653 = vmatprep.subr.bf16.mxu0 0
      %1654 = vmatpush1.bf16.msra.mxu0 %v685
      %1655 = vmatprep.subr.bf16.mxu0 0
      %1656 = vmatpush1.bf16.msra.mxu0 %v686
      %1657 = vmatprep.subr.bf16.mxu0 0
      %1658 = vmatpush1.bf16.msra.mxu0 %v687
      %1659 = vmatprep.mubr.bf16.mxu0 %v1592
      %1660 = vmatmul.mubr.bf16.gmra.mrb[0].mxu0 %v1591
      %v1661 = vpop.f32.mrb[0].mxu0
      %v1662 = vadd.f32 0.0, %v1661
      %v1663 = vpop.f32.mrb[0].mxu0
      %v1664 = vpop.f32.mrb[0].mxu0
      %v1665 = vadd.f32 0.0, %v1664
      %v1666 = vpop.f32.mrb[0].mxu0
      %1667 = vmatprep.mubr.bf16.mxu0 %v1597
      %1668 = vmatmul.mubr.bf16.gmra.mrb[0].mxu0 %v1596
      %v1669 = vpop.f32.mrb[0].mxu0
      %v1670 = vadd.f32 0.0, %v1669
      %v1671 = vpop.f32.mrb[0].mxu0
      %v1672 = vpop.f32.mrb[0].mxu0
      %v1673 = vadd.f32 0.0, %v1672
      %v1674 = vpop.f32.mrb[0].mxu0
      %1675 = vmatprep.mubr.bf16.mxu0 %v1602
      %1676 = vmatmul.mubr.bf16.gmra.mrb[0].mxu0 %v1601
      %v1677 = vpop.f32.mrb[0].mxu0
      %v1678 = vadd.f32 0.0, %v1677
      %v1679 = vpop.f32.mrb[0].mxu0
      %v1680 = vpop.f32.mrb[0].mxu0
      %v1681 = vadd.f32 0.0, %v1680
      %v1682 = vpop.f32.mrb[0].mxu0
      %1683 = vdwg.mxu0
      %1684 = vmatprep.subr.bf16.mxu0 0
      %1685 = vmatpush1.bf16.msra.mxu0 %v688
      %1686 = vmatprep.subr.bf16.mxu0 0
      %1687 = vmatpush1.bf16.msra.mxu0 %v689
      %1688 = vmatprep.subr.bf16.mxu0 0
      %1689 = vmatpush1.bf16.msra.mxu0 %v690
      %1690 = vmatprep.subr.bf16.mxu0 0
      %1691 = vmatpush1.bf16.msra.mxu0 %v691
      %1692 = vmatprep.subr.bf16.mxu0 0
      %1693 = vmatpush1.bf16.msra.mxu0 %v692
      %1694 = vmatprep.subr.bf16.mxu0 0
      %1695 = vmatpush1.bf16.msra.mxu0 %v693
      %1696 = vmatprep.subr.bf16.mxu0 0
      %1697 = vmatpush1.bf16.msra.mxu0 %v694
      %1698 = vmatprep.subr.bf16.mxu0 0
      %1699 = vmatpush1.bf16.msra.mxu0 %v695
      %1700 = vmatprep.subr.bf16.mxu0 0
      %1701 = vmatpush1.bf16.msra.mxu0 %v696
      %1702 = vmatprep.subr.bf16.mxu0 0
      %1703 = vmatpush1.bf16.msra.mxu0 %v697
      %1704 = vmatprep.subr.bf16.mxu0 0
      %1705 = vmatpush1.bf16.msra.mxu0 %v698
      %1706 = vmatprep.subr.bf16.mxu0 0
      %1707 = vmatpush1.bf16.msra.mxu0 %v699
      %1708 = vmatprep.subr.bf16.mxu0 0
      %1709 = vmatpush1.bf16.msra.mxu0 %v700
      %1710 = vmatprep.subr.bf16.mxu0 0
      %1711 = vmatpush1.bf16.msra.mxu0 %v701
      %1712 = vmatprep.subr.bf16.mxu0 0
      %1713 = vmatpush1.bf16.msra.mxu0 %v702
      %1714 = vmatprep.subr.bf16.mxu0 0
      %1715 = vmatpush1.bf16.msra.mxu0 %v703
      %1716 = vmatprep.mubr.bf16.mxu0 %v1594
      %1717 = vmatmul.mubr.bf16.gmra.mrb[0].mxu0 %v1593
      %v1718 = vpop.f32.mrb[0].mxu0
      %v1719 = vadd.f32 %v1662, %v1718
      %v1720 = vpop.f32.mrb[0].mxu0
      %v1721 = vpop.f32.mrb[0].mxu0
      %v1722 = vadd.f32 %v1665, %v1721
      %v1723 = vpop.f32.mrb[0].mxu0
      %1724 = vmatprep.mubr.bf16.mxu0 %v1599
      %1725 = vmatmul.mubr.bf16.gmra.mrb[0].mxu0 %v1598
      %v1726 = vpop.f32.mrb[0].mxu0
      %v1727 = vadd.f32 %v1670, %v1726
      %v1728 = vpop.f32.mrb[0].mxu0
      %v1729 = vpop.f32.mrb[0].mxu0
      %v1730 = vadd.f32 %v1673, %v1729
      %v1731 = vpop.f32.mrb[0].mxu0
      %1732 = vmatprep.mubr.bf16.mxu0 %v1604
      %1733 = vmatmul.mubr.bf16.gmra.mrb[0].mxu0 %v1603
      %v1734 = vpop.f32.mrb[0].mxu0
      %v1735 = vadd.f32 %v1678, %v1734
      %v1736 = vpop.f32.mrb[0].mxu0
      %v1737 = vpop.f32.mrb[0].mxu0
      %v1738 = vadd.f32 %v1681, %v1737
      %v1739 = vpop.f32.mrb[0].mxu0
      %1740 = vdwg.mxu0
      %1741 = vmatprep.subr.bf16.mxu0 0
      %1742 = vmatpush1.bf16.msra.mxu0 %v704
      %1743 = vmatprep.subr.bf16.mxu0 0
      %1744 = vmatpush1.bf16.msra.mxu0 %v705
      %1745 = vmatprep.subr.bf16.mxu0 0
      %1746 = vmatpush1.bf16.msra.mxu0 %v706
      %1747 = vmatprep.subr.bf16.mxu0 0
      %1748 = vmatpush1.bf16.msra.mxu0 %v707
      %1749 = vmatprep.subr.bf16.mxu0 0
      %1750 = vmatpush1.bf16.msra.mxu0 0
      %1751 = vmatprep.subr.bf16.mxu0 0
      %1752 = vmatpush1.bf16.msra.mxu0 0
      %1753 = vmatprep.subr.bf16.mxu0 0
      %1754 = vmatpush1.bf16.msra.mxu0 0
      %1755 = vmatprep.subr.bf16.mxu0 0
      %1756 = vmatpush1.bf16.msra.mxu0 0
      %1757 = vmatprep.subr.bf16.mxu0 0
      %1758 = vmatpush1.bf16.msra.mxu0 0
      %1759 = vmatprep.subr.bf16.mxu0 0
      %1760 = vmatpush1.bf16.msra.mxu0 0
      %1761 = vmatprep.subr.bf16.mxu0 0
      %1762 = vmatpush1.bf16.msra.mxu0 0
      %1763 = vmatprep.subr.bf16.mxu0 0
      %1764 = vmatpush1.bf16.msra.mxu0 0
      %1765 = vmatprep.subr.bf16.mxu0 0
      %1766 = vmatpush1.bf16.msra.mxu0 0
      %1767 = vmatprep.subr.bf16.mxu0 0
      %1768 = vmatpush1.bf16.msra.mxu0 0
      %1769 = vmatprep.subr.bf16.mxu0 0
      %1770 = vmatpush1.bf16.msra.mxu0 0
      %1771 = vmatprep.subr.bf16.mxu0 0
      %1772 = vmatpush1.bf16.msra.mxu0 0
      %1773 = vmatprep.mubr.bf16.mxu0 0
      %1774 = vmatmul.mubr.bf16.gmra.mrb[0].mxu0 %v1619
      %v1775 = vpop.f32.mrb[0].mxu0
      %v1776 = vadd.f32 %v1719, %v1775
      %v1777 = vpop.f32.mrb[0].mxu0
      %v1778 = vpop.f32.mrb[0].mxu0
      %v1779 = vadd.f32 %v1722, %v1778
      %v1780 = vpop.f32.mrb[0].mxu0
      %1781 = vmatprep.mubr.bf16.mxu0 0
      %1782 = vmatmul.mubr.bf16.gmra.mrb[0].mxu0 %v1622
      %v1783 = vpop.f32.mrb[0].mxu0
      %v1784 = vadd.f32 %v1727, %v1783
      %v1785 = vpop.f32.mrb[0].mxu0
      %v1786 = vpop.f32.mrb[0].mxu0
      %v1787 = vadd.f32 %v1730, %v1786
      %v1788 = vpop.f32.mrb[0].mxu0
      %1789 = vmatprep.mubr.bf16.mxu0 0
      %1790 = vmatmul.mubr.bf16.gmra.mrb[0].mxu0 %v1625
      %v1791 = vpop.f32.mrb[0].mxu0
      %v1792 = vadd.f32 %v1735, %v1791
      %v1793 = vpop.f32.mrb[0].mxu0
      %v1794 = vpop.f32.mrb[0].mxu0
      %v1795 = vadd.f32 %v1738, %v1794
      %v1796 = vpop.f32.mrb[0].mxu0
      %1797 = vdwg.mxu0
      %v1798 = vmul.f32 %v1776, %v929
      %v1799 = vmul.f32 %v1779, %v929
      %v1800 = vmul.f32 %v1784, %v929
      %v1801 = vmul.f32 %v1787, %v929
      %v1802 = vmul.f32 %v1792, %v929
      %v1803 = vmul.f32 %v1795, %v929
      %v1804 = vadd.f32 %v1798, %v941
      %v1805 = vadd.f32 %v1799, %v941
      %v1806 = vadd.f32 %v1800, %v941
      %v1807 = vadd.f32 %v1801, %v941
      %v1808 = vadd.f32 %v1802, %v941
      %v1809 = vadd.f32 %v1803, %v941
      %v1810 = vmax.f32 %v1519, %v1804
      %v1811 = vmax.f32 %v1520, %v1805
      %v1812 = vmax.f32 %v1521, %v1806
      %v1813 = vmax.f32 %v1522, %v1807
      %v1814 = vmax.f32 %v1523, %v1808
      %v1815 = vmax.f32 %v1524, %v1809
      %v1816 = vmax.f32 %v1234, %v1810
      %v1817 = vmax.f32 %v1235, %v1811
      %v1818 = vmax.f32 %v1236, %v1812
      %v1819 = vmax.f32 %v1237, %v1813
      %v1820 = vmax.f32 %v1238, %v1814
      %v1821 = vmax.f32 %v1239, %v1815
      %v1822 = vmax.f32 %v1816, 0.0
      %v1823 = vmax.f32 %v1817, 0.0
      %v1824 = vmax.f32 %v1818, 0.0
      %v1825 = vmax.f32 %v1819, 0.0
      %v1826 = vmax.f32 %v1820, 0.0
      %v1827 = vmax.f32 %v1821, 0.0
      %v1828 = vpack.c.bf16 %v1823, %v1822
      %v1829 = vpack.c.bf16 %v1825, %v1824
      %v1830 = vpack.c.bf16 %v1827, %v1826
      %v1834 = vunpack.c.l.b16 %v1828
      %v1835 = vunpack.c.h.b16 %v1828
      %v1836 = vunpack.c.l.b16 %v1829
      %v1837 = vunpack.c.h.b16 %v1829
      %v1838 = vunpack.c.l.b16 %v1830
      %v1839 = vunpack.c.h.b16 %v1830
      %v1840 = vpack.c.b16 %v1834, %v1834
      %v1841 = vpack.c.b16 %v1835, %v1835
      %v1842 = vpack.c.b16 %v1836, %v1836
      %v1843 = vpack.c.b16 %v1837, %v1837
      %v1844 = vpack.c.b16 %v1838, %v1838
      %v1845 = vpack.c.b16 %v1839, %v1839
      %1852 = vst [vmem:[%s358] sm:$0xf] %v1840
      %1853 = vst [vmem:[%s358 + $0x4] sm:$0xf] %v1841
      %1854 = vst [vmem:[%s358 + $0x8] sm:$0xf] %v1842
      %1855 = vst [vmem:[%s358 + $0xc] sm:$0xf] %v1843
      %1856 = vst [vmem:[%s358 + $0x10] sm:$0xf] %v1844
      %1857 = vst [vmem:[%s358 + $0x14] sm:$0xf] %v1845
      %s1858 = smul.u32 6, %s18
      %p1859 = scmp.lt.s32.totalorder %s1858, 11
      %s1860 = scalar_select %p1859, %s1858, 11
      %s1861 = smul.addr %s1860, 4
      %s1862 = scalar_lea.vmem %s7, %s1861
      // Predicated region
      $region49: #{_lambda_.5} parent=47 // pred_check
        %p1863 = pneg %p203
      $region50: #{_lambda_.5} parent=47 // pred_check_branch
        %1865 = sbr.rel (%p1863) target = $region52
      $region51: #{_lambda_.5} parent=47 // pred_region
        %s1866 = smul.u32 6, %s18
      $region52: #{_lambda_.5} parent=47 // pred_fallthru
        _
    $region48: #{_lambda_.5} parent=5 // pred_fallthru
      _
    %p1867 = scmp.le.s32.totalorder 2, %s13
    // Predicated region
    $region53: #{_lambda_.5} parent=5 // pred_check
      %p1868 = pneg %p1867
    $region54: #{_lambda_.5} parent=5 // pred_check_branch
      %1870 = sbr.rel (%p1868) target = $region56
    $region55: #{_lambda_.5} parent=5 // pred_region
      %s1871 = ssub.s32 %s13, 2
      // Predicated region
      $region57: #{_lambda_.5} parent=55 // pred_check
        %p1872 = pneg %p209
      $region58: #{_lambda_.5} parent=55 // pred_check_branch
        %1874 = sbr.rel (%p1872) target = $region60
      $region59: #{_lambda_.5} parent=55 // pred_region
        %s1875 = smul.u32 6, %s19
        %p1876 = scmp.lt.s32.totalorder %s1875, 11
        %s1877 = scalar_select %p1876, %s1875, 11
        %s1878 = smul.addr %s1877, 4
        %s1879 = scalar_lea.vmem %s7, %s1878
      $region60: #{_lambda_.5} parent=55 // pred_fallthru
        _
    $region56: #{_lambda_.5} parent=5 // pred_fallthru
      _
  $region6: #{_lambda_.5} parent=0 // loop_footer
    %s17 = sadd.s32 1, %s13
  $region7: #{_lambda_.5} parent=0 // loop_footer_branch
    %12 = sbr.rel target = $region3
  $region8: #{_lambda_.5} parent=0 // loop_exit
    _

// kernel: tile.42
$region0: #{tile.42}
  #allocation0 [shape = 's32[1]{0}', space=sflag, size = 0x4, scoped, tag = 'scoped memory for tile.42']
  %s0 = inlined_call_operand.vmem [shape: f32[64], index: 0, kind: input, shape index: {}]
  %s1 = inlined_call_operand.vmem [shape: f32[2,64], index: 1, kind: output, shape index: {}]
  // Predicated region
  $region2: #{tile.42} parent=0 // pred_check
    _
  $region3: #{tile.42} parent=0 // pred_check_branch
    %3 = sbr.rel (0) target = $region5
  $region4: #{tile.42} parent=0 // pred_region
    _
  $region5: #{tile.42} parent=0 // pred_fallthru
    _
  %v4 = vld [vmem:[%s0] ss:$0 sm:$0xff]
  %5 = vst [vmem:[%s1] sm:$0x3] %v4

// kernel: tile.43
$region0: #{tile.43}
  %s0 = inlined_call_operand.vmem [shape: f32[2,64], index: 0, kind: input, shape index: {}]
  %s1 = inlined_call_operand.vmem [shape: f32[1,128], index: 1, kind: output, shape index: {}]
  $region1: #{tile.43} parent=0
    #allocation0 [shape = 'u8[4096]{0}', space=vmem, size = 0x1000, scoped, tag = 'scoped mem for output reshape']
    #allocation1 [shape = 'u8[4096]{0}', space=vmem, size = 0x1000, scoped, tag = 'scoped mem for input reshape']
    %s3 = sshllo.u32 0, 2
    %v4 = vld [vmem:[%s0] sm:%s3]
    %5 = vst [vmem:[#allocation1] sm:%s3] %v4
    %v6 = vld [vmem:[#allocation1] sm:$0x1]
    %vm7 = vcmask 523264
    %8 = vst.msk [vmem:[#allocation0] sm:$0x1] %vm7, %v6
    %s9 = scalar_lea.vmem [#allocation1], 1
    %v10 = vld [vmem:[%s9] sm:$0x1]
    %11 = vrot.lane.b32.xlu0 %v10, 64
    %v12 = vpop.permute.xlu0 %11
    %vm13 = vcmask 1048064
    %14 = vst.msk [vmem:[#allocation0] sm:$0x1] %vm13, %v12
    %s16 = sshllo.u32 0, 1
    %v18 = vld [vmem:[#allocation0] sm:%s16]
    %s19 = sshllo.u32 0, 1
    %20 = vst [vmem:[%s1] sm:%s19] %v18

// kernel: _lambda_.6
$region0: #{_lambda_.6}
  #allocation0 [shape = 'u32[]', space=smem, size = 0x4, offset = 0x4, fixed_abs, tag = 'smem constant byte address 0x4 - core index']
  #allocation1 [shape = 'u32[144,128]{1,0:T(1,128)}', space=vmem, size = 0x12000, scoped, tag = 'internal scratch']
  %s0 = inlined_call_operand.vmem [shape: bf16[16,576], index: 0, kind: input, shape index: {}]
  %s1 = inlined_call_operand.vmem [shape: bf16[16,576], index: 1, kind: input, shape index: {}]
  %s2 = inlined_call_operand.vmem [shape: bf16[16,576], index: 2, kind: input, shape index: {}]
  %s3 = inlined_call_operand.vmem [shape: bf16[16,576], index: 3, kind: input, shape index: {}]
  %s4 = inlined_call_operand.vmem [shape: bf16[576,128], index: 4, kind: input, shape index: {}]
  %s5 = inlined_call_operand.vmem [shape: f32[1,128], index: 5, kind: input, shape index: {}]
  %s6 = inlined_call_operand.vmem [shape: f32[1,128], index: 6, kind: input, shape index: {}]
  %s7 = inlined_call_operand.vmem [shape: bf16[16,128], index: 7, kind: output, shape index: {}]
  %s8 = sld [smem:[#allocation0]]
  $region61: #{_lambda_.6} parent=0
    _
  %s10 = ssub.s32 1, %s8
  %s11 = scalar_select 0, %s10, %s8
  loop: start=0, step=1, limit=4
  $region2: #{_lambda_.6} parent=0 // loop_pre_header
    _
  $region3: #{_lambda_.6} parent=0 // loop_header
    %s13 = sphi 0, %s17
    %p14 = scmp.ge.s32.totalorder %s13, 4
    %s23 = sphi 0, %s25
    %s26 = sphi 0, %s23
    %s27 = sphi 0, %s26
    %s43 = sphi 0, %s27
    %s49 = sphi 0, %s51
    %s52 = sphi 0, %s49
    %s53 = sphi 0, %s52
    %s69 = sphi 0, %s53
    %s75 = sphi 0, %s77
    %s78 = sphi 0, %s75
    %s79 = sphi 0, %s78
    %s95 = sphi 0, %s79
    %s101 = sphi 0, %s103
    %s104 = sphi 0, %s101
    %s105 = sphi 0, %s104
    %s121 = sphi 0, %s105
    %s125 = sphi 0, %s125
    %s127 = sphi 0, %s125
    %s128 = sphi 0, %s127
    %s142 = sphi 0, %s128
    %s146 = sphi 0, %s146
    %s148 = sphi 0, %s146
    %s149 = sphi 0, %s148
    %s163 = sphi 0, %s149
    %s167 = sphi 0, %s167
    %s169 = sphi 0, %s167
    %s170 = sphi 0, %s169
    %s184 = sphi 0, %s170
    %s190 = sphi 0, %s192
    %s193 = sphi 0, %s190
    %s194 = sphi 0, %s193
    %s210 = sphi 0, %s194
  $region4: #{_lambda_.6} parent=0 // loop_header_branch
    %16 = sbr.rel (%p14) target = $region8
  $region5: #{_lambda_.6} parent=0 // loop_body
    %s18 = ssub.s32 %s13, 1
    %s19 = ssub.s32 %s13, 2
    %s20 = sadd.s32 %s13, 1
    %s21 = ssub.s32 %s13, %s20
    %p22 = scmp.eq.s32.totalorder %s21, 0
    %s24 = sadd.s32 %s23, 1
    %s25 = scalar_select %p22, %s23, %s24
    %p28 = pneg %p22
    %p29 = scmp.eq.s32.totalorder %s13, 1
    %p30 = por %p28, %p29
    %p31 = scmp.ne.s32.totalorder %s23, %s26
    %p32 = scmp.eq.s32.totalorder %s13, 0
    %p33 = por %p31, %p32
    %p34 = scmp.ne.s32.totalorder %s23, %s26
    %p35 = scmp.eq.s32.totalorder %s18, 1
    %p36 = por %p34, %p35
    %p37 = scmp.ne.s32.totalorder %s26, %s27
    %p38 = scmp.eq.s32.totalorder %s18, 0
    %p39 = por %p37, %p38
    %p40 = scmp.ne.s32.totalorder %s26, %s27
    %p41 = scmp.eq.s32.totalorder %s19, 1
    %p42 = por %p40, %p41
    %p44 = scmp.ne.s32.totalorder %s27, %s43
    %p45 = scmp.eq.s32.totalorder %s19, 0
    %p46 = por %p44, %p45
    %s47 = ssub.s32 %s13, %s20
    %p48 = scmp.eq.s32.totalorder %s47, 0
    %s50 = sadd.s32 %s49, 1
    %s51 = scalar_select %p48, %s49, %s50
    %p54 = pneg %p48
    %p55 = scmp.eq.s32.totalorder %s13, 1
    %p56 = por %p54, %p55
    %p57 = scmp.ne.s32.totalorder %s49, %s52
    %p58 = scmp.eq.s32.totalorder %s13, 0
    %p59 = por %p57, %p58
    %p60 = scmp.ne.s32.totalorder %s49, %s52
    %p61 = scmp.eq.s32.totalorder %s18, 1
    %p62 = por %p60, %p61
    %p63 = scmp.ne.s32.totalorder %s52, %s53
    %p64 = scmp.eq.s32.totalorder %s18, 0
    %p65 = por %p63, %p64
    %p66 = scmp.ne.s32.totalorder %s52, %s53
    %p67 = scmp.eq.s32.totalorder %s19, 1
    %p68 = por %p66, %p67
    %p70 = scmp.ne.s32.totalorder %s53, %s69
    %p71 = scmp.eq.s32.totalorder %s19, 0
    %p72 = por %p70, %p71
    %s73 = ssub.s32 %s13, %s20
    %p74 = scmp.eq.s32.totalorder %s73, 0
    %s76 = sadd.s32 %s75, 1
    %s77 = scalar_select %p74, %s75, %s76
    %p80 = pneg %p74
    %p81 = scmp.eq.s32.totalorder %s13, 1
    %p82 = por %p80, %p81
    %p83 = scmp.ne.s32.totalorder %s75, %s78
    %p84 = scmp.eq.s32.totalorder %s13, 0
    %p85 = por %p83, %p84
    %p86 = scmp.ne.s32.totalorder %s75, %s78
    %p87 = scmp.eq.s32.totalorder %s18, 1
    %p88 = por %p86, %p87
    %p89 = scmp.ne.s32.totalorder %s78, %s79
    %p90 = scmp.eq.s32.totalorder %s18, 0
    %p91 = por %p89, %p90
    %p92 = scmp.ne.s32.totalorder %s78, %s79
    %p93 = scmp.eq.s32.totalorder %s19, 1
    %p94 = por %p92, %p93
    %p96 = scmp.ne.s32.totalorder %s79, %s95
    %p97 = scmp.eq.s32.totalorder %s19, 0
    %p98 = por %p96, %p97
    %s99 = ssub.s32 %s13, %s20
    %p100 = scmp.eq.s32.totalorder %s99, 0
    %s102 = sadd.s32 %s101, 1
    %s103 = scalar_select %p100, %s101, %s102
    %p106 = pneg %p100
    %p107 = scmp.eq.s32.totalorder %s13, 1
    %p108 = por %p106, %p107
    %p109 = scmp.ne.s32.totalorder %s101, %s104
    %p110 = scmp.eq.s32.totalorder %s13, 0
    %p111 = por %p109, %p110
    %p112 = scmp.ne.s32.totalorder %s101, %s104
    %p113 = scmp.eq.s32.totalorder %s18, 1
    %p114 = por %p112, %p113
    %p115 = scmp.ne.s32.totalorder %s104, %s105
    %p116 = scmp.eq.s32.totalorder %s18, 0
    %p117 = por %p115, %p116
    %p118 = scmp.ne.s32.totalorder %s104, %s105
    %p119 = scmp.eq.s32.totalorder %s19, 1
    %p120 = por %p118, %p119
    %p122 = scmp.ne.s32.totalorder %s105, %s121
    %p123 = scmp.eq.s32.totalorder %s19, 0
    %p124 = por %p122, %p123
    %s126 = sadd.s32 %s125, 1
    %p129 = scmp.eq.s32.totalorder %s13, 1
    %p130 = scmp.ne.s32.totalorder %s125, %s127
    %p131 = scmp.eq.s32.totalorder %s13, 0
    %p132 = por %p130, %p131
    %p133 = scmp.ne.s32.totalorder %s125, %s127
    %p134 = scmp.eq.s32.totalorder %s18, 1
    %p135 = por %p133, %p134
    %p136 = scmp.ne.s32.totalorder %s127, %s128
    %p137 = scmp.eq.s32.totalorder %s18, 0
    %p138 = por %p136, %p137
    %p139 = scmp.ne.s32.totalorder %s127, %s128
    %p140 = scmp.eq.s32.totalorder %s19, 1
    %p141 = por %p139, %p140
    %p143 = scmp.ne.s32.totalorder %s128, %s142
    %p144 = scmp.eq.s32.totalorder %s19, 0
    %p145 = por %p143, %p144
    %s147 = sadd.s32 %s146, 1
    %p150 = scmp.eq.s32.totalorder %s13, 1
    %p151 = scmp.ne.s32.totalorder %s146, %s148
    %p152 = scmp.eq.s32.totalorder %s13, 0
    %p153 = por %p151, %p152
    %p154 = scmp.ne.s32.totalorder %s146, %s148
    %p155 = scmp.eq.s32.totalorder %s18, 1
    %p156 = por %p154, %p155
    %p157 = scmp.ne.s32.totalorder %s148, %s149
    %p158 = scmp.eq.s32.totalorder %s18, 0
    %p159 = por %p157, %p158
    %p160 = scmp.ne.s32.totalorder %s148, %s149
    %p161 = scmp.eq.s32.totalorder %s19, 1
    %p162 = por %p160, %p161
    %p164 = scmp.ne.s32.totalorder %s149, %s163
    %p165 = scmp.eq.s32.totalorder %s19, 0
    %p166 = por %p164, %p165
    %s168 = sadd.s32 %s167, 1
    %p171 = scmp.eq.s32.totalorder %s13, 1
    %p172 = scmp.ne.s32.totalorder %s167, %s169
    %p173 = scmp.eq.s32.totalorder %s13, 0
    %p174 = por %p172, %p173
    %p175 = scmp.ne.s32.totalorder %s167, %s169
    %p176 = scmp.eq.s32.totalorder %s18, 1
    %p177 = por %p175, %p176
    %p178 = scmp.ne.s32.totalorder %s169, %s170
    %p179 = scmp.eq.s32.totalorder %s18, 0
    %p180 = por %p178, %p179
    %p181 = scmp.ne.s32.totalorder %s169, %s170
    %p182 = scmp.eq.s32.totalorder %s19, 1
    %p183 = por %p181, %p182
    %p185 = scmp.ne.s32.totalorder %s170, %s184
    %p186 = scmp.eq.s32.totalorder %s19, 0
    %p187 = por %p185, %p186
    %s188 = ssub.s32 %s13, %s20
    %p189 = scmp.eq.s32.totalorder %s188, 0
    %s191 = sadd.s32 %s190, 1
    %s192 = scalar_select %p189, %s190, %s191
    %p195 = pneg %p189
    %p196 = scmp.eq.s32.totalorder %s13, 1
    %p197 = por %p195, %p196
    %p198 = scmp.ne.s32.totalorder %s190, %s193
    %p199 = scmp.eq.s32.totalorder %s13, 0
    %p200 = por %p198, %p199
    %p201 = scmp.ne.s32.totalorder %s190, %s193
    %p202 = scmp.eq.s32.totalorder %s18, 1
    %p203 = por %p201, %p202
    %p204 = scmp.ne.s32.totalorder %s193, %s194
    %p205 = scmp.eq.s32.totalorder %s18, 0
    %p206 = por %p204, %p205
    %p207 = scmp.ne.s32.totalorder %s193, %s194
    %p208 = scmp.eq.s32.totalorder %s19, 1
    %p209 = por %p207, %p208
    %p211 = scmp.ne.s32.totalorder %s194, %s210
    %p212 = scmp.eq.s32.totalorder %s19, 0
    %p213 = por %p211, %p212
    %p214 = scmp.le.s32.totalorder 1, %s13
    %p215 = scmp.lt.s32.totalorder %s13, 3
    %p216 = pnand %p214, %p215
    %p217 = pneg %p216
    // Predicated region
    $region9: #{_lambda_.6} parent=5 // pred_check
      _
    $region10: #{_lambda_.6} parent=5 // pred_check_branch
      %219 = sbr.rel (%p216) target = $region12
    $region11: #{_lambda_.6} parent=5 // pred_region
      %s220 = ssub.s32 %s13, 1
      // Predicated region
      $region13: #{_lambda_.6} parent=11 // pred_check
        %p221 = pneg %p138
      $region14: #{_lambda_.6} parent=11 // pred_check_branch
        %223 = sbr.rel (%p221) target = $region16
      $region15: #{_lambda_.6} parent=11 // pred_region
        _
      $region16: #{_lambda_.6} parent=11 // pred_fallthru
        _
      // Predicated region
      $region17: #{_lambda_.6} parent=11 // pred_check
        %p224 = pneg %p159
      $region18: #{_lambda_.6} parent=11 // pred_check_branch
        %226 = sbr.rel (%p224) target = $region20
      $region19: #{_lambda_.6} parent=11 // pred_region
        _
      $region20: #{_lambda_.6} parent=11 // pred_fallthru
        _
      // Predicated region
      $region21: #{_lambda_.6} parent=11 // pred_check
        %p227 = pneg %p180
      $region22: #{_lambda_.6} parent=11 // pred_check_branch
        %229 = sbr.rel (%p227) target = $region24
      $region23: #{_lambda_.6} parent=11 // pred_region
        _
      $region24: #{_lambda_.6} parent=11 // pred_fallthru
        _
    $region12: #{_lambda_.6} parent=5 // pred_fallthru
      _
    %p230 = scmp.lt.s32.totalorder %s13, 2
    // Predicated region
    $region25: #{_lambda_.6} parent=5 // pred_check
      %p231 = pneg %p230
    $region26: #{_lambda_.6} parent=5 // pred_check_branch
      %233 = sbr.rel (%p231) target = $region28
    $region27: #{_lambda_.6} parent=5 // pred_region
      // Predicated region
      $region29: #{_lambda_.6} parent=27 // pred_check
        %p234 = pneg %p33
      $region30: #{_lambda_.6} parent=27 // pred_check_branch
        %236 = sbr.rel (%p234) target = $region32
      $region31: #{_lambda_.6} parent=27 // pred_region
        %p237 = scmp.lt.s32.totalorder %s13, 1
        %s238 = scalar_select %p237, %s13, 1
        %s239 = smul.addr %s238, 5
        %s240 = smul.addr %s239, 4
        %s241 = scalar_lea.vmem %s0, %s240
      $region32: #{_lambda_.6} parent=27 // pred_fallthru
        _
      // Predicated region
      $region33: #{_lambda_.6} parent=27 // pred_check
        %p242 = pneg %p59
      $region34: #{_lambda_.6} parent=27 // pred_check_branch
        %244 = sbr.rel (%p242) target = $region36
      $region35: #{_lambda_.6} parent=27 // pred_region
        %p245 = scmp.lt.s32.totalorder %s13, 1
        %s246 = scalar_select %p245, %s13, 1
        %s247 = smul.addr %s246, 5
        %s248 = smul.addr %s247, 4
        %s249 = scalar_lea.vmem %s1, %s248
      $region36: #{_lambda_.6} parent=27 // pred_fallthru
        _
      // Predicated region
      $region37: #{_lambda_.6} parent=27 // pred_check
        %p250 = pneg %p85
      $region38: #{_lambda_.6} parent=27 // pred_check_branch
        %252 = sbr.rel (%p250) target = $region40
      $region39: #{_lambda_.6} parent=27 // pred_region
        %p253 = scmp.lt.s32.totalorder %s13, 1
        %s254 = scalar_select %p253, %s13, 1
        %s255 = smul.addr %s254, 5
        %s256 = smul.addr %s255, 4
        %s257 = scalar_lea.vmem %s2, %s256
      $region40: #{_lambda_.6} parent=27 // pred_fallthru
        _
      // Predicated region
      $region41: #{_lambda_.6} parent=27 // pred_check
        %p258 = pneg %p111
      $region42: #{_lambda_.6} parent=27 // pred_check_branch
        %260 = sbr.rel (%p258) target = $region44
      $region43: #{_lambda_.6} parent=27 // pred_region
        %p261 = scmp.lt.s32.totalorder %s13, 1
        %s262 = scalar_select %p261, %s13, 1
        %s263 = smul.addr %s262, 5
        %s264 = smul.addr %s263, 4
        %s265 = scalar_lea.vmem %s3, %s264
      $region44: #{_lambda_.6} parent=27 // pred_fallthru
        _
    $region28: #{_lambda_.6} parent=5 // pred_fallthru
      _
    %p266 = scmp.le.s32.totalorder 1, %s13
    %p267 = scmp.lt.s32.totalorder %s13, 3
    %p268 = pnand %p266, %p267
    %p269 = pneg %p268
    // Predicated region
    $region45: #{_lambda_.6} parent=5 // pred_check
      _
    $region46: #{_lambda_.6} parent=5 // pred_check_branch
      %271 = sbr.rel (%p268) target = $region48
    $region47: #{_lambda_.6} parent=5 // pred_region
      %s272 = ssub.s32 %s13, 1
      %p273 = scmp.lt.s32.totalorder %s18, 1
      %s274 = scalar_select %p273, %s18, 1
      %s275 = smul.addr %s274, 5
      %s276 = smul.addr %s275, 4
      %s277 = scalar_lea.vmem %s0, %s276
      %p278 = pneg %p39
      %p279 = pneg %p36
      %p280 = scmp.lt.s32.totalorder %s18, 1
      %s281 = scalar_select %p280, %s18, 1
      %s282 = smul.addr %s281, 5
      %s283 = smul.addr %s282, 4
      %s284 = scalar_lea.vmem %s1, %s283
      %p285 = pneg %p65
      %p286 = pneg %p62
      %p287 = scmp.lt.s32.totalorder %s18, 1
      %s288 = scalar_select %p287, %s18, 1
      %s289 = smul.addr %s288, 5
      %s290 = smul.addr %s289, 4
      %s291 = scalar_lea.vmem %s2, %s290
      %p292 = pneg %p91
      %p293 = pneg %p88
      %p294 = scmp.lt.s32.totalorder %s18, 1
      %s295 = scalar_select %p294, %s18, 1
      %s296 = smul.addr %s295, 5
      %s297 = smul.addr %s296, 4
      %s298 = scalar_lea.vmem %s3, %s297
      %p299 = pneg %p117
      %p300 = pneg %p114
      %p301 = pneg %p138
      %p302 = pneg %p135
      %p303 = pneg %p159
      %p304 = pneg %p156
      %p305 = pneg %p180
      %p306 = pneg %p177
      %p307 = pneg %p206
      %p308 = pneg %p203
      %p309 = scmp.lt.s32.totalorder %s18, 1
      %s310 = scalar_select %p309, %s18, 1
      %s311 = smul.addr %s310, 4
      %s312 = scalar_lea.vmem %s7, %s311
      %p313 = scmp.lt.s32.totalorder %s18, 1
      %s314 = scalar_select %p313, %s18, 1
      %s315 = smul.addr %s314, 5
      %s316 = smul.addr %s315, 4
      %s317 = scalar_lea.vmem %s0, %s316
      %p318 = scmp.lt.s32.totalorder %s18, 1
      %s319 = scalar_select %p318, %s18, 1
      %s320 = smul.addr %s319, 5
      %s321 = smul.addr %s320, 4
      %s322 = scalar_lea.vmem %s1, %s321
      %p323 = scmp.lt.s32.totalorder %s18, 1
      %s324 = scalar_select %p323, %s18, 1
      %s325 = smul.addr %s324, 5
      %s326 = smul.addr %s325, 4
      %s327 = scalar_lea.vmem %s2, %s326
      %p328 = scmp.lt.s32.totalorder %s18, 1
      %s329 = scalar_select %p328, %s18, 1
      %s330 = smul.addr %s329, 5
      %s331 = smul.addr %s330, 4
      %s332 = scalar_lea.vmem %s3, %s331
      %p333 = scmp.lt.s32.totalorder %s18, 1
      %s334 = scalar_select %p333, %s18, 1
      %s335 = smul.addr %s334, 4
      %s336 = scalar_lea.vmem %s7, %s335
      %v338 = vld [vmem:[%s4] sm:$0xf]
      %v339 = vld [vmem:[%s4 + $0x4] sm:$0xf]
      %v340 = vld [vmem:[%s4 + $0x8] sm:$0xf]
      %v341 = vld [vmem:[%s4 + $0xc] sm:$0xf]
      %v342 = vld [vmem:[%s4 + $0x10] sm:$0xf]
      %v343 = vld [vmem:[%s4 + $0x14] sm:$0xf]
      %v344 = vld [vmem:[%s4 + $0x18] sm:$0xf]
      %v345 = vld [vmem:[%s4 + $0x1c] sm:$0xf]
      %v346 = vld [vmem:[%s4 + $0x20] sm:$0xf]
      %v347 = vld [vmem:[%s4 + $0x24] sm:$0xf]
      %v348 = vld [vmem:[%s4 + $0x28] sm:$0xf]
      %v349 = vld [vmem:[%s4 + $0x2c] sm:$0xf]
      %v350 = vld [vmem:[%s4 + $0x30] sm:$0xf]
      %v351 = vld [vmem:[%s4 + $0x34] sm:$0xf]
      %v352 = vld [vmem:[%s4 + $0x38] sm:$0xf]
      %v353 = vld [vmem:[%s4 + $0x3c] sm:$0xf]
      %v354 = vld [vmem:[%s4 + $0x40] sm:$0xf]
      %v355 = vld [vmem:[%s4 + $0x44] sm:$0xf]
      %v356 = vld [vmem:[%s4 + $0x48] sm:$0xf]
      %v357 = vld [vmem:[%s4 + $0x4c] sm:$0xf]
      %v358 = vld [vmem:[%s4 + $0x50] sm:$0xf]
      %v359 = vld [vmem:[%s4 + $0x54] sm:$0xf]
      %v360 = vld [vmem:[%s4 + $0x58] sm:$0xf]
      %v361 = vld [vmem:[%s4 + $0x5c] sm:$0xf]
      %v362 = vld [vmem:[%s4 + $0x60] sm:$0xf]
      %v363 = vld [vmem:[%s4 + $0x64] sm:$0xf]
      %v364 = vld [vmem:[%s4 + $0x68] sm:$0xf]
      %v365 = vld [vmem:[%s4 + $0x6c] sm:$0xf]
      %v366 = vld [vmem:[%s4 + $0x70] sm:$0xf]
      %v367 = vld [vmem:[%s4 + $0x74] sm:$0xf]
      %v368 = vld [vmem:[%s4 + $0x78] sm:$0xf]
      %v369 = vld [vmem:[%s4 + $0x7c] sm:$0xf]
      %v370 = vld [vmem:[%s4 + $0x80] sm:$0xf]
      %v371 = vld [vmem:[%s4 + $0x84] sm:$0xf]
      %v372 = vld [vmem:[%s4 + $0x88] sm:$0xf]
      %v373 = vld [vmem:[%s4 + $0x8c] sm:$0xf]
      %v374 = vld [vmem:[%s4 + $0x90] sm:$0xf]
      %v375 = vld [vmem:[%s4 + $0x94] sm:$0xf]
      %v376 = vld [vmem:[%s4 + $0x98] sm:$0xf]
      %v377 = vld [vmem:[%s4 + $0x9c] sm:$0xf]
      %v378 = vld [vmem:[%s4 + $0xa0] sm:$0xf]
      %v379 = vld [vmem:[%s4 + $0xa4] sm:$0xf]
      %v380 = vld [vmem:[%s4 + $0xa8] sm:$0xf]
      %v381 = vld [vmem:[%s4 + $0xac] sm:$0xf]
      %v382 = vld [vmem:[%s4 + $0xb0] sm:$0xf]
      %v383 = vld [vmem:[%s4 + $0xb4] sm:$0xf]
      %v384 = vld [vmem:[%s4 + $0xb8] sm:$0xf]
      %v385 = vld [vmem:[%s4 + $0xbc] sm:$0xf]
      %v386 = vld [vmem:[%s4 + $0xc0] sm:$0xf]
      %v387 = vld [vmem:[%s4 + $0xc4] sm:$0xf]
      %v388 = vld [vmem:[%s4 + $0xc8] sm:$0xf]
      %v389 = vld [vmem:[%s4 + $0xcc] sm:$0xf]
      %v390 = vld [vmem:[%s4 + $0xd0] sm:$0xf]
      %v391 = vld [vmem:[%s4 + $0xd4] sm:$0xf]
      %v392 = vld [vmem:[%s4 + $0xd8] sm:$0xf]
      %v393 = vld [vmem:[%s4 + $0xdc] sm:$0xf]
      %v394 = vld [vmem:[%s4 + $0xe0] sm:$0xf]
      %v395 = vld [vmem:[%s4 + $0xe4] sm:$0xf]
      %v396 = vld [vmem:[%s4 + $0xe8] sm:$0xf]
      %v397 = vld [vmem:[%s4 + $0xec] sm:$0xf]
      %v398 = vld [vmem:[%s4 + $0xf0] sm:$0xf]
      %v399 = vld [vmem:[%s4 + $0xf4] sm:$0xf]
      %v400 = vld [vmem:[%s4 + $0xf8] sm:$0xf]
      %v401 = vld [vmem:[%s4 + $0xfc] sm:$0xf]
      %v402 = vld [vmem:[%s4 + $0x100] sm:$0xf]
      %v403 = vld [vmem:[%s4 + $0x104] sm:$0xf]
      %v404 = vld [vmem:[%s4 + $0x108] sm:$0xf]
      %v405 = vld [vmem:[%s4 + $0x10c] sm:$0xf]
      %v406 = vld [vmem:[%s4 + $0x110] sm:$0xf]
      %v407 = vld [vmem:[%s4 + $0x114] sm:$0xf]
      %v408 = vld [vmem:[%s4 + $0x118] sm:$0xf]
      %v409 = vld [vmem:[%s4 + $0x11c] sm:$0xf]
      %v410 = vld [vmem:[%s5] sm:$0x1]
      %v411 = vld [vmem:[%s6] sm:$0x1]
      %v412 = vld [vmem:[%s317] sm:$0xff]
      %v413 = vld [vmem:[%s317 + $0x8] sm:$0xff]
      %v414 = vld [vmem:[%s317 + $0x10] sm:$0xf]
      %v418 = vunpack.c.l.b16 %v412
      %v419 = vunpack.c.h.b16 %v412
      %v420 = vunpack.c.l.b16 %v413
      %v421 = vunpack.c.h.b16 %v413
      %v422 = vunpack.c.l.b16 %v414
      %v423 = vpack.c.b16 %v418, %v418
      %v424 = vpack.c.b16 %v419, %v419
      %v425 = vpack.c.b16 %v420, %v420
      %v426 = vpack.c.b16 %v421, %v421
      %v427 = vpack.c.b16 %v422, %v422
      %v504 = vunpack.c.l.b16 %v338
      %v505 = vunpack.c.l.b16 %v339
      %v506 = vunpack.c.l.b16 %v340
      %v507 = vunpack.c.l.b16 %v341
      %v508 = vunpack.c.l.b16 %v342
      %v509 = vunpack.c.l.b16 %v343
      %v510 = vunpack.c.l.b16 %v344
      %v511 = vunpack.c.l.b16 %v345
      %v512 = vunpack.c.l.b16 %v346
      %v513 = vunpack.c.l.b16 %v347
      %v514 = vunpack.c.l.b16 %v348
      %v515 = vunpack.c.l.b16 %v349
      %v516 = vunpack.c.l.b16 %v350
      %v517 = vunpack.c.l.b16 %v351
      %v518 = vunpack.c.l.b16 %v352
      %v519 = vunpack.c.l.b16 %v353
      %v520 = vunpack.c.l.b16 %v354
      %v521 = vunpack.c.l.b16 %v355
      %v522 = vunpack.c.l.b16 %v356
      %v523 = vunpack.c.l.b16 %v357
      %v524 = vunpack.c.l.b16 %v358
      %v525 = vunpack.c.l.b16 %v359
      %v526 = vunpack.c.l.b16 %v360
      %v527 = vunpack.c.l.b16 %v361
      %v528 = vunpack.c.l.b16 %v362
      %v529 = vunpack.c.l.b16 %v363
      %v530 = vunpack.c.l.b16 %v364
      %v531 = vunpack.c.l.b16 %v365
      %v532 = vunpack.c.l.b16 %v366
      %v533 = vunpack.c.l.b16 %v367
      %v534 = vunpack.c.l.b16 %v368
      %v535 = vunpack.c.l.b16 %v369
      %v536 = vunpack.c.l.b16 %v370
      %v537 = vunpack.c.l.b16 %v371
      %v538 = vunpack.c.l.b16 %v372
      %v539 = vunpack.c.l.b16 %v373
      %v540 = vunpack.c.l.b16 %v374
      %v541 = vunpack.c.l.b16 %v375
      %v542 = vunpack.c.l.b16 %v376
      %v543 = vunpack.c.l.b16 %v377
      %v544 = vunpack.c.l.b16 %v378
      %v545 = vunpack.c.l.b16 %v379
      %v546 = vunpack.c.l.b16 %v380
      %v547 = vunpack.c.l.b16 %v381
      %v548 = vunpack.c.l.b16 %v382
      %v549 = vunpack.c.l.b16 %v383
      %v550 = vunpack.c.l.b16 %v384
      %v551 = vunpack.c.l.b16 %v385
      %v552 = vunpack.c.l.b16 %v386
      %v553 = vunpack.c.l.b16 %v387
      %v554 = vunpack.c.l.b16 %v388
      %v555 = vunpack.c.l.b16 %v389
      %v556 = vunpack.c.l.b16 %v390
      %v557 = vunpack.c.l.b16 %v391
      %v558 = vunpack.c.l.b16 %v392
      %v559 = vunpack.c.l.b16 %v393
      %v560 = vunpack.c.l.b16 %v394
      %v561 = vunpack.c.l.b16 %v395
      %v562 = vunpack.c.l.b16 %v396
      %v563 = vunpack.c.l.b16 %v397
      %v564 = vunpack.c.l.b16 %v398
      %v565 = vunpack.c.l.b16 %v399
      %v566 = vunpack.c.l.b16 %v400
      %v567 = vunpack.c.l.b16 %v401
      %v568 = vunpack.c.l.b16 %v402
      %v569 = vunpack.c.l.b16 %v403
      %v570 = vunpack.c.l.b16 %v404
      %v571 = vunpack.c.l.b16 %v405
      %v572 = vunpack.c.l.b16 %v406
      %v573 = vunpack.c.l.b16 %v407
      %v574 = vunpack.c.l.b16 %v408
      %v575 = vunpack.c.l.b16 %v409
      %v576 = vpack.c.b16 %v505, %v504
      %v577 = vpack.c.b16 %v507, %v506
      %v578 = vpack.c.b16 %v509, %v508
      %v579 = vpack.c.b16 %v511, %v510
      %v580 = vpack.c.b16 %v513, %v512
      %v581 = vpack.c.b16 %v515, %v514
      %v582 = vpack.c.b16 %v517, %v516
      %v583 = vpack.c.b16 %v519, %v518
      %v584 = vpack.c.b16 %v521, %v520
      %v585 = vpack.c.b16 %v523, %v522
      %v586 = vpack.c.b16 %v525, %v524
      %v587 = vpack.c.b16 %v527, %v526
      %v588 = vpack.c.b16 %v529, %v528
      %v589 = vpack.c.b16 %v531, %v530
      %v590 = vpack.c.b16 %v533, %v532
      %v591 = vpack.c.b16 %v535, %v534
      %v592 = vpack.c.b16 %v537, %v536
      %v593 = vpack.c.b16 %v539, %v538
      %v594 = vpack.c.b16 %v541, %v540
      %v595 = vpack.c.b16 %v543, %v542
      %v596 = vpack.c.b16 %v545, %v544
      %v597 = vpack.c.b16 %v547, %v546
      %v598 = vpack.c.b16 %v549, %v548
      %v599 = vpack.c.b16 %v551, %v550
      %v600 = vpack.c.b16 %v553, %v552
      %v601 = vpack.c.b16 %v555, %v554
      %v602 = vpack.c.b16 %v557, %v556
      %v603 = vpack.c.b16 %v559, %v558
      %v604 = vpack.c.b16 %v561, %v560
      %v605 = vpack.c.b16 %v563, %v562
      %v606 = vpack.c.b16 %v565, %v564
      %v607 = vpack.c.b16 %v567, %v566
      %v608 = vpack.c.b16 %v569, %v568
      %v609 = vpack.c.b16 %v571, %v570
      %v610 = vpack.c.b16 %v573, %v572
      %v611 = vpack.c.b16 %v575, %v574
      %vm648 = vcmask 523264
      %v650 = vsel %vm648, %v427, 0
      %652 = vmatprep.subr.bf16.mxu0 0
      %653 = vmatpush1.bf16.msra.mxu0 %v576
      %654 = vmatprep.subr.bf16.mxu0 0
      %655 = vmatpush1.bf16.msra.mxu0 %v577
      %656 = vmatprep.subr.bf16.mxu0 0
      %657 = vmatpush1.bf16.msra.mxu0 %v578
      %658 = vmatprep.subr.bf16.mxu0 0
      %659 = vmatpush1.bf16.msra.mxu0 %v579
      %660 = vmatprep.subr.bf16.mxu0 0
      %661 = vmatpush1.bf16.msra.mxu0 %v580
      %662 = vmatprep.subr.bf16.mxu0 0
      %663 = vmatpush1.bf16.msra.mxu0 %v581
      %664 = vmatprep.subr.bf16.mxu0 0
      %665 = vmatpush1.bf16.msra.mxu0 %v582
      %666 = vmatprep.subr.bf16.mxu0 0
      %667 = vmatpush1.bf16.msra.mxu0 %v583
      %668 = vmatprep.subr.bf16.mxu0 0
      %669 = vmatpush1.bf16.msra.mxu0 %v584
      %670 = vmatprep.subr.bf16.mxu0 0
      %671 = vmatpush1.bf16.msra.mxu0 %v585
      %672 = vmatprep.subr.bf16.mxu0 0
      %673 = vmatpush1.bf16.msra.mxu0 %v586
      %674 = vmatprep.subr.bf16.mxu0 0
      %675 = vmatpush1.bf16.msra.mxu0 %v587
      %676 = vmatprep.subr.bf16.mxu0 0
      %677 = vmatpush1.bf16.msra.mxu0 %v588
      %678 = vmatprep.subr.bf16.mxu0 0
      %679 = vmatpush1.bf16.msra.mxu0 %v589
      %680 = vmatprep.subr.bf16.mxu0 0
      %681 = vmatpush1.bf16.msra.mxu0 %v590
      %682 = vmatprep.subr.bf16.mxu0 0
      %683 = vmatpush1.bf16.msra.mxu0 %v591
      %684 = vmatprep.mubr.bf16.mxu0 %v424
      %685 = vmatmul.mubr.bf16.gmra.mrb[0].mxu0 %v423
      %v686 = vpop.f32.mrb[0].mxu0
      %v687 = vadd.f32 0.0, %v686
      %v688 = vpop.f32.mrb[0].mxu0
      %v689 = vpop.f32.mrb[0].mxu0
      %v690 = vpop.f32.mrb[0].mxu0
      %691 = vdwg.mxu0
      %692 = vmatprep.subr.bf16.mxu0 0
      %693 = vmatpush1.bf16.msra.mxu0 %v592
      %694 = vmatprep.subr.bf16.mxu0 0
      %695 = vmatpush1.bf16.msra.mxu0 %v593
      %696 = vmatprep.subr.bf16.mxu0 0
      %697 = vmatpush1.bf16.msra.mxu0 %v594
      %698 = vmatprep.subr.bf16.mxu0 0
      %699 = vmatpush1.bf16.msra.mxu0 %v595
      %700 = vmatprep.subr.bf16.mxu0 0
      %701 = vmatpush1.bf16.msra.mxu0 %v596
      %702 = vmatprep.subr.bf16.mxu0 0
      %703 = vmatpush1.bf16.msra.mxu0 %v597
      %704 = vmatprep.subr.bf16.mxu0 0
      %705 = vmatpush1.bf16.msra.mxu0 %v598
      %706 = vmatprep.subr.bf16.mxu0 0
      %707 = vmatpush1.bf16.msra.mxu0 %v599
      %708 = vmatprep.subr.bf16.mxu0 0
      %709 = vmatpush1.bf16.msra.mxu0 %v600
      %710 = vmatprep.subr.bf16.mxu0 0
      %711 = vmatpush1.bf16.msra.mxu0 %v601
      %712 = vmatprep.subr.bf16.mxu0 0
      %713 = vmatpush1.bf16.msra.mxu0 %v602
      %714 = vmatprep.subr.bf16.mxu0 0
      %715 = vmatpush1.bf16.msra.mxu0 %v603
      %716 = vmatprep.subr.bf16.mxu0 0
      %717 = vmatpush1.bf16.msra.mxu0 %v604
      %718 = vmatprep.subr.bf16.mxu0 0
      %719 = vmatpush1.bf16.msra.mxu0 %v605
      %720 = vmatprep.subr.bf16.mxu0 0
      %721 = vmatpush1.bf16.msra.mxu0 %v606
      %722 = vmatprep.subr.bf16.mxu0 0
      %723 = vmatpush1.bf16.msra.mxu0 %v607
      %724 = vmatprep.mubr.bf16.mxu0 %v426
      %725 = vmatmul.mubr.bf16.gmra.mrb[0].mxu0 %v425
      %v726 = vpop.f32.mrb[0].mxu0
      %v727 = vadd.f32 %v687, %v726
      %v728 = vpop.f32.mrb[0].mxu0
      %v729 = vpop.f32.mrb[0].mxu0
      %v730 = vpop.f32.mrb[0].mxu0
      %731 = vdwg.mxu0
      %732 = vmatprep.subr.bf16.mxu0 0
      %733 = vmatpush1.bf16.msra.mxu0 %v608
      %734 = vmatprep.subr.bf16.mxu0 0
      %735 = vmatpush1.bf16.msra.mxu0 %v609
      %736 = vmatprep.subr.bf16.mxu0 0
      %737 = vmatpush1.bf16.msra.mxu0 %v610
      %738 = vmatprep.subr.bf16.mxu0 0
      %739 = vmatpush1.bf16.msra.mxu0 %v611
      %740 = vmatprep.subr.bf16.mxu0 0
      %741 = vmatpush1.bf16.msra.mxu0 0
      %742 = vmatprep.subr.bf16.mxu0 0
      %743 = vmatpush1.bf16.msra.mxu0 0
      %744 = vmatprep.subr.bf16.mxu0 0
      %745 = vmatpush1.bf16.msra.mxu0 0
      %746 = vmatprep.subr.bf16.mxu0 0
      %747 = vmatpush1.bf16.msra.mxu0 0
      %748 = vmatprep.subr.bf16.mxu0 0
      %749 = vmatpush1.bf16.msra.mxu0 0
      %750 = vmatprep.subr.bf16.mxu0 0
      %751 = vmatpush1.bf16.msra.mxu0 0
      %752 = vmatprep.subr.bf16.mxu0 0
      %753 = vmatpush1.bf16.msra.mxu0 0
      %754 = vmatprep.subr.bf16.mxu0 0
      %755 = vmatpush1.bf16.msra.mxu0 0
      %756 = vmatprep.subr.bf16.mxu0 0
      %757 = vmatpush1.bf16.msra.mxu0 0
      %758 = vmatprep.subr.bf16.mxu0 0
      %759 = vmatpush1.bf16.msra.mxu0 0
      %760 = vmatprep.subr.bf16.mxu0 0
      %761 = vmatpush1.bf16.msra.mxu0 0
      %762 = vmatprep.subr.bf16.mxu0 0
      %763 = vmatpush1.bf16.msra.mxu0 0
      %764 = vmatprep.mubr.bf16.mxu0 0
      %765 = vmatmul.mubr.bf16.gmra.mrb[0].mxu0 %v650
      %v766 = vpop.f32.mrb[0].mxu0
      %v767 = vadd.f32 %v727, %v766
      %v768 = vpop.f32.mrb[0].mxu0
      %v769 = vpop.f32.mrb[0].mxu0
      %v770 = vpop.f32.mrb[0].mxu0
      %771 = vdwg.mxu0
      %v773 = vlaneseq
      %v774 = vshrl.u32 %v773, 7
      %v775 = vsub.s32 0, %v774
      %v776 = vrot.slane %v410, %v775
      %v778 = vmul.f32 %v767, %v776
      %v780 = vlaneseq
      %v781 = vshrl.u32 %v780, 7
      %v782 = vsub.s32 0, %v781
      %v783 = vrot.slane %v411, %v782
      %v785 = vadd.f32 %v778, %v783
      %v786 = vld [vmem:[%s322] sm:$0xff]
      %v787 = vld [vmem:[%s322 + $0x8] sm:$0xff]
      %v788 = vld [vmem:[%s322 + $0x10] sm:$0xf]
      %v792 = vunpack.c.l.b16 %v786
      %v793 = vunpack.c.h.b16 %v786
      %v794 = vunpack.c.l.b16 %v787
      %v795 = vunpack.c.h.b16 %v787
      %v796 = vunpack.c.l.b16 %v788
      %v797 = vpack.c.b16 %v792, %v792
      %v798 = vpack.c.b16 %v793, %v793
      %v799 = vpack.c.b16 %v794, %v794
      %v800 = vpack.c.b16 %v795, %v795
      %v801 = vpack.c.b16 %v796, %v796
      %v807 = vsel %vm648, %v801, 0
      %809 = vmatprep.subr.bf16.mxu0 0
      %810 = vmatpush1.bf16.msra.mxu0 %v576
      %811 = vmatprep.subr.bf16.mxu0 0
      %812 = vmatpush1.bf16.msra.mxu0 %v577
      %813 = vmatprep.subr.bf16.mxu0 0
      %814 = vmatpush1.bf16.msra.mxu0 %v578
      %815 = vmatprep.subr.bf16.mxu0 0
      %816 = vmatpush1.bf16.msra.mxu0 %v579
      %817 = vmatprep.subr.bf16.mxu0 0
      %818 = vmatpush1.bf16.msra.mxu0 %v580
      %819 = vmatprep.subr.bf16.mxu0 0
      %820 = vmatpush1.bf16.msra.mxu0 %v581
      %821 = vmatprep.subr.bf16.mxu0 0
      %822 = vmatpush1.bf16.msra.mxu0 %v582
      %823 = vmatprep.subr.bf16.mxu0 0
      %824 = vmatpush1.bf16.msra.mxu0 %v583
      %825 = vmatprep.subr.bf16.mxu0 0
      %826 = vmatpush1.bf16.msra.mxu0 %v584
      %827 = vmatprep.subr.bf16.mxu0 0
      %828 = vmatpush1.bf16.msra.mxu0 %v585
      %829 = vmatprep.subr.bf16.mxu0 0
      %830 = vmatpush1.bf16.msra.mxu0 %v586
      %831 = vmatprep.subr.bf16.mxu0 0
      %832 = vmatpush1.bf16.msra.mxu0 %v587
      %833 = vmatprep.subr.bf16.mxu0 0
      %834 = vmatpush1.bf16.msra.mxu0 %v588
      %835 = vmatprep.subr.bf16.mxu0 0
      %836 = vmatpush1.bf16.msra.mxu0 %v589
      %837 = vmatprep.subr.bf16.mxu0 0
      %838 = vmatpush1.bf16.msra.mxu0 %v590
      %839 = vmatprep.subr.bf16.mxu0 0
      %840 = vmatpush1.bf16.msra.mxu0 %v591
      %841 = vmatprep.mubr.bf16.mxu0 %v798
      %842 = vmatmul.mubr.bf16.gmra.mrb[0].mxu0 %v797
      %v843 = vpop.f32.mrb[0].mxu0
      %v844 = vadd.f32 0.0, %v843
      %v845 = vpop.f32.mrb[0].mxu0
      %v846 = vpop.f32.mrb[0].mxu0
      %v847 = vpop.f32.mrb[0].mxu0
      %848 = vdwg.mxu0
      %849 = vmatprep.subr.bf16.mxu0 0
      %850 = vmatpush1.bf16.msra.mxu0 %v592
      %851 = vmatprep.subr.bf16.mxu0 0
      %852 = vmatpush1.bf16.msra.mxu0 %v593
      %853 = vmatprep.subr.bf16.mxu0 0
      %854 = vmatpush1.bf16.msra.mxu0 %v594
      %855 = vmatprep.subr.bf16.mxu0 0
      %856 = vmatpush1.bf16.msra.mxu0 %v595
      %857 = vmatprep.subr.bf16.mxu0 0
      %858 = vmatpush1.bf16.msra.mxu0 %v596
      %859 = vmatprep.subr.bf16.mxu0 0
      %860 = vmatpush1.bf16.msra.mxu0 %v597
      %861 = vmatprep.subr.bf16.mxu0 0
      %862 = vmatpush1.bf16.msra.mxu0 %v598
      %863 = vmatprep.subr.bf16.mxu0 0
      %864 = vmatpush1.bf16.msra.mxu0 %v599
      %865 = vmatprep.subr.bf16.mxu0 0
      %866 = vmatpush1.bf16.msra.mxu0 %v600
      %867 = vmatprep.subr.bf16.mxu0 0
      %868 = vmatpush1.bf16.msra.mxu0 %v601
      %869 = vmatprep.subr.bf16.mxu0 0
      %870 = vmatpush1.bf16.msra.mxu0 %v602
      %871 = vmatprep.subr.bf16.mxu0 0
      %872 = vmatpush1.bf16.msra.mxu0 %v603
      %873 = vmatprep.subr.bf16.mxu0 0
      %874 = vmatpush1.bf16.msra.mxu0 %v604
      %875 = vmatprep.subr.bf16.mxu0 0
      %876 = vmatpush1.bf16.msra.mxu0 %v605
      %877 = vmatprep.subr.bf16.mxu0 0
      %878 = vmatpush1.bf16.msra.mxu0 %v606
      %879 = vmatprep.subr.bf16.mxu0 0
      %880 = vmatpush1.bf16.msra.mxu0 %v607
      %881 = vmatprep.mubr.bf16.mxu0 %v800
      %882 = vmatmul.mubr.bf16.gmra.mrb[0].mxu0 %v799
      %v883 = vpop.f32.mrb[0].mxu0
      %v884 = vadd.f32 %v844, %v883
      %v885 = vpop.f32.mrb[0].mxu0
      %v886 = vpop.f32.mrb[0].mxu0
      %v887 = vpop.f32.mrb[0].mxu0
      %888 = vdwg.mxu0
      %889 = vmatprep.subr.bf16.mxu0 0
      %890 = vmatpush1.bf16.msra.mxu0 %v608
      %891 = vmatprep.subr.bf16.mxu0 0
      %892 = vmatpush1.bf16.msra.mxu0 %v609
      %893 = vmatprep.subr.bf16.mxu0 0
      %894 = vmatpush1.bf16.msra.mxu0 %v610
      %895 = vmatprep.subr.bf16.mxu0 0
      %896 = vmatpush1.bf16.msra.mxu0 %v611
      %897 = vmatprep.subr.bf16.mxu0 0
      %898 = vmatpush1.bf16.msra.mxu0 0
      %899 = vmatprep.subr.bf16.mxu0 0
      %900 = vmatpush1.bf16.msra.mxu0 0
      %901 = vmatprep.subr.bf16.mxu0 0
      %902 = vmatpush1.bf16.msra.mxu0 0
      %903 = vmatprep.subr.bf16.mxu0 0
      %904 = vmatpush1.bf16.msra.mxu0 0
      %905 = vmatprep.subr.bf16.mxu0 0
      %906 = vmatpush1.bf16.msra.mxu0 0
      %907 = vmatprep.subr.bf16.mxu0 0
      %908 = vmatpush1.bf16.msra.mxu0 0
      %909 = vmatprep.subr.bf16.mxu0 0
      %910 = vmatpush1.bf16.msra.mxu0 0
      %911 = vmatprep.subr.bf16.mxu0 0
      %912 = vmatpush1.bf16.msra.mxu0 0
      %913 = vmatprep.subr.bf16.mxu0 0
      %914 = vmatpush1.bf16.msra.mxu0 0
      %915 = vmatprep.subr.bf16.mxu0 0
      %916 = vmatpush1.bf16.msra.mxu0 0
      %917 = vmatprep.subr.bf16.mxu0 0
      %918 = vmatpush1.bf16.msra.mxu0 0
      %919 = vmatprep.subr.bf16.mxu0 0
      %920 = vmatpush1.bf16.msra.mxu0 0
      %921 = vmatprep.mubr.bf16.mxu0 0
      %922 = vmatmul.mubr.bf16.gmra.mrb[0].mxu0 %v807
      %v923 = vpop.f32.mrb[0].mxu0
      %v924 = vadd.f32 %v884, %v923
      %v925 = vpop.f32.mrb[0].mxu0
      %v926 = vpop.f32.mrb[0].mxu0
      %v927 = vpop.f32.mrb[0].mxu0
      %928 = vdwg.mxu0
      %v929 = vmul.f32 %v924, %v776
      %v930 = vadd.f32 %v929, %v783
      %v931 = vmax.f32 %v785, %v930
      %v932 = vld [vmem:[%s327] sm:$0xff]
      %v933 = vld [vmem:[%s327 + $0x8] sm:$0xff]
      %v934 = vld [vmem:[%s327 + $0x10] sm:$0xf]
      %v938 = vunpack.c.l.b16 %v932
      %v939 = vunpack.c.h.b16 %v932
      %v940 = vunpack.c.l.b16 %v933
      %v941 = vunpack.c.h.b16 %v933
      %v942 = vunpack.c.l.b16 %v934
      %v943 = vpack.c.b16 %v938, %v938
      %v944 = vpack.c.b16 %v939, %v939
      %v945 = vpack.c.b16 %v940, %v940
      %v946 = vpack.c.b16 %v941, %v941
      %v947 = vpack.c.b16 %v942, %v942
      %v953 = vsel %vm648, %v947, 0
      %955 = vmatprep.subr.bf16.mxu0 0
      %956 = vmatpush1.bf16.msra.mxu0 %v576
      %957 = vmatprep.subr.bf16.mxu0 0
      %958 = vmatpush1.bf16.msra.mxu0 %v577
      %959 = vmatprep.subr.bf16.mxu0 0
      %960 = vmatpush1.bf16.msra.mxu0 %v578
      %961 = vmatprep.subr.bf16.mxu0 0
      %962 = vmatpush1.bf16.msra.mxu0 %v579
      %963 = vmatprep.subr.bf16.mxu0 0
      %964 = vmatpush1.bf16.msra.mxu0 %v580
      %965 = vmatprep.subr.bf16.mxu0 0
      %966 = vmatpush1.bf16.msra.mxu0 %v581
      %967 = vmatprep.subr.bf16.mxu0 0
      %968 = vmatpush1.bf16.msra.mxu0 %v582
      %969 = vmatprep.subr.bf16.mxu0 0
      %970 = vmatpush1.bf16.msra.mxu0 %v583
      %971 = vmatprep.subr.bf16.mxu0 0
      %972 = vmatpush1.bf16.msra.mxu0 %v584
      %973 = vmatprep.subr.bf16.mxu0 0
      %974 = vmatpush1.bf16.msra.mxu0 %v585
      %975 = vmatprep.subr.bf16.mxu0 0
      %976 = vmatpush1.bf16.msra.mxu0 %v586
      %977 = vmatprep.subr.bf16.mxu0 0
      %978 = vmatpush1.bf16.msra.mxu0 %v587
      %979 = vmatprep.subr.bf16.mxu0 0
      %980 = vmatpush1.bf16.msra.mxu0 %v588
      %981 = vmatprep.subr.bf16.mxu0 0
      %982 = vmatpush1.bf16.msra.mxu0 %v589
      %983 = vmatprep.subr.bf16.mxu0 0
      %984 = vmatpush1.bf16.msra.mxu0 %v590
      %985 = vmatprep.subr.bf16.mxu0 0
      %986 = vmatpush1.bf16.msra.mxu0 %v591
      %987 = vmatprep.mubr.bf16.mxu0 %v944
      %988 = vmatmul.mubr.bf16.gmra.mrb[0].mxu0 %v943
      %v989 = vpop.f32.mrb[0].mxu0
      %v990 = vadd.f32 0.0, %v989
      %v991 = vpop.f32.mrb[0].mxu0
      %v992 = vpop.f32.mrb[0].mxu0
      %v993 = vpop.f32.mrb[0].mxu0
      %994 = vdwg.mxu0
      %995 = vmatprep.subr.bf16.mxu0 0
      %996 = vmatpush1.bf16.msra.mxu0 %v592
      %997 = vmatprep.subr.bf16.mxu0 0
      %998 = vmatpush1.bf16.msra.mxu0 %v593
      %999 = vmatprep.subr.bf16.mxu0 0
      %1000 = vmatpush1.bf16.msra.mxu0 %v594
      %1001 = vmatprep.subr.bf16.mxu0 0
      %1002 = vmatpush1.bf16.msra.mxu0 %v595
      %1003 = vmatprep.subr.bf16.mxu0 0
      %1004 = vmatpush1.bf16.msra.mxu0 %v596
      %1005 = vmatprep.subr.bf16.mxu0 0
      %1006 = vmatpush1.bf16.msra.mxu0 %v597
      %1007 = vmatprep.subr.bf16.mxu0 0
      %1008 = vmatpush1.bf16.msra.mxu0 %v598
      %1009 = vmatprep.subr.bf16.mxu0 0
      %1010 = vmatpush1.bf16.msra.mxu0 %v599
      %1011 = vmatprep.subr.bf16.mxu0 0
      %1012 = vmatpush1.bf16.msra.mxu0 %v600
      %1013 = vmatprep.subr.bf16.mxu0 0
      %1014 = vmatpush1.bf16.msra.mxu0 %v601
      %1015 = vmatprep.subr.bf16.mxu0 0
      %1016 = vmatpush1.bf16.msra.mxu0 %v602
      %1017 = vmatprep.subr.bf16.mxu0 0
      %1018 = vmatpush1.bf16.msra.mxu0 %v603
      %1019 = vmatprep.subr.bf16.mxu0 0
      %1020 = vmatpush1.bf16.msra.mxu0 %v604
      %1021 = vmatprep.subr.bf16.mxu0 0
      %1022 = vmatpush1.bf16.msra.mxu0 %v605
      %1023 = vmatprep.subr.bf16.mxu0 0
      %1024 = vmatpush1.bf16.msra.mxu0 %v606
      %1025 = vmatprep.subr.bf16.mxu0 0
      %1026 = vmatpush1.bf16.msra.mxu0 %v607
      %1027 = vmatprep.mubr.bf16.mxu0 %v946
      %1028 = vmatmul.mubr.bf16.gmra.mrb[0].mxu0 %v945
      %v1029 = vpop.f32.mrb[0].mxu0
      %v1030 = vadd.f32 %v990, %v1029
      %v1031 = vpop.f32.mrb[0].mxu0
      %v1032 = vpop.f32.mrb[0].mxu0
      %v1033 = vpop.f32.mrb[0].mxu0
      %1034 = vdwg.mxu0
      %1035 = vmatprep.subr.bf16.mxu0 0
      %1036 = vmatpush1.bf16.msra.mxu0 %v608
      %1037 = vmatprep.subr.bf16.mxu0 0
      %1038 = vmatpush1.bf16.msra.mxu0 %v609
      %1039 = vmatprep.subr.bf16.mxu0 0
      %1040 = vmatpush1.bf16.msra.mxu0 %v610
      %1041 = vmatprep.subr.bf16.mxu0 0
      %1042 = vmatpush1.bf16.msra.mxu0 %v611
      %1043 = vmatprep.subr.bf16.mxu0 0
      %1044 = vmatpush1.bf16.msra.mxu0 0
      %1045 = vmatprep.subr.bf16.mxu0 0
      %1046 = vmatpush1.bf16.msra.mxu0 0
      %1047 = vmatprep.subr.bf16.mxu0 0
      %1048 = vmatpush1.bf16.msra.mxu0 0
      %1049 = vmatprep.subr.bf16.mxu0 0
      %1050 = vmatpush1.bf16.msra.mxu0 0
      %1051 = vmatprep.subr.bf16.mxu0 0
      %1052 = vmatpush1.bf16.msra.mxu0 0
      %1053 = vmatprep.subr.bf16.mxu0 0
      %1054 = vmatpush1.bf16.msra.mxu0 0
      %1055 = vmatprep.subr.bf16.mxu0 0
      %1056 = vmatpush1.bf16.msra.mxu0 0
      %1057 = vmatprep.subr.bf16.mxu0 0
      %1058 = vmatpush1.bf16.msra.mxu0 0
      %1059 = vmatprep.subr.bf16.mxu0 0
      %1060 = vmatpush1.bf16.msra.mxu0 0
      %1061 = vmatprep.subr.bf16.mxu0 0
      %1062 = vmatpush1.bf16.msra.mxu0 0
      %1063 = vmatprep.subr.bf16.mxu0 0
      %1064 = vmatpush1.bf16.msra.mxu0 0
      %1065 = vmatprep.subr.bf16.mxu0 0
      %1066 = vmatpush1.bf16.msra.mxu0 0
      %1067 = vmatprep.mubr.bf16.mxu0 0
      %1068 = vmatmul.mubr.bf16.gmra.mrb[0].mxu0 %v953
      %v1069 = vpop.f32.mrb[0].mxu0
      %v1070 = vadd.f32 %v1030, %v1069
      %v1071 = vpop.f32.mrb[0].mxu0
      %v1072 = vpop.f32.mrb[0].mxu0
      %v1073 = vpop.f32.mrb[0].mxu0
      %1074 = vdwg.mxu0
      %v1075 = vmul.f32 %v1070, %v776
      %v1076 = vadd.f32 %v1075, %v783
      %v1077 = vld [vmem:[%s332] sm:$0xff]
      %v1078 = vld [vmem:[%s332 + $0x8] sm:$0xff]
      %v1079 = vld [vmem:[%s332 + $0x10] sm:$0xf]
      %v1083 = vunpack.c.l.b16 %v1077
      %v1084 = vunpack.c.h.b16 %v1077
      %v1085 = vunpack.c.l.b16 %v1078
      %v1086 = vunpack.c.h.b16 %v1078
      %v1087 = vunpack.c.l.b16 %v1079
      %v1088 = vpack.c.b16 %v1083, %v1083
      %v1089 = vpack.c.b16 %v1084, %v1084
      %v1090 = vpack.c.b16 %v1085, %v1085
      %v1091 = vpack.c.b16 %v1086, %v1086
      %v1092 = vpack.c.b16 %v1087, %v1087
      %v1098 = vsel %vm648, %v1092, 0
      %1100 = vmatprep.subr.bf16.mxu0 0
      %1101 = vmatpush1.bf16.msra.mxu0 %v576
      %1102 = vmatprep.subr.bf16.mxu0 0
      %1103 = vmatpush1.bf16.msra.mxu0 %v577
      %1104 = vmatprep.subr.bf16.mxu0 0
      %1105 = vmatpush1.bf16.msra.mxu0 %v578
      %1106 = vmatprep.subr.bf16.mxu0 0
      %1107 = vmatpush1.bf16.msra.mxu0 %v579
      %1108 = vmatprep.subr.bf16.mxu0 0
      %1109 = vmatpush1.bf16.msra.mxu0 %v580
      %1110 = vmatprep.subr.bf16.mxu0 0
      %1111 = vmatpush1.bf16.msra.mxu0 %v581
      %1112 = vmatprep.subr.bf16.mxu0 0
      %1113 = vmatpush1.bf16.msra.mxu0 %v582
      %1114 = vmatprep.subr.bf16.mxu0 0
      %1115 = vmatpush1.bf16.msra.mxu0 %v583
      %1116 = vmatprep.subr.bf16.mxu0 0
      %1117 = vmatpush1.bf16.msra.mxu0 %v584
      %1118 = vmatprep.subr.bf16.mxu0 0
      %1119 = vmatpush1.bf16.msra.mxu0 %v585
      %1120 = vmatprep.subr.bf16.mxu0 0
      %1121 = vmatpush1.bf16.msra.mxu0 %v586
      %1122 = vmatprep.subr.bf16.mxu0 0
      %1123 = vmatpush1.bf16.msra.mxu0 %v587
      %1124 = vmatprep.subr.bf16.mxu0 0
      %1125 = vmatpush1.bf16.msra.mxu0 %v588
      %1126 = vmatprep.subr.bf16.mxu0 0
      %1127 = vmatpush1.bf16.msra.mxu0 %v589
      %1128 = vmatprep.subr.bf16.mxu0 0
      %1129 = vmatpush1.bf16.msra.mxu0 %v590
      %1130 = vmatprep.subr.bf16.mxu0 0
      %1131 = vmatpush1.bf16.msra.mxu0 %v591
      %1132 = vmatprep.mubr.bf16.mxu0 %v1089
      %1133 = vmatmul.mubr.bf16.gmra.mrb[0].mxu0 %v1088
      %v1134 = vpop.f32.mrb[0].mxu0
      %v1135 = vadd.f32 0.0, %v1134
      %v1136 = vpop.f32.mrb[0].mxu0
      %v1137 = vpop.f32.mrb[0].mxu0
      %v1138 = vpop.f32.mrb[0].mxu0
      %1139 = vdwg.mxu0
      %1140 = vmatprep.subr.bf16.mxu0 0
      %1141 = vmatpush1.bf16.msra.mxu0 %v592
      %1142 = vmatprep.subr.bf16.mxu0 0
      %1143 = vmatpush1.bf16.msra.mxu0 %v593
      %1144 = vmatprep.subr.bf16.mxu0 0
      %1145 = vmatpush1.bf16.msra.mxu0 %v594
      %1146 = vmatprep.subr.bf16.mxu0 0
      %1147 = vmatpush1.bf16.msra.mxu0 %v595
      %1148 = vmatprep.subr.bf16.mxu0 0
      %1149 = vmatpush1.bf16.msra.mxu0 %v596
      %1150 = vmatprep.subr.bf16.mxu0 0
      %1151 = vmatpush1.bf16.msra.mxu0 %v597
      %1152 = vmatprep.subr.bf16.mxu0 0
      %1153 = vmatpush1.bf16.msra.mxu0 %v598
      %1154 = vmatprep.subr.bf16.mxu0 0
      %1155 = vmatpush1.bf16.msra.mxu0 %v599
      %1156 = vmatprep.subr.bf16.mxu0 0
      %1157 = vmatpush1.bf16.msra.mxu0 %v600
      %1158 = vmatprep.subr.bf16.mxu0 0
      %1159 = vmatpush1.bf16.msra.mxu0 %v601
      %1160 = vmatprep.subr.bf16.mxu0 0
      %1161 = vmatpush1.bf16.msra.mxu0 %v602
      %1162 = vmatprep.subr.bf16.mxu0 0
      %1163 = vmatpush1.bf16.msra.mxu0 %v603
      %1164 = vmatprep.subr.bf16.mxu0 0
      %1165 = vmatpush1.bf16.msra.mxu0 %v604
      %1166 = vmatprep.subr.bf16.mxu0 0
      %1167 = vmatpush1.bf16.msra.mxu0 %v605
      %1168 = vmatprep.subr.bf16.mxu0 0
      %1169 = vmatpush1.bf16.msra.mxu0 %v606
      %1170 = vmatprep.subr.bf16.mxu0 0
      %1171 = vmatpush1.bf16.msra.mxu0 %v607
      %1172 = vmatprep.mubr.bf16.mxu0 %v1091
      %1173 = vmatmul.mubr.bf16.gmra.mrb[0].mxu0 %v1090
      %v1174 = vpop.f32.mrb[0].mxu0
      %v1175 = vadd.f32 %v1135, %v1174
      %v1176 = vpop.f32.mrb[0].mxu0
      %v1177 = vpop.f32.mrb[0].mxu0
      %v1178 = vpop.f32.mrb[0].mxu0
      %1179 = vdwg.mxu0
      %1180 = vmatprep.subr.bf16.mxu0 0
      %1181 = vmatpush1.bf16.msra.mxu0 %v608
      %1182 = vmatprep.subr.bf16.mxu0 0
      %1183 = vmatpush1.bf16.msra.mxu0 %v609
      %1184 = vmatprep.subr.bf16.mxu0 0
      %1185 = vmatpush1.bf16.msra.mxu0 %v610
      %1186 = vmatprep.subr.bf16.mxu0 0
      %1187 = vmatpush1.bf16.msra.mxu0 %v611
      %1188 = vmatprep.subr.bf16.mxu0 0
      %1189 = vmatpush1.bf16.msra.mxu0 0
      %1190 = vmatprep.subr.bf16.mxu0 0
      %1191 = vmatpush1.bf16.msra.mxu0 0
      %1192 = vmatprep.subr.bf16.mxu0 0
      %1193 = vmatpush1.bf16.msra.mxu0 0
      %1194 = vmatprep.subr.bf16.mxu0 0
      %1195 = vmatpush1.bf16.msra.mxu0 0
      %1196 = vmatprep.subr.bf16.mxu0 0
      %1197 = vmatpush1.bf16.msra.mxu0 0
      %1198 = vmatprep.subr.bf16.mxu0 0
      %1199 = vmatpush1.bf16.msra.mxu0 0
      %1200 = vmatprep.subr.bf16.mxu0 0
      %1201 = vmatpush1.bf16.msra.mxu0 0
      %1202 = vmatprep.subr.bf16.mxu0 0
      %1203 = vmatpush1.bf16.msra.mxu0 0
      %1204 = vmatprep.subr.bf16.mxu0 0
      %1205 = vmatpush1.bf16.msra.mxu0 0
      %1206 = vmatprep.subr.bf16.mxu0 0
      %1207 = vmatpush1.bf16.msra.mxu0 0
      %1208 = vmatprep.subr.bf16.mxu0 0
      %1209 = vmatpush1.bf16.msra.mxu0 0
      %1210 = vmatprep.subr.bf16.mxu0 0
      %1211 = vmatpush1.bf16.msra.mxu0 0
      %1212 = vmatprep.mubr.bf16.mxu0 0
      %1213 = vmatmul.mubr.bf16.gmra.mrb[0].mxu0 %v1098
      %v1214 = vpop.f32.mrb[0].mxu0
      %v1215 = vadd.f32 %v1175, %v1214
      %v1216 = vpop.f32.mrb[0].mxu0
      %v1217 = vpop.f32.mrb[0].mxu0
      %v1218 = vpop.f32.mrb[0].mxu0
      %1219 = vdwg.mxu0
      %v1220 = vmul.f32 %v1215, %v776
      %v1221 = vadd.f32 %v1220, %v783
      %v1222 = vmax.f32 %v1076, %v1221
      %v1223 = vmax.f32 %v931, %v1222
      %v1224 = vmax.f32 %v1223, 0.0
      %v1225 = vpack.c.bf16 %v1224, %v1224
      %1226 = vst [vmem:[%s336] sm:$0xf] %v1225
      %p1227 = scmp.lt.s32.totalorder %s18, 1
      %s1228 = scalar_select %p1227, %s18, 1
      %s1229 = smul.addr %s1228, 4
      %s1230 = scalar_lea.vmem %s7, %s1229
      // Predicated region
      $region49: #{_lambda_.6} parent=47 // pred_check
        %p1231 = pneg %p203
      $region50: #{_lambda_.6} parent=47 // pred_check_branch
        %1233 = sbr.rel (%p1231) target = $region52
      $region51: #{_lambda_.6} parent=47 // pred_region
        _
      $region52: #{_lambda_.6} parent=47 // pred_fallthru
        _
    $region48: #{_lambda_.6} parent=5 // pred_fallthru
      _
    %p1234 = scmp.le.s32.totalorder 2, %s13
    // Predicated region
    $region53: #{_lambda_.6} parent=5 // pred_check
      %p1235 = pneg %p1234
    $region54: #{_lambda_.6} parent=5 // pred_check_branch
      %1237 = sbr.rel (%p1235) target = $region56
    $region55: #{_lambda_.6} parent=5 // pred_region
      %s1238 = ssub.s32 %s13, 2
      // Predicated region
      $region57: #{_lambda_.6} parent=55 // pred_check
        %p1239 = pneg %p209
      $region58: #{_lambda_.6} parent=55 // pred_check_branch
        %1241 = sbr.rel (%p1239) target = $region60
      $region59: #{_lambda_.6} parent=55 // pred_region
        %p1242 = scmp.lt.s32.totalorder %s19, 1
        %s1243 = scalar_select %p1242, %s19, 1
        %s1244 = smul.addr %s1243, 4
        %s1245 = scalar_lea.vmem %s7, %s1244
      $region60: #{_lambda_.6} parent=55 // pred_fallthru
        _
    $region56: #{_lambda_.6} parent=5 // pred_fallthru
      _
  $region6: #{_lambda_.6} parent=0 // loop_footer
    %s17 = sadd.s32 1, %s13
  $region7: #{_lambda_.6} parent=0 // loop_footer_branch
    %12 = sbr.rel target = $region3
  $region8: #{_lambda_.6} parent=0 // loop_exit
    _

// kernel: _lambda_.7
$region0: #{_lambda_.7}
  #allocation0 [shape = 'u32[]', space=smem, size = 0x4, offset = 0x4, fixed_abs, tag = 'smem constant byte address 0x4 - core index']
  #allocation1 [shape = 'u32[144,128]{1,0:T(1,128)}', space=vmem, size = 0x12000, scoped, tag = 'internal scratch']
  %s0 = inlined_call_operand.vmem [shape: f32[8,576], index: 0, kind: input, shape index: {}]
  %s1 = inlined_call_operand.vmem [shape: f32[576,128], index: 1, kind: input, shape index: {}]
  %s2 = inlined_call_operand.vmem [shape: f32[1,128], index: 2, kind: input, shape index: {}]
  %s3 = inlined_call_operand.vmem [shape: f32[128,128], index: 3, kind: input, shape index: {}]
  %s4 = inlined_call_operand.vmem [shape: f32[1,128], index: 4, kind: input, shape index: {}]
  %s5 = inlined_call_operand.vmem [shape: f32[8,128], index: 5, kind: output, shape index: {}]
  %s6 = sld [smem:[#allocation0]]
  $region30: #{_lambda_.7} parent=0
    _
  %s8 = ssub.s32 1, %s6
  %s9 = scalar_select 0, %s8, %s6
  // Predicated region
  $region2: #{_lambda_.7} parent=0 // pred_check
    _
  $region3: #{_lambda_.7} parent=0 // pred_check_branch
    %11 = sbr.rel (0) target = $region5
  $region4: #{_lambda_.7} parent=0 // pred_region
    _
  $region5: #{_lambda_.7} parent=0 // pred_fallthru
    _
  // Predicated region
  $region6: #{_lambda_.7} parent=0 // pred_check
    _
  $region7: #{_lambda_.7} parent=0 // pred_check_branch
    %13 = sbr.rel (0) target = $region9
  $region8: #{_lambda_.7} parent=0 // pred_region
    _
  $region9: #{_lambda_.7} parent=0 // pred_fallthru
    _
  // Predicated region
  $region10: #{_lambda_.7} parent=0 // pred_check
    _
  $region11: #{_lambda_.7} parent=0 // pred_check_branch
    %15 = sbr.rel (0) target = $region13
  $region12: #{_lambda_.7} parent=0 // pred_region
    _
  $region13: #{_lambda_.7} parent=0 // pred_fallthru
    _
  // Predicated region
  $region14: #{_lambda_.7} parent=0 // pred_check
    _
  $region15: #{_lambda_.7} parent=0 // pred_check_branch
    %17 = sbr.rel (0) target = $region17
  $region16: #{_lambda_.7} parent=0 // pred_region
    _
  $region17: #{_lambda_.7} parent=0 // pred_fallthru
    _
  // Predicated region
  $region18: #{_lambda_.7} parent=0 // pred_check
    _
  $region19: #{_lambda_.7} parent=0 // pred_check_branch
    %19 = sbr.rel (0) target = $region21
  $region20: #{_lambda_.7} parent=0 // pred_region
    _
  $region21: #{_lambda_.7} parent=0 // pred_fallthru
    _
  %v20 = vld [vmem:[%s0] sm:$0xff]
  %v21 = vld [vmem:[%s0 + $0x8] sm:$0xff]
  %v22 = vld [vmem:[%s0 + $0x10] sm:$0xff]
  %v23 = vld [vmem:[%s0 + $0x18] sm:$0xff]
  %v24 = vld [vmem:[%s0 + $0x20] sm:$0xff]
  %v25 = vld [vmem:[%s1] sm:$0xff]
  %v26 = vld [vmem:[%s1 + $0x8] sm:$0xff]
  %v27 = vld [vmem:[%s1 + $0x10] sm:$0xff]
  %v28 = vld [vmem:[%s1 + $0x18] sm:$0xff]
  %v29 = vld [vmem:[%s1 + $0x20] sm:$0xff]
  %v30 = vld [vmem:[%s1 + $0x28] sm:$0xff]
  %v31 = vld [vmem:[%s1 + $0x30] sm:$0xff]
  %v32 = vld [vmem:[%s1 + $0x38] sm:$0xff]
  %v33 = vld [vmem:[%s1 + $0x40] sm:$0xff]
  %v34 = vld [vmem:[%s1 + $0x48] sm:$0xff]
  %v35 = vld [vmem:[%s1 + $0x50] sm:$0xff]
  %v36 = vld [vmem:[%s1 + $0x58] sm:$0xff]
  %v37 = vld [vmem:[%s1 + $0x60] sm:$0xff]
  %v38 = vld [vmem:[%s1 + $0x68] sm:$0xff]
  %v39 = vld [vmem:[%s1 + $0x70] sm:$0xff]
  %v40 = vld [vmem:[%s1 + $0x78] sm:$0xff]
  %v41 = vld [vmem:[%s1 + $0x80] sm:$0xff]
  %v42 = vld [vmem:[%s1 + $0x88] sm:$0xff]
  %v43 = vld [vmem:[%s1 + $0x90] sm:$0xff]
  %v44 = vld [vmem:[%s1 + $0x98] sm:$0xff]
  %v45 = vld [vmem:[%s1 + $0xa0] sm:$0xff]
  %v46 = vld [vmem:[%s1 + $0xa8] sm:$0xff]
  %v47 = vld [vmem:[%s1 + $0xb0] sm:$0xff]
  %v48 = vld [vmem:[%s1 + $0xb8] sm:$0xff]
  %v49 = vld [vmem:[%s1 + $0xc0] sm:$0xff]
  %v50 = vld [vmem:[%s1 + $0xc8] sm:$0xff]
  %v51 = vld [vmem:[%s1 + $0xd0] sm:$0xff]
  %v52 = vld [vmem:[%s1 + $0xd8] sm:$0xff]
  %v53 = vld [vmem:[%s1 + $0xe0] sm:$0xff]
  %v54 = vld [vmem:[%s1 + $0xe8] sm:$0xff]
  %v55 = vld [vmem:[%s1 + $0xf0] sm:$0xff]
  %v56 = vld [vmem:[%s1 + $0xf8] sm:$0xff]
  %v57 = vld [vmem:[%s1 + $0x100] sm:$0xff]
  %v58 = vld [vmem:[%s1 + $0x108] sm:$0xff]
  %v59 = vld [vmem:[%s1 + $0x110] sm:$0xff]
  %v60 = vld [vmem:[%s1 + $0x118] sm:$0xff]
  %v61 = vld [vmem:[%s1 + $0x120] sm:$0xff]
  %v62 = vld [vmem:[%s1 + $0x128] sm:$0xff]
  %v63 = vld [vmem:[%s1 + $0x130] sm:$0xff]
  %v64 = vld [vmem:[%s1 + $0x138] sm:$0xff]
  %v65 = vld [vmem:[%s1 + $0x140] sm:$0xff]
  %v66 = vld [vmem:[%s1 + $0x148] sm:$0xff]
  %v67 = vld [vmem:[%s1 + $0x150] sm:$0xff]
  %v68 = vld [vmem:[%s1 + $0x158] sm:$0xff]
  %v69 = vld [vmem:[%s1 + $0x160] sm:$0xff]
  %v70 = vld [vmem:[%s1 + $0x168] sm:$0xff]
  %v71 = vld [vmem:[%s1 + $0x170] sm:$0xff]
  %v72 = vld [vmem:[%s1 + $0x178] sm:$0xff]
  %v73 = vld [vmem:[%s1 + $0x180] sm:$0xff]
  %v74 = vld [vmem:[%s1 + $0x188] sm:$0xff]
  %v75 = vld [vmem:[%s1 + $0x190] sm:$0xff]
  %v76 = vld [vmem:[%s1 + $0x198] sm:$0xff]
  %v77 = vld [vmem:[%s1 + $0x1a0] sm:$0xff]
  %v78 = vld [vmem:[%s1 + $0x1a8] sm:$0xff]
  %v79 = vld [vmem:[%s1 + $0x1b0] sm:$0xff]
  %v80 = vld [vmem:[%s1 + $0x1b8] sm:$0xff]
  %v81 = vld [vmem:[%s1 + $0x1c0] sm:$0xff]
  %v82 = vld [vmem:[%s1 + $0x1c8] sm:$0xff]
  %v83 = vld [vmem:[%s1 + $0x1d0] sm:$0xff]
  %v84 = vld [vmem:[%s1 + $0x1d8] sm:$0xff]
  %v85 = vld [vmem:[%s1 + $0x1e0] sm:$0xff]
  %v86 = vld [vmem:[%s1 + $0x1e8] sm:$0xff]
  %v87 = vld [vmem:[%s1 + $0x1f0] sm:$0xff]
  %v88 = vld [vmem:[%s1 + $0x1f8] sm:$0xff]
  %v89 = vld [vmem:[%s1 + $0x200] sm:$0xff]
  %v90 = vld [vmem:[%s1 + $0x208] sm:$0xff]
  %v91 = vld [vmem:[%s1 + $0x210] sm:$0xff]
  %v92 = vld [vmem:[%s1 + $0x218] sm:$0xff]
  %v93 = vld [vmem:[%s1 + $0x220] sm:$0xff]
  %v94 = vld [vmem:[%s1 + $0x228] sm:$0xff]
  %v95 = vld [vmem:[%s1 + $0x230] sm:$0xff]
  %v96 = vld [vmem:[%s1 + $0x238] sm:$0xff]
  %v97 = vld [vmem:[%s2] sm:$0x1]
  %v99 = vlaneseq
  %v100 = vshrl.u32 %v99, 7
  %v101 = vsub.s32 0, %v100
  %v102 = vrot.slane %v97, %v101
  %vm104 = vcmask 523264
  %v106 = vsel %vm104, %v24, 0
  %108 = vmatprep.subr.mxu0 0.0
  %109 = vmatpush1.msra.mxu0 %v25
  %110 = vmatprep.subr.mxu0 0.0
  %111 = vmatpush1.msra.mxu0 %v26
  %112 = vmatprep.subr.mxu0 0.0
  %113 = vmatpush1.msra.mxu0 %v27
  %114 = vmatprep.subr.mxu0 0.0
  %115 = vmatpush1.msra.mxu0 %v28
  %116 = vmatprep.subr.mxu0 0.0
  %117 = vmatpush1.msra.mxu0 %v29
  %118 = vmatprep.subr.mxu0 0.0
  %119 = vmatpush1.msra.mxu0 %v30
  %120 = vmatprep.subr.mxu0 0.0
  %121 = vmatpush1.msra.mxu0 %v31
  %122 = vmatprep.subr.mxu0 0.0
  %123 = vmatpush1.msra.mxu0 %v32
  %124 = vmatprep.subr.mxu0 0.0
  %125 = vmatpush1.msra.mxu0 %v33
  %126 = vmatprep.subr.mxu0 0.0
  %127 = vmatpush1.msra.mxu0 %v34
  %128 = vmatprep.subr.mxu0 0.0
  %129 = vmatpush1.msra.mxu0 %v35
  %130 = vmatprep.subr.mxu0 0.0
  %131 = vmatpush1.msra.mxu0 %v36
  %132 = vmatprep.subr.mxu0 0.0
  %133 = vmatpush1.msra.mxu0 %v37
  %134 = vmatprep.subr.mxu0 0.0
  %135 = vmatpush1.msra.mxu0 %v38
  %136 = vmatprep.subr.mxu0 0.0
  %137 = vmatpush1.msra.mxu0 %v39
  %138 = vmatprep.subr.mxu0 0.0
  %139 = vmatpush1.msra.mxu0 %v40
  %140 = vmatprep.subr.mxu0 0.0
  %141 = vmatpush1.msra.mxu0 %v41
  %142 = vmatprep.subr.mxu0 0.0
  %143 = vmatpush1.msra.mxu0 %v42
  %144 = vmatprep.subr.mxu0 0.0
  %145 = vmatpush1.msra.mxu0 %v43
  %146 = vmatprep.subr.mxu0 0.0
  %147 = vmatpush1.msra.mxu0 %v44
  %148 = vmatprep.subr.mxu0 0.0
  %149 = vmatpush1.msra.mxu0 %v45
  %150 = vmatprep.subr.mxu0 0.0
  %151 = vmatpush1.msra.mxu0 %v46
  %152 = vmatprep.subr.mxu0 0.0
  %153 = vmatpush1.msra.mxu0 %v47
  %154 = vmatprep.subr.mxu0 0.0
  %155 = vmatpush1.msra.mxu0 %v48
  %156 = vmatprep.subr.mxu0 0.0
  %157 = vmatpush1.msra.mxu0 %v49
  %158 = vmatprep.subr.mxu0 0.0
  %159 = vmatpush1.msra.mxu0 %v50
  %160 = vmatprep.subr.mxu0 0.0
  %161 = vmatpush1.msra.mxu0 %v51
  %162 = vmatprep.subr.mxu0 0.0
  %163 = vmatpush1.msra.mxu0 %v52
  %164 = vmatprep.subr.mxu0 0.0
  %165 = vmatpush1.msra.mxu0 %v53
  %166 = vmatprep.subr.mxu0 0.0
  %167 = vmatpush1.msra.mxu0 %v54
  %168 = vmatprep.subr.mxu0 0.0
  %169 = vmatpush1.msra.mxu0 %v55
  %170 = vmatprep.subr.mxu0 0.0
  %171 = vmatpush1.msra.mxu0 %v56
  %172 = vmatprep.mubr.f32.mxu0 %v21
  %173 = vmatmul.mubr.f32.gmra.mrb[0].mxu0 %v20
  %v174 = vpop.f32.mrb[0].mxu0
  %v175 = vadd.f32 %v102, %v174
  %v176 = vpop.f32.mrb[0].mxu0
  %177 = vdwg.mxu0
  %178 = vmatprep.subr.mxu0 0.0
  %179 = vmatpush1.msra.mxu0 %v57
  %180 = vmatprep.subr.mxu0 0.0
  %181 = vmatpush1.msra.mxu0 %v58
  %182 = vmatprep.subr.mxu0 0.0
  %183 = vmatpush1.msra.mxu0 %v59
  %184 = vmatprep.subr.mxu0 0.0
  %185 = vmatpush1.msra.mxu0 %v60
  %186 = vmatprep.subr.mxu0 0.0
  %187 = vmatpush1.msra.mxu0 %v61
  %188 = vmatprep.subr.mxu0 0.0
  %189 = vmatpush1.msra.mxu0 %v62
  %190 = vmatprep.subr.mxu0 0.0
  %191 = vmatpush1.msra.mxu0 %v63
  %192 = vmatprep.subr.mxu0 0.0
  %193 = vmatpush1.msra.mxu0 %v64
  %194 = vmatprep.subr.mxu0 0.0
  %195 = vmatpush1.msra.mxu0 %v65
  %196 = vmatprep.subr.mxu0 0.0
  %197 = vmatpush1.msra.mxu0 %v66
  %198 = vmatprep.subr.mxu0 0.0
  %199 = vmatpush1.msra.mxu0 %v67
  %200 = vmatprep.subr.mxu0 0.0
  %201 = vmatpush1.msra.mxu0 %v68
  %202 = vmatprep.subr.mxu0 0.0
  %203 = vmatpush1.msra.mxu0 %v69
  %204 = vmatprep.subr.mxu0 0.0
  %205 = vmatpush1.msra.mxu0 %v70
  %206 = vmatprep.subr.mxu0 0.0
  %207 = vmatpush1.msra.mxu0 %v71
  %208 = vmatprep.subr.mxu0 0.0
  %209 = vmatpush1.msra.mxu0 %v72
  %210 = vmatprep.subr.mxu0 0.0
  %211 = vmatpush1.msra.mxu0 %v73
  %212 = vmatprep.subr.mxu0 0.0
  %213 = vmatpush1.msra.mxu0 %v74
  %214 = vmatprep.subr.mxu0 0.0
  %215 = vmatpush1.msra.mxu0 %v75
  %216 = vmatprep.subr.mxu0 0.0
  %217 = vmatpush1.msra.mxu0 %v76
  %218 = vmatprep.subr.mxu0 0.0
  %219 = vmatpush1.msra.mxu0 %v77
  %220 = vmatprep.subr.mxu0 0.0
  %221 = vmatpush1.msra.mxu0 %v78
  %222 = vmatprep.subr.mxu0 0.0
  %223 = vmatpush1.msra.mxu0 %v79
  %224 = vmatprep.subr.mxu0 0.0
  %225 = vmatpush1.msra.mxu0 %v80
  %226 = vmatprep.subr.mxu0 0.0
  %227 = vmatpush1.msra.mxu0 %v81
  %228 = vmatprep.subr.mxu0 0.0
  %229 = vmatpush1.msra.mxu0 %v82
  %230 = vmatprep.subr.mxu0 0.0
  %231 = vmatpush1.msra.mxu0 %v83
  %232 = vmatprep.subr.mxu0 0.0
  %233 = vmatpush1.msra.mxu0 %v84
  %234 = vmatprep.subr.mxu0 0.0
  %235 = vmatpush1.msra.mxu0 %v85
  %236 = vmatprep.subr.mxu0 0.0
  %237 = vmatpush1.msra.mxu0 %v86
  %238 = vmatprep.subr.mxu0 0.0
  %239 = vmatpush1.msra.mxu0 %v87
  %240 = vmatprep.subr.mxu0 0.0
  %241 = vmatpush1.msra.mxu0 %v88
  %242 = vmatprep.mubr.f32.mxu0 %v23
  %243 = vmatmul.mubr.f32.gmra.mrb[0].mxu0 %v22
  %v244 = vpop.f32.mrb[0].mxu0
  %v245 = vadd.f32 %v175, %v244
  %v246 = vpop.f32.mrb[0].mxu0
  %247 = vdwg.mxu0
  %248 = vmatprep.subr.mxu0 0.0
  %249 = vmatpush1.msra.mxu0 %v89
  %250 = vmatprep.subr.mxu0 0.0
  %251 = vmatpush1.msra.mxu0 %v90
  %252 = vmatprep.subr.mxu0 0.0
  %253 = vmatpush1.msra.mxu0 %v91
  %254 = vmatprep.subr.mxu0 0.0
  %255 = vmatpush1.msra.mxu0 %v92
  %256 = vmatprep.subr.mxu0 0.0
  %257 = vmatpush1.msra.mxu0 %v93
  %258 = vmatprep.subr.mxu0 0.0
  %259 = vmatpush1.msra.mxu0 %v94
  %260 = vmatprep.subr.mxu0 0.0
  %261 = vmatpush1.msra.mxu0 %v95
  %262 = vmatprep.subr.mxu0 0.0
  %263 = vmatpush1.msra.mxu0 %v96
  %264 = vmatprep.subr.mxu0 0.0
  %265 = vmatpush1.msra.mxu0 0.0
  %266 = vmatprep.subr.mxu0 0.0
  %267 = vmatpush1.msra.mxu0 0.0
  %268 = vmatprep.subr.mxu0 0.0
  %269 = vmatpush1.msra.mxu0 0.0
  %270 = vmatprep.subr.mxu0 0.0
  %271 = vmatpush1.msra.mxu0 0.0
  %272 = vmatprep.subr.mxu0 0.0
  %273 = vmatpush1.msra.mxu0 0.0
  %274 = vmatprep.subr.mxu0 0.0
  %275 = vmatpush1.msra.mxu0 0.0
  %276 = vmatprep.subr.mxu0 0.0
  %277 = vmatpush1.msra.mxu0 0.0
  %278 = vmatprep.subr.mxu0 0.0
  %279 = vmatpush1.msra.mxu0 0.0
  %280 = vmatprep.subr.mxu0 0.0
  %281 = vmatpush1.msra.mxu0 0.0
  %282 = vmatprep.subr.mxu0 0.0
  %283 = vmatpush1.msra.mxu0 0.0
  %284 = vmatprep.subr.mxu0 0.0
  %285 = vmatpush1.msra.mxu0 0.0
  %286 = vmatprep.subr.mxu0 0.0
  %287 = vmatpush1.msra.mxu0 0.0
  %288 = vmatprep.subr.mxu0 0.0
  %289 = vmatpush1.msra.mxu0 0.0
  %290 = vmatprep.subr.mxu0 0.0
  %291 = vmatpush1.msra.mxu0 0.0
  %292 = vmatprep.subr.mxu0 0.0
  %293 = vmatpush1.msra.mxu0 0.0
  %294 = vmatprep.subr.mxu0 0.0
  %295 = vmatpush1.msra.mxu0 0.0
  %296 = vmatprep.subr.mxu0 0.0
  %297 = vmatpush1.msra.mxu0 0.0
  %298 = vmatprep.subr.mxu0 0.0
  %299 = vmatpush1.msra.mxu0 0.0
  %300 = vmatprep.subr.mxu0 0.0
  %301 = vmatpush1.msra.mxu0 0.0
  %302 = vmatprep.subr.mxu0 0.0
  %303 = vmatpush1.msra.mxu0 0.0
  %304 = vmatprep.subr.mxu0 0.0
  %305 = vmatpush1.msra.mxu0 0.0
  %306 = vmatprep.subr.mxu0 0.0
  %307 = vmatpush1.msra.mxu0 0.0
  %308 = vmatprep.subr.mxu0 0.0
  %309 = vmatpush1.msra.mxu0 0.0
  %310 = vmatprep.subr.mxu0 0.0
  %311 = vmatpush1.msra.mxu0 0.0
  %312 = vmatprep.mubr.f32.mxu0 0.0
  %313 = vmatmul.mubr.f32.gmra.mrb[0].mxu0 %v106
  %v314 = vpop.f32.mrb[0].mxu0
  %v315 = vadd.f32 %v245, %v314
  %v316 = vpop.f32.mrb[0].mxu0
  %317 = vdwg.mxu0
  %v318 = vld [vmem:[%s3] sm:$0xff]
  %v319 = vld [vmem:[%s3 + $0x8] sm:$0xff]
  %v320 = vld [vmem:[%s3 + $0x10] sm:$0xff]
  %v321 = vld [vmem:[%s3 + $0x18] sm:$0xff]
  %v322 = vld [vmem:[%s3 + $0x20] sm:$0xff]
  %v323 = vld [vmem:[%s3 + $0x28] sm:$0xff]
  %v324 = vld [vmem:[%s3 + $0x30] sm:$0xff]
  %v325 = vld [vmem:[%s3 + $0x38] sm:$0xff]
  %v326 = vld [vmem:[%s3 + $0x40] sm:$0xff]
  %v327 = vld [vmem:[%s3 + $0x48] sm:$0xff]
  %v328 = vld [vmem:[%s3 + $0x50] sm:$0xff]
  %v329 = vld [vmem:[%s3 + $0x58] sm:$0xff]
  %v330 = vld [vmem:[%s3 + $0x60] sm:$0xff]
  %v331 = vld [vmem:[%s3 + $0x68] sm:$0xff]
  %v332 = vld [vmem:[%s3 + $0x70] sm:$0xff]
  %v333 = vld [vmem:[%s3 + $0x78] sm:$0xff]
  %v334 = vld [vmem:[%s4] sm:$0x1]
  %v336 = vlaneseq
  %v337 = vshrl.u32 %v336, 7
  %v338 = vsub.s32 0, %v337
  %v339 = vrot.slane %v334, %v338
  %341 = vmatprep.subr.mxu0 0.0
  %342 = vmatpush1.msra.mxu0 %v318
  %343 = vmatprep.subr.mxu0 0.0
  %344 = vmatpush1.msra.mxu0 %v319
  %345 = vmatprep.subr.mxu0 0.0
  %346 = vmatpush1.msra.mxu0 %v320
  %347 = vmatprep.subr.mxu0 0.0
  %348 = vmatpush1.msra.mxu0 %v321
  %349 = vmatprep.subr.mxu0 0.0
  %350 = vmatpush1.msra.mxu0 %v322
  %351 = vmatprep.subr.mxu0 0.0
  %352 = vmatpush1.msra.mxu0 %v323
  %353 = vmatprep.subr.mxu0 0.0
  %354 = vmatpush1.msra.mxu0 %v324
  %355 = vmatprep.subr.mxu0 0.0
  %356 = vmatpush1.msra.mxu0 %v325
  %357 = vmatprep.subr.mxu0 0.0
  %358 = vmatpush1.msra.mxu0 %v326
  %359 = vmatprep.subr.mxu0 0.0
  %360 = vmatpush1.msra.mxu0 %v327
  %361 = vmatprep.subr.mxu0 0.0
  %362 = vmatpush1.msra.mxu0 %v328
  %363 = vmatprep.subr.mxu0 0.0
  %364 = vmatpush1.msra.mxu0 %v329
  %365 = vmatprep.subr.mxu0 0.0
  %366 = vmatpush1.msra.mxu0 %v330
  %367 = vmatprep.subr.mxu0 0.0
  %368 = vmatpush1.msra.mxu0 %v331
  %369 = vmatprep.subr.mxu0 0.0
  %370 = vmatpush1.msra.mxu0 %v332
  %371 = vmatprep.subr.mxu0 0.0
  %372 = vmatpush1.msra.mxu0 %v333
  %373 = vmatprep.subr.mxu0 0.0
  %374 = vmatpush1.msra.mxu0 0.0
  %375 = vmatprep.subr.mxu0 0.0
  %376 = vmatpush1.msra.mxu0 0.0
  %377 = vmatprep.subr.mxu0 0.0
  %378 = vmatpush1.msra.mxu0 0.0
  %379 = vmatprep.subr.mxu0 0.0
  %380 = vmatpush1.msra.mxu0 0.0
  %381 = vmatprep.subr.mxu0 0.0
  %382 = vmatpush1.msra.mxu0 0.0
  %383 = vmatprep.subr.mxu0 0.0
  %384 = vmatpush1.msra.mxu0 0.0
  %385 = vmatprep.subr.mxu0 0.0
  %386 = vmatpush1.msra.mxu0 0.0
  %387 = vmatprep.subr.mxu0 0.0
  %388 = vmatpush1.msra.mxu0 0.0
  %389 = vmatprep.subr.mxu0 0.0
  %390 = vmatpush1.msra.mxu0 0.0
  %391 = vmatprep.subr.mxu0 0.0
  %392 = vmatpush1.msra.mxu0 0.0
  %393 = vmatprep.subr.mxu0 0.0
  %394 = vmatpush1.msra.mxu0 0.0
  %395 = vmatprep.subr.mxu0 0.0
  %396 = vmatpush1.msra.mxu0 0.0
  %397 = vmatprep.subr.mxu0 0.0
  %398 = vmatpush1.msra.mxu0 0.0
  %399 = vmatprep.subr.mxu0 0.0
  %400 = vmatpush1.msra.mxu0 0.0
  %401 = vmatprep.subr.mxu0 0.0
  %402 = vmatpush1.msra.mxu0 0.0
  %403 = vmatprep.subr.mxu0 0.0
  %404 = vmatpush1.msra.mxu0 0.0
  %405 = vmatprep.mubr.f32.mxu0 0.0
  %406 = vmatmul.mubr.f32.gmra.mrb[0].mxu0 %v315
  %v407 = vpop.f32.mrb[0].mxu0
  %v408 = vadd.f32 %v339, %v407
  %v409 = vpop.f32.mrb[0].mxu0
  %410 = vdwg.mxu0
  %v411 = vmax.f32 %v408, 0.0
  %412 = vst [vmem:[%s5] sm:$0xff] %v411
  // Predicated region
  $region22: #{_lambda_.7} parent=0 // pred_check
    _
  $region23: #{_lambda_.7} parent=0 // pred_check_branch
    %414 = sbr.rel (0) target = $region25
  $region24: #{_lambda_.7} parent=0 // pred_region
    _
  $region25: #{_lambda_.7} parent=0 // pred_fallthru
    _
  // Predicated region
  $region26: #{_lambda_.7} parent=0 // pred_check
    _
  $region27: #{_lambda_.7} parent=0 // pred_check_branch
    %416 = sbr.rel (0) target = $region29
  $region28: #{_lambda_.7} parent=0 // pred_region
    _
  $region29: #{_lambda_.7} parent=0 // pred_fallthru
    _

</llo_original>
